<compile_context>
chip_gen: v5e
topology: v5e:2x2
jax: 0.10.0
libtpu: 0.0.40
codegen_flags: <defaults>
</compile_context>

<pallas_src>
import functools

import numpy as np

import jax
import jax.numpy as jnp
from jax import lax
from jax.experimental import pallas as pl
from jax.experimental.pallas import tpu as pltpu


# ----------------------------------------------------------------------------
# Fused kernel: conv1 -> conv2 -> conv3 -> conv4(+sigmoid), all in VMEM.
# ----------------------------------------------------------------------------
def _kind_adjust_kernel(ratio_ref, x_ref, mask_ref, rmap_ref, w1b1_ref,
                        w_ref, b_ref, o_ref, *, W, S):
    # Tap offsets (dh, dw) in (kh, kw) row-major order -> flattened lane offset.
    offs = [dh * W + dw for dh in (-1, 0, 1) for dw in (-1, 0, 1)]

    def leaky(y):
        return jnp.where(y > 0, y, 0.2 * y)

    # Per-tap boundary masks: reproduce zero "same" padding AND zero the
    # roll-wrap across image boundaries in the lane-batched layout.
    mask_rows = [mask_ref[pl.ds(t, 1), :] for t in range(9)]          # (1, S)
    # Hoisted sublane broadcasts, built once and reused by conv2..conv4.
    masks32 = [None if off == 0 else jnp.broadcast_to(mask_rows[t], (32, S))
               for t, off in enumerate(offs)]

    # ---- layer 1: Cin = 2 = (image, constant-ratio channel) ----------------
    # Ratio channel contribution is ratio * ratio_map (precomputed from the
    # ratio-columns of W1 and the masks); image channel is 9 VPU outer
    # products (Cin == 1, so no MXU / patch matrix needed).
    ratio = ratio_ref[0]                                              # SMEM scalar
    x_row = x_ref[0]                                                  # (1, S)
    w1b = w1b1_ref[...]                                               # (32, 10) = [W1_img | b1]
    acc = ratio * rmap_ref[...] + w1b[:, 9:10]                        # (32, S)
    for t, off in enumerate(offs):
        if off == 0:
            tap = x_row
        else:
            tap = pltpu.roll(x_row, shift=(-off) % S, axis=1) * mask_rows[t]
        acc = acc + w1b[:, t:t + 1] * tap                             # (32,1)*(1,S) outer product
    h = leaky(acc)                                                    # (32, S)

    # ---- layers 2..4: 9 accumulated (32,32)@(32,S) dots (no im2col concat) --
    def conv(a, layer):                                               # a: (32, S)
        acc = jnp.dot(w_ref[layer * 9 + 4], a,                        # centre tap: no roll/mask
                      preferred_element_type=jnp.float32)
        for t, off in enumerate(offs):
            if off == 0:
                continue
            tap = pltpu.roll(a, shift=(-off) % S, axis=1) * masks32[t]
            acc = acc + jnp.dot(w_ref[layer * 9 + t], tap,
                                preferred_element_type=jnp.float32)
        return leaky(acc + b_ref[layer])

    h = conv(h, 0)                                                    # conv2: (32, S)
    h = conv(h, 1)                                                    # conv3: (32, S)
    h = conv(h, 2)                                                    # conv4 (Cout padded to 32)
    h4 = h[0:1, :]                                                    # only row 0 is real

    # Exact sigmoid (last layer is ~2 vregs; approx reciprocal buys nothing).
    o_ref[0] = (1.0 / (1.0 + jnp.exp(-h4))).astype(o_ref.dtype)


# ----------------------------------------------------------------------------
# Host-side helpers
# ----------------------------------------------------------------------------
def _tap_masks(H, W):
    """(9, H*W) f32 per-tap validity masks (reproduce zero 'same' padding)."""
    hh, ww = np.meshgrid(np.arange(H), np.arange(W), indexing="ij")
    rows = []
    for dh in (-1, 0, 1):
        for dw in (-1, 0, 1):
            valid = ((hh + dh >= 0) & (hh + dh < H) &
                     (ww + dw >= 0) & (ww + dw < W))
            rows.append(valid.reshape(H * W).astype(np.float32))
    return np.stack(rows, axis=0)


def _num_parallel_steps(N):
    """v7x: 2 TensorCores -> 2 big parallel steps; 1-TC chips: 1 fused step."""
    try:
        kind = jax.devices()[0].device_kind.lower()
        tcs = 2 if ("v7" in kind or "7x" in kind) else 1
    except Exception:
        tcs = 1
    g = min(N, tcs)
    while g > 1 and N % g != 0:
        g -= 1
    return max(g, 1)


def _pack_taps(w_hwio, cout_pad=32):
    """HWIO (3,3,Cin,Cout) -> (9, cout_pad, Cin); tap-major, rows padded."""
    kh, kw, cin, cout = w_hwio.shape
    wt = jnp.transpose(w_hwio, (0, 1, 3, 2)).reshape(kh * kw, cout, cin)
    if cout < cout_pad:
        wt = jnp.pad(wt, ((0, 0), (0, cout_pad - cout), (0, 0)))
    return wt


# ----------------------------------------------------------------------------
# Wrapper
# ----------------------------------------------------------------------------
def illumination_adjust_net(x_nchw, x_ratio, params, grid_steps=None):
    N, C, H, W = x_nchw.shape
    assert C == 1, "IlluminationAdjustNet expects a 1-channel illumination map"
    HW = H * W
    G = _num_parallel_steps(N) if grid_steps is None else grid_steps
    assert N % G == 0, "batch must divide evenly over grid steps"
    B = N // G
    S = B * HW                      # lanes per grid step (B images lane-packed)

    (w1, b1), (w2, b2), (w3, b3), (w4, b4) = params

    # ---- layer 1: split image / ratio channels ------------------------------
    w1_t = jnp.transpose(w1, (3, 0, 1, 2)).reshape(32, 9, 2)   # (Cout, tap, Cin)
    w1_img, w1_ratio = w1_t[:, :, 0], w1_t[:, :, 1]            # (32, 9) each
    w1b1 = jnp.concatenate([w1_img, b1.reshape(32, 1)], axis=1)        # (32, 10)

    # ---- layers 2..4: per-tap weights + biases, packed ----------------------
    w234 = jnp.concatenate([_pack_taps(w2), _pack_taps(w3), _pack_taps(w4)],
                           axis=0)                                      # (27, 32, 32)
    b234 = jnp.stack([b2.reshape(32, 1), b3.reshape(32, 1),
                      jnp.pad(b4.reshape(1, 1), ((0, 31), (0, 0)))],
                     axis=0)                                            # (3, 32, 1)

    # ---- constants: masks (tiled per image) and the ratio map ---------------
    masks = jnp.asarray(np.tile(_tap_masks(H, W), (1, B)))              # (9, S)
    ratio_map = jnp.dot(w1_ratio, masks,
                        precision=lax.Precision.HIGHEST)                # (32, S)

    ratio_arr = jnp.asarray(x_ratio, jnp.float32).reshape(1)            # SMEM scalar
    x_packed = x_nchw.astype(jnp.float32).reshape(N, HW).reshape(G, 1, S)

    kernel = functools.partial(_kind_adjust_kernel, W=W, S=S)

    out = pl.pallas_call(
        kernel,
        out_shape=jax.ShapeDtypeStruct((G, 1, S), jnp.float32),
        grid=(G,),
        in_specs=[
            pl.BlockSpec(memory_space=pltpu.MemorySpace.SMEM),   # ratio scalar
            pl.BlockSpec((1, 1, S), lambda g: (g, 0, 0)),        # images, lane-packed
            pl.BlockSpec((9, S), lambda g: (0, 0)),              # tap masks
            pl.BlockSpec((32, S), lambda g: (0, 0)),             # ratio map
            pl.BlockSpec((32, 10), lambda g: (0, 0)),            # [W1_img | b1]
            pl.BlockSpec((27, 32, 32), lambda g: (0, 0, 0)),     # per-tap W2..W4
            pl.BlockSpec((3, 32, 1), lambda g: (0, 0, 0)),       # b2..b4
        ],
        out_specs=pl.BlockSpec((1, 1, S), lambda g: (g, 0, 0)),  # lane-dense output
        compiler_params=pltpu.CompilerParams(
            dimension_semantics=("parallel",)),
    )(ratio_arr, x_packed, masks, ratio_map, w1b1, w234, b234)

    return out.reshape(N, 1, H, W)


# ----------------------------------------------------------------------------
# Parameter init (PyTorch Conv2d-like uniform(-1/sqrt(fan_in), 1/sqrt(fan_in)))
# ----------------------------------------------------------------------------
def init_params(key):
    specs = [(2, 32), (32, 32), (32, 32), (32, 1)]
    params = []
    for cin, cout in specs:
        key, kw, kb = jax.random.split(key, 3)
        bound = 1.0 / jnp.sqrt(cin * 9)
        w = jax.random.uniform(kw, (3, 3, cin, cout), jnp.float32, -bound, bound)
        b = jax.random.uniform(kb, (cout,), jnp.float32, -bound, bound)
        params.append((w, b))
    return params


# ----------------------------------------------------------------------------
# Pure-JAX reference (for correctness check)
# ----------------------------------------------------------------------------
def _ref_forward(x_nchw, x_ratio, params):
    ratio = jnp.ones_like(x_nchw) * x_ratio
    h = jnp.concatenate([x_nchw, ratio], axis=1)
    for i, (w, b) in enumerate(params):
        h = lax.conv_general_dilated(
            h, w, (1, 1), ((1, 1), (1, 1)),
            dimension_numbers=("NCHW", "HWIO", "NCHW"),
            precision=lax.Precision.HIGHEST,
        ) + b.reshape(1, -1, 1, 1)
        h = jnp.where(h > 0, h, 0.2 * h)
        if i == 3:
            h = 1.0 / (1.0 + jnp.exp(-h))
    return h


if __name__ == "__main__":
    key = jax.random.PRNGKey(0)
    key, kx = jax.random.split(key)

    N, C, H, W = 2, 1, 16, 16
    x = jax.random.uniform(kx, (N, C, H, W), jnp.float32)
    x_ratio = jnp.float32(0.5)
    params = init_params(key)

    out = jax.jit(illumination_adjust_net)(x, x_ratio, params)
    out = jax.block_until_ready(out)

    ref = _ref_forward(x, x_ratio, params)
    assert out.shape == (N, 1, H, W)
    # Exact sigmoid now; slack only covers possible MXU pass-count differences
    # between the Pallas matmuls and the XLA reference conv.
    assert jnp.allclose(out, ref, atol=2e-3, rtol=2e-3)

    print("KERNEL_OK")
</pallas_src>

<mosaic_0001>
module attributes {stable_mosaic.version = 11 : i64} {
  func.func @_kind_adjust_kernel(%arg0: i32, %arg1: memref<1xf32, #tpu.memory_space<smem>>, %arg2: memref<1x1x512xf32, #tpu.memory_space<vmem>>, %arg3: memref<9x512xf32, #tpu.memory_space<vmem>>, %arg4: memref<32x512xf32, #tpu.memory_space<vmem>>, %arg5: memref<32x10xf32, #tpu.memory_space<vmem>>, %arg6: memref<27x32x32xf32, #tpu.memory_space<vmem>>, %arg7: memref<3x32x1xf32, #tpu.memory_space<vmem>>, %arg8: memref<1x1x512xf32, #tpu.memory_space<vmem>>) attributes {dimension_semantics = [#tpu.dimension_semantics<parallel>], iteration_bounds = array<i64: 1>, scalar_prefetch = 0 : i64, scratch_operands = 0 : i64, tpu.core_type = #tpu.core_type<tc>, window_params = [{transform_indices = @transform_0, window_bounds = array<i64: 1>}, {transform_indices = @transform_1, window_bounds = array<i64: 1, 1, 512>}, {pipeline_mode = #tpu.pipeline_mode<synchronous>, transform_indices = @transform_2, window_bounds = array<i64: 9, 512>}, {pipeline_mode = #tpu.pipeline_mode<synchronous>, transform_indices = @transform_3, window_bounds = array<i64: 32, 512>}, {pipeline_mode = #tpu.pipeline_mode<synchronous>, transform_indices = @transform_4, window_bounds = array<i64: 32, 10>}, {pipeline_mode = #tpu.pipeline_mode<synchronous>, transform_indices = @transform_5, window_bounds = array<i64: 27, 32, 32>}, {pipeline_mode = #tpu.pipeline_mode<synchronous>, transform_indices = @transform_6, window_bounds = array<i64: 3, 32, 1>}, {transform_indices = @transform_7, window_bounds = array<i64: 1, 1, 512>}]} {
    %c0 = arith.constant 0 : index
    %c0_0 = arith.constant 0 : index
    %0 = vector.load %arg3[%c0, %c0_0] : memref<9x512xf32, #tpu.memory_space<vmem>>, vector<1x512xf32>
    %c1 = arith.constant 1 : index
    %c0_1 = arith.constant 0 : index
    %1 = vector.load %arg3[%c1, %c0_1] : memref<9x512xf32, #tpu.memory_space<vmem>>, vector<1x512xf32>
    %c2 = arith.constant 2 : index
    %c0_2 = arith.constant 0 : index
    %2 = vector.load %arg3[%c2, %c0_2] : memref<9x512xf32, #tpu.memory_space<vmem>>, vector<1x512xf32>
    %c3 = arith.constant 3 : index
    %c0_3 = arith.constant 0 : index
    %3 = vector.load %arg3[%c3, %c0_3] : memref<9x512xf32, #tpu.memory_space<vmem>>, vector<1x512xf32>
    %c5 = arith.constant 5 : index
    %c0_4 = arith.constant 0 : index
    %4 = vector.load %arg3[%c5, %c0_4] : memref<9x512xf32, #tpu.memory_space<vmem>>, vector<1x512xf32>
    %c6 = arith.constant 6 : index
    %c0_5 = arith.constant 0 : index
    %5 = vector.load %arg3[%c6, %c0_5] : memref<9x512xf32, #tpu.memory_space<vmem>>, vector<1x512xf32>
    %c7 = arith.constant 7 : index
    %c0_6 = arith.constant 0 : index
    %6 = vector.load %arg3[%c7, %c0_6] : memref<9x512xf32, #tpu.memory_space<vmem>>, vector<1x512xf32>
    %c8 = arith.constant 8 : index
    %c0_7 = arith.constant 0 : index
    %7 = vector.load %arg3[%c8, %c0_7] : memref<9x512xf32, #tpu.memory_space<vmem>>, vector<1x512xf32>
    %8 = vector.shape_cast %0 : vector<1x512xf32> to vector<1x512xf32>
    %9 = vector.broadcast %8 : vector<1x512xf32> to vector<32x512xf32>
    %10 = vector.shape_cast %1 : vector<1x512xf32> to vector<1x512xf32>
    %11 = vector.broadcast %10 : vector<1x512xf32> to vector<32x512xf32>
    %12 = vector.shape_cast %2 : vector<1x512xf32> to vector<1x512xf32>
    %13 = vector.broadcast %12 : vector<1x512xf32> to vector<32x512xf32>
    %14 = vector.shape_cast %3 : vector<1x512xf32> to vector<1x512xf32>
    %15 = vector.broadcast %14 : vector<1x512xf32> to vector<32x512xf32>
    %16 = vector.shape_cast %4 : vector<1x512xf32> to vector<1x512xf32>
    %17 = vector.broadcast %16 : vector<1x512xf32> to vector<32x512xf32>
    %18 = vector.shape_cast %5 : vector<1x512xf32> to vector<1x512xf32>
    %19 = vector.broadcast %18 : vector<1x512xf32> to vector<32x512xf32>
    %20 = vector.shape_cast %6 : vector<1x512xf32> to vector<1x512xf32>
    %21 = vector.broadcast %20 : vector<1x512xf32> to vector<32x512xf32>
    %22 = vector.shape_cast %7 : vector<1x512xf32> to vector<1x512xf32>
    %23 = vector.broadcast %22 : vector<1x512xf32> to vector<32x512xf32>
    %c0_8 = arith.constant 0 : index
    %24 = memref.load %arg1[%c0_8] : memref<1xf32, #tpu.memory_space<smem>>
    %c0_9 = arith.constant 0 : index
    %c0_10 = arith.constant 0 : index
    %c0_11 = arith.constant 0 : index
    %25 = vector.load %arg2[%c0_9, %c0_10, %c0_11] : memref<1x1x512xf32, #tpu.memory_space<vmem>>, vector<1x1x512xf32>
    %26 = vector.shape_cast %25 : vector<1x1x512xf32> to vector<1x512xf32>
    %c0_12 = arith.constant 0 : index
    %c0_13 = arith.constant 0 : index
    %27 = vector.load %arg5[%c0_12, %c0_13] : memref<32x10xf32, #tpu.memory_space<vmem>>, vector<32x10xf32>
    %c0_14 = arith.constant 0 : index
    %c0_15 = arith.constant 0 : index
    %28 = vector.load %arg4[%c0_14, %c0_15] : memref<32x512xf32, #tpu.memory_space<vmem>>, vector<32x512xf32>
    %29 = vector.broadcast %24 : f32 to vector<32x512xf32>
    %30 = arith.mulf %29, %28 : vector<32x512xf32>
    %31 = vector.extract_strided_slice %27 {offsets = [0, 9], sizes = [32, 1], strides = [1, 1]} : vector<32x10xf32> to vector<32x1xf32>
    %32 = vector.broadcast %31 : vector<32x1xf32> to vector<32x512xf32>
    %33 = arith.addf %30, %32 : vector<32x512xf32>
    %c17_i32 = arith.constant 17 : i32
    %34 = tpu.dynamic_rotate %26 by %c17_i32 dim 1 : vector<1x512xf32>, i32 -> vector<1x512xf32>
    %35 = arith.mulf %34, %0 : vector<1x512xf32>
    %36 = vector.extract_strided_slice %27 {offsets = [0, 0], sizes = [32, 1], strides = [1, 1]} : vector<32x10xf32> to vector<32x1xf32>
    %37 = vector.broadcast %36 : vector<32x1xf32> to vector<32x512xf32>
    %38 = vector.broadcast %35 : vector<1x512xf32> to vector<32x512xf32>
    %39 = arith.mulf %37, %38 : vector<32x512xf32>
    %40 = arith.addf %33, %39 : vector<32x512xf32>
    %c16_i32 = arith.constant 16 : i32
    %41 = tpu.dynamic_rotate %26 by %c16_i32 dim 1 : vector<1x512xf32>, i32 -> vector<1x512xf32>
    %42 = arith.mulf %41, %1 : vector<1x512xf32>
    %43 = vector.extract_strided_slice %27 {offsets = [0, 1], sizes = [32, 1], strides = [1, 1]} : vector<32x10xf32> to vector<32x1xf32>
    %44 = vector.broadcast %43 : vector<32x1xf32> to vector<32x512xf32>
    %45 = vector.broadcast %42 : vector<1x512xf32> to vector<32x512xf32>
    %46 = arith.mulf %44, %45 : vector<32x512xf32>
    %47 = arith.addf %40, %46 : vector<32x512xf32>
    %c15_i32 = arith.constant 15 : i32
    %48 = tpu.dynamic_rotate %26 by %c15_i32 dim 1 : vector<1x512xf32>, i32 -> vector<1x512xf32>
    %49 = arith.mulf %48, %2 : vector<1x512xf32>
    %50 = vector.extract_strided_slice %27 {offsets = [0, 2], sizes = [32, 1], strides = [1, 1]} : vector<32x10xf32> to vector<32x1xf32>
    %51 = vector.broadcast %50 : vector<32x1xf32> to vector<32x512xf32>
    %52 = vector.broadcast %49 : vector<1x512xf32> to vector<32x512xf32>
    %53 = arith.mulf %51, %52 : vector<32x512xf32>
    %54 = arith.addf %47, %53 : vector<32x512xf32>
    %c1_i32 = arith.constant 1 : i32
    %55 = tpu.dynamic_rotate %26 by %c1_i32 dim 1 : vector<1x512xf32>, i32 -> vector<1x512xf32>
    %56 = arith.mulf %55, %3 : vector<1x512xf32>
    %57 = vector.extract_strided_slice %27 {offsets = [0, 3], sizes = [32, 1], strides = [1, 1]} : vector<32x10xf32> to vector<32x1xf32>
    %58 = vector.broadcast %57 : vector<32x1xf32> to vector<32x512xf32>
    %59 = vector.broadcast %56 : vector<1x512xf32> to vector<32x512xf32>
    %60 = arith.mulf %58, %59 : vector<32x512xf32>
    %61 = arith.addf %54, %60 : vector<32x512xf32>
    %62 = vector.extract_strided_slice %27 {offsets = [0, 4], sizes = [32, 1], strides = [1, 1]} : vector<32x10xf32> to vector<32x1xf32>
    %63 = vector.broadcast %62 : vector<32x1xf32> to vector<32x512xf32>
    %64 = vector.broadcast %26 : vector<1x512xf32> to vector<32x512xf32>
    %65 = arith.mulf %63, %64 : vector<32x512xf32>
    %66 = arith.addf %61, %65 : vector<32x512xf32>
    %c511_i32 = arith.constant 511 : i32
    %67 = tpu.dynamic_rotate %26 by %c511_i32 dim 1 : vector<1x512xf32>, i32 -> vector<1x512xf32>
    %68 = arith.mulf %67, %4 : vector<1x512xf32>
    %69 = vector.extract_strided_slice %27 {offsets = [0, 5], sizes = [32, 1], strides = [1, 1]} : vector<32x10xf32> to vector<32x1xf32>
    %70 = vector.broadcast %69 : vector<32x1xf32> to vector<32x512xf32>
    %71 = vector.broadcast %68 : vector<1x512xf32> to vector<32x512xf32>
    %72 = arith.mulf %70, %71 : vector<32x512xf32>
    %73 = arith.addf %66, %72 : vector<32x512xf32>
    %c497_i32 = arith.constant 497 : i32
    %74 = tpu.dynamic_rotate %26 by %c497_i32 dim 1 : vector<1x512xf32>, i32 -> vector<1x512xf32>
    %75 = arith.mulf %74, %5 : vector<1x512xf32>
    %76 = vector.extract_strided_slice %27 {offsets = [0, 6], sizes = [32, 1], strides = [1, 1]} : vector<32x10xf32> to vector<32x1xf32>
    %77 = vector.broadcast %76 : vector<32x1xf32> to vector<32x512xf32>
    %78 = vector.broadcast %75 : vector<1x512xf32> to vector<32x512xf32>
    %79 = arith.mulf %77, %78 : vector<32x512xf32>
    %80 = arith.addf %73, %79 : vector<32x512xf32>
    %c496_i32 = arith.constant 496 : i32
    %81 = tpu.dynamic_rotate %26 by %c496_i32 dim 1 : vector<1x512xf32>, i32 -> vector<1x512xf32>
    %82 = arith.mulf %81, %6 : vector<1x512xf32>
    %83 = vector.extract_strided_slice %27 {offsets = [0, 7], sizes = [32, 1], strides = [1, 1]} : vector<32x10xf32> to vector<32x1xf32>
    %84 = vector.broadcast %83 : vector<32x1xf32> to vector<32x512xf32>
    %85 = vector.broadcast %82 : vector<1x512xf32> to vector<32x512xf32>
    %86 = arith.mulf %84, %85 : vector<32x512xf32>
    %87 = arith.addf %80, %86 : vector<32x512xf32>
    %c495_i32 = arith.constant 495 : i32
    %88 = tpu.dynamic_rotate %26 by %c495_i32 dim 1 : vector<1x512xf32>, i32 -> vector<1x512xf32>
    %89 = arith.mulf %88, %7 : vector<1x512xf32>
    %90 = vector.extract_strided_slice %27 {offsets = [0, 8], sizes = [32, 1], strides = [1, 1]} : vector<32x10xf32> to vector<32x1xf32>
    %91 = vector.broadcast %90 : vector<32x1xf32> to vector<32x512xf32>
    %92 = vector.broadcast %89 : vector<1x512xf32> to vector<32x512xf32>
    %93 = arith.mulf %91, %92 : vector<32x512xf32>
    %94 = arith.addf %87, %93 : vector<32x512xf32>
    %cst = arith.constant 0.000000e+00 : f32
    %95 = vector.broadcast %cst : f32 to vector<32x512xf32>
    %96 = arith.cmpf ogt, %94, %95 : vector<32x512xf32>
    %cst_16 = arith.constant 2.000000e-01 : f32
    %97 = vector.broadcast %cst_16 : f32 to vector<32x512xf32>
    %98 = arith.mulf %97, %94 : vector<32x512xf32>
    %99 = arith.select %96, %94, %98 : vector<32x512xi1>, vector<32x512xf32>
    %c4 = arith.constant 4 : index
    %c0_17 = arith.constant 0 : index
    %c0_18 = arith.constant 0 : index
    %100 = vector.load %arg6[%c4, %c0_17, %c0_18] : memref<27x32x32xf32, #tpu.memory_space<vmem>>, vector<1x32x32xf32>
    %101 = vector.shape_cast %100 : vector<1x32x32xf32> to vector<32x32xf32>
    %cst_19 = arith.constant dense<0.000000e+00> : vector<32x512xf32>
    %102 = tpu.matmul %101, %99, %cst_19 {dimension_numbers = #tpu.dot_dimension_numbers<[1], [0], [0], [1], [0, 0, 1, 1], [], []>} : vector<32x32xf32>, vector<32x512xf32>, vector<32x512xf32> -> vector<32x512xf32>
    %c17_i32_20 = arith.constant 17 : i32
    %103 = tpu.dynamic_rotate %99 by %c17_i32_20 dim 1 : vector<32x512xf32>, i32 -> vector<32x512xf32>
    %104 = arith.mulf %103, %9 : vector<32x512xf32>
    %c0_21 = arith.constant 0 : index
    %c0_22 = arith.constant 0 : index
    %c0_23 = arith.constant 0 : index
    %105 = vector.load %arg6[%c0_21, %c0_22, %c0_23] : memref<27x32x32xf32, #tpu.memory_space<vmem>>, vector<1x32x32xf32>
    %106 = vector.shape_cast %105 : vector<1x32x32xf32> to vector<32x32xf32>
    %cst_24 = arith.constant dense<0.000000e+00> : vector<32x512xf32>
    %107 = tpu.matmul %106, %104, %cst_24 {dimension_numbers = #tpu.dot_dimension_numbers<[1], [0], [0], [1], [0, 0, 1, 1], [], []>} : vector<32x32xf32>, vector<32x512xf32>, vector<32x512xf32> -> vector<32x512xf32>
    %108 = arith.addf %102, %107 : vector<32x512xf32>
    %c16_i32_25 = arith.constant 16 : i32
    %109 = tpu.dynamic_rotate %99 by %c16_i32_25 dim 1 : vector<32x512xf32>, i32 -> vector<32x512xf32>
    %110 = arith.mulf %109, %11 : vector<32x512xf32>
    %c1_26 = arith.constant 1 : index
    %c0_27 = arith.constant 0 : index
    %c0_28 = arith.constant 0 : index
    %111 = vector.load %arg6[%c1_26, %c0_27, %c0_28] : memref<27x32x32xf32, #tpu.memory_space<vmem>>, vector<1x32x32xf32>
    %112 = vector.shape_cast %111 : vector<1x32x32xf32> to vector<32x32xf32>
    %cst_29 = arith.constant dense<0.000000e+00> : vector<32x512xf32>
    %113 = tpu.matmul %112, %110, %cst_29 {dimension_numbers = #tpu.dot_dimension_numbers<[1], [0], [0], [1], [0, 0, 1, 1], [], []>} : vector<32x32xf32>, vector<32x512xf32>, vector<32x512xf32> -> vector<32x512xf32>
    %114 = arith.addf %108, %113 : vector<32x512xf32>
    %c15_i32_30 = arith.constant 15 : i32
    %115 = tpu.dynamic_rotate %99 by %c15_i32_30 dim 1 : vector<32x512xf32>, i32 -> vector<32x512xf32>
    %116 = arith.mulf %115, %13 : vector<32x512xf32>
    %c2_31 = arith.constant 2 : index
    %c0_32 = arith.constant 0 : index
    %c0_33 = arith.constant 0 : index
    %117 = vector.load %arg6[%c2_31, %c0_32, %c0_33] : memref<27x32x32xf32, #tpu.memory_space<vmem>>, vector<1x32x32xf32>
    %118 = vector.shape_cast %117 : vector<1x32x32xf32> to vector<32x32xf32>
    %cst_34 = arith.constant dense<0.000000e+00> : vector<32x512xf32>
    %119 = tpu.matmul %118, %116, %cst_34 {dimension_numbers = #tpu.dot_dimension_numbers<[1], [0], [0], [1], [0, 0, 1, 1], [], []>} : vector<32x32xf32>, vector<32x512xf32>, vector<32x512xf32> -> vector<32x512xf32>
    %120 = arith.addf %114, %119 : vector<32x512xf32>
    %c1_i32_35 = arith.constant 1 : i32
    %121 = tpu.dynamic_rotate %99 by %c1_i32_35 dim 1 : vector<32x512xf32>, i32 -> vector<32x512xf32>
    %122 = arith.mulf %121, %15 : vector<32x512xf32>
    %c3_36 = arith.constant 3 : index
    %c0_37 = arith.constant 0 : index
    %c0_38 = arith.constant 0 : index
    %123 = vector.load %arg6[%c3_36, %c0_37, %c0_38] : memref<27x32x32xf32, #tpu.memory_space<vmem>>, vector<1x32x32xf32>
    %124 = vector.shape_cast %123 : vector<1x32x32xf32> to vector<32x32xf32>
    %cst_39 = arith.constant dense<0.000000e+00> : vector<32x512xf32>
    %125 = tpu.matmul %124, %122, %cst_39 {dimension_numbers = #tpu.dot_dimension_numbers<[1], [0], [0], [1], [0, 0, 1, 1], [], []>} : vector<32x32xf32>, vector<32x512xf32>, vector<32x512xf32> -> vector<32x512xf32>
    %126 = arith.addf %120, %125 : vector<32x512xf32>
    %c511_i32_40 = arith.constant 511 : i32
    %127 = tpu.dynamic_rotate %99 by %c511_i32_40 dim 1 : vector<32x512xf32>, i32 -> vector<32x512xf32>
    %128 = arith.mulf %127, %17 : vector<32x512xf32>
    %c5_41 = arith.constant 5 : index
    %c0_42 = arith.constant 0 : index
    %c0_43 = arith.constant 0 : index
    %129 = vector.load %arg6[%c5_41, %c0_42, %c0_43] : memref<27x32x32xf32, #tpu.memory_space<vmem>>, vector<1x32x32xf32>
    %130 = vector.shape_cast %129 : vector<1x32x32xf32> to vector<32x32xf32>
    %cst_44 = arith.constant dense<0.000000e+00> : vector<32x512xf32>
    %131 = tpu.matmul %130, %128, %cst_44 {dimension_numbers = #tpu.dot_dimension_numbers<[1], [0], [0], [1], [0, 0, 1, 1], [], []>} : vector<32x32xf32>, vector<32x512xf32>, vector<32x512xf32> -> vector<32x512xf32>
    %132 = arith.addf %126, %131 : vector<32x512xf32>
    %c497_i32_45 = arith.constant 497 : i32
    %133 = tpu.dynamic_rotate %99 by %c497_i32_45 dim 1 : vector<32x512xf32>, i32 -> vector<32x512xf32>
    %134 = arith.mulf %133, %19 : vector<32x512xf32>
    %c6_46 = arith.constant 6 : index
    %c0_47 = arith.constant 0 : index
    %c0_48 = arith.constant 0 : index
    %135 = vector.load %arg6[%c6_46, %c0_47, %c0_48] : memref<27x32x32xf32, #tpu.memory_space<vmem>>, vector<1x32x32xf32>
    %136 = vector.shape_cast %135 : vector<1x32x32xf32> to vector<32x32xf32>
    %cst_49 = arith.constant dense<0.000000e+00> : vector<32x512xf32>
    %137 = tpu.matmul %136, %134, %cst_49 {dimension_numbers = #tpu.dot_dimension_numbers<[1], [0], [0], [1], [0, 0, 1, 1], [], []>} : vector<32x32xf32>, vector<32x512xf32>, vector<32x512xf32> -> vector<32x512xf32>
    %138 = arith.addf %132, %137 : vector<32x512xf32>
    %c496_i32_50 = arith.constant 496 : i32
    %139 = tpu.dynamic_rotate %99 by %c496_i32_50 dim 1 : vector<32x512xf32>, i32 -> vector<32x512xf32>
    %140 = arith.mulf %139, %21 : vector<32x512xf32>
    %c7_51 = arith.constant 7 : index
    %c0_52 = arith.constant 0 : index
    %c0_53 = arith.constant 0 : index
    %141 = vector.load %arg6[%c7_51, %c0_52, %c0_53] : memref<27x32x32xf32, #tpu.memory_space<vmem>>, vector<1x32x32xf32>
    %142 = vector.shape_cast %141 : vector<1x32x32xf32> to vector<32x32xf32>
    %cst_54 = arith.constant dense<0.000000e+00> : vector<32x512xf32>
    %143 = tpu.matmul %142, %140, %cst_54 {dimension_numbers = #tpu.dot_dimension_numbers<[1], [0], [0], [1], [0, 0, 1, 1], [], []>} : vector<32x32xf32>, vector<32x512xf32>, vector<32x512xf32> -> vector<32x512xf32>
    %144 = arith.addf %138, %143 : vector<32x512xf32>
    %c495_i32_55 = arith.constant 495 : i32
    %145 = tpu.dynamic_rotate %99 by %c495_i32_55 dim 1 : vector<32x512xf32>, i32 -> vector<32x512xf32>
    %146 = arith.mulf %145, %23 : vector<32x512xf32>
    %c8_56 = arith.constant 8 : index
    %c0_57 = arith.constant 0 : index
    %c0_58 = arith.constant 0 : index
    %147 = vector.load %arg6[%c8_56, %c0_57, %c0_58] : memref<27x32x32xf32, #tpu.memory_space<vmem>>, vector<1x32x32xf32>
    %148 = vector.shape_cast %147 : vector<1x32x32xf32> to vector<32x32xf32>
    %cst_59 = arith.constant dense<0.000000e+00> : vector<32x512xf32>
    %149 = tpu.matmul %148, %146, %cst_59 {dimension_numbers = #tpu.dot_dimension_numbers<[1], [0], [0], [1], [0, 0, 1, 1], [], []>} : vector<32x32xf32>, vector<32x512xf32>, vector<32x512xf32> -> vector<32x512xf32>
    %150 = arith.addf %144, %149 : vector<32x512xf32>
    %c0_60 = arith.constant 0 : index
    %c0_61 = arith.constant 0 : index
    %c0_62 = arith.constant 0 : index
    %151 = vector.load %arg7[%c0_60, %c0_61, %c0_62] : memref<3x32x1xf32, #tpu.memory_space<vmem>>, vector<1x32x1xf32>
    %152 = vector.shape_cast %151 : vector<1x32x1xf32> to vector<32x1xf32>
    %153 = vector.broadcast %152 : vector<32x1xf32> to vector<32x512xf32>
    %154 = arith.addf %150, %153 : vector<32x512xf32>
    %cst_63 = arith.constant 0.000000e+00 : f32
    %155 = vector.broadcast %cst_63 : f32 to vector<32x512xf32>
    %156 = arith.cmpf ogt, %154, %155 : vector<32x512xf32>
    %cst_64 = arith.constant 2.000000e-01 : f32
    %157 = vector.broadcast %cst_64 : f32 to vector<32x512xf32>
    %158 = arith.mulf %157, %154 : vector<32x512xf32>
    %159 = arith.select %156, %154, %158 : vector<32x512xi1>, vector<32x512xf32>
    %c13 = arith.constant 13 : index
    %c0_65 = arith.constant 0 : index
    %c0_66 = arith.constant 0 : index
    %160 = vector.load %arg6[%c13, %c0_65, %c0_66] : memref<27x32x32xf32, #tpu.memory_space<vmem>>, vector<1x32x32xf32>
    %161 = vector.shape_cast %160 : vector<1x32x32xf32> to vector<32x32xf32>
    %cst_67 = arith.constant dense<0.000000e+00> : vector<32x512xf32>
    %162 = tpu.matmul %161, %159, %cst_67 {dimension_numbers = #tpu.dot_dimension_numbers<[1], [0], [0], [1], [0, 0, 1, 1], [], []>} : vector<32x32xf32>, vector<32x512xf32>, vector<32x512xf32> -> vector<32x512xf32>
    %c17_i32_68 = arith.constant 17 : i32
    %163 = tpu.dynamic_rotate %159 by %c17_i32_68 dim 1 : vector<32x512xf32>, i32 -> vector<32x512xf32>
    %164 = arith.mulf %163, %9 : vector<32x512xf32>
    %c9 = arith.constant 9 : index
    %c0_69 = arith.constant 0 : index
    %c0_70 = arith.constant 0 : index
    %165 = vector.load %arg6[%c9, %c0_69, %c0_70] : memref<27x32x32xf32, #tpu.memory_space<vmem>>, vector<1x32x32xf32>
    %166 = vector.shape_cast %165 : vector<1x32x32xf32> to vector<32x32xf32>
    %cst_71 = arith.constant dense<0.000000e+00> : vector<32x512xf32>
    %167 = tpu.matmul %166, %164, %cst_71 {dimension_numbers = #tpu.dot_dimension_numbers<[1], [0], [0], [1], [0, 0, 1, 1], [], []>} : vector<32x32xf32>, vector<32x512xf32>, vector<32x512xf32> -> vector<32x512xf32>
    %168 = arith.addf %162, %167 : vector<32x512xf32>
    %c16_i32_72 = arith.constant 16 : i32
    %169 = tpu.dynamic_rotate %159 by %c16_i32_72 dim 1 : vector<32x512xf32>, i32 -> vector<32x512xf32>
    %170 = arith.mulf %169, %11 : vector<32x512xf32>
    %c10 = arith.constant 10 : index
    %c0_73 = arith.constant 0 : index
    %c0_74 = arith.constant 0 : index
    %171 = vector.load %arg6[%c10, %c0_73, %c0_74] : memref<27x32x32xf32, #tpu.memory_space<vmem>>, vector<1x32x32xf32>
    %172 = vector.shape_cast %171 : vector<1x32x32xf32> to vector<32x32xf32>
    %cst_75 = arith.constant dense<0.000000e+00> : vector<32x512xf32>
    %173 = tpu.matmul %172, %170, %cst_75 {dimension_numbers = #tpu.dot_dimension_numbers<[1], [0], [0], [1], [0, 0, 1, 1], [], []>} : vector<32x32xf32>, vector<32x512xf32>, vector<32x512xf32> -> vector<32x512xf32>
    %174 = arith.addf %168, %173 : vector<32x512xf32>
    %c15_i32_76 = arith.constant 15 : i32
    %175 = tpu.dynamic_rotate %159 by %c15_i32_76 dim 1 : vector<32x512xf32>, i32 -> vector<32x512xf32>
    %176 = arith.mulf %175, %13 : vector<32x512xf32>
    %c11 = arith.constant 11 : index
    %c0_77 = arith.constant 0 : index
    %c0_78 = arith.constant 0 : index
    %177 = vector.load %arg6[%c11, %c0_77, %c0_78] : memref<27x32x32xf32, #tpu.memory_space<vmem>>, vector<1x32x32xf32>
    %178 = vector.shape_cast %177 : vector<1x32x32xf32> to vector<32x32xf32>
    %cst_79 = arith.constant dense<0.000000e+00> : vector<32x512xf32>
    %179 = tpu.matmul %178, %176, %cst_79 {dimension_numbers = #tpu.dot_dimension_numbers<[1], [0], [0], [1], [0, 0, 1, 1], [], []>} : vector<32x32xf32>, vector<32x512xf32>, vector<32x512xf32> -> vector<32x512xf32>
    %180 = arith.addf %174, %179 : vector<32x512xf32>
    %c1_i32_80 = arith.constant 1 : i32
    %181 = tpu.dynamic_rotate %159 by %c1_i32_80 dim 1 : vector<32x512xf32>, i32 -> vector<32x512xf32>
    %182 = arith.mulf %181, %15 : vector<32x512xf32>
    %c12 = arith.constant 12 : index
    %c0_81 = arith.constant 0 : index
    %c0_82 = arith.constant 0 : index
    %183 = vector.load %arg6[%c12, %c0_81, %c0_82] : memref<27x32x32xf32, #tpu.memory_space<vmem>>, vector<1x32x32xf32>
    %184 = vector.shape_cast %183 : vector<1x32x32xf32> to vector<32x32xf32>
    %cst_83 = arith.constant dense<0.000000e+00> : vector<32x512xf32>
    %185 = tpu.matmul %184, %182, %cst_83 {dimension_numbers = #tpu.dot_dimension_numbers<[1], [0], [0], [1], [0, 0, 1, 1], [], []>} : vector<32x32xf32>, vector<32x512xf32>, vector<32x512xf32> -> vector<32x512xf32>
    %186 = arith.addf %180, %185 : vector<32x512xf32>
    %c511_i32_84 = arith.constant 511 : i32
    %187 = tpu.dynamic_rotate %159 by %c511_i32_84 dim 1 : vector<32x512xf32>, i32 -> vector<32x512xf32>
    %188 = arith.mulf %187, %17 : vector<32x512xf32>
    %c14 = arith.constant 14 : index
    %c0_85 = arith.constant 0 : index
    %c0_86 = arith.constant 0 : index
    %189 = vector.load %arg6[%c14, %c0_85, %c0_86] : memref<27x32x32xf32, #tpu.memory_space<vmem>>, vector<1x32x32xf32>
    %190 = vector.shape_cast %189 : vector<1x32x32xf32> to vector<32x32xf32>
    %cst_87 = arith.constant dense<0.000000e+00> : vector<32x512xf32>
    %191 = tpu.matmul %190, %188, %cst_87 {dimension_numbers = #tpu.dot_dimension_numbers<[1], [0], [0], [1], [0, 0, 1, 1], [], []>} : vector<32x32xf32>, vector<32x512xf32>, vector<32x512xf32> -> vector<32x512xf32>
    %192 = arith.addf %186, %191 : vector<32x512xf32>
    %c497_i32_88 = arith.constant 497 : i32
    %193 = tpu.dynamic_rotate %159 by %c497_i32_88 dim 1 : vector<32x512xf32>, i32 -> vector<32x512xf32>
    %194 = arith.mulf %193, %19 : vector<32x512xf32>
    %c15 = arith.constant 15 : index
    %c0_89 = arith.constant 0 : index
    %c0_90 = arith.constant 0 : index
    %195 = vector.load %arg6[%c15, %c0_89, %c0_90] : memref<27x32x32xf32, #tpu.memory_space<vmem>>, vector<1x32x32xf32>
    %196 = vector.shape_cast %195 : vector<1x32x32xf32> to vector<32x32xf32>
    %cst_91 = arith.constant dense<0.000000e+00> : vector<32x512xf32>
    %197 = tpu.matmul %196, %194, %cst_91 {dimension_numbers = #tpu.dot_dimension_numbers<[1], [0], [0], [1], [0, 0, 1, 1], [], []>} : vector<32x32xf32>, vector<32x512xf32>, vector<32x512xf32> -> vector<32x512xf32>
    %198 = arith.addf %192, %197 : vector<32x512xf32>
    %c496_i32_92 = arith.constant 496 : i32
    %199 = tpu.dynamic_rotate %159 by %c496_i32_92 dim 1 : vector<32x512xf32>, i32 -> vector<32x512xf32>
    %200 = arith.mulf %199, %21 : vector<32x512xf32>
    %c16 = arith.constant 16 : index
    %c0_93 = arith.constant 0 : index
    %c0_94 = arith.constant 0 : index
    %201 = vector.load %arg6[%c16, %c0_93, %c0_94] : memref<27x32x32xf32, #tpu.memory_space<vmem>>, vector<1x32x32xf32>
    %202 = vector.shape_cast %201 : vector<1x32x32xf32> to vector<32x32xf32>
    %cst_95 = arith.constant dense<0.000000e+00> : vector<32x512xf32>
    %203 = tpu.matmul %202, %200, %cst_95 {dimension_numbers = #tpu.dot_dimension_numbers<[1], [0], [0], [1], [0, 0, 1, 1], [], []>} : vector<32x32xf32>, vector<32x512xf32>, vector<32x512xf32> -> vector<32x512xf32>
    %204 = arith.addf %198, %203 : vector<32x512xf32>
    %c495_i32_96 = arith.constant 495 : i32
    %205 = tpu.dynamic_rotate %159 by %c495_i32_96 dim 1 : vector<32x512xf32>, i32 -> vector<32x512xf32>
    %206 = arith.mulf %205, %23 : vector<32x512xf32>
    %c17 = arith.constant 17 : index
    %c0_97 = arith.constant 0 : index
    %c0_98 = arith.constant 0 : index
    %207 = vector.load %arg6[%c17, %c0_97, %c0_98] : memref<27x32x32xf32, #tpu.memory_space<vmem>>, vector<1x32x32xf32>
    %208 = vector.shape_cast %207 : vector<1x32x32xf32> to vector<32x32xf32>
    %cst_99 = arith.constant dense<0.000000e+00> : vector<32x512xf32>
    %209 = tpu.matmul %208, %206, %cst_99 {dimension_numbers = #tpu.dot_dimension_numbers<[1], [0], [0], [1], [0, 0, 1, 1], [], []>} : vector<32x32xf32>, vector<32x512xf32>, vector<32x512xf32> -> vector<32x512xf32>
    %210 = arith.addf %204, %209 : vector<32x512xf32>
    %c1_100 = arith.constant 1 : index
    %c0_101 = arith.constant 0 : index
    %c0_102 = arith.constant 0 : index
    %211 = vector.load %arg7[%c1_100, %c0_101, %c0_102] : memref<3x32x1xf32, #tpu.memory_space<vmem>>, vector<1x32x1xf32>
    %212 = vector.shape_cast %211 : vector<1x32x1xf32> to vector<32x1xf32>
    %213 = vector.broadcast %212 : vector<32x1xf32> to vector<32x512xf32>
    %214 = arith.addf %210, %213 : vector<32x512xf32>
    %cst_103 = arith.constant 0.000000e+00 : f32
    %215 = vector.broadcast %cst_103 : f32 to vector<32x512xf32>
    %216 = arith.cmpf ogt, %214, %215 : vector<32x512xf32>
    %cst_104 = arith.constant 2.000000e-01 : f32
    %217 = vector.broadcast %cst_104 : f32 to vector<32x512xf32>
    %218 = arith.mulf %217, %214 : vector<32x512xf32>
    %219 = arith.select %216, %214, %218 : vector<32x512xi1>, vector<32x512xf32>
    %c22 = arith.constant 22 : index
    %c0_105 = arith.constant 0 : index
    %c0_106 = arith.constant 0 : index
    %220 = vector.load %arg6[%c22, %c0_105, %c0_106] : memref<27x32x32xf32, #tpu.memory_space<vmem>>, vector<1x32x32xf32>
    %221 = vector.shape_cast %220 : vector<1x32x32xf32> to vector<32x32xf32>
    %cst_107 = arith.constant dense<0.000000e+00> : vector<32x512xf32>
    %222 = tpu.matmul %221, %219, %cst_107 {dimension_numbers = #tpu.dot_dimension_numbers<[1], [0], [0], [1], [0, 0, 1, 1], [], []>} : vector<32x32xf32>, vector<32x512xf32>, vector<32x512xf32> -> vector<32x512xf32>
    %c17_i32_108 = arith.constant 17 : i32
    %223 = tpu.dynamic_rotate %219 by %c17_i32_108 dim 1 : vector<32x512xf32>, i32 -> vector<32x512xf32>
    %224 = arith.mulf %223, %9 : vector<32x512xf32>
    %c18 = arith.constant 18 : index
    %c0_109 = arith.constant 0 : index
    %c0_110 = arith.constant 0 : index
    %225 = vector.load %arg6[%c18, %c0_109, %c0_110] : memref<27x32x32xf32, #tpu.memory_space<vmem>>, vector<1x32x32xf32>
    %226 = vector.shape_cast %225 : vector<1x32x32xf32> to vector<32x32xf32>
    %cst_111 = arith.constant dense<0.000000e+00> : vector<32x512xf32>
    %227 = tpu.matmul %226, %224, %cst_111 {dimension_numbers = #tpu.dot_dimension_numbers<[1], [0], [0], [1], [0, 0, 1, 1], [], []>} : vector<32x32xf32>, vector<32x512xf32>, vector<32x512xf32> -> vector<32x512xf32>
    %228 = arith.addf %222, %227 : vector<32x512xf32>
    %c16_i32_112 = arith.constant 16 : i32
    %229 = tpu.dynamic_rotate %219 by %c16_i32_112 dim 1 : vector<32x512xf32>, i32 -> vector<32x512xf32>
    %230 = arith.mulf %229, %11 : vector<32x512xf32>
    %c19 = arith.constant 19 : index
    %c0_113 = arith.constant 0 : index
    %c0_114 = arith.constant 0 : index
    %231 = vector.load %arg6[%c19, %c0_113, %c0_114] : memref<27x32x32xf32, #tpu.memory_space<vmem>>, vector<1x32x32xf32>
    %232 = vector.shape_cast %231 : vector<1x32x32xf32> to vector<32x32xf32>
    %cst_115 = arith.constant dense<0.000000e+00> : vector<32x512xf32>
    %233 = tpu.matmul %232, %230, %cst_115 {dimension_numbers = #tpu.dot_dimension_numbers<[1], [0], [0], [1], [0, 0, 1, 1], [], []>} : vector<32x32xf32>, vector<32x512xf32>, vector<32x512xf32> -> vector<32x512xf32>
    %234 = arith.addf %228, %233 : vector<32x512xf32>
    %c15_i32_116 = arith.constant 15 : i32
    %235 = tpu.dynamic_rotate %219 by %c15_i32_116 dim 1 : vector<32x512xf32>, i32 -> vector<32x512xf32>
    %236 = arith.mulf %235, %13 : vector<32x512xf32>
    %c20 = arith.constant 20 : index
    %c0_117 = arith.constant 0 : index
    %c0_118 = arith.constant 0 : index
    %237 = vector.load %arg6[%c20, %c0_117, %c0_118] : memref<27x32x32xf32, #tpu.memory_space<vmem>>, vector<1x32x32xf32>
    %238 = vector.shape_cast %237 : vector<1x32x32xf32> to vector<32x32xf32>
    %cst_119 = arith.constant dense<0.000000e+00> : vector<32x512xf32>
    %239 = tpu.matmul %238, %236, %cst_119 {dimension_numbers = #tpu.dot_dimension_numbers<[1], [0], [0], [1], [0, 0, 1, 1], [], []>} : vector<32x32xf32>, vector<32x512xf32>, vector<32x512xf32> -> vector<32x512xf32>
    %240 = arith.addf %234, %239 : vector<32x512xf32>
    %c1_i32_120 = arith.constant 1 : i32
    %241 = tpu.dynamic_rotate %219 by %c1_i32_120 dim 1 : vector<32x512xf32>, i32 -> vector<32x512xf32>
    %242 = arith.mulf %241, %15 : vector<32x512xf32>
    %c21 = arith.constant 21 : index
    %c0_121 = arith.constant 0 : index
    %c0_122 = arith.constant 0 : index
    %243 = vector.load %arg6[%c21, %c0_121, %c0_122] : memref<27x32x32xf32, #tpu.memory_space<vmem>>, vector<1x32x32xf32>
    %244 = vector.shape_cast %243 : vector<1x32x32xf32> to vector<32x32xf32>
    %cst_123 = arith.constant dense<0.000000e+00> : vector<32x512xf32>
    %245 = tpu.matmul %244, %242, %cst_123 {dimension_numbers = #tpu.dot_dimension_numbers<[1], [0], [0], [1], [0, 0, 1, 1], [], []>} : vector<32x32xf32>, vector<32x512xf32>, vector<32x512xf32> -> vector<32x512xf32>
    %246 = arith.addf %240, %245 : vector<32x512xf32>
    %c511_i32_124 = arith.constant 511 : i32
    %247 = tpu.dynamic_rotate %219 by %c511_i32_124 dim 1 : vector<32x512xf32>, i32 -> vector<32x512xf32>
    %248 = arith.mulf %247, %17 : vector<32x512xf32>
    %c23 = arith.constant 23 : index
    %c0_125 = arith.constant 0 : index
    %c0_126 = arith.constant 0 : index
    %249 = vector.load %arg6[%c23, %c0_125, %c0_126] : memref<27x32x32xf32, #tpu.memory_space<vmem>>, vector<1x32x32xf32>
    %250 = vector.shape_cast %249 : vector<1x32x32xf32> to vector<32x32xf32>
    %cst_127 = arith.constant dense<0.000000e+00> : vector<32x512xf32>
    %251 = tpu.matmul %250, %248, %cst_127 {dimension_numbers = #tpu.dot_dimension_numbers<[1], [0], [0], [1], [0, 0, 1, 1], [], []>} : vector<32x32xf32>, vector<32x512xf32>, vector<32x512xf32> -> vector<32x512xf32>
    %252 = arith.addf %246, %251 : vector<32x512xf32>
    %c497_i32_128 = arith.constant 497 : i32
    %253 = tpu.dynamic_rotate %219 by %c497_i32_128 dim 1 : vector<32x512xf32>, i32 -> vector<32x512xf32>
    %254 = arith.mulf %253, %19 : vector<32x512xf32>
    %c24 = arith.constant 24 : index
    %c0_129 = arith.constant 0 : index
    %c0_130 = arith.constant 0 : index
    %255 = vector.load %arg6[%c24, %c0_129, %c0_130] : memref<27x32x32xf32, #tpu.memory_space<vmem>>, vector<1x32x32xf32>
    %256 = vector.shape_cast %255 : vector<1x32x32xf32> to vector<32x32xf32>
    %cst_131 = arith.constant dense<0.000000e+00> : vector<32x512xf32>
    %257 = tpu.matmul %256, %254, %cst_131 {dimension_numbers = #tpu.dot_dimension_numbers<[1], [0], [0], [1], [0, 0, 1, 1], [], []>} : vector<32x32xf32>, vector<32x512xf32>, vector<32x512xf32> -> vector<32x512xf32>
    %258 = arith.addf %252, %257 : vector<32x512xf32>
    %c496_i32_132 = arith.constant 496 : i32
    %259 = tpu.dynamic_rotate %219 by %c496_i32_132 dim 1 : vector<32x512xf32>, i32 -> vector<32x512xf32>
    %260 = arith.mulf %259, %21 : vector<32x512xf32>
    %c25 = arith.constant 25 : index
    %c0_133 = arith.constant 0 : index
    %c0_134 = arith.constant 0 : index
    %261 = vector.load %arg6[%c25, %c0_133, %c0_134] : memref<27x32x32xf32, #tpu.memory_space<vmem>>, vector<1x32x32xf32>
    %262 = vector.shape_cast %261 : vector<1x32x32xf32> to vector<32x32xf32>
    %cst_135 = arith.constant dense<0.000000e+00> : vector<32x512xf32>
    %263 = tpu.matmul %262, %260, %cst_135 {dimension_numbers = #tpu.dot_dimension_numbers<[1], [0], [0], [1], [0, 0, 1, 1], [], []>} : vector<32x32xf32>, vector<32x512xf32>, vector<32x512xf32> -> vector<32x512xf32>
    %264 = arith.addf %258, %263 : vector<32x512xf32>
    %c495_i32_136 = arith.constant 495 : i32
    %265 = tpu.dynamic_rotate %219 by %c495_i32_136 dim 1 : vector<32x512xf32>, i32 -> vector<32x512xf32>
    %266 = arith.mulf %265, %23 : vector<32x512xf32>
    %c26 = arith.constant 26 : index
    %c0_137 = arith.constant 0 : index
    %c0_138 = arith.constant 0 : index
    %267 = vector.load %arg6[%c26, %c0_137, %c0_138] : memref<27x32x32xf32, #tpu.memory_space<vmem>>, vector<1x32x32xf32>
    %268 = vector.shape_cast %267 : vector<1x32x32xf32> to vector<32x32xf32>
    %cst_139 = arith.constant dense<0.000000e+00> : vector<32x512xf32>
    %269 = tpu.matmul %268, %266, %cst_139 {dimension_numbers = #tpu.dot_dimension_numbers<[1], [0], [0], [1], [0, 0, 1, 1], [], []>} : vector<32x32xf32>, vector<32x512xf32>, vector<32x512xf32> -> vector<32x512xf32>
    %270 = arith.addf %264, %269 : vector<32x512xf32>
    %c2_140 = arith.constant 2 : index
    %c0_141 = arith.constant 0 : index
    %c0_142 = arith.constant 0 : index
    %271 = vector.load %arg7[%c2_140, %c0_141, %c0_142] : memref<3x32x1xf32, #tpu.memory_space<vmem>>, vector<1x32x1xf32>
    %272 = vector.shape_cast %271 : vector<1x32x1xf32> to vector<32x1xf32>
    %273 = vector.broadcast %272 : vector<32x1xf32> to vector<32x512xf32>
    %274 = arith.addf %270, %273 : vector<32x512xf32>
    %cst_143 = arith.constant 0.000000e+00 : f32
    %275 = vector.broadcast %cst_143 : f32 to vector<32x512xf32>
    %276 = arith.cmpf ogt, %274, %275 : vector<32x512xf32>
    %cst_144 = arith.constant 2.000000e-01 : f32
    %277 = vector.broadcast %cst_144 : f32 to vector<32x512xf32>
    %278 = arith.mulf %277, %274 : vector<32x512xf32>
    %279 = arith.select %276, %274, %278 : vector<32x512xi1>, vector<32x512xf32>
    %280 = vector.extract_strided_slice %279 {offsets = [0, 0], sizes = [1, 512], strides = [1, 1]} : vector<32x512xf32> to vector<1x512xf32>
    %cst_145 = arith.constant 0.000000e+00 : f32
    %281 = vector.broadcast %cst_145 : f32 to vector<1x512xf32>
    %282 = arith.subf %281, %280 : vector<1x512xf32>
    %283 = math.exp %282 : vector<1x512xf32>
    %cst_146 = arith.constant 1.000000e+00 : f32
    %284 = vector.broadcast %cst_146 : f32 to vector<1x512xf32>
    %285 = arith.addf %284, %283 : vector<1x512xf32>
    %cst_147 = arith.constant 1.000000e+00 : f32
    %286 = vector.broadcast %cst_147 : f32 to vector<1x512xf32>
    %287 = arith.divf %286, %285 : vector<1x512xf32>
    %c0_148 = arith.constant 0 : index
    %c0_149 = arith.constant 0 : index
    %c0_150 = arith.constant 0 : index
    %288 = vector.load %arg8[%c0_148, %c0_149, %c0_150] : memref<1x1x512xf32, #tpu.memory_space<vmem>>, vector<1x1x512xf32>
    %289 = vector.shape_cast %288 : vector<1x1x512xf32> to vector<1x512xf32>
    %290 = vector.shape_cast %287 : vector<1x512xf32> to vector<1x1x512xf32>
    tpu.vector_store %arg8[%c0_148, %c0_149, %c0_150], %290 {strides = array<i32>} : memref<1x1x512xf32, #tpu.memory_space<vmem>>, vector<1x1x512xf32>,
    return
  }
  func.func @transform_0(%arg0: i32) -> i32 {
    %c0_i32 = arith.constant 0 : i32
    %c0_i32_0 = arith.constant 0 : i32
    return %c0_i32 : i32
  }
  func.func @transform_1(%arg0: i32) -> (i32, i32, i32) {
    %c0_i32 = arith.constant 0 : i32
    %c0_i32_0 = arith.constant 0 : i32
    %c0_i32_1 = arith.constant 0 : i32
    return %arg0, %c0_i32, %c0_i32_0 : i32, i32, i32
  }
  func.func @transform_2(%arg0: i32) -> (i32, i32) {
    %c0_i32 = arith.constant 0 : i32
    %c0_i32_0 = arith.constant 0 : i32
    %c0_i32_1 = arith.constant 0 : i32
    return %c0_i32, %c0_i32_0 : i32, i32
  }
  func.func @transform_3(%arg0: i32) -> (i32, i32) {
    %c0_i32 = arith.constant 0 : i32
    %c0_i32_0 = arith.constant 0 : i32
    %c0_i32_1 = arith.constant 0 : i32
    return %c0_i32, %c0_i32_0 : i32, i32
  }
  func.func @transform_4(%arg0: i32) -> (i32, i32) {
    %c0_i32 = arith.constant 0 : i32
    %c0_i32_0 = arith.constant 0 : i32
    %c0_i32_1 = arith.constant 0 : i32
    return %c0_i32, %c0_i32_0 : i32, i32
  }
  func.func @transform_5(%arg0: i32) -> (i32, i32, i32) {
    %c0_i32 = arith.constant 0 : i32
    %c0_i32_0 = arith.constant 0 : i32
    %c0_i32_1 = arith.constant 0 : i32
    %c0_i32_2 = arith.constant 0 : i32
    return %c0_i32, %c0_i32_0, %c0_i32_1 : i32, i32, i32
  }
  func.func @transform_6(%arg0: i32) -> (i32, i32, i32) {
    %c0_i32 = arith.constant 0 : i32
    %c0_i32_0 = arith.constant 0 : i32
    %c0_i32_1 = arith.constant 0 : i32
    %c0_i32_2 = arith.constant 0 : i32
    return %c0_i32, %c0_i32_0, %c0_i32_1 : i32, i32, i32
  }
  func.func @transform_7(%arg0: i32) -> (i32, i32, i32) {
    %c0_i32 = arith.constant 0 : i32
    %c0_i32_0 = arith.constant 0 : i32
    %c0_i32_1 = arith.constant 0 : i32
    return %arg0, %c0_i32, %c0_i32_0 : i32, i32, i32
  }
}

</mosaic_0001>

<llo_original>
// kernel: illumination_adjust_net.1
$region0: #{illumination_adjust_net.1}
  #allocation0 [shape = 'u32[]', space=smem, size = 0x4, offset = 0x4, fixed_abs, tag = 'smem constant byte address 0x4 - core index']
  #allocation1 [shape = 'u32[72,128]{1,0:T(1,128)}', space=vmem, size = 0x9000, scoped, tag = 'internal scratch']
  #allocation2 [shape = 'f32[1]{0:T(128)S(6)}', space=smem, size = 0x200, scoped, tag = 'scoped memory for illumination_adjust_net.1']
  %s0 = inlined_call_operand.<no memory space> [shape: f32[1], index: 0, kind: input, shape index: {}]
  %s1 = inlined_call_operand.vmem [shape: f32[1,1,512], index: 1, kind: input, shape index: {}]
  %s2 = inlined_call_operand.vmem [shape: f32[9,512], index: 2, kind: input, shape index: {}]
  %s3 = inlined_call_operand.vmem [shape: f32[32,512], index: 3, kind: input, shape index: {}]
  %s4 = inlined_call_operand.vmem [shape: f32[32,10], index: 4, kind: input, shape index: {}]
  %s5 = inlined_call_operand.vmem [shape: f32[27,32,32], index: 5, kind: input, shape index: {}]
  %s6 = inlined_call_operand.vmem [shape: f32[3,32,1], index: 6, kind: input, shape index: {}]
  %s7 = inlined_call_operand.vmem [shape: f32[1,1,512], index: 7, kind: output, shape index: {}]
  %s8 = sld [smem:[#allocation0]]
  $region38: #{illumination_adjust_net.1} parent=0
    _
  %s10 = ssub.s32 1, %s8
  %s11 = scalar_select 0, %s10, %s8
  %12 = sst [smem:[#allocation2]] %s0
  // Predicated region
  $region2: #{illumination_adjust_net.1} parent=0 // pred_check
    _
  $region3: #{illumination_adjust_net.1} parent=0 // pred_check_branch
    %14 = sbr.rel (0) target = $region5
  $region4: #{illumination_adjust_net.1} parent=0 // pred_region
    _
  $region5: #{illumination_adjust_net.1} parent=0 // pred_fallthru
    _
  // Predicated region
  $region6: #{illumination_adjust_net.1} parent=0 // pred_check
    _
  $region7: #{illumination_adjust_net.1} parent=0 // pred_check_branch
    %16 = sbr.rel (0) target = $region9
  $region8: #{illumination_adjust_net.1} parent=0 // pred_region
    _
  $region9: #{illumination_adjust_net.1} parent=0 // pred_fallthru
    _
  // Predicated region
  $region10: #{illumination_adjust_net.1} parent=0 // pred_check
    _
  $region11: #{illumination_adjust_net.1} parent=0 // pred_check_branch
    %18 = sbr.rel (0) target = $region13
  $region12: #{illumination_adjust_net.1} parent=0 // pred_region
    _
  $region13: #{illumination_adjust_net.1} parent=0 // pred_fallthru
    _
  // Predicated region
  $region14: #{illumination_adjust_net.1} parent=0 // pred_check
    _
  $region15: #{illumination_adjust_net.1} parent=0 // pred_check_branch
    %20 = sbr.rel (0) target = $region17
  $region16: #{illumination_adjust_net.1} parent=0 // pred_region
    _
  $region17: #{illumination_adjust_net.1} parent=0 // pred_fallthru
    _
  // Predicated region
  $region18: #{illumination_adjust_net.1} parent=0 // pred_check
    _
  $region19: #{illumination_adjust_net.1} parent=0 // pred_check_branch
    %22 = sbr.rel (0) target = $region21
  $region20: #{illumination_adjust_net.1} parent=0 // pred_region
    _
  $region21: #{illumination_adjust_net.1} parent=0 // pred_fallthru
    _
  // Predicated region
  $region22: #{illumination_adjust_net.1} parent=0 // pred_check
    _
  $region23: #{illumination_adjust_net.1} parent=0 // pred_check_branch
    %24 = sbr.rel (0) target = $region25
  $region24: #{illumination_adjust_net.1} parent=0 // pred_region
    _
  $region25: #{illumination_adjust_net.1} parent=0 // pred_fallthru
    _
  // Predicated region
  $region26: #{illumination_adjust_net.1} parent=0 // pred_check
    _
  $region27: #{illumination_adjust_net.1} parent=0 // pred_check_branch
    %26 = sbr.rel (0) target = $region29
  $region28: #{illumination_adjust_net.1} parent=0 // pred_region
    _
  $region29: #{illumination_adjust_net.1} parent=0 // pred_fallthru
    _
  %v27 = vld [vmem:[%s2] ss:$8 sm:$0xf]
  %s28 = scalar_lea.vmem %s2, 1
  %v29 = vld [vmem:[%s28] ss:$8 sm:$0xf]
  %s30 = scalar_lea.vmem %s2, 2
  %v31 = vld [vmem:[%s30] ss:$8 sm:$0xf]
  %s32 = scalar_lea.vmem %s2, 3
  %v33 = vld [vmem:[%s32] ss:$8 sm:$0xf]
  %s34 = scalar_lea.vmem %s2, 5
  %v35 = vld [vmem:[%s34] ss:$8 sm:$0xf]
  %s36 = scalar_lea.vmem %s2, 6
  %v37 = vld [vmem:[%s36] ss:$8 sm:$0xf]
  %s38 = scalar_lea.vmem %s2, 7
  %v39 = vld [vmem:[%s38] ss:$8 sm:$0xf]
  %s40 = scalar_lea.vmem %s2, 32
  %v41 = vld [vmem:[%s40] ss:$8 sm:$0xf]
  %v43 = vperm.slane %v27, 0
  %v44 = vperm.slane %v27, 1
  %v45 = vperm.slane %v27, 2
  %v46 = vperm.slane %v27, 3
  %v52 = vperm.slane %v29, 0
  %v53 = vperm.slane %v29, 1
  %v54 = vperm.slane %v29, 2
  %v55 = vperm.slane %v29, 3
  %v61 = vperm.slane %v31, 0
  %v62 = vperm.slane %v31, 1
  %v63 = vperm.slane %v31, 2
  %v64 = vperm.slane %v31, 3
  %v70 = vperm.slane %v33, 0
  %v71 = vperm.slane %v33, 1
  %v72 = vperm.slane %v33, 2
  %v73 = vperm.slane %v33, 3
  %v79 = vperm.slane %v35, 0
  %v80 = vperm.slane %v35, 1
  %v81 = vperm.slane %v35, 2
  %v82 = vperm.slane %v35, 3
  %v88 = vperm.slane %v37, 0
  %v89 = vperm.slane %v37, 1
  %v90 = vperm.slane %v37, 2
  %v91 = vperm.slane %v37, 3
  %v97 = vperm.slane %v39, 0
  %v98 = vperm.slane %v39, 1
  %v99 = vperm.slane %v39, 2
  %v100 = vperm.slane %v39, 3
  %v106 = vperm.slane %v41, 0
  %v107 = vperm.slane %v41, 1
  %v108 = vperm.slane %v41, 2
  %v109 = vperm.slane %v41, 3
  %s114 = sld [smem:[#allocation2]]
  %v115 = vld [vmem:[%s1] sm:$0xf]
  %v116 = vld [vmem:[%s4] sm:$0xff]
  %v117 = vld [vmem:[%s4 + $0x8] sm:$0xff]
  %v118 = vld [vmem:[%s4 + $0x10] sm:$0xff]
  %v119 = vld [vmem:[%s4 + $0x18] sm:$0xff]
  %v120 = vld [vmem:[%s3] sm:$0xff]
  %v121 = vld [vmem:[%s3 + $0x8] sm:$0xff]
  %v122 = vld [vmem:[%s3 + $0x10] sm:$0xff]
  %v123 = vld [vmem:[%s3 + $0x18] sm:$0xff]
  %v124 = vld [vmem:[%s3 + $0x20] sm:$0xff]
  %v125 = vld [vmem:[%s3 + $0x28] sm:$0xff]
  %v126 = vld [vmem:[%s3 + $0x30] sm:$0xff]
  %v127 = vld [vmem:[%s3 + $0x38] sm:$0xff]
  %v128 = vld [vmem:[%s3 + $0x40] sm:$0xff]
  %v129 = vld [vmem:[%s3 + $0x48] sm:$0xff]
  %v130 = vld [vmem:[%s3 + $0x50] sm:$0xff]
  %v131 = vld [vmem:[%s3 + $0x58] sm:$0xff]
  %v132 = vld [vmem:[%s3 + $0x60] sm:$0xff]
  %v133 = vld [vmem:[%s3 + $0x68] sm:$0xff]
  %v134 = vld [vmem:[%s3 + $0x70] sm:$0xff]
  %v135 = vld [vmem:[%s3 + $0x78] sm:$0xff]
  %v136 = vstv %s114
  %v137 = vmul.f32 %v136, %v120
  %v138 = vmul.f32 %v136, %v121
  %v139 = vmul.f32 %v136, %v122
  %v140 = vmul.f32 %v136, %v123
  %v141 = vmul.f32 %v136, %v124
  %v142 = vmul.f32 %v136, %v125
  %v143 = vmul.f32 %v136, %v126
  %v144 = vmul.f32 %v136, %v127
  %v145 = vmul.f32 %v136, %v128
  %v146 = vmul.f32 %v136, %v129
  %v147 = vmul.f32 %v136, %v130
  %v148 = vmul.f32 %v136, %v131
  %v149 = vmul.f32 %v136, %v132
  %v150 = vmul.f32 %v136, %v133
  %v151 = vmul.f32 %v136, %v134
  %v152 = vmul.f32 %v136, %v135
  %154 = vset.pattern.permute.xlu0 9
  %155 = vperm.xlu0 %154, %v116
  %v156 = vpop.permute.xlu0 %155
  %159 = vset.pattern.permute.xlu0 9
  %160 = vperm.xlu0 %159, %v117
  %v161 = vpop.permute.xlu0 %160
  %164 = vset.pattern.permute.xlu0 9
  %165 = vperm.xlu0 %164, %v118
  %v166 = vpop.permute.xlu0 %165
  %169 = vset.pattern.permute.xlu0 9
  %170 = vperm.xlu0 %169, %v119
  %v171 = vpop.permute.xlu0 %170
  %v173 = vadd.f32 %v137, %v156
  %v174 = vadd.f32 %v138, %v156
  %v175 = vadd.f32 %v139, %v156
  %v176 = vadd.f32 %v140, %v156
  %v177 = vadd.f32 %v141, %v161
  %v178 = vadd.f32 %v142, %v161
  %v179 = vadd.f32 %v143, %v161
  %v180 = vadd.f32 %v144, %v161
  %v181 = vadd.f32 %v145, %v166
  %v182 = vadd.f32 %v146, %v166
  %v183 = vadd.f32 %v147, %v166
  %v184 = vadd.f32 %v148, %v166
  %v185 = vadd.f32 %v149, %v171
  %v186 = vadd.f32 %v150, %v171
  %v187 = vadd.f32 %v151, %v171
  %v188 = vadd.f32 %v152, %v171
  %v190 = vperm.slane %v115, 0
  %v191 = vperm.slane %v115, 1
  %v192 = vperm.slane %v115, 2
  %v193 = vperm.slane %v115, 3
  %198 = vrot.lane.b32.xlu0 %v190, 17
  %v199 = vpop.permute.xlu0 %198
  %200 = vrot.lane.b32.xlu0 %v191, 17
  %v201 = vpop.permute.xlu0 %200
  %202 = vrot.lane.b32.xlu0 %v192, 17
  %v203 = vpop.permute.xlu0 %202
  %204 = vrot.lane.b32.xlu0 %v193, 17
  %v205 = vpop.permute.xlu0 %204
  %v206 = vlaneseq
  %v207 = vand.u32 %v206, 127
  %vm208 = vcmp.lt.s32.totalorder %v207, 17
  %v209 = vsel %vm208, %v203, %v205
  %v210 = vsel %vm208, %v201, %v203
  %v211 = vsel %vm208, %v199, %v201
  %v212 = vsel %vm208, %v205, %v199
  %v213 = vmul.f32 %v212, %v43
  %v214 = vmul.f32 %v211, %v44
  %v215 = vmul.f32 %v210, %v45
  %v216 = vmul.f32 %v209, %v46
  %217 = vset.pattern.permute.xlu0 0
  %218 = vperm.xlu0 %217, %v116
  %v219 = vpop.permute.xlu0 %218
  %221 = vset.pattern.permute.xlu0 0
  %222 = vperm.xlu0 %221, %v117
  %v223 = vpop.permute.xlu0 %222
  %225 = vset.pattern.permute.xlu0 0
  %226 = vperm.xlu0 %225, %v118
  %v227 = vpop.permute.xlu0 %226
  %229 = vset.pattern.permute.xlu0 0
  %230 = vperm.xlu0 %229, %v119
  %v231 = vpop.permute.xlu0 %230
  %v233 = vperm.slane %v213, 0
  %v234 = vperm.slane %v214, 0
  %v235 = vperm.slane %v215, 0
  %v236 = vperm.slane %v216, 0
  %v237 = vmul.f32 %v219, %v233
  %v238 = vmul.f32 %v219, %v234
  %v239 = vmul.f32 %v219, %v235
  %v240 = vmul.f32 %v219, %v236
  %v241 = vmul.f32 %v223, %v233
  %v242 = vmul.f32 %v223, %v234
  %v243 = vmul.f32 %v223, %v235
  %v244 = vmul.f32 %v223, %v236
  %v245 = vmul.f32 %v227, %v233
  %v246 = vmul.f32 %v227, %v234
  %v247 = vmul.f32 %v227, %v235
  %v248 = vmul.f32 %v227, %v236
  %v249 = vmul.f32 %v231, %v233
  %v250 = vmul.f32 %v231, %v234
  %v251 = vmul.f32 %v231, %v235
  %v252 = vmul.f32 %v231, %v236
  %v253 = vadd.f32 %v173, %v237
  %v254 = vadd.f32 %v174, %v238
  %v255 = vadd.f32 %v175, %v239
  %v256 = vadd.f32 %v176, %v240
  %v257 = vadd.f32 %v177, %v241
  %v258 = vadd.f32 %v178, %v242
  %v259 = vadd.f32 %v179, %v243
  %v260 = vadd.f32 %v180, %v244
  %v261 = vadd.f32 %v181, %v245
  %v262 = vadd.f32 %v182, %v246
  %v263 = vadd.f32 %v183, %v247
  %v264 = vadd.f32 %v184, %v248
  %v265 = vadd.f32 %v185, %v249
  %v266 = vadd.f32 %v186, %v250
  %v267 = vadd.f32 %v187, %v251
  %v268 = vadd.f32 %v188, %v252
  %269 = vrot.lane.b32.xlu0 %v190, 16
  %v270 = vpop.permute.xlu0 %269
  %271 = vrot.lane.b32.xlu0 %v191, 16
  %v272 = vpop.permute.xlu0 %271
  %273 = vrot.lane.b32.xlu0 %v192, 16
  %v274 = vpop.permute.xlu0 %273
  %275 = vrot.lane.b32.xlu0 %v193, 16
  %v276 = vpop.permute.xlu0 %275
  %vm277 = vcmp.lt.s32.totalorder %v207, 16
  %v278 = vsel %vm277, %v274, %v276
  %v279 = vsel %vm277, %v272, %v274
  %v280 = vsel %vm277, %v270, %v272
  %v281 = vsel %vm277, %v276, %v270
  %v282 = vmul.f32 %v281, %v52
  %v283 = vmul.f32 %v280, %v53
  %v284 = vmul.f32 %v279, %v54
  %v285 = vmul.f32 %v278, %v55
  %286 = vset.pattern.permute.xlu0 1
  %287 = vperm.xlu0 %286, %v116
  %v288 = vpop.permute.xlu0 %287
  %290 = vset.pattern.permute.xlu0 1
  %291 = vperm.xlu0 %290, %v117
  %v292 = vpop.permute.xlu0 %291
  %294 = vset.pattern.permute.xlu0 1
  %295 = vperm.xlu0 %294, %v118
  %v296 = vpop.permute.xlu0 %295
  %298 = vset.pattern.permute.xlu0 1
  %299 = vperm.xlu0 %298, %v119
  %v300 = vpop.permute.xlu0 %299
  %v302 = vperm.slane %v282, 0
  %v303 = vperm.slane %v283, 0
  %v304 = vperm.slane %v284, 0
  %v305 = vperm.slane %v285, 0
  %v306 = vmul.f32 %v288, %v302
  %v307 = vmul.f32 %v288, %v303
  %v308 = vmul.f32 %v288, %v304
  %v309 = vmul.f32 %v288, %v305
  %v310 = vmul.f32 %v292, %v302
  %v311 = vmul.f32 %v292, %v303
  %v312 = vmul.f32 %v292, %v304
  %v313 = vmul.f32 %v292, %v305
  %v314 = vmul.f32 %v296, %v302
  %v315 = vmul.f32 %v296, %v303
  %v316 = vmul.f32 %v296, %v304
  %v317 = vmul.f32 %v296, %v305
  %v318 = vmul.f32 %v300, %v302
  %v319 = vmul.f32 %v300, %v303
  %v320 = vmul.f32 %v300, %v304
  %v321 = vmul.f32 %v300, %v305
  %v322 = vadd.f32 %v253, %v306
  %v323 = vadd.f32 %v254, %v307
  %v324 = vadd.f32 %v255, %v308
  %v325 = vadd.f32 %v256, %v309
  %v326 = vadd.f32 %v257, %v310
  %v327 = vadd.f32 %v258, %v311
  %v328 = vadd.f32 %v259, %v312
  %v329 = vadd.f32 %v260, %v313
  %v330 = vadd.f32 %v261, %v314
  %v331 = vadd.f32 %v262, %v315
  %v332 = vadd.f32 %v263, %v316
  %v333 = vadd.f32 %v264, %v317
  %v334 = vadd.f32 %v265, %v318
  %v335 = vadd.f32 %v266, %v319
  %v336 = vadd.f32 %v267, %v320
  %v337 = vadd.f32 %v268, %v321
  %338 = vrot.lane.b32.xlu0 %v190, 15
  %v339 = vpop.permute.xlu0 %338
  %340 = vrot.lane.b32.xlu0 %v191, 15
  %v341 = vpop.permute.xlu0 %340
  %342 = vrot.lane.b32.xlu0 %v192, 15
  %v343 = vpop.permute.xlu0 %342
  %344 = vrot.lane.b32.xlu0 %v193, 15
  %v345 = vpop.permute.xlu0 %344
  %vm346 = vcmp.lt.s32.totalorder %v207, 15
  %v347 = vsel %vm346, %v343, %v345
  %v348 = vsel %vm346, %v341, %v343
  %v349 = vsel %vm346, %v339, %v341
  %v350 = vsel %vm346, %v345, %v339
  %v351 = vmul.f32 %v350, %v61
  %v352 = vmul.f32 %v349, %v62
  %v353 = vmul.f32 %v348, %v63
  %v354 = vmul.f32 %v347, %v64
  %355 = vset.pattern.permute.xlu0 2
  %356 = vperm.xlu0 %355, %v116
  %v357 = vpop.permute.xlu0 %356
  %359 = vset.pattern.permute.xlu0 2
  %360 = vperm.xlu0 %359, %v117
  %v361 = vpop.permute.xlu0 %360
  %363 = vset.pattern.permute.xlu0 2
  %364 = vperm.xlu0 %363, %v118
  %v365 = vpop.permute.xlu0 %364
  %367 = vset.pattern.permute.xlu0 2
  %368 = vperm.xlu0 %367, %v119
  %v369 = vpop.permute.xlu0 %368
  %v371 = vperm.slane %v351, 0
  %v372 = vperm.slane %v352, 0
  %v373 = vperm.slane %v353, 0
  %v374 = vperm.slane %v354, 0
  %v375 = vmul.f32 %v357, %v371
  %v376 = vmul.f32 %v357, %v372
  %v377 = vmul.f32 %v357, %v373
  %v378 = vmul.f32 %v357, %v374
  %v379 = vmul.f32 %v361, %v371
  %v380 = vmul.f32 %v361, %v372
  %v381 = vmul.f32 %v361, %v373
  %v382 = vmul.f32 %v361, %v374
  %v383 = vmul.f32 %v365, %v371
  %v384 = vmul.f32 %v365, %v372
  %v385 = vmul.f32 %v365, %v373
  %v386 = vmul.f32 %v365, %v374
  %v387 = vmul.f32 %v369, %v371
  %v388 = vmul.f32 %v369, %v372
  %v389 = vmul.f32 %v369, %v373
  %v390 = vmul.f32 %v369, %v374
  %v391 = vadd.f32 %v322, %v375
  %v392 = vadd.f32 %v323, %v376
  %v393 = vadd.f32 %v324, %v377
  %v394 = vadd.f32 %v325, %v378
  %v395 = vadd.f32 %v326, %v379
  %v396 = vadd.f32 %v327, %v380
  %v397 = vadd.f32 %v328, %v381
  %v398 = vadd.f32 %v329, %v382
  %v399 = vadd.f32 %v330, %v383
  %v400 = vadd.f32 %v331, %v384
  %v401 = vadd.f32 %v332, %v385
  %v402 = vadd.f32 %v333, %v386
  %v403 = vadd.f32 %v334, %v387
  %v404 = vadd.f32 %v335, %v388
  %v405 = vadd.f32 %v336, %v389
  %v406 = vadd.f32 %v337, %v390
  %407 = vrot.lane.b32.xlu0 %v190, 1
  %v408 = vpop.permute.xlu0 %407
  %409 = vrot.lane.b32.xlu0 %v191, 1
  %v410 = vpop.permute.xlu0 %409
  %411 = vrot.lane.b32.xlu0 %v192, 1
  %v412 = vpop.permute.xlu0 %411
  %413 = vrot.lane.b32.xlu0 %v193, 1
  %v414 = vpop.permute.xlu0 %413
  %vm415 = vcmp.lt.s32.totalorder %v207, 1
  %v416 = vsel %vm415, %v412, %v414
  %v417 = vsel %vm415, %v410, %v412
  %v418 = vsel %vm415, %v408, %v410
  %v419 = vsel %vm415, %v414, %v408
  %v420 = vmul.f32 %v419, %v70
  %v421 = vmul.f32 %v418, %v71
  %v422 = vmul.f32 %v417, %v72
  %v423 = vmul.f32 %v416, %v73
  %424 = vset.pattern.permute.xlu0 3
  %425 = vperm.xlu0 %424, %v116
  %v426 = vpop.permute.xlu0 %425
  %428 = vset.pattern.permute.xlu0 3
  %429 = vperm.xlu0 %428, %v117
  %v430 = vpop.permute.xlu0 %429
  %432 = vset.pattern.permute.xlu0 3
  %433 = vperm.xlu0 %432, %v118
  %v434 = vpop.permute.xlu0 %433
  %436 = vset.pattern.permute.xlu0 3
  %437 = vperm.xlu0 %436, %v119
  %v438 = vpop.permute.xlu0 %437
  %v440 = vperm.slane %v420, 0
  %v441 = vperm.slane %v421, 0
  %v442 = vperm.slane %v422, 0
  %v443 = vperm.slane %v423, 0
  %v444 = vmul.f32 %v426, %v440
  %v445 = vmul.f32 %v426, %v441
  %v446 = vmul.f32 %v426, %v442
  %v447 = vmul.f32 %v426, %v443
  %v448 = vmul.f32 %v430, %v440
  %v449 = vmul.f32 %v430, %v441
  %v450 = vmul.f32 %v430, %v442
  %v451 = vmul.f32 %v430, %v443
  %v452 = vmul.f32 %v434, %v440
  %v453 = vmul.f32 %v434, %v441
  %v454 = vmul.f32 %v434, %v442
  %v455 = vmul.f32 %v434, %v443
  %v456 = vmul.f32 %v438, %v440
  %v457 = vmul.f32 %v438, %v441
  %v458 = vmul.f32 %v438, %v442
  %v459 = vmul.f32 %v438, %v443
  %v460 = vadd.f32 %v391, %v444
  %v461 = vadd.f32 %v392, %v445
  %v462 = vadd.f32 %v393, %v446
  %v463 = vadd.f32 %v394, %v447
  %v464 = vadd.f32 %v395, %v448
  %v465 = vadd.f32 %v396, %v449
  %v466 = vadd.f32 %v397, %v450
  %v467 = vadd.f32 %v398, %v451
  %v468 = vadd.f32 %v399, %v452
  %v469 = vadd.f32 %v400, %v453
  %v470 = vadd.f32 %v401, %v454
  %v471 = vadd.f32 %v402, %v455
  %v472 = vadd.f32 %v403, %v456
  %v473 = vadd.f32 %v404, %v457
  %v474 = vadd.f32 %v405, %v458
  %v475 = vadd.f32 %v406, %v459
  %476 = vset.pattern.permute.xlu0 4
  %477 = vperm.xlu0 %476, %v116
  %v478 = vpop.permute.xlu0 %477
  %480 = vset.pattern.permute.xlu0 4
  %481 = vperm.xlu0 %480, %v117
  %v482 = vpop.permute.xlu0 %481
  %484 = vset.pattern.permute.xlu0 4
  %485 = vperm.xlu0 %484, %v118
  %v486 = vpop.permute.xlu0 %485
  %488 = vset.pattern.permute.xlu0 4
  %489 = vperm.xlu0 %488, %v119
  %v490 = vpop.permute.xlu0 %489
  %v492 = vmul.f32 %v478, %v190
  %v493 = vmul.f32 %v478, %v191
  %v494 = vmul.f32 %v478, %v192
  %v495 = vmul.f32 %v478, %v193
  %v496 = vmul.f32 %v482, %v190
  %v497 = vmul.f32 %v482, %v191
  %v498 = vmul.f32 %v482, %v192
  %v499 = vmul.f32 %v482, %v193
  %v500 = vmul.f32 %v486, %v190
  %v501 = vmul.f32 %v486, %v191
  %v502 = vmul.f32 %v486, %v192
  %v503 = vmul.f32 %v486, %v193
  %v504 = vmul.f32 %v490, %v190
  %v505 = vmul.f32 %v490, %v191
  %v506 = vmul.f32 %v490, %v192
  %v507 = vmul.f32 %v490, %v193
  %v508 = vadd.f32 %v460, %v492
  %v509 = vadd.f32 %v461, %v493
  %v510 = vadd.f32 %v462, %v494
  %v511 = vadd.f32 %v463, %v495
  %v512 = vadd.f32 %v464, %v496
  %v513 = vadd.f32 %v465, %v497
  %v514 = vadd.f32 %v466, %v498
  %v515 = vadd.f32 %v467, %v499
  %v516 = vadd.f32 %v468, %v500
  %v517 = vadd.f32 %v469, %v501
  %v518 = vadd.f32 %v470, %v502
  %v519 = vadd.f32 %v471, %v503
  %v520 = vadd.f32 %v472, %v504
  %v521 = vadd.f32 %v473, %v505
  %v522 = vadd.f32 %v474, %v506
  %v523 = vadd.f32 %v475, %v507
  %524 = vrot.lane.b32.xlu0 %v190, 127
  %v525 = vpop.permute.xlu0 %524
  %526 = vrot.lane.b32.xlu0 %v191, 127
  %v527 = vpop.permute.xlu0 %526
  %528 = vrot.lane.b32.xlu0 %v192, 127
  %v529 = vpop.permute.xlu0 %528
  %530 = vrot.lane.b32.xlu0 %v193, 127
  %v531 = vpop.permute.xlu0 %530
  %vm532 = vcmp.lt.s32.totalorder %v207, 127
  %v533 = vsel %vm532, %v529, %v531
  %v534 = vsel %vm532, %v527, %v529
  %v535 = vsel %vm532, %v525, %v527
  %v536 = vsel %vm532, %v531, %v525
  %v537 = vmul.f32 %v535, %v79
  %v538 = vmul.f32 %v534, %v80
  %v539 = vmul.f32 %v533, %v81
  %v540 = vmul.f32 %v536, %v82
  %541 = vset.pattern.permute.xlu0 5
  %542 = vperm.xlu0 %541, %v116
  %v543 = vpop.permute.xlu0 %542
  %545 = vset.pattern.permute.xlu0 5
  %546 = vperm.xlu0 %545, %v117
  %v547 = vpop.permute.xlu0 %546
  %549 = vset.pattern.permute.xlu0 5
  %550 = vperm.xlu0 %549, %v118
  %v551 = vpop.permute.xlu0 %550
  %553 = vset.pattern.permute.xlu0 5
  %554 = vperm.xlu0 %553, %v119
  %v555 = vpop.permute.xlu0 %554
  %v557 = vperm.slane %v537, 0
  %v558 = vperm.slane %v538, 0
  %v559 = vperm.slane %v539, 0
  %v560 = vperm.slane %v540, 0
  %v561 = vmul.f32 %v543, %v557
  %v562 = vmul.f32 %v543, %v558
  %v563 = vmul.f32 %v543, %v559
  %v564 = vmul.f32 %v543, %v560
  %v565 = vmul.f32 %v547, %v557
  %v566 = vmul.f32 %v547, %v558
  %v567 = vmul.f32 %v547, %v559
  %v568 = vmul.f32 %v547, %v560
  %v569 = vmul.f32 %v551, %v557
  %v570 = vmul.f32 %v551, %v558
  %v571 = vmul.f32 %v551, %v559
  %v572 = vmul.f32 %v551, %v560
  %v573 = vmul.f32 %v555, %v557
  %v574 = vmul.f32 %v555, %v558
  %v575 = vmul.f32 %v555, %v559
  %v576 = vmul.f32 %v555, %v560
  %v577 = vadd.f32 %v508, %v561
  %v578 = vadd.f32 %v509, %v562
  %v579 = vadd.f32 %v510, %v563
  %v580 = vadd.f32 %v511, %v564
  %v581 = vadd.f32 %v512, %v565
  %v582 = vadd.f32 %v513, %v566
  %v583 = vadd.f32 %v514, %v567
  %v584 = vadd.f32 %v515, %v568
  %v585 = vadd.f32 %v516, %v569
  %v586 = vadd.f32 %v517, %v570
  %v587 = vadd.f32 %v518, %v571
  %v588 = vadd.f32 %v519, %v572
  %v589 = vadd.f32 %v520, %v573
  %v590 = vadd.f32 %v521, %v574
  %v591 = vadd.f32 %v522, %v575
  %v592 = vadd.f32 %v523, %v576
  %593 = vrot.lane.b32.xlu0 %v190, 113
  %v594 = vpop.permute.xlu0 %593
  %595 = vrot.lane.b32.xlu0 %v191, 113
  %v596 = vpop.permute.xlu0 %595
  %597 = vrot.lane.b32.xlu0 %v192, 113
  %v598 = vpop.permute.xlu0 %597
  %599 = vrot.lane.b32.xlu0 %v193, 113
  %v600 = vpop.permute.xlu0 %599
  %vm601 = vcmp.lt.s32.totalorder %v207, 113
  %v602 = vsel %vm601, %v598, %v600
  %v603 = vsel %vm601, %v596, %v598
  %v604 = vsel %vm601, %v594, %v596
  %v605 = vsel %vm601, %v600, %v594
  %v606 = vmul.f32 %v604, %v88
  %v607 = vmul.f32 %v603, %v89
  %v608 = vmul.f32 %v602, %v90
  %v609 = vmul.f32 %v605, %v91
  %610 = vset.pattern.permute.xlu0 6
  %611 = vperm.xlu0 %610, %v116
  %v612 = vpop.permute.xlu0 %611
  %614 = vset.pattern.permute.xlu0 6
  %615 = vperm.xlu0 %614, %v117
  %v616 = vpop.permute.xlu0 %615
  %618 = vset.pattern.permute.xlu0 6
  %619 = vperm.xlu0 %618, %v118
  %v620 = vpop.permute.xlu0 %619
  %622 = vset.pattern.permute.xlu0 6
  %623 = vperm.xlu0 %622, %v119
  %v624 = vpop.permute.xlu0 %623
  %v626 = vperm.slane %v606, 0
  %v627 = vperm.slane %v607, 0
  %v628 = vperm.slane %v608, 0
  %v629 = vperm.slane %v609, 0
  %v630 = vmul.f32 %v612, %v626
  %v631 = vmul.f32 %v612, %v627
  %v632 = vmul.f32 %v612, %v628
  %v633 = vmul.f32 %v612, %v629
  %v634 = vmul.f32 %v616, %v626
  %v635 = vmul.f32 %v616, %v627
  %v636 = vmul.f32 %v616, %v628
  %v637 = vmul.f32 %v616, %v629
  %v638 = vmul.f32 %v620, %v626
  %v639 = vmul.f32 %v620, %v627
  %v640 = vmul.f32 %v620, %v628
  %v641 = vmul.f32 %v620, %v629
  %v642 = vmul.f32 %v624, %v626
  %v643 = vmul.f32 %v624, %v627
  %v644 = vmul.f32 %v624, %v628
  %v645 = vmul.f32 %v624, %v629
  %v646 = vadd.f32 %v577, %v630
  %v647 = vadd.f32 %v578, %v631
  %v648 = vadd.f32 %v579, %v632
  %v649 = vadd.f32 %v580, %v633
  %v650 = vadd.f32 %v581, %v634
  %v651 = vadd.f32 %v582, %v635
  %v652 = vadd.f32 %v583, %v636
  %v653 = vadd.f32 %v584, %v637
  %v654 = vadd.f32 %v585, %v638
  %v655 = vadd.f32 %v586, %v639
  %v656 = vadd.f32 %v587, %v640
  %v657 = vadd.f32 %v588, %v641
  %v658 = vadd.f32 %v589, %v642
  %v659 = vadd.f32 %v590, %v643
  %v660 = vadd.f32 %v591, %v644
  %v661 = vadd.f32 %v592, %v645
  %662 = vrot.lane.b32.xlu0 %v190, 112
  %v663 = vpop.permute.xlu0 %662
  %664 = vrot.lane.b32.xlu0 %v191, 112
  %v665 = vpop.permute.xlu0 %664
  %666 = vrot.lane.b32.xlu0 %v192, 112
  %v667 = vpop.permute.xlu0 %666
  %668 = vrot.lane.b32.xlu0 %v193, 112
  %v669 = vpop.permute.xlu0 %668
  %vm670 = vcmp.lt.s32.totalorder %v207, 112
  %v671 = vsel %vm670, %v667, %v669
  %v672 = vsel %vm670, %v665, %v667
  %v673 = vsel %vm670, %v663, %v665
  %v674 = vsel %vm670, %v669, %v663
  %v675 = vmul.f32 %v673, %v97
  %v676 = vmul.f32 %v672, %v98
  %v677 = vmul.f32 %v671, %v99
  %v678 = vmul.f32 %v674, %v100
  %679 = vset.pattern.permute.xlu0 7
  %680 = vperm.xlu0 %679, %v116
  %v681 = vpop.permute.xlu0 %680
  %683 = vset.pattern.permute.xlu0 7
  %684 = vperm.xlu0 %683, %v117
  %v685 = vpop.permute.xlu0 %684
  %687 = vset.pattern.permute.xlu0 7
  %688 = vperm.xlu0 %687, %v118
  %v689 = vpop.permute.xlu0 %688
  %691 = vset.pattern.permute.xlu0 7
  %692 = vperm.xlu0 %691, %v119
  %v693 = vpop.permute.xlu0 %692
  %v695 = vperm.slane %v675, 0
  %v696 = vperm.slane %v676, 0
  %v697 = vperm.slane %v677, 0
  %v698 = vperm.slane %v678, 0
  %v699 = vmul.f32 %v681, %v695
  %v700 = vmul.f32 %v681, %v696
  %v701 = vmul.f32 %v681, %v697
  %v702 = vmul.f32 %v681, %v698
  %v703 = vmul.f32 %v685, %v695
  %v704 = vmul.f32 %v685, %v696
  %v705 = vmul.f32 %v685, %v697
  %v706 = vmul.f32 %v685, %v698
  %v707 = vmul.f32 %v689, %v695
  %v708 = vmul.f32 %v689, %v696
  %v709 = vmul.f32 %v689, %v697
  %v710 = vmul.f32 %v689, %v698
  %v711 = vmul.f32 %v693, %v695
  %v712 = vmul.f32 %v693, %v696
  %v713 = vmul.f32 %v693, %v697
  %v714 = vmul.f32 %v693, %v698
  %v715 = vadd.f32 %v646, %v699
  %v716 = vadd.f32 %v647, %v700
  %v717 = vadd.f32 %v648, %v701
  %v718 = vadd.f32 %v649, %v702
  %v719 = vadd.f32 %v650, %v703
  %v720 = vadd.f32 %v651, %v704
  %v721 = vadd.f32 %v652, %v705
  %v722 = vadd.f32 %v653, %v706
  %v723 = vadd.f32 %v654, %v707
  %v724 = vadd.f32 %v655, %v708
  %v725 = vadd.f32 %v656, %v709
  %v726 = vadd.f32 %v657, %v710
  %v727 = vadd.f32 %v658, %v711
  %v728 = vadd.f32 %v659, %v712
  %v729 = vadd.f32 %v660, %v713
  %v730 = vadd.f32 %v661, %v714
  %731 = vrot.lane.b32.xlu0 %v190, 111
  %v732 = vpop.permute.xlu0 %731
  %733 = vrot.lane.b32.xlu0 %v191, 111
  %v734 = vpop.permute.xlu0 %733
  %735 = vrot.lane.b32.xlu0 %v192, 111
  %v736 = vpop.permute.xlu0 %735
  %737 = vrot.lane.b32.xlu0 %v193, 111
  %v738 = vpop.permute.xlu0 %737
  %vm739 = vcmp.lt.s32.totalorder %v207, 111
  %v740 = vsel %vm739, %v736, %v738
  %v741 = vsel %vm739, %v734, %v736
  %v742 = vsel %vm739, %v732, %v734
  %v743 = vsel %vm739, %v738, %v732
  %v744 = vmul.f32 %v742, %v106
  %v745 = vmul.f32 %v741, %v107
  %v746 = vmul.f32 %v740, %v108
  %v747 = vmul.f32 %v743, %v109
  %748 = vset.pattern.permute.xlu0 8
  %749 = vperm.xlu0 %748, %v116
  %v750 = vpop.permute.xlu0 %749
  %752 = vset.pattern.permute.xlu0 8
  %753 = vperm.xlu0 %752, %v117
  %v754 = vpop.permute.xlu0 %753
  %756 = vset.pattern.permute.xlu0 8
  %757 = vperm.xlu0 %756, %v118
  %v758 = vpop.permute.xlu0 %757
  %760 = vset.pattern.permute.xlu0 8
  %761 = vperm.xlu0 %760, %v119
  %v762 = vpop.permute.xlu0 %761
  %v764 = vperm.slane %v744, 0
  %v765 = vperm.slane %v745, 0
  %v766 = vperm.slane %v746, 0
  %v767 = vperm.slane %v747, 0
  %v768 = vmul.f32 %v750, %v764
  %v769 = vmul.f32 %v750, %v765
  %v770 = vmul.f32 %v750, %v766
  %v771 = vmul.f32 %v750, %v767
  %v772 = vmul.f32 %v754, %v764
  %v773 = vmul.f32 %v754, %v765
  %v774 = vmul.f32 %v754, %v766
  %v775 = vmul.f32 %v754, %v767
  %v776 = vmul.f32 %v758, %v764
  %v777 = vmul.f32 %v758, %v765
  %v778 = vmul.f32 %v758, %v766
  %v779 = vmul.f32 %v758, %v767
  %v780 = vmul.f32 %v762, %v764
  %v781 = vmul.f32 %v762, %v765
  %v782 = vmul.f32 %v762, %v766
  %v783 = vmul.f32 %v762, %v767
  %v784 = vadd.f32 %v715, %v768
  %v785 = vadd.f32 %v716, %v769
  %v786 = vadd.f32 %v717, %v770
  %v787 = vadd.f32 %v718, %v771
  %v788 = vadd.f32 %v719, %v772
  %v789 = vadd.f32 %v720, %v773
  %v790 = vadd.f32 %v721, %v774
  %v791 = vadd.f32 %v722, %v775
  %v792 = vadd.f32 %v723, %v776
  %v793 = vadd.f32 %v724, %v777
  %v794 = vadd.f32 %v725, %v778
  %v795 = vadd.f32 %v726, %v779
  %v796 = vadd.f32 %v727, %v780
  %v797 = vadd.f32 %v728, %v781
  %v798 = vadd.f32 %v729, %v782
  %v799 = vadd.f32 %v730, %v783
  %vm800 = vcmp.gt.f32.partialorder %v784, 0.0
  %vm801 = vcmp.gt.f32.partialorder %v785, 0.0
  %vm802 = vcmp.gt.f32.partialorder %v786, 0.0
  %vm803 = vcmp.gt.f32.partialorder %v787, 0.0
  %vm804 = vcmp.gt.f32.partialorder %v788, 0.0
  %vm805 = vcmp.gt.f32.partialorder %v789, 0.0
  %vm806 = vcmp.gt.f32.partialorder %v790, 0.0
  %vm807 = vcmp.gt.f32.partialorder %v791, 0.0
  %vm808 = vcmp.gt.f32.partialorder %v792, 0.0
  %vm809 = vcmp.gt.f32.partialorder %v793, 0.0
  %vm810 = vcmp.gt.f32.partialorder %v794, 0.0
  %vm811 = vcmp.gt.f32.partialorder %v795, 0.0
  %vm812 = vcmp.gt.f32.partialorder %v796, 0.0
  %vm813 = vcmp.gt.f32.partialorder %v797, 0.0
  %vm814 = vcmp.gt.f32.partialorder %v798, 0.0
  %vm815 = vcmp.gt.f32.partialorder %v799, 0.0
  %v816 = vmul.f32 %v784, 0.2
  %v817 = vmul.f32 %v785, 0.2
  %v818 = vmul.f32 %v786, 0.2
  %v819 = vmul.f32 %v787, 0.2
  %v820 = vmul.f32 %v788, 0.2
  %v821 = vmul.f32 %v789, 0.2
  %v822 = vmul.f32 %v790, 0.2
  %v823 = vmul.f32 %v791, 0.2
  %v824 = vmul.f32 %v792, 0.2
  %v825 = vmul.f32 %v793, 0.2
  %v826 = vmul.f32 %v794, 0.2
  %v827 = vmul.f32 %v795, 0.2
  %v828 = vmul.f32 %v796, 0.2
  %v829 = vmul.f32 %v797, 0.2
  %v830 = vmul.f32 %v798, 0.2
  %v831 = vmul.f32 %v799, 0.2
  %v832 = vsel %vm800, %v784, %v816
  %v833 = vsel %vm801, %v785, %v817
  %v834 = vsel %vm802, %v786, %v818
  %v835 = vsel %vm803, %v787, %v819
  %v836 = vsel %vm804, %v788, %v820
  %v837 = vsel %vm805, %v789, %v821
  %v838 = vsel %vm806, %v790, %v822
  %v839 = vsel %vm807, %v791, %v823
  %v840 = vsel %vm808, %v792, %v824
  %v841 = vsel %vm809, %v793, %v825
  %v842 = vsel %vm810, %v794, %v826
  %v843 = vsel %vm811, %v795, %v827
  %v844 = vsel %vm812, %v796, %v828
  %v845 = vsel %vm813, %v797, %v829
  %v846 = vsel %vm814, %v798, %v830
  %v847 = vsel %vm815, %v799, %v831
  %s848 = scalar_lea.vmem %s5, 128
  %v849 = vld [vmem:[%s848] sm:$0xff]
  %v850 = vld [vmem:[%s848 + $0x8] sm:$0xff]
  %v851 = vld [vmem:[%s848 + $0x10] sm:$0xff]
  %v852 = vld [vmem:[%s848 + $0x18] sm:$0xff]
  %853 = vrot.lane.b32.xlu0 %v832, 17
  %v854 = vpop.permute.xlu0 %853
  %855 = vrot.lane.b32.xlu0 %v836, 17
  %v856 = vpop.permute.xlu0 %855
  %857 = vrot.lane.b32.xlu0 %v840, 17
  %v858 = vpop.permute.xlu0 %857
  %859 = vrot.lane.b32.xlu0 %v844, 17
  %v860 = vpop.permute.xlu0 %859
  %861 = vrot.lane.b32.xlu0 %v833, 17
  %v862 = vpop.permute.xlu0 %861
  %863 = vrot.lane.b32.xlu0 %v837, 17
  %v864 = vpop.permute.xlu0 %863
  %865 = vrot.lane.b32.xlu0 %v841, 17
  %v866 = vpop.permute.xlu0 %865
  %867 = vrot.lane.b32.xlu0 %v845, 17
  %v868 = vpop.permute.xlu0 %867
  %869 = vrot.lane.b32.xlu0 %v834, 17
  %v870 = vpop.permute.xlu0 %869
  %871 = vrot.lane.b32.xlu0 %v838, 17
  %v872 = vpop.permute.xlu0 %871
  %873 = vrot.lane.b32.xlu0 %v842, 17
  %v874 = vpop.permute.xlu0 %873
  %875 = vrot.lane.b32.xlu0 %v846, 17
  %v876 = vpop.permute.xlu0 %875
  %877 = vrot.lane.b32.xlu0 %v835, 17
  %v878 = vpop.permute.xlu0 %877
  %879 = vrot.lane.b32.xlu0 %v839, 17
  %v880 = vpop.permute.xlu0 %879
  %881 = vrot.lane.b32.xlu0 %v843, 17
  %v882 = vpop.permute.xlu0 %881
  %883 = vrot.lane.b32.xlu0 %v847, 17
  %v884 = vpop.permute.xlu0 %883
  %v885 = vsel %vm208, %v870, %v878
  %v886 = vsel %vm208, %v872, %v880
  %v887 = vsel %vm208, %v874, %v882
  %v888 = vsel %vm208, %v876, %v884
  %v889 = vsel %vm208, %v862, %v870
  %v890 = vsel %vm208, %v864, %v872
  %v891 = vsel %vm208, %v866, %v874
  %v892 = vsel %vm208, %v868, %v876
  %v893 = vsel %vm208, %v854, %v862
  %v894 = vsel %vm208, %v856, %v864
  %v895 = vsel %vm208, %v858, %v866
  %v896 = vsel %vm208, %v860, %v868
  %v897 = vsel %vm208, %v878, %v854
  %v898 = vsel %vm208, %v880, %v856
  %v899 = vsel %vm208, %v882, %v858
  %v900 = vsel %vm208, %v884, %v860
  %v901 = vmul.f32 %v897, %v43
  %v902 = vmul.f32 %v893, %v44
  %v903 = vmul.f32 %v889, %v45
  %v904 = vmul.f32 %v885, %v46
  %v905 = vmul.f32 %v898, %v43
  %v906 = vmul.f32 %v894, %v44
  %v907 = vmul.f32 %v890, %v45
  %v908 = vmul.f32 %v886, %v46
  %v909 = vmul.f32 %v899, %v43
  %v910 = vmul.f32 %v895, %v44
  %v911 = vmul.f32 %v891, %v45
  %v912 = vmul.f32 %v887, %v46
  %v913 = vmul.f32 %v900, %v43
  %v914 = vmul.f32 %v896, %v44
  %v915 = vmul.f32 %v892, %v45
  %v916 = vmul.f32 %v888, %v46
  %v917 = vld [vmem:[%s5] sm:$0xff]
  %v918 = vld [vmem:[%s5 + $0x8] sm:$0xff]
  %v919 = vld [vmem:[%s5 + $0x10] sm:$0xff]
  %v920 = vld [vmem:[%s5 + $0x18] sm:$0xff]
  %vm921 = vcmask 261120
  %v923 = vsel %vm921, %v917, 0
  %v926 = vsel %vm921, %v918, 0
  %v929 = vsel %vm921, %v919, 0
  %v932 = vsel %vm921, %v920, 0
  %934 = vmatpush.msra.mxu0 0.0
  %935 = vmatpush.msra.mxu0 0.0
  %936 = vmatpush.msra.mxu0 0.0
  %937 = vmatpush.msra.mxu0 0.0
  %938 = vmatpush.msra.mxu0 0.0
  %939 = vmatpush.msra.mxu0 0.0
  %940 = vmatpush.msra.mxu0 0.0
  %941 = vmatpush.msra.mxu0 0.0
  %942 = vmatpush.msra.mxu0 0.0
  %943 = vmatpush.msra.mxu0 0.0
  %944 = vmatpush.msra.mxu0 0.0
  %945 = vmatpush.msra.mxu0 0.0
  %946 = vmatpush.msra.mxu0 %v913
  %947 = vmatpush.msra.mxu0 %v909
  %948 = vmatpush.msra.mxu0 %v905
  %949 = vmatpush.msra.mxu0 %v901
  %950 = vmatmul.f32.gmra.mxu0 %v923
  %v951 = vpop.f32.mrf.mxu0
  %v952 = vadd.f32 0.0, %v951
  %953 = vmatmul.f32.gmra.mxu0 %v926
  %v954 = vpop.f32.mrf.mxu0
  %v955 = vadd.f32 0.0, %v954
  %956 = vmatmul.f32.gmra.mxu0 %v929
  %v957 = vpop.f32.mrf.mxu0
  %v958 = vadd.f32 0.0, %v957
  %959 = vmatmul.f32.gmra.mxu0 %v932
  %v960 = vpop.f32.mrf.mxu0
  %v961 = vadd.f32 0.0, %v960
  %962 = vdwg.mxu0
  %963 = vmatpush.msra.mxu0 0.0
  %964 = vmatpush.msra.mxu0 0.0
  %965 = vmatpush.msra.mxu0 0.0
  %966 = vmatpush.msra.mxu0 0.0
  %967 = vmatpush.msra.mxu0 0.0
  %968 = vmatpush.msra.mxu0 0.0
  %969 = vmatpush.msra.mxu0 0.0
  %970 = vmatpush.msra.mxu0 0.0
  %971 = vmatpush.msra.mxu0 0.0
  %972 = vmatpush.msra.mxu0 0.0
  %973 = vmatpush.msra.mxu0 0.0
  %974 = vmatpush.msra.mxu0 0.0
  %975 = vmatpush.msra.mxu0 %v914
  %976 = vmatpush.msra.mxu0 %v910
  %977 = vmatpush.msra.mxu0 %v906
  %978 = vmatpush.msra.mxu0 %v902
  %979 = vmatmul.f32.gmra.mxu0 %v923
  %v980 = vpop.f32.mrf.mxu0
  %v981 = vadd.f32 0.0, %v980
  %982 = vmatmul.f32.gmra.mxu0 %v926
  %v983 = vpop.f32.mrf.mxu0
  %v984 = vadd.f32 0.0, %v983
  %985 = vmatmul.f32.gmra.mxu0 %v929
  %v986 = vpop.f32.mrf.mxu0
  %v987 = vadd.f32 0.0, %v986
  %988 = vmatmul.f32.gmra.mxu0 %v932
  %v989 = vpop.f32.mrf.mxu0
  %v990 = vadd.f32 0.0, %v989
  %991 = vdwg.mxu0
  %992 = vmatpush.msra.mxu0 0.0
  %993 = vmatpush.msra.mxu0 0.0
  %994 = vmatpush.msra.mxu0 0.0
  %995 = vmatpush.msra.mxu0 0.0
  %996 = vmatpush.msra.mxu0 0.0
  %997 = vmatpush.msra.mxu0 0.0
  %998 = vmatpush.msra.mxu0 0.0
  %999 = vmatpush.msra.mxu0 0.0
  %1000 = vmatpush.msra.mxu0 0.0
  %1001 = vmatpush.msra.mxu0 0.0
  %1002 = vmatpush.msra.mxu0 0.0
  %1003 = vmatpush.msra.mxu0 0.0
  %1004 = vmatpush.msra.mxu0 %v915
  %1005 = vmatpush.msra.mxu0 %v911
  %1006 = vmatpush.msra.mxu0 %v907
  %1007 = vmatpush.msra.mxu0 %v903
  %1008 = vmatmul.f32.gmra.mxu0 %v923
  %v1009 = vpop.f32.mrf.mxu0
  %v1010 = vadd.f32 0.0, %v1009
  %1011 = vmatmul.f32.gmra.mxu0 %v926
  %v1012 = vpop.f32.mrf.mxu0
  %v1013 = vadd.f32 0.0, %v1012
  %1014 = vmatmul.f32.gmra.mxu0 %v929
  %v1015 = vpop.f32.mrf.mxu0
  %v1016 = vadd.f32 0.0, %v1015
  %1017 = vmatmul.f32.gmra.mxu0 %v932
  %v1018 = vpop.f32.mrf.mxu0
  %v1019 = vadd.f32 0.0, %v1018
  %1020 = vdwg.mxu0
  %1021 = vmatpush.msra.mxu0 0.0
  %1022 = vmatpush.msra.mxu0 0.0
  %1023 = vmatpush.msra.mxu0 0.0
  %1024 = vmatpush.msra.mxu0 0.0
  %1025 = vmatpush.msra.mxu0 0.0
  %1026 = vmatpush.msra.mxu0 0.0
  %1027 = vmatpush.msra.mxu0 0.0
  %1028 = vmatpush.msra.mxu0 0.0
  %1029 = vmatpush.msra.mxu0 0.0
  %1030 = vmatpush.msra.mxu0 0.0
  %1031 = vmatpush.msra.mxu0 0.0
  %1032 = vmatpush.msra.mxu0 0.0
  %1033 = vmatpush.msra.mxu0 %v916
  %1034 = vmatpush.msra.mxu0 %v912
  %1035 = vmatpush.msra.mxu0 %v908
  %1036 = vmatpush.msra.mxu0 %v904
  %1037 = vmatmul.f32.gmra.mxu0 %v923
  %v1038 = vpop.f32.mrf.mxu0
  %v1039 = vadd.f32 0.0, %v1038
  %1040 = vmatmul.f32.gmra.mxu0 %v926
  %v1041 = vpop.f32.mrf.mxu0
  %v1042 = vadd.f32 0.0, %v1041
  %1043 = vmatmul.f32.gmra.mxu0 %v929
  %v1044 = vpop.f32.mrf.mxu0
  %v1045 = vadd.f32 0.0, %v1044
  %1046 = vmatmul.f32.gmra.mxu0 %v932
  %v1047 = vpop.f32.mrf.mxu0
  %v1048 = vadd.f32 0.0, %v1047
  %1049 = vdwg.mxu0
  %v1051 = vsel %vm921, %v849, 0
  %v1054 = vsel %vm921, %v850, 0
  %v1057 = vsel %vm921, %v851, 0
  %v1060 = vsel %vm921, %v852, 0
  %1062 = vmatpush.msra.mxu0 0.0
  %1063 = vmatpush.msra.mxu0 0.0
  %1064 = vmatpush.msra.mxu0 0.0
  %1065 = vmatpush.msra.mxu0 0.0
  %1066 = vmatpush.msra.mxu0 0.0
  %1067 = vmatpush.msra.mxu0 0.0
  %1068 = vmatpush.msra.mxu0 0.0
  %1069 = vmatpush.msra.mxu0 0.0
  %1070 = vmatpush.msra.mxu0 0.0
  %1071 = vmatpush.msra.mxu0 0.0
  %1072 = vmatpush.msra.mxu0 0.0
  %1073 = vmatpush.msra.mxu0 0.0
  %1074 = vmatpush.msra.mxu0 %v844
  %1075 = vmatpush.msra.mxu0 %v840
  %1076 = vmatpush.msra.mxu0 %v836
  %1077 = vmatpush.msra.mxu0 %v832
  %1078 = vmatmul.f32.gmra.mxu0 %v1051
  %v1079 = vpop.f32.mrf.mxu0
  %v1080 = vadd.f32 %v952, %v1079
  %1081 = vmatmul.f32.gmra.mxu0 %v1054
  %v1082 = vpop.f32.mrf.mxu0
  %v1083 = vadd.f32 %v955, %v1082
  %1084 = vmatmul.f32.gmra.mxu0 %v1057
  %v1085 = vpop.f32.mrf.mxu0
  %v1086 = vadd.f32 %v958, %v1085
  %1087 = vmatmul.f32.gmra.mxu0 %v1060
  %v1088 = vpop.f32.mrf.mxu0
  %v1089 = vadd.f32 %v961, %v1088
  %1090 = vdwg.mxu0
  %1091 = vmatpush.msra.mxu0 0.0
  %1092 = vmatpush.msra.mxu0 0.0
  %1093 = vmatpush.msra.mxu0 0.0
  %1094 = vmatpush.msra.mxu0 0.0
  %1095 = vmatpush.msra.mxu0 0.0
  %1096 = vmatpush.msra.mxu0 0.0
  %1097 = vmatpush.msra.mxu0 0.0
  %1098 = vmatpush.msra.mxu0 0.0
  %1099 = vmatpush.msra.mxu0 0.0
  %1100 = vmatpush.msra.mxu0 0.0
  %1101 = vmatpush.msra.mxu0 0.0
  %1102 = vmatpush.msra.mxu0 0.0
  %1103 = vmatpush.msra.mxu0 %v845
  %1104 = vmatpush.msra.mxu0 %v841
  %1105 = vmatpush.msra.mxu0 %v837
  %1106 = vmatpush.msra.mxu0 %v833
  %1107 = vmatmul.f32.gmra.mxu0 %v1051
  %v1108 = vpop.f32.mrf.mxu0
  %v1109 = vadd.f32 %v981, %v1108
  %1110 = vmatmul.f32.gmra.mxu0 %v1054
  %v1111 = vpop.f32.mrf.mxu0
  %v1112 = vadd.f32 %v984, %v1111
  %1113 = vmatmul.f32.gmra.mxu0 %v1057
  %v1114 = vpop.f32.mrf.mxu0
  %v1115 = vadd.f32 %v987, %v1114
  %1116 = vmatmul.f32.gmra.mxu0 %v1060
  %v1117 = vpop.f32.mrf.mxu0
  %v1118 = vadd.f32 %v990, %v1117
  %1119 = vdwg.mxu0
  %1120 = vmatpush.msra.mxu0 0.0
  %1121 = vmatpush.msra.mxu0 0.0
  %1122 = vmatpush.msra.mxu0 0.0
  %1123 = vmatpush.msra.mxu0 0.0
  %1124 = vmatpush.msra.mxu0 0.0
  %1125 = vmatpush.msra.mxu0 0.0
  %1126 = vmatpush.msra.mxu0 0.0
  %1127 = vmatpush.msra.mxu0 0.0
  %1128 = vmatpush.msra.mxu0 0.0
  %1129 = vmatpush.msra.mxu0 0.0
  %1130 = vmatpush.msra.mxu0 0.0
  %1131 = vmatpush.msra.mxu0 0.0
  %1132 = vmatpush.msra.mxu0 %v846
  %1133 = vmatpush.msra.mxu0 %v842
  %1134 = vmatpush.msra.mxu0 %v838
  %1135 = vmatpush.msra.mxu0 %v834
  %1136 = vmatmul.f32.gmra.mxu0 %v1051
  %v1137 = vpop.f32.mrf.mxu0
  %v1138 = vadd.f32 %v1010, %v1137
  %1139 = vmatmul.f32.gmra.mxu0 %v1054
  %v1140 = vpop.f32.mrf.mxu0
  %v1141 = vadd.f32 %v1013, %v1140
  %1142 = vmatmul.f32.gmra.mxu0 %v1057
  %v1143 = vpop.f32.mrf.mxu0
  %v1144 = vadd.f32 %v1016, %v1143
  %1145 = vmatmul.f32.gmra.mxu0 %v1060
  %v1146 = vpop.f32.mrf.mxu0
  %v1147 = vadd.f32 %v1019, %v1146
  %1148 = vdwg.mxu0
  %1149 = vmatpush.msra.mxu0 0.0
  %1150 = vmatpush.msra.mxu0 0.0
  %1151 = vmatpush.msra.mxu0 0.0
  %1152 = vmatpush.msra.mxu0 0.0
  %1153 = vmatpush.msra.mxu0 0.0
  %1154 = vmatpush.msra.mxu0 0.0
  %1155 = vmatpush.msra.mxu0 0.0
  %1156 = vmatpush.msra.mxu0 0.0
  %1157 = vmatpush.msra.mxu0 0.0
  %1158 = vmatpush.msra.mxu0 0.0
  %1159 = vmatpush.msra.mxu0 0.0
  %1160 = vmatpush.msra.mxu0 0.0
  %1161 = vmatpush.msra.mxu0 %v847
  %1162 = vmatpush.msra.mxu0 %v843
  %1163 = vmatpush.msra.mxu0 %v839
  %1164 = vmatpush.msra.mxu0 %v835
  %1165 = vmatmul.f32.gmra.mxu0 %v1051
  %v1166 = vpop.f32.mrf.mxu0
  %v1167 = vadd.f32 %v1039, %v1166
  %1168 = vmatmul.f32.gmra.mxu0 %v1054
  %v1169 = vpop.f32.mrf.mxu0
  %v1170 = vadd.f32 %v1042, %v1169
  %1171 = vmatmul.f32.gmra.mxu0 %v1057
  %v1172 = vpop.f32.mrf.mxu0
  %v1173 = vadd.f32 %v1045, %v1172
  %1174 = vmatmul.f32.gmra.mxu0 %v1060
  %v1175 = vpop.f32.mrf.mxu0
  %v1176 = vadd.f32 %v1048, %v1175
  %1177 = vdwg.mxu0
  %1178 = vrot.lane.b32.xlu0 %v832, 16
  %v1179 = vpop.permute.xlu0 %1178
  %1180 = vrot.lane.b32.xlu0 %v836, 16
  %v1181 = vpop.permute.xlu0 %1180
  %1182 = vrot.lane.b32.xlu0 %v840, 16
  %v1183 = vpop.permute.xlu0 %1182
  %1184 = vrot.lane.b32.xlu0 %v844, 16
  %v1185 = vpop.permute.xlu0 %1184
  %1186 = vrot.lane.b32.xlu0 %v833, 16
  %v1187 = vpop.permute.xlu0 %1186
  %1188 = vrot.lane.b32.xlu0 %v837, 16
  %v1189 = vpop.permute.xlu0 %1188
  %1190 = vrot.lane.b32.xlu0 %v841, 16
  %v1191 = vpop.permute.xlu0 %1190
  %1192 = vrot.lane.b32.xlu0 %v845, 16
  %v1193 = vpop.permute.xlu0 %1192
  %1194 = vrot.lane.b32.xlu0 %v834, 16
  %v1195 = vpop.permute.xlu0 %1194
  %1196 = vrot.lane.b32.xlu0 %v838, 16
  %v1197 = vpop.permute.xlu0 %1196
  %1198 = vrot.lane.b32.xlu0 %v842, 16
  %v1199 = vpop.permute.xlu0 %1198
  %1200 = vrot.lane.b32.xlu0 %v846, 16
  %v1201 = vpop.permute.xlu0 %1200
  %1202 = vrot.lane.b32.xlu0 %v835, 16
  %v1203 = vpop.permute.xlu0 %1202
  %1204 = vrot.lane.b32.xlu0 %v839, 16
  %v1205 = vpop.permute.xlu0 %1204
  %1206 = vrot.lane.b32.xlu0 %v843, 16
  %v1207 = vpop.permute.xlu0 %1206
  %1208 = vrot.lane.b32.xlu0 %v847, 16
  %v1209 = vpop.permute.xlu0 %1208
  %v1210 = vsel %vm277, %v1195, %v1203
  %v1211 = vsel %vm277, %v1197, %v1205
  %v1212 = vsel %vm277, %v1199, %v1207
  %v1213 = vsel %vm277, %v1201, %v1209
  %v1214 = vsel %vm277, %v1187, %v1195
  %v1215 = vsel %vm277, %v1189, %v1197
  %v1216 = vsel %vm277, %v1191, %v1199
  %v1217 = vsel %vm277, %v1193, %v1201
  %v1218 = vsel %vm277, %v1179, %v1187
  %v1219 = vsel %vm277, %v1181, %v1189
  %v1220 = vsel %vm277, %v1183, %v1191
  %v1221 = vsel %vm277, %v1185, %v1193
  %v1222 = vsel %vm277, %v1203, %v1179
  %v1223 = vsel %vm277, %v1205, %v1181
  %v1224 = vsel %vm277, %v1207, %v1183
  %v1225 = vsel %vm277, %v1209, %v1185
  %v1226 = vmul.f32 %v1222, %v52
  %v1227 = vmul.f32 %v1218, %v53
  %v1228 = vmul.f32 %v1214, %v54
  %v1229 = vmul.f32 %v1210, %v55
  %v1230 = vmul.f32 %v1223, %v52
  %v1231 = vmul.f32 %v1219, %v53
  %v1232 = vmul.f32 %v1215, %v54
  %v1233 = vmul.f32 %v1211, %v55
  %v1234 = vmul.f32 %v1224, %v52
  %v1235 = vmul.f32 %v1220, %v53
  %v1236 = vmul.f32 %v1216, %v54
  %v1237 = vmul.f32 %v1212, %v55
  %v1238 = vmul.f32 %v1225, %v52
  %v1239 = vmul.f32 %v1221, %v53
  %v1240 = vmul.f32 %v1217, %v54
  %v1241 = vmul.f32 %v1213, %v55
  %s1242 = scalar_lea.vmem %s5, 32
  %v1243 = vld [vmem:[%s1242] sm:$0xff]
  %v1244 = vld [vmem:[%s1242 + $0x8] sm:$0xff]
  %v1245 = vld [vmem:[%s1242 + $0x10] sm:$0xff]
  %v1246 = vld [vmem:[%s1242 + $0x18] sm:$0xff]
  %v1248 = vsel %vm921, %v1243, 0
  %v1251 = vsel %vm921, %v1244, 0
  %v1254 = vsel %vm921, %v1245, 0
  %v1257 = vsel %vm921, %v1246, 0
  %1259 = vmatpush.msra.mxu0 0.0
  %1260 = vmatpush.msra.mxu0 0.0
  %1261 = vmatpush.msra.mxu0 0.0
  %1262 = vmatpush.msra.mxu0 0.0
  %1263 = vmatpush.msra.mxu0 0.0
  %1264 = vmatpush.msra.mxu0 0.0
  %1265 = vmatpush.msra.mxu0 0.0
  %1266 = vmatpush.msra.mxu0 0.0
  %1267 = vmatpush.msra.mxu0 0.0
  %1268 = vmatpush.msra.mxu0 0.0
  %1269 = vmatpush.msra.mxu0 0.0
  %1270 = vmatpush.msra.mxu0 0.0
  %1271 = vmatpush.msra.mxu0 %v1238
  %1272 = vmatpush.msra.mxu0 %v1234
  %1273 = vmatpush.msra.mxu0 %v1230
  %1274 = vmatpush.msra.mxu0 %v1226
  %1275 = vmatmul.f32.gmra.mxu0 %v1248
  %v1276 = vpop.f32.mrf.mxu0
  %v1277 = vadd.f32 0.0, %v1276
  %1278 = vmatmul.f32.gmra.mxu0 %v1251
  %v1279 = vpop.f32.mrf.mxu0
  %v1280 = vadd.f32 0.0, %v1279
  %1281 = vmatmul.f32.gmra.mxu0 %v1254
  %v1282 = vpop.f32.mrf.mxu0
  %v1283 = vadd.f32 0.0, %v1282
  %1284 = vmatmul.f32.gmra.mxu0 %v1257
  %v1285 = vpop.f32.mrf.mxu0
  %v1286 = vadd.f32 0.0, %v1285
  %1287 = vdwg.mxu0
  %1288 = vmatpush.msra.mxu0 0.0
  %1289 = vmatpush.msra.mxu0 0.0
  %1290 = vmatpush.msra.mxu0 0.0
  %1291 = vmatpush.msra.mxu0 0.0
  %1292 = vmatpush.msra.mxu0 0.0
  %1293 = vmatpush.msra.mxu0 0.0
  %1294 = vmatpush.msra.mxu0 0.0
  %1295 = vmatpush.msra.mxu0 0.0
  %1296 = vmatpush.msra.mxu0 0.0
  %1297 = vmatpush.msra.mxu0 0.0
  %1298 = vmatpush.msra.mxu0 0.0
  %1299 = vmatpush.msra.mxu0 0.0
  %1300 = vmatpush.msra.mxu0 %v1239
  %1301 = vmatpush.msra.mxu0 %v1235
  %1302 = vmatpush.msra.mxu0 %v1231
  %1303 = vmatpush.msra.mxu0 %v1227
  %1304 = vmatmul.f32.gmra.mxu0 %v1248
  %v1305 = vpop.f32.mrf.mxu0
  %v1306 = vadd.f32 0.0, %v1305
  %1307 = vmatmul.f32.gmra.mxu0 %v1251
  %v1308 = vpop.f32.mrf.mxu0
  %v1309 = vadd.f32 0.0, %v1308
  %1310 = vmatmul.f32.gmra.mxu0 %v1254
  %v1311 = vpop.f32.mrf.mxu0
  %v1312 = vadd.f32 0.0, %v1311
  %1313 = vmatmul.f32.gmra.mxu0 %v1257
  %v1314 = vpop.f32.mrf.mxu0
  %v1315 = vadd.f32 0.0, %v1314
  %1316 = vdwg.mxu0
  %1317 = vmatpush.msra.mxu0 0.0
  %1318 = vmatpush.msra.mxu0 0.0
  %1319 = vmatpush.msra.mxu0 0.0
  %1320 = vmatpush.msra.mxu0 0.0
  %1321 = vmatpush.msra.mxu0 0.0
  %1322 = vmatpush.msra.mxu0 0.0
  %1323 = vmatpush.msra.mxu0 0.0
  %1324 = vmatpush.msra.mxu0 0.0
  %1325 = vmatpush.msra.mxu0 0.0
  %1326 = vmatpush.msra.mxu0 0.0
  %1327 = vmatpush.msra.mxu0 0.0
  %1328 = vmatpush.msra.mxu0 0.0
  %1329 = vmatpush.msra.mxu0 %v1240
  %1330 = vmatpush.msra.mxu0 %v1236
  %1331 = vmatpush.msra.mxu0 %v1232
  %1332 = vmatpush.msra.mxu0 %v1228
  %1333 = vmatmul.f32.gmra.mxu0 %v1248
  %v1334 = vpop.f32.mrf.mxu0
  %v1335 = vadd.f32 0.0, %v1334
  %1336 = vmatmul.f32.gmra.mxu0 %v1251
  %v1337 = vpop.f32.mrf.mxu0
  %v1338 = vadd.f32 0.0, %v1337
  %1339 = vmatmul.f32.gmra.mxu0 %v1254
  %v1340 = vpop.f32.mrf.mxu0
  %v1341 = vadd.f32 0.0, %v1340
  %1342 = vmatmul.f32.gmra.mxu0 %v1257
  %v1343 = vpop.f32.mrf.mxu0
  %v1344 = vadd.f32 0.0, %v1343
  %1345 = vdwg.mxu0
  %1346 = vmatpush.msra.mxu0 0.0
  %1347 = vmatpush.msra.mxu0 0.0
  %1348 = vmatpush.msra.mxu0 0.0
  %1349 = vmatpush.msra.mxu0 0.0
  %1350 = vmatpush.msra.mxu0 0.0
  %1351 = vmatpush.msra.mxu0 0.0
  %1352 = vmatpush.msra.mxu0 0.0
  %1353 = vmatpush.msra.mxu0 0.0
  %1354 = vmatpush.msra.mxu0 0.0
  %1355 = vmatpush.msra.mxu0 0.0
  %1356 = vmatpush.msra.mxu0 0.0
  %1357 = vmatpush.msra.mxu0 0.0
  %1358 = vmatpush.msra.mxu0 %v1241
  %1359 = vmatpush.msra.mxu0 %v1237
  %1360 = vmatpush.msra.mxu0 %v1233
  %1361 = vmatpush.msra.mxu0 %v1229
  %1362 = vmatmul.f32.gmra.mxu0 %v1248
  %v1363 = vpop.f32.mrf.mxu0
  %v1364 = vadd.f32 0.0, %v1363
  %1365 = vmatmul.f32.gmra.mxu0 %v1251
  %v1366 = vpop.f32.mrf.mxu0
  %v1367 = vadd.f32 0.0, %v1366
  %1368 = vmatmul.f32.gmra.mxu0 %v1254
  %v1369 = vpop.f32.mrf.mxu0
  %v1370 = vadd.f32 0.0, %v1369
  %1371 = vmatmul.f32.gmra.mxu0 %v1257
  %v1372 = vpop.f32.mrf.mxu0
  %v1373 = vadd.f32 0.0, %v1372
  %1374 = vdwg.mxu0
  %v1375 = vadd.f32 %v1080, %v1277
  %v1376 = vadd.f32 %v1109, %v1306
  %v1377 = vadd.f32 %v1138, %v1335
  %v1378 = vadd.f32 %v1167, %v1364
  %v1379 = vadd.f32 %v1083, %v1280
  %v1380 = vadd.f32 %v1112, %v1309
  %v1381 = vadd.f32 %v1141, %v1338
  %v1382 = vadd.f32 %v1170, %v1367
  %v1383 = vadd.f32 %v1086, %v1283
  %v1384 = vadd.f32 %v1115, %v1312
  %v1385 = vadd.f32 %v1144, %v1341
  %v1386 = vadd.f32 %v1173, %v1370
  %v1387 = vadd.f32 %v1089, %v1286
  %v1388 = vadd.f32 %v1118, %v1315
  %v1389 = vadd.f32 %v1147, %v1344
  %v1390 = vadd.f32 %v1176, %v1373
  %1391 = vrot.lane.b32.xlu0 %v832, 15
  %v1392 = vpop.permute.xlu0 %1391
  %1393 = vrot.lane.b32.xlu0 %v836, 15
  %v1394 = vpop.permute.xlu0 %1393
  %1395 = vrot.lane.b32.xlu0 %v840, 15
  %v1396 = vpop.permute.xlu0 %1395
  %1397 = vrot.lane.b32.xlu0 %v844, 15
  %v1398 = vpop.permute.xlu0 %1397
  %1399 = vrot.lane.b32.xlu0 %v833, 15
  %v1400 = vpop.permute.xlu0 %1399
  %1401 = vrot.lane.b32.xlu0 %v837, 15
  %v1402 = vpop.permute.xlu0 %1401
  %1403 = vrot.lane.b32.xlu0 %v841, 15
  %v1404 = vpop.permute.xlu0 %1403
  %1405 = vrot.lane.b32.xlu0 %v845, 15
  %v1406 = vpop.permute.xlu0 %1405
  %1407 = vrot.lane.b32.xlu0 %v834, 15
  %v1408 = vpop.permute.xlu0 %1407
  %1409 = vrot.lane.b32.xlu0 %v838, 15
  %v1410 = vpop.permute.xlu0 %1409
  %1411 = vrot.lane.b32.xlu0 %v842, 15
  %v1412 = vpop.permute.xlu0 %1411
  %1413 = vrot.lane.b32.xlu0 %v846, 15
  %v1414 = vpop.permute.xlu0 %1413
  %1415 = vrot.lane.b32.xlu0 %v835, 15
  %v1416 = vpop.permute.xlu0 %1415
  %1417 = vrot.lane.b32.xlu0 %v839, 15
  %v1418 = vpop.permute.xlu0 %1417
  %1419 = vrot.lane.b32.xlu0 %v843, 15
  %v1420 = vpop.permute.xlu0 %1419
  %1421 = vrot.lane.b32.xlu0 %v847, 15
  %v1422 = vpop.permute.xlu0 %1421
  %v1423 = vsel %vm346, %v1408, %v1416
  %v1424 = vsel %vm346, %v1410, %v1418
  %v1425 = vsel %vm346, %v1412, %v1420
  %v1426 = vsel %vm346, %v1414, %v1422
  %v1427 = vsel %vm346, %v1400, %v1408
  %v1428 = vsel %vm346, %v1402, %v1410
  %v1429 = vsel %vm346, %v1404, %v1412
  %v1430 = vsel %vm346, %v1406, %v1414
  %v1431 = vsel %vm346, %v1392, %v1400
  %v1432 = vsel %vm346, %v1394, %v1402
  %v1433 = vsel %vm346, %v1396, %v1404
  %v1434 = vsel %vm346, %v1398, %v1406
  %v1435 = vsel %vm346, %v1416, %v1392
  %v1436 = vsel %vm346, %v1418, %v1394
  %v1437 = vsel %vm346, %v1420, %v1396
  %v1438 = vsel %vm346, %v1422, %v1398
  %v1439 = vmul.f32 %v1435, %v61
  %v1440 = vmul.f32 %v1431, %v62
  %v1441 = vmul.f32 %v1427, %v63
  %v1442 = vmul.f32 %v1423, %v64
  %v1443 = vmul.f32 %v1436, %v61
  %v1444 = vmul.f32 %v1432, %v62
  %v1445 = vmul.f32 %v1428, %v63
  %v1446 = vmul.f32 %v1424, %v64
  %v1447 = vmul.f32 %v1437, %v61
  %v1448 = vmul.f32 %v1433, %v62
  %v1449 = vmul.f32 %v1429, %v63
  %v1450 = vmul.f32 %v1425, %v64
  %v1451 = vmul.f32 %v1438, %v61
  %v1452 = vmul.f32 %v1434, %v62
  %v1453 = vmul.f32 %v1430, %v63
  %v1454 = vmul.f32 %v1426, %v64
  %s1455 = scalar_lea.vmem %s5, 64
  %v1456 = vld [vmem:[%s1455] sm:$0xff]
  %v1457 = vld [vmem:[%s1455 + $0x8] sm:$0xff]
  %v1458 = vld [vmem:[%s1455 + $0x10] sm:$0xff]
  %v1459 = vld [vmem:[%s1455 + $0x18] sm:$0xff]
  %v1461 = vsel %vm921, %v1456, 0
  %v1464 = vsel %vm921, %v1457, 0
  %v1467 = vsel %vm921, %v1458, 0
  %v1470 = vsel %vm921, %v1459, 0
  %1472 = vmatpush.msra.mxu0 0.0
  %1473 = vmatpush.msra.mxu0 0.0
  %1474 = vmatpush.msra.mxu0 0.0
  %1475 = vmatpush.msra.mxu0 0.0
  %1476 = vmatpush.msra.mxu0 0.0
  %1477 = vmatpush.msra.mxu0 0.0
  %1478 = vmatpush.msra.mxu0 0.0
  %1479 = vmatpush.msra.mxu0 0.0
  %1480 = vmatpush.msra.mxu0 0.0
  %1481 = vmatpush.msra.mxu0 0.0
  %1482 = vmatpush.msra.mxu0 0.0
  %1483 = vmatpush.msra.mxu0 0.0
  %1484 = vmatpush.msra.mxu0 %v1451
  %1485 = vmatpush.msra.mxu0 %v1447
  %1486 = vmatpush.msra.mxu0 %v1443
  %1487 = vmatpush.msra.mxu0 %v1439
  %1488 = vmatmul.f32.gmra.mxu0 %v1461
  %v1489 = vpop.f32.mrf.mxu0
  %v1490 = vadd.f32 0.0, %v1489
  %1491 = vmatmul.f32.gmra.mxu0 %v1464
  %v1492 = vpop.f32.mrf.mxu0
  %v1493 = vadd.f32 0.0, %v1492
  %1494 = vmatmul.f32.gmra.mxu0 %v1467
  %v1495 = vpop.f32.mrf.mxu0
  %v1496 = vadd.f32 0.0, %v1495
  %1497 = vmatmul.f32.gmra.mxu0 %v1470
  %v1498 = vpop.f32.mrf.mxu0
  %v1499 = vadd.f32 0.0, %v1498
  %1500 = vdwg.mxu0
  %1501 = vmatpush.msra.mxu0 0.0
  %1502 = vmatpush.msra.mxu0 0.0
  %1503 = vmatpush.msra.mxu0 0.0
  %1504 = vmatpush.msra.mxu0 0.0
  %1505 = vmatpush.msra.mxu0 0.0
  %1506 = vmatpush.msra.mxu0 0.0
  %1507 = vmatpush.msra.mxu0 0.0
  %1508 = vmatpush.msra.mxu0 0.0
  %1509 = vmatpush.msra.mxu0 0.0
  %1510 = vmatpush.msra.mxu0 0.0
  %1511 = vmatpush.msra.mxu0 0.0
  %1512 = vmatpush.msra.mxu0 0.0
  %1513 = vmatpush.msra.mxu0 %v1452
  %1514 = vmatpush.msra.mxu0 %v1448
  %1515 = vmatpush.msra.mxu0 %v1444
  %1516 = vmatpush.msra.mxu0 %v1440
  %1517 = vmatmul.f32.gmra.mxu0 %v1461
  %v1518 = vpop.f32.mrf.mxu0
  %v1519 = vadd.f32 0.0, %v1518
  %1520 = vmatmul.f32.gmra.mxu0 %v1464
  %v1521 = vpop.f32.mrf.mxu0
  %v1522 = vadd.f32 0.0, %v1521
  %1523 = vmatmul.f32.gmra.mxu0 %v1467
  %v1524 = vpop.f32.mrf.mxu0
  %v1525 = vadd.f32 0.0, %v1524
  %1526 = vmatmul.f32.gmra.mxu0 %v1470
  %v1527 = vpop.f32.mrf.mxu0
  %v1528 = vadd.f32 0.0, %v1527
  %1529 = vdwg.mxu0
  %1530 = vmatpush.msra.mxu0 0.0
  %1531 = vmatpush.msra.mxu0 0.0
  %1532 = vmatpush.msra.mxu0 0.0
  %1533 = vmatpush.msra.mxu0 0.0
  %1534 = vmatpush.msra.mxu0 0.0
  %1535 = vmatpush.msra.mxu0 0.0
  %1536 = vmatpush.msra.mxu0 0.0
  %1537 = vmatpush.msra.mxu0 0.0
  %1538 = vmatpush.msra.mxu0 0.0
  %1539 = vmatpush.msra.mxu0 0.0
  %1540 = vmatpush.msra.mxu0 0.0
  %1541 = vmatpush.msra.mxu0 0.0
  %1542 = vmatpush.msra.mxu0 %v1453
  %1543 = vmatpush.msra.mxu0 %v1449
  %1544 = vmatpush.msra.mxu0 %v1445
  %1545 = vmatpush.msra.mxu0 %v1441
  %1546 = vmatmul.f32.gmra.mxu0 %v1461
  %v1547 = vpop.f32.mrf.mxu0
  %v1548 = vadd.f32 0.0, %v1547
  %1549 = vmatmul.f32.gmra.mxu0 %v1464
  %v1550 = vpop.f32.mrf.mxu0
  %v1551 = vadd.f32 0.0, %v1550
  %1552 = vmatmul.f32.gmra.mxu0 %v1467
  %v1553 = vpop.f32.mrf.mxu0
  %v1554 = vadd.f32 0.0, %v1553
  %1555 = vmatmul.f32.gmra.mxu0 %v1470
  %v1556 = vpop.f32.mrf.mxu0
  %v1557 = vadd.f32 0.0, %v1556
  %1558 = vdwg.mxu0
  %1559 = vmatpush.msra.mxu0 0.0
  %1560 = vmatpush.msra.mxu0 0.0
  %1561 = vmatpush.msra.mxu0 0.0
  %1562 = vmatpush.msra.mxu0 0.0
  %1563 = vmatpush.msra.mxu0 0.0
  %1564 = vmatpush.msra.mxu0 0.0
  %1565 = vmatpush.msra.mxu0 0.0
  %1566 = vmatpush.msra.mxu0 0.0
  %1567 = vmatpush.msra.mxu0 0.0
  %1568 = vmatpush.msra.mxu0 0.0
  %1569 = vmatpush.msra.mxu0 0.0
  %1570 = vmatpush.msra.mxu0 0.0
  %1571 = vmatpush.msra.mxu0 %v1454
  %1572 = vmatpush.msra.mxu0 %v1450
  %1573 = vmatpush.msra.mxu0 %v1446
  %1574 = vmatpush.msra.mxu0 %v1442
  %1575 = vmatmul.f32.gmra.mxu0 %v1461
  %v1576 = vpop.f32.mrf.mxu0
  %v1577 = vadd.f32 0.0, %v1576
  %1578 = vmatmul.f32.gmra.mxu0 %v1464
  %v1579 = vpop.f32.mrf.mxu0
  %v1580 = vadd.f32 0.0, %v1579
  %1581 = vmatmul.f32.gmra.mxu0 %v1467
  %v1582 = vpop.f32.mrf.mxu0
  %v1583 = vadd.f32 0.0, %v1582
  %1584 = vmatmul.f32.gmra.mxu0 %v1470
  %v1585 = vpop.f32.mrf.mxu0
  %v1586 = vadd.f32 0.0, %v1585
  %1587 = vdwg.mxu0
  %v1588 = vadd.f32 %v1375, %v1490
  %v1589 = vadd.f32 %v1376, %v1519
  %v1590 = vadd.f32 %v1377, %v1548
  %v1591 = vadd.f32 %v1378, %v1577
  %v1592 = vadd.f32 %v1379, %v1493
  %v1593 = vadd.f32 %v1380, %v1522
  %v1594 = vadd.f32 %v1381, %v1551
  %v1595 = vadd.f32 %v1382, %v1580
  %v1596 = vadd.f32 %v1383, %v1496
  %v1597 = vadd.f32 %v1384, %v1525
  %v1598 = vadd.f32 %v1385, %v1554
  %v1599 = vadd.f32 %v1386, %v1583
  %v1600 = vadd.f32 %v1387, %v1499
  %v1601 = vadd.f32 %v1388, %v1528
  %v1602 = vadd.f32 %v1389, %v1557
  %v1603 = vadd.f32 %v1390, %v1586
  %1604 = vrot.lane.b32.xlu0 %v832, 1
  %v1605 = vpop.permute.xlu0 %1604
  %1606 = vrot.lane.b32.xlu0 %v836, 1
  %v1607 = vpop.permute.xlu0 %1606
  %1608 = vrot.lane.b32.xlu0 %v840, 1
  %v1609 = vpop.permute.xlu0 %1608
  %1610 = vrot.lane.b32.xlu0 %v844, 1
  %v1611 = vpop.permute.xlu0 %1610
  %1612 = vrot.lane.b32.xlu0 %v833, 1
  %v1613 = vpop.permute.xlu0 %1612
  %1614 = vrot.lane.b32.xlu0 %v837, 1
  %v1615 = vpop.permute.xlu0 %1614
  %1616 = vrot.lane.b32.xlu0 %v841, 1
  %v1617 = vpop.permute.xlu0 %1616
  %1618 = vrot.lane.b32.xlu0 %v845, 1
  %v1619 = vpop.permute.xlu0 %1618
  %1620 = vrot.lane.b32.xlu0 %v834, 1
  %v1621 = vpop.permute.xlu0 %1620
  %1622 = vrot.lane.b32.xlu0 %v838, 1
  %v1623 = vpop.permute.xlu0 %1622
  %1624 = vrot.lane.b32.xlu0 %v842, 1
  %v1625 = vpop.permute.xlu0 %1624
  %1626 = vrot.lane.b32.xlu0 %v846, 1
  %v1627 = vpop.permute.xlu0 %1626
  %1628 = vrot.lane.b32.xlu0 %v835, 1
  %v1629 = vpop.permute.xlu0 %1628
  %1630 = vrot.lane.b32.xlu0 %v839, 1
  %v1631 = vpop.permute.xlu0 %1630
  %1632 = vrot.lane.b32.xlu0 %v843, 1
  %v1633 = vpop.permute.xlu0 %1632
  %1634 = vrot.lane.b32.xlu0 %v847, 1
  %v1635 = vpop.permute.xlu0 %1634
  %v1636 = vsel %vm415, %v1621, %v1629
  %v1637 = vsel %vm415, %v1623, %v1631
  %v1638 = vsel %vm415, %v1625, %v1633
  %v1639 = vsel %vm415, %v1627, %v1635
  %v1640 = vsel %vm415, %v1613, %v1621
  %v1641 = vsel %vm415, %v1615, %v1623
  %v1642 = vsel %vm415, %v1617, %v1625
  %v1643 = vsel %vm415, %v1619, %v1627
  %v1644 = vsel %vm415, %v1605, %v1613
  %v1645 = vsel %vm415, %v1607, %v1615
  %v1646 = vsel %vm415, %v1609, %v1617
  %v1647 = vsel %vm415, %v1611, %v1619
  %v1648 = vsel %vm415, %v1629, %v1605
  %v1649 = vsel %vm415, %v1631, %v1607
  %v1650 = vsel %vm415, %v1633, %v1609
  %v1651 = vsel %vm415, %v1635, %v1611
  %v1652 = vmul.f32 %v1648, %v70
  %v1653 = vmul.f32 %v1644, %v71
  %v1654 = vmul.f32 %v1640, %v72
  %v1655 = vmul.f32 %v1636, %v73
  %v1656 = vmul.f32 %v1649, %v70
  %v1657 = vmul.f32 %v1645, %v71
  %v1658 = vmul.f32 %v1641, %v72
  %v1659 = vmul.f32 %v1637, %v73
  %v1660 = vmul.f32 %v1650, %v70
  %v1661 = vmul.f32 %v1646, %v71
  %v1662 = vmul.f32 %v1642, %v72
  %v1663 = vmul.f32 %v1638, %v73
  %v1664 = vmul.f32 %v1651, %v70
  %v1665 = vmul.f32 %v1647, %v71
  %v1666 = vmul.f32 %v1643, %v72
  %v1667 = vmul.f32 %v1639, %v73
  %s1668 = scalar_lea.vmem %s5, 96
  %v1669 = vld [vmem:[%s1668] sm:$0xff]
  %v1670 = vld [vmem:[%s1668 + $0x8] sm:$0xff]
  %v1671 = vld [vmem:[%s1668 + $0x10] sm:$0xff]
  %v1672 = vld [vmem:[%s1668 + $0x18] sm:$0xff]
  %v1674 = vsel %vm921, %v1669, 0
  %v1677 = vsel %vm921, %v1670, 0
  %v1680 = vsel %vm921, %v1671, 0
  %v1683 = vsel %vm921, %v1672, 0
  %1685 = vmatpush.msra.mxu0 0.0
  %1686 = vmatpush.msra.mxu0 0.0
  %1687 = vmatpush.msra.mxu0 0.0
  %1688 = vmatpush.msra.mxu0 0.0
  %1689 = vmatpush.msra.mxu0 0.0
  %1690 = vmatpush.msra.mxu0 0.0
  %1691 = vmatpush.msra.mxu0 0.0
  %1692 = vmatpush.msra.mxu0 0.0
  %1693 = vmatpush.msra.mxu0 0.0
  %1694 = vmatpush.msra.mxu0 0.0
  %1695 = vmatpush.msra.mxu0 0.0
  %1696 = vmatpush.msra.mxu0 0.0
  %1697 = vmatpush.msra.mxu0 %v1664
  %1698 = vmatpush.msra.mxu0 %v1660
  %1699 = vmatpush.msra.mxu0 %v1656
  %1700 = vmatpush.msra.mxu0 %v1652
  %1701 = vmatmul.f32.gmra.mxu0 %v1674
  %v1702 = vpop.f32.mrf.mxu0
  %v1703 = vadd.f32 0.0, %v1702
  %1704 = vmatmul.f32.gmra.mxu0 %v1677
  %v1705 = vpop.f32.mrf.mxu0
  %v1706 = vadd.f32 0.0, %v1705
  %1707 = vmatmul.f32.gmra.mxu0 %v1680
  %v1708 = vpop.f32.mrf.mxu0
  %v1709 = vadd.f32 0.0, %v1708
  %1710 = vmatmul.f32.gmra.mxu0 %v1683
  %v1711 = vpop.f32.mrf.mxu0
  %v1712 = vadd.f32 0.0, %v1711
  %1713 = vdwg.mxu0
  %1714 = vmatpush.msra.mxu0 0.0
  %1715 = vmatpush.msra.mxu0 0.0
  %1716 = vmatpush.msra.mxu0 0.0
  %1717 = vmatpush.msra.mxu0 0.0
  %1718 = vmatpush.msra.mxu0 0.0
  %1719 = vmatpush.msra.mxu0 0.0
  %1720 = vmatpush.msra.mxu0 0.0
  %1721 = vmatpush.msra.mxu0 0.0
  %1722 = vmatpush.msra.mxu0 0.0
  %1723 = vmatpush.msra.mxu0 0.0
  %1724 = vmatpush.msra.mxu0 0.0
  %1725 = vmatpush.msra.mxu0 0.0
  %1726 = vmatpush.msra.mxu0 %v1665
  %1727 = vmatpush.msra.mxu0 %v1661
  %1728 = vmatpush.msra.mxu0 %v1657
  %1729 = vmatpush.msra.mxu0 %v1653
  %1730 = vmatmul.f32.gmra.mxu0 %v1674
  %v1731 = vpop.f32.mrf.mxu0
  %v1732 = vadd.f32 0.0, %v1731
  %1733 = vmatmul.f32.gmra.mxu0 %v1677
  %v1734 = vpop.f32.mrf.mxu0
  %v1735 = vadd.f32 0.0, %v1734
  %1736 = vmatmul.f32.gmra.mxu0 %v1680
  %v1737 = vpop.f32.mrf.mxu0
  %v1738 = vadd.f32 0.0, %v1737
  %1739 = vmatmul.f32.gmra.mxu0 %v1683
  %v1740 = vpop.f32.mrf.mxu0
  %v1741 = vadd.f32 0.0, %v1740
  %1742 = vdwg.mxu0
  %1743 = vmatpush.msra.mxu0 0.0
  %1744 = vmatpush.msra.mxu0 0.0
  %1745 = vmatpush.msra.mxu0 0.0
  %1746 = vmatpush.msra.mxu0 0.0
  %1747 = vmatpush.msra.mxu0 0.0
  %1748 = vmatpush.msra.mxu0 0.0
  %1749 = vmatpush.msra.mxu0 0.0
  %1750 = vmatpush.msra.mxu0 0.0
  %1751 = vmatpush.msra.mxu0 0.0
  %1752 = vmatpush.msra.mxu0 0.0
  %1753 = vmatpush.msra.mxu0 0.0
  %1754 = vmatpush.msra.mxu0 0.0
  %1755 = vmatpush.msra.mxu0 %v1666
  %1756 = vmatpush.msra.mxu0 %v1662
  %1757 = vmatpush.msra.mxu0 %v1658
  %1758 = vmatpush.msra.mxu0 %v1654
  %1759 = vmatmul.f32.gmra.mxu0 %v1674
  %v1760 = vpop.f32.mrf.mxu0
  %v1761 = vadd.f32 0.0, %v1760
  %1762 = vmatmul.f32.gmra.mxu0 %v1677
  %v1763 = vpop.f32.mrf.mxu0
  %v1764 = vadd.f32 0.0, %v1763
  %1765 = vmatmul.f32.gmra.mxu0 %v1680
  %v1766 = vpop.f32.mrf.mxu0
  %v1767 = vadd.f32 0.0, %v1766
  %1768 = vmatmul.f32.gmra.mxu0 %v1683
  %v1769 = vpop.f32.mrf.mxu0
  %v1770 = vadd.f32 0.0, %v1769
  %1771 = vdwg.mxu0
  %1772 = vmatpush.msra.mxu0 0.0
  %1773 = vmatpush.msra.mxu0 0.0
  %1774 = vmatpush.msra.mxu0 0.0
  %1775 = vmatpush.msra.mxu0 0.0
  %1776 = vmatpush.msra.mxu0 0.0
  %1777 = vmatpush.msra.mxu0 0.0
  %1778 = vmatpush.msra.mxu0 0.0
  %1779 = vmatpush.msra.mxu0 0.0
  %1780 = vmatpush.msra.mxu0 0.0
  %1781 = vmatpush.msra.mxu0 0.0
  %1782 = vmatpush.msra.mxu0 0.0
  %1783 = vmatpush.msra.mxu0 0.0
  %1784 = vmatpush.msra.mxu0 %v1667
  %1785 = vmatpush.msra.mxu0 %v1663
  %1786 = vmatpush.msra.mxu0 %v1659
  %1787 = vmatpush.msra.mxu0 %v1655
  %1788 = vmatmul.f32.gmra.mxu0 %v1674
  %v1789 = vpop.f32.mrf.mxu0
  %v1790 = vadd.f32 0.0, %v1789
  %1791 = vmatmul.f32.gmra.mxu0 %v1677
  %v1792 = vpop.f32.mrf.mxu0
  %v1793 = vadd.f32 0.0, %v1792
  %1794 = vmatmul.f32.gmra.mxu0 %v1680
  %v1795 = vpop.f32.mrf.mxu0
  %v1796 = vadd.f32 0.0, %v1795
  %1797 = vmatmul.f32.gmra.mxu0 %v1683
  %v1798 = vpop.f32.mrf.mxu0
  %v1799 = vadd.f32 0.0, %v1798
  %1800 = vdwg.mxu0
  %v1801 = vadd.f32 %v1588, %v1703
  %v1802 = vadd.f32 %v1589, %v1732
  %v1803 = vadd.f32 %v1590, %v1761
  %v1804 = vadd.f32 %v1591, %v1790
  %v1805 = vadd.f32 %v1592, %v1706
  %v1806 = vadd.f32 %v1593, %v1735
  %v1807 = vadd.f32 %v1594, %v1764
  %v1808 = vadd.f32 %v1595, %v1793
  %v1809 = vadd.f32 %v1596, %v1709
  %v1810 = vadd.f32 %v1597, %v1738
  %v1811 = vadd.f32 %v1598, %v1767
  %v1812 = vadd.f32 %v1599, %v1796
  %v1813 = vadd.f32 %v1600, %v1712
  %v1814 = vadd.f32 %v1601, %v1741
  %v1815 = vadd.f32 %v1602, %v1770
  %v1816 = vadd.f32 %v1603, %v1799
  %1817 = vrot.lane.b32.xlu0 %v832, 127
  %v1818 = vpop.permute.xlu0 %1817
  %1819 = vrot.lane.b32.xlu0 %v836, 127
  %v1820 = vpop.permute.xlu0 %1819
  %1821 = vrot.lane.b32.xlu0 %v840, 127
  %v1822 = vpop.permute.xlu0 %1821
  %1823 = vrot.lane.b32.xlu0 %v844, 127
  %v1824 = vpop.permute.xlu0 %1823
  %1825 = vrot.lane.b32.xlu0 %v833, 127
  %v1826 = vpop.permute.xlu0 %1825
  %1827 = vrot.lane.b32.xlu0 %v837, 127
  %v1828 = vpop.permute.xlu0 %1827
  %1829 = vrot.lane.b32.xlu0 %v841, 127
  %v1830 = vpop.permute.xlu0 %1829
  %1831 = vrot.lane.b32.xlu0 %v845, 127
  %v1832 = vpop.permute.xlu0 %1831
  %1833 = vrot.lane.b32.xlu0 %v834, 127
  %v1834 = vpop.permute.xlu0 %1833
  %1835 = vrot.lane.b32.xlu0 %v838, 127
  %v1836 = vpop.permute.xlu0 %1835
  %1837 = vrot.lane.b32.xlu0 %v842, 127
  %v1838 = vpop.permute.xlu0 %1837
  %1839 = vrot.lane.b32.xlu0 %v846, 127
  %v1840 = vpop.permute.xlu0 %1839
  %1841 = vrot.lane.b32.xlu0 %v835, 127
  %v1842 = vpop.permute.xlu0 %1841
  %1843 = vrot.lane.b32.xlu0 %v839, 127
  %v1844 = vpop.permute.xlu0 %1843
  %1845 = vrot.lane.b32.xlu0 %v843, 127
  %v1846 = vpop.permute.xlu0 %1845
  %1847 = vrot.lane.b32.xlu0 %v847, 127
  %v1848 = vpop.permute.xlu0 %1847
  %v1849 = vsel %vm532, %v1834, %v1842
  %v1850 = vsel %vm532, %v1836, %v1844
  %v1851 = vsel %vm532, %v1838, %v1846
  %v1852 = vsel %vm532, %v1840, %v1848
  %v1853 = vsel %vm532, %v1826, %v1834
  %v1854 = vsel %vm532, %v1828, %v1836
  %v1855 = vsel %vm532, %v1830, %v1838
  %v1856 = vsel %vm532, %v1832, %v1840
  %v1857 = vsel %vm532, %v1818, %v1826
  %v1858 = vsel %vm532, %v1820, %v1828
  %v1859 = vsel %vm532, %v1822, %v1830
  %v1860 = vsel %vm532, %v1824, %v1832
  %v1861 = vsel %vm532, %v1842, %v1818
  %v1862 = vsel %vm532, %v1844, %v1820
  %v1863 = vsel %vm532, %v1846, %v1822
  %v1864 = vsel %vm532, %v1848, %v1824
  %v1865 = vmul.f32 %v1857, %v79
  %v1866 = vmul.f32 %v1853, %v80
  %v1867 = vmul.f32 %v1849, %v81
  %v1868 = vmul.f32 %v1861, %v82
  %v1869 = vmul.f32 %v1858, %v79
  %v1870 = vmul.f32 %v1854, %v80
  %v1871 = vmul.f32 %v1850, %v81
  %v1872 = vmul.f32 %v1862, %v82
  %v1873 = vmul.f32 %v1859, %v79
  %v1874 = vmul.f32 %v1855, %v80
  %v1875 = vmul.f32 %v1851, %v81
  %v1876 = vmul.f32 %v1863, %v82
  %v1877 = vmul.f32 %v1860, %v79
  %v1878 = vmul.f32 %v1856, %v80
  %v1879 = vmul.f32 %v1852, %v81
  %v1880 = vmul.f32 %v1864, %v82
  %s1881 = scalar_lea.vmem %s5, 160
  %v1882 = vld [vmem:[%s1881] sm:$0xff]
  %v1883 = vld [vmem:[%s1881 + $0x8] sm:$0xff]
  %v1884 = vld [vmem:[%s1881 + $0x10] sm:$0xff]
  %v1885 = vld [vmem:[%s1881 + $0x18] sm:$0xff]
  %v1887 = vsel %vm921, %v1882, 0
  %v1890 = vsel %vm921, %v1883, 0
  %v1893 = vsel %vm921, %v1884, 0
  %v1896 = vsel %vm921, %v1885, 0
  %1898 = vmatpush.msra.mxu0 0.0
  %1899 = vmatpush.msra.mxu0 0.0
  %1900 = vmatpush.msra.mxu0 0.0
  %1901 = vmatpush.msra.mxu0 0.0
  %1902 = vmatpush.msra.mxu0 0.0
  %1903 = vmatpush.msra.mxu0 0.0
  %1904 = vmatpush.msra.mxu0 0.0
  %1905 = vmatpush.msra.mxu0 0.0
  %1906 = vmatpush.msra.mxu0 0.0
  %1907 = vmatpush.msra.mxu0 0.0
  %1908 = vmatpush.msra.mxu0 0.0
  %1909 = vmatpush.msra.mxu0 0.0
  %1910 = vmatpush.msra.mxu0 %v1877
  %1911 = vmatpush.msra.mxu0 %v1873
  %1912 = vmatpush.msra.mxu0 %v1869
  %1913 = vmatpush.msra.mxu0 %v1865
  %1914 = vmatmul.f32.gmra.mxu0 %v1887
  %v1915 = vpop.f32.mrf.mxu0
  %v1916 = vadd.f32 0.0, %v1915
  %1917 = vmatmul.f32.gmra.mxu0 %v1890
  %v1918 = vpop.f32.mrf.mxu0
  %v1919 = vadd.f32 0.0, %v1918
  %1920 = vmatmul.f32.gmra.mxu0 %v1893
  %v1921 = vpop.f32.mrf.mxu0
  %v1922 = vadd.f32 0.0, %v1921
  %1923 = vmatmul.f32.gmra.mxu0 %v1896
  %v1924 = vpop.f32.mrf.mxu0
  %v1925 = vadd.f32 0.0, %v1924
  %1926 = vdwg.mxu0
  %1927 = vmatpush.msra.mxu0 0.0
  %1928 = vmatpush.msra.mxu0 0.0
  %1929 = vmatpush.msra.mxu0 0.0
  %1930 = vmatpush.msra.mxu0 0.0
  %1931 = vmatpush.msra.mxu0 0.0
  %1932 = vmatpush.msra.mxu0 0.0
  %1933 = vmatpush.msra.mxu0 0.0
  %1934 = vmatpush.msra.mxu0 0.0
  %1935 = vmatpush.msra.mxu0 0.0
  %1936 = vmatpush.msra.mxu0 0.0
  %1937 = vmatpush.msra.mxu0 0.0
  %1938 = vmatpush.msra.mxu0 0.0
  %1939 = vmatpush.msra.mxu0 %v1878
  %1940 = vmatpush.msra.mxu0 %v1874
  %1941 = vmatpush.msra.mxu0 %v1870
  %1942 = vmatpush.msra.mxu0 %v1866
  %1943 = vmatmul.f32.gmra.mxu0 %v1887
  %v1944 = vpop.f32.mrf.mxu0
  %v1945 = vadd.f32 0.0, %v1944
  %1946 = vmatmul.f32.gmra.mxu0 %v1890
  %v1947 = vpop.f32.mrf.mxu0
  %v1948 = vadd.f32 0.0, %v1947
  %1949 = vmatmul.f32.gmra.mxu0 %v1893
  %v1950 = vpop.f32.mrf.mxu0
  %v1951 = vadd.f32 0.0, %v1950
  %1952 = vmatmul.f32.gmra.mxu0 %v1896
  %v1953 = vpop.f32.mrf.mxu0
  %v1954 = vadd.f32 0.0, %v1953
  %1955 = vdwg.mxu0
  %1956 = vmatpush.msra.mxu0 0.0
  %1957 = vmatpush.msra.mxu0 0.0
  %1958 = vmatpush.msra.mxu0 0.0
  %1959 = vmatpush.msra.mxu0 0.0
  %1960 = vmatpush.msra.mxu0 0.0
  %1961 = vmatpush.msra.mxu0 0.0
  %1962 = vmatpush.msra.mxu0 0.0
  %1963 = vmatpush.msra.mxu0 0.0
  %1964 = vmatpush.msra.mxu0 0.0
  %1965 = vmatpush.msra.mxu0 0.0
  %1966 = vmatpush.msra.mxu0 0.0
  %1967 = vmatpush.msra.mxu0 0.0
  %1968 = vmatpush.msra.mxu0 %v1879
  %1969 = vmatpush.msra.mxu0 %v1875
  %1970 = vmatpush.msra.mxu0 %v1871
  %1971 = vmatpush.msra.mxu0 %v1867
  %1972 = vmatmul.f32.gmra.mxu0 %v1887
  %v1973 = vpop.f32.mrf.mxu0
  %v1974 = vadd.f32 0.0, %v1973
  %1975 = vmatmul.f32.gmra.mxu0 %v1890
  %v1976 = vpop.f32.mrf.mxu0
  %v1977 = vadd.f32 0.0, %v1976
  %1978 = vmatmul.f32.gmra.mxu0 %v1893
  %v1979 = vpop.f32.mrf.mxu0
  %v1980 = vadd.f32 0.0, %v1979
  %1981 = vmatmul.f32.gmra.mxu0 %v1896
  %v1982 = vpop.f32.mrf.mxu0
  %v1983 = vadd.f32 0.0, %v1982
  %1984 = vdwg.mxu0
  %1985 = vmatpush.msra.mxu0 0.0
  %1986 = vmatpush.msra.mxu0 0.0
  %1987 = vmatpush.msra.mxu0 0.0
  %1988 = vmatpush.msra.mxu0 0.0
  %1989 = vmatpush.msra.mxu0 0.0
  %1990 = vmatpush.msra.mxu0 0.0
  %1991 = vmatpush.msra.mxu0 0.0
  %1992 = vmatpush.msra.mxu0 0.0
  %1993 = vmatpush.msra.mxu0 0.0
  %1994 = vmatpush.msra.mxu0 0.0
  %1995 = vmatpush.msra.mxu0 0.0
  %1996 = vmatpush.msra.mxu0 0.0
  %1997 = vmatpush.msra.mxu0 %v1880
  %1998 = vmatpush.msra.mxu0 %v1876
  %1999 = vmatpush.msra.mxu0 %v1872
  %2000 = vmatpush.msra.mxu0 %v1868
  %2001 = vmatmul.f32.gmra.mxu0 %v1887
  %v2002 = vpop.f32.mrf.mxu0
  %v2003 = vadd.f32 0.0, %v2002
  %2004 = vmatmul.f32.gmra.mxu0 %v1890
  %v2005 = vpop.f32.mrf.mxu0
  %v2006 = vadd.f32 0.0, %v2005
  %2007 = vmatmul.f32.gmra.mxu0 %v1893
  %v2008 = vpop.f32.mrf.mxu0
  %v2009 = vadd.f32 0.0, %v2008
  %2010 = vmatmul.f32.gmra.mxu0 %v1896
  %v2011 = vpop.f32.mrf.mxu0
  %v2012 = vadd.f32 0.0, %v2011
  %2013 = vdwg.mxu0
  %v2014 = vadd.f32 %v1801, %v1916
  %v2015 = vadd.f32 %v1802, %v1945
  %v2016 = vadd.f32 %v1803, %v1974
  %v2017 = vadd.f32 %v1804, %v2003
  %v2018 = vadd.f32 %v1805, %v1919
  %v2019 = vadd.f32 %v1806, %v1948
  %v2020 = vadd.f32 %v1807, %v1977
  %v2021 = vadd.f32 %v1808, %v2006
  %v2022 = vadd.f32 %v1809, %v1922
  %v2023 = vadd.f32 %v1810, %v1951
  %v2024 = vadd.f32 %v1811, %v1980
  %v2025 = vadd.f32 %v1812, %v2009
  %v2026 = vadd.f32 %v1813, %v1925
  %v2027 = vadd.f32 %v1814, %v1954
  %v2028 = vadd.f32 %v1815, %v1983
  %v2029 = vadd.f32 %v1816, %v2012
  %2030 = vrot.lane.b32.xlu0 %v832, 113
  %v2031 = vpop.permute.xlu0 %2030
  %2032 = vrot.lane.b32.xlu0 %v836, 113
  %v2033 = vpop.permute.xlu0 %2032
  %2034 = vrot.lane.b32.xlu0 %v840, 113
  %v2035 = vpop.permute.xlu0 %2034
  %2036 = vrot.lane.b32.xlu0 %v844, 113
  %v2037 = vpop.permute.xlu0 %2036
  %2038 = vrot.lane.b32.xlu0 %v833, 113
  %v2039 = vpop.permute.xlu0 %2038
  %2040 = vrot.lane.b32.xlu0 %v837, 113
  %v2041 = vpop.permute.xlu0 %2040
  %2042 = vrot.lane.b32.xlu0 %v841, 113
  %v2043 = vpop.permute.xlu0 %2042
  %2044 = vrot.lane.b32.xlu0 %v845, 113
  %v2045 = vpop.permute.xlu0 %2044
  %2046 = vrot.lane.b32.xlu0 %v834, 113
  %v2047 = vpop.permute.xlu0 %2046
  %2048 = vrot.lane.b32.xlu0 %v838, 113
  %v2049 = vpop.permute.xlu0 %2048
  %2050 = vrot.lane.b32.xlu0 %v842, 113
  %v2051 = vpop.permute.xlu0 %2050
  %2052 = vrot.lane.b32.xlu0 %v846, 113
  %v2053 = vpop.permute.xlu0 %2052
  %2054 = vrot.lane.b32.xlu0 %v835, 113
  %v2055 = vpop.permute.xlu0 %2054
  %2056 = vrot.lane.b32.xlu0 %v839, 113
  %v2057 = vpop.permute.xlu0 %2056
  %2058 = vrot.lane.b32.xlu0 %v843, 113
  %v2059 = vpop.permute.xlu0 %2058
  %2060 = vrot.lane.b32.xlu0 %v847, 113
  %v2061 = vpop.permute.xlu0 %2060
  %v2062 = vsel %vm601, %v2047, %v2055
  %v2063 = vsel %vm601, %v2049, %v2057
  %v2064 = vsel %vm601, %v2051, %v2059
  %v2065 = vsel %vm601, %v2053, %v2061
  %v2066 = vsel %vm601, %v2039, %v2047
  %v2067 = vsel %vm601, %v2041, %v2049
  %v2068 = vsel %vm601, %v2043, %v2051
  %v2069 = vsel %vm601, %v2045, %v2053
  %v2070 = vsel %vm601, %v2031, %v2039
  %v2071 = vsel %vm601, %v2033, %v2041
  %v2072 = vsel %vm601, %v2035, %v2043
  %v2073 = vsel %vm601, %v2037, %v2045
  %v2074 = vsel %vm601, %v2055, %v2031
  %v2075 = vsel %vm601, %v2057, %v2033
  %v2076 = vsel %vm601, %v2059, %v2035
  %v2077 = vsel %vm601, %v2061, %v2037
  %v2078 = vmul.f32 %v2070, %v88
  %v2079 = vmul.f32 %v2066, %v89
  %v2080 = vmul.f32 %v2062, %v90
  %v2081 = vmul.f32 %v2074, %v91
  %v2082 = vmul.f32 %v2071, %v88
  %v2083 = vmul.f32 %v2067, %v89
  %v2084 = vmul.f32 %v2063, %v90
  %v2085 = vmul.f32 %v2075, %v91
  %v2086 = vmul.f32 %v2072, %v88
  %v2087 = vmul.f32 %v2068, %v89
  %v2088 = vmul.f32 %v2064, %v90
  %v2089 = vmul.f32 %v2076, %v91
  %v2090 = vmul.f32 %v2073, %v88
  %v2091 = vmul.f32 %v2069, %v89
  %v2092 = vmul.f32 %v2065, %v90
  %v2093 = vmul.f32 %v2077, %v91
  %s2094 = scalar_lea.vmem %s5, 192
  %v2095 = vld [vmem:[%s2094] sm:$0xff]
  %v2096 = vld [vmem:[%s2094 + $0x8] sm:$0xff]
  %v2097 = vld [vmem:[%s2094 + $0x10] sm:$0xff]
  %v2098 = vld [vmem:[%s2094 + $0x18] sm:$0xff]
  %v2100 = vsel %vm921, %v2095, 0
  %v2103 = vsel %vm921, %v2096, 0
  %v2106 = vsel %vm921, %v2097, 0
  %v2109 = vsel %vm921, %v2098, 0
  %2111 = vmatpush.msra.mxu0 0.0
  %2112 = vmatpush.msra.mxu0 0.0
  %2113 = vmatpush.msra.mxu0 0.0
  %2114 = vmatpush.msra.mxu0 0.0
  %2115 = vmatpush.msra.mxu0 0.0
  %2116 = vmatpush.msra.mxu0 0.0
  %2117 = vmatpush.msra.mxu0 0.0
  %2118 = vmatpush.msra.mxu0 0.0
  %2119 = vmatpush.msra.mxu0 0.0
  %2120 = vmatpush.msra.mxu0 0.0
  %2121 = vmatpush.msra.mxu0 0.0
  %2122 = vmatpush.msra.mxu0 0.0
  %2123 = vmatpush.msra.mxu0 %v2090
  %2124 = vmatpush.msra.mxu0 %v2086
  %2125 = vmatpush.msra.mxu0 %v2082
  %2126 = vmatpush.msra.mxu0 %v2078
  %2127 = vmatmul.f32.gmra.mxu0 %v2100
  %v2128 = vpop.f32.mrf.mxu0
  %v2129 = vadd.f32 0.0, %v2128
  %2130 = vmatmul.f32.gmra.mxu0 %v2103
  %v2131 = vpop.f32.mrf.mxu0
  %v2132 = vadd.f32 0.0, %v2131
  %2133 = vmatmul.f32.gmra.mxu0 %v2106
  %v2134 = vpop.f32.mrf.mxu0
  %v2135 = vadd.f32 0.0, %v2134
  %2136 = vmatmul.f32.gmra.mxu0 %v2109
  %v2137 = vpop.f32.mrf.mxu0
  %v2138 = vadd.f32 0.0, %v2137
  %2139 = vdwg.mxu0
  %2140 = vmatpush.msra.mxu0 0.0
  %2141 = vmatpush.msra.mxu0 0.0
  %2142 = vmatpush.msra.mxu0 0.0
  %2143 = vmatpush.msra.mxu0 0.0
  %2144 = vmatpush.msra.mxu0 0.0
  %2145 = vmatpush.msra.mxu0 0.0
  %2146 = vmatpush.msra.mxu0 0.0
  %2147 = vmatpush.msra.mxu0 0.0
  %2148 = vmatpush.msra.mxu0 0.0
  %2149 = vmatpush.msra.mxu0 0.0
  %2150 = vmatpush.msra.mxu0 0.0
  %2151 = vmatpush.msra.mxu0 0.0
  %2152 = vmatpush.msra.mxu0 %v2091
  %2153 = vmatpush.msra.mxu0 %v2087
  %2154 = vmatpush.msra.mxu0 %v2083
  %2155 = vmatpush.msra.mxu0 %v2079
  %2156 = vmatmul.f32.gmra.mxu0 %v2100
  %v2157 = vpop.f32.mrf.mxu0
  %v2158 = vadd.f32 0.0, %v2157
  %2159 = vmatmul.f32.gmra.mxu0 %v2103
  %v2160 = vpop.f32.mrf.mxu0
  %v2161 = vadd.f32 0.0, %v2160
  %2162 = vmatmul.f32.gmra.mxu0 %v2106
  %v2163 = vpop.f32.mrf.mxu0
  %v2164 = vadd.f32 0.0, %v2163
  %2165 = vmatmul.f32.gmra.mxu0 %v2109
  %v2166 = vpop.f32.mrf.mxu0
  %v2167 = vadd.f32 0.0, %v2166
  %2168 = vdwg.mxu0
  %2169 = vmatpush.msra.mxu0 0.0
  %2170 = vmatpush.msra.mxu0 0.0
  %2171 = vmatpush.msra.mxu0 0.0
  %2172 = vmatpush.msra.mxu0 0.0
  %2173 = vmatpush.msra.mxu0 0.0
  %2174 = vmatpush.msra.mxu0 0.0
  %2175 = vmatpush.msra.mxu0 0.0
  %2176 = vmatpush.msra.mxu0 0.0
  %2177 = vmatpush.msra.mxu0 0.0
  %2178 = vmatpush.msra.mxu0 0.0
  %2179 = vmatpush.msra.mxu0 0.0
  %2180 = vmatpush.msra.mxu0 0.0
  %2181 = vmatpush.msra.mxu0 %v2092
  %2182 = vmatpush.msra.mxu0 %v2088
  %2183 = vmatpush.msra.mxu0 %v2084
  %2184 = vmatpush.msra.mxu0 %v2080
  %2185 = vmatmul.f32.gmra.mxu0 %v2100
  %v2186 = vpop.f32.mrf.mxu0
  %v2187 = vadd.f32 0.0, %v2186
  %2188 = vmatmul.f32.gmra.mxu0 %v2103
  %v2189 = vpop.f32.mrf.mxu0
  %v2190 = vadd.f32 0.0, %v2189
  %2191 = vmatmul.f32.gmra.mxu0 %v2106
  %v2192 = vpop.f32.mrf.mxu0
  %v2193 = vadd.f32 0.0, %v2192
  %2194 = vmatmul.f32.gmra.mxu0 %v2109
  %v2195 = vpop.f32.mrf.mxu0
  %v2196 = vadd.f32 0.0, %v2195
  %2197 = vdwg.mxu0
  %2198 = vmatpush.msra.mxu0 0.0
  %2199 = vmatpush.msra.mxu0 0.0
  %2200 = vmatpush.msra.mxu0 0.0
  %2201 = vmatpush.msra.mxu0 0.0
  %2202 = vmatpush.msra.mxu0 0.0
  %2203 = vmatpush.msra.mxu0 0.0
  %2204 = vmatpush.msra.mxu0 0.0
  %2205 = vmatpush.msra.mxu0 0.0
  %2206 = vmatpush.msra.mxu0 0.0
  %2207 = vmatpush.msra.mxu0 0.0
  %2208 = vmatpush.msra.mxu0 0.0
  %2209 = vmatpush.msra.mxu0 0.0
  %2210 = vmatpush.msra.mxu0 %v2093
  %2211 = vmatpush.msra.mxu0 %v2089
  %2212 = vmatpush.msra.mxu0 %v2085
  %2213 = vmatpush.msra.mxu0 %v2081
  %2214 = vmatmul.f32.gmra.mxu0 %v2100
  %v2215 = vpop.f32.mrf.mxu0
  %v2216 = vadd.f32 0.0, %v2215
  %2217 = vmatmul.f32.gmra.mxu0 %v2103
  %v2218 = vpop.f32.mrf.mxu0
  %v2219 = vadd.f32 0.0, %v2218
  %2220 = vmatmul.f32.gmra.mxu0 %v2106
  %v2221 = vpop.f32.mrf.mxu0
  %v2222 = vadd.f32 0.0, %v2221
  %2223 = vmatmul.f32.gmra.mxu0 %v2109
  %v2224 = vpop.f32.mrf.mxu0
  %v2225 = vadd.f32 0.0, %v2224
  %2226 = vdwg.mxu0
  %v2227 = vadd.f32 %v2014, %v2129
  %v2228 = vadd.f32 %v2015, %v2158
  %v2229 = vadd.f32 %v2016, %v2187
  %v2230 = vadd.f32 %v2017, %v2216
  %v2231 = vadd.f32 %v2018, %v2132
  %v2232 = vadd.f32 %v2019, %v2161
  %v2233 = vadd.f32 %v2020, %v2190
  %v2234 = vadd.f32 %v2021, %v2219
  %v2235 = vadd.f32 %v2022, %v2135
  %v2236 = vadd.f32 %v2023, %v2164
  %v2237 = vadd.f32 %v2024, %v2193
  %v2238 = vadd.f32 %v2025, %v2222
  %v2239 = vadd.f32 %v2026, %v2138
  %v2240 = vadd.f32 %v2027, %v2167
  %v2241 = vadd.f32 %v2028, %v2196
  %v2242 = vadd.f32 %v2029, %v2225
  %2243 = vrot.lane.b32.xlu0 %v832, 112
  %v2244 = vpop.permute.xlu0 %2243
  %2245 = vrot.lane.b32.xlu0 %v836, 112
  %v2246 = vpop.permute.xlu0 %2245
  %2247 = vrot.lane.b32.xlu0 %v840, 112
  %v2248 = vpop.permute.xlu0 %2247
  %2249 = vrot.lane.b32.xlu0 %v844, 112
  %v2250 = vpop.permute.xlu0 %2249
  %2251 = vrot.lane.b32.xlu0 %v833, 112
  %v2252 = vpop.permute.xlu0 %2251
  %2253 = vrot.lane.b32.xlu0 %v837, 112
  %v2254 = vpop.permute.xlu0 %2253
  %2255 = vrot.lane.b32.xlu0 %v841, 112
  %v2256 = vpop.permute.xlu0 %2255
  %2257 = vrot.lane.b32.xlu0 %v845, 112
  %v2258 = vpop.permute.xlu0 %2257
  %2259 = vrot.lane.b32.xlu0 %v834, 112
  %v2260 = vpop.permute.xlu0 %2259
  %2261 = vrot.lane.b32.xlu0 %v838, 112
  %v2262 = vpop.permute.xlu0 %2261
  %2263 = vrot.lane.b32.xlu0 %v842, 112
  %v2264 = vpop.permute.xlu0 %2263
  %2265 = vrot.lane.b32.xlu0 %v846, 112
  %v2266 = vpop.permute.xlu0 %2265
  %2267 = vrot.lane.b32.xlu0 %v835, 112
  %v2268 = vpop.permute.xlu0 %2267
  %2269 = vrot.lane.b32.xlu0 %v839, 112
  %v2270 = vpop.permute.xlu0 %2269
  %2271 = vrot.lane.b32.xlu0 %v843, 112
  %v2272 = vpop.permute.xlu0 %2271
  %2273 = vrot.lane.b32.xlu0 %v847, 112
  %v2274 = vpop.permute.xlu0 %2273
  %v2275 = vsel %vm670, %v2260, %v2268
  %v2276 = vsel %vm670, %v2262, %v2270
  %v2277 = vsel %vm670, %v2264, %v2272
  %v2278 = vsel %vm670, %v2266, %v2274
  %v2279 = vsel %vm670, %v2252, %v2260
  %v2280 = vsel %vm670, %v2254, %v2262
  %v2281 = vsel %vm670, %v2256, %v2264
  %v2282 = vsel %vm670, %v2258, %v2266
  %v2283 = vsel %vm670, %v2244, %v2252
  %v2284 = vsel %vm670, %v2246, %v2254
  %v2285 = vsel %vm670, %v2248, %v2256
  %v2286 = vsel %vm670, %v2250, %v2258
  %v2287 = vsel %vm670, %v2268, %v2244
  %v2288 = vsel %vm670, %v2270, %v2246
  %v2289 = vsel %vm670, %v2272, %v2248
  %v2290 = vsel %vm670, %v2274, %v2250
  %v2291 = vmul.f32 %v2283, %v97
  %v2292 = vmul.f32 %v2279, %v98
  %v2293 = vmul.f32 %v2275, %v99
  %v2294 = vmul.f32 %v2287, %v100
  %v2295 = vmul.f32 %v2284, %v97
  %v2296 = vmul.f32 %v2280, %v98
  %v2297 = vmul.f32 %v2276, %v99
  %v2298 = vmul.f32 %v2288, %v100
  %v2299 = vmul.f32 %v2285, %v97
  %v2300 = vmul.f32 %v2281, %v98
  %v2301 = vmul.f32 %v2277, %v99
  %v2302 = vmul.f32 %v2289, %v100
  %v2303 = vmul.f32 %v2286, %v97
  %v2304 = vmul.f32 %v2282, %v98
  %v2305 = vmul.f32 %v2278, %v99
  %v2306 = vmul.f32 %v2290, %v100
  %s2307 = scalar_lea.vmem %s5, 224
  %v2308 = vld [vmem:[%s2307] sm:$0xff]
  %v2309 = vld [vmem:[%s2307 + $0x8] sm:$0xff]
  %v2310 = vld [vmem:[%s2307 + $0x10] sm:$0xff]
  %v2311 = vld [vmem:[%s2307 + $0x18] sm:$0xff]
  %v2313 = vsel %vm921, %v2308, 0
  %v2316 = vsel %vm921, %v2309, 0
  %v2319 = vsel %vm921, %v2310, 0
  %v2322 = vsel %vm921, %v2311, 0
  %2324 = vmatpush.msra.mxu0 0.0
  %2325 = vmatpush.msra.mxu0 0.0
  %2326 = vmatpush.msra.mxu0 0.0
  %2327 = vmatpush.msra.mxu0 0.0
  %2328 = vmatpush.msra.mxu0 0.0
  %2329 = vmatpush.msra.mxu0 0.0
  %2330 = vmatpush.msra.mxu0 0.0
  %2331 = vmatpush.msra.mxu0 0.0
  %2332 = vmatpush.msra.mxu0 0.0
  %2333 = vmatpush.msra.mxu0 0.0
  %2334 = vmatpush.msra.mxu0 0.0
  %2335 = vmatpush.msra.mxu0 0.0
  %2336 = vmatpush.msra.mxu0 %v2303
  %2337 = vmatpush.msra.mxu0 %v2299
  %2338 = vmatpush.msra.mxu0 %v2295
  %2339 = vmatpush.msra.mxu0 %v2291
  %2340 = vmatmul.f32.gmra.mxu0 %v2313
  %v2341 = vpop.f32.mrf.mxu0
  %v2342 = vadd.f32 0.0, %v2341
  %2343 = vmatmul.f32.gmra.mxu0 %v2316
  %v2344 = vpop.f32.mrf.mxu0
  %v2345 = vadd.f32 0.0, %v2344
  %2346 = vmatmul.f32.gmra.mxu0 %v2319
  %v2347 = vpop.f32.mrf.mxu0
  %v2348 = vadd.f32 0.0, %v2347
  %2349 = vmatmul.f32.gmra.mxu0 %v2322
  %v2350 = vpop.f32.mrf.mxu0
  %v2351 = vadd.f32 0.0, %v2350
  %2352 = vdwg.mxu0
  %2353 = vmatpush.msra.mxu0 0.0
  %2354 = vmatpush.msra.mxu0 0.0
  %2355 = vmatpush.msra.mxu0 0.0
  %2356 = vmatpush.msra.mxu0 0.0
  %2357 = vmatpush.msra.mxu0 0.0
  %2358 = vmatpush.msra.mxu0 0.0
  %2359 = vmatpush.msra.mxu0 0.0
  %2360 = vmatpush.msra.mxu0 0.0
  %2361 = vmatpush.msra.mxu0 0.0
  %2362 = vmatpush.msra.mxu0 0.0
  %2363 = vmatpush.msra.mxu0 0.0
  %2364 = vmatpush.msra.mxu0 0.0
  %2365 = vmatpush.msra.mxu0 %v2304
  %2366 = vmatpush.msra.mxu0 %v2300
  %2367 = vmatpush.msra.mxu0 %v2296
  %2368 = vmatpush.msra.mxu0 %v2292
  %2369 = vmatmul.f32.gmra.mxu0 %v2313
  %v2370 = vpop.f32.mrf.mxu0
  %v2371 = vadd.f32 0.0, %v2370
  %2372 = vmatmul.f32.gmra.mxu0 %v2316
  %v2373 = vpop.f32.mrf.mxu0
  %v2374 = vadd.f32 0.0, %v2373
  %2375 = vmatmul.f32.gmra.mxu0 %v2319
  %v2376 = vpop.f32.mrf.mxu0
  %v2377 = vadd.f32 0.0, %v2376
  %2378 = vmatmul.f32.gmra.mxu0 %v2322
  %v2379 = vpop.f32.mrf.mxu0
  %v2380 = vadd.f32 0.0, %v2379
  %2381 = vdwg.mxu0
  %2382 = vmatpush.msra.mxu0 0.0
  %2383 = vmatpush.msra.mxu0 0.0
  %2384 = vmatpush.msra.mxu0 0.0
  %2385 = vmatpush.msra.mxu0 0.0
  %2386 = vmatpush.msra.mxu0 0.0
  %2387 = vmatpush.msra.mxu0 0.0
  %2388 = vmatpush.msra.mxu0 0.0
  %2389 = vmatpush.msra.mxu0 0.0
  %2390 = vmatpush.msra.mxu0 0.0
  %2391 = vmatpush.msra.mxu0 0.0
  %2392 = vmatpush.msra.mxu0 0.0
  %2393 = vmatpush.msra.mxu0 0.0
  %2394 = vmatpush.msra.mxu0 %v2305
  %2395 = vmatpush.msra.mxu0 %v2301
  %2396 = vmatpush.msra.mxu0 %v2297
  %2397 = vmatpush.msra.mxu0 %v2293
  %2398 = vmatmul.f32.gmra.mxu0 %v2313
  %v2399 = vpop.f32.mrf.mxu0
  %v2400 = vadd.f32 0.0, %v2399
  %2401 = vmatmul.f32.gmra.mxu0 %v2316
  %v2402 = vpop.f32.mrf.mxu0
  %v2403 = vadd.f32 0.0, %v2402
  %2404 = vmatmul.f32.gmra.mxu0 %v2319
  %v2405 = vpop.f32.mrf.mxu0
  %v2406 = vadd.f32 0.0, %v2405
  %2407 = vmatmul.f32.gmra.mxu0 %v2322
  %v2408 = vpop.f32.mrf.mxu0
  %v2409 = vadd.f32 0.0, %v2408
  %2410 = vdwg.mxu0
  %2411 = vmatpush.msra.mxu0 0.0
  %2412 = vmatpush.msra.mxu0 0.0
  %2413 = vmatpush.msra.mxu0 0.0
  %2414 = vmatpush.msra.mxu0 0.0
  %2415 = vmatpush.msra.mxu0 0.0
  %2416 = vmatpush.msra.mxu0 0.0
  %2417 = vmatpush.msra.mxu0 0.0
  %2418 = vmatpush.msra.mxu0 0.0
  %2419 = vmatpush.msra.mxu0 0.0
  %2420 = vmatpush.msra.mxu0 0.0
  %2421 = vmatpush.msra.mxu0 0.0
  %2422 = vmatpush.msra.mxu0 0.0
  %2423 = vmatpush.msra.mxu0 %v2306
  %2424 = vmatpush.msra.mxu0 %v2302
  %2425 = vmatpush.msra.mxu0 %v2298
  %2426 = vmatpush.msra.mxu0 %v2294
  %2427 = vmatmul.f32.gmra.mxu0 %v2313
  %v2428 = vpop.f32.mrf.mxu0
  %v2429 = vadd.f32 0.0, %v2428
  %2430 = vmatmul.f32.gmra.mxu0 %v2316
  %v2431 = vpop.f32.mrf.mxu0
  %v2432 = vadd.f32 0.0, %v2431
  %2433 = vmatmul.f32.gmra.mxu0 %v2319
  %v2434 = vpop.f32.mrf.mxu0
  %v2435 = vadd.f32 0.0, %v2434
  %2436 = vmatmul.f32.gmra.mxu0 %v2322
  %v2437 = vpop.f32.mrf.mxu0
  %v2438 = vadd.f32 0.0, %v2437
  %2439 = vdwg.mxu0
  %v2440 = vadd.f32 %v2227, %v2342
  %v2441 = vadd.f32 %v2228, %v2371
  %v2442 = vadd.f32 %v2229, %v2400
  %v2443 = vadd.f32 %v2230, %v2429
  %v2444 = vadd.f32 %v2231, %v2345
  %v2445 = vadd.f32 %v2232, %v2374
  %v2446 = vadd.f32 %v2233, %v2403
  %v2447 = vadd.f32 %v2234, %v2432
  %v2448 = vadd.f32 %v2235, %v2348
  %v2449 = vadd.f32 %v2236, %v2377
  %v2450 = vadd.f32 %v2237, %v2406
  %v2451 = vadd.f32 %v2238, %v2435
  %v2452 = vadd.f32 %v2239, %v2351
  %v2453 = vadd.f32 %v2240, %v2380
  %v2454 = vadd.f32 %v2241, %v2409
  %v2455 = vadd.f32 %v2242, %v2438
  %2456 = vrot.lane.b32.xlu0 %v832, 111
  %v2457 = vpop.permute.xlu0 %2456
  %2458 = vrot.lane.b32.xlu0 %v836, 111
  %v2459 = vpop.permute.xlu0 %2458
  %2460 = vrot.lane.b32.xlu0 %v840, 111
  %v2461 = vpop.permute.xlu0 %2460
  %2462 = vrot.lane.b32.xlu0 %v844, 111
  %v2463 = vpop.permute.xlu0 %2462
  %2464 = vrot.lane.b32.xlu0 %v833, 111
  %v2465 = vpop.permute.xlu0 %2464
  %2466 = vrot.lane.b32.xlu0 %v837, 111
  %v2467 = vpop.permute.xlu0 %2466
  %2468 = vrot.lane.b32.xlu0 %v841, 111
  %v2469 = vpop.permute.xlu0 %2468
  %2470 = vrot.lane.b32.xlu0 %v845, 111
  %v2471 = vpop.permute.xlu0 %2470
  %2472 = vrot.lane.b32.xlu0 %v834, 111
  %v2473 = vpop.permute.xlu0 %2472
  %2474 = vrot.lane.b32.xlu0 %v838, 111
  %v2475 = vpop.permute.xlu0 %2474
  %2476 = vrot.lane.b32.xlu0 %v842, 111
  %v2477 = vpop.permute.xlu0 %2476
  %2478 = vrot.lane.b32.xlu0 %v846, 111
  %v2479 = vpop.permute.xlu0 %2478
  %2480 = vrot.lane.b32.xlu0 %v835, 111
  %v2481 = vpop.permute.xlu0 %2480
  %2482 = vrot.lane.b32.xlu0 %v839, 111
  %v2483 = vpop.permute.xlu0 %2482
  %2484 = vrot.lane.b32.xlu0 %v843, 111
  %v2485 = vpop.permute.xlu0 %2484
  %2486 = vrot.lane.b32.xlu0 %v847, 111
  %v2487 = vpop.permute.xlu0 %2486
  %v2488 = vsel %vm739, %v2473, %v2481
  %v2489 = vsel %vm739, %v2475, %v2483
  %v2490 = vsel %vm739, %v2477, %v2485
  %v2491 = vsel %vm739, %v2479, %v2487
  %v2492 = vsel %vm739, %v2465, %v2473
  %v2493 = vsel %vm739, %v2467, %v2475
  %v2494 = vsel %vm739, %v2469, %v2477
  %v2495 = vsel %vm739, %v2471, %v2479
  %v2496 = vsel %vm739, %v2457, %v2465
  %v2497 = vsel %vm739, %v2459, %v2467
  %v2498 = vsel %vm739, %v2461, %v2469
  %v2499 = vsel %vm739, %v2463, %v2471
  %v2500 = vsel %vm739, %v2481, %v2457
  %v2501 = vsel %vm739, %v2483, %v2459
  %v2502 = vsel %vm739, %v2485, %v2461
  %v2503 = vsel %vm739, %v2487, %v2463
  %v2504 = vmul.f32 %v2496, %v106
  %v2505 = vmul.f32 %v2492, %v107
  %v2506 = vmul.f32 %v2488, %v108
  %v2507 = vmul.f32 %v2500, %v109
  %v2508 = vmul.f32 %v2497, %v106
  %v2509 = vmul.f32 %v2493, %v107
  %v2510 = vmul.f32 %v2489, %v108
  %v2511 = vmul.f32 %v2501, %v109
  %v2512 = vmul.f32 %v2498, %v106
  %v2513 = vmul.f32 %v2494, %v107
  %v2514 = vmul.f32 %v2490, %v108
  %v2515 = vmul.f32 %v2502, %v109
  %v2516 = vmul.f32 %v2499, %v106
  %v2517 = vmul.f32 %v2495, %v107
  %v2518 = vmul.f32 %v2491, %v108
  %v2519 = vmul.f32 %v2503, %v109
  %s2520 = scalar_lea.vmem %s5, 256
  %v2521 = vld [vmem:[%s2520] sm:$0xff]
  %v2522 = vld [vmem:[%s2520 + $0x8] sm:$0xff]
  %v2523 = vld [vmem:[%s2520 + $0x10] sm:$0xff]
  %v2524 = vld [vmem:[%s2520 + $0x18] sm:$0xff]
  %v2526 = vsel %vm921, %v2521, 0
  %v2529 = vsel %vm921, %v2522, 0
  %v2532 = vsel %vm921, %v2523, 0
  %v2535 = vsel %vm921, %v2524, 0
  %2537 = vmatpush.msra.mxu0 0.0
  %2538 = vmatpush.msra.mxu0 0.0
  %2539 = vmatpush.msra.mxu0 0.0
  %2540 = vmatpush.msra.mxu0 0.0
  %2541 = vmatpush.msra.mxu0 0.0
  %2542 = vmatpush.msra.mxu0 0.0
  %2543 = vmatpush.msra.mxu0 0.0
  %2544 = vmatpush.msra.mxu0 0.0
  %2545 = vmatpush.msra.mxu0 0.0
  %2546 = vmatpush.msra.mxu0 0.0
  %2547 = vmatpush.msra.mxu0 0.0
  %2548 = vmatpush.msra.mxu0 0.0
  %2549 = vmatpush.msra.mxu0 %v2516
  %2550 = vmatpush.msra.mxu0 %v2512
  %2551 = vmatpush.msra.mxu0 %v2508
  %2552 = vmatpush.msra.mxu0 %v2504
  %2553 = vmatmul.f32.gmra.mxu0 %v2526
  %v2554 = vpop.f32.mrf.mxu0
  %v2555 = vadd.f32 0.0, %v2554
  %2556 = vmatmul.f32.gmra.mxu0 %v2529
  %v2557 = vpop.f32.mrf.mxu0
  %v2558 = vadd.f32 0.0, %v2557
  %2559 = vmatmul.f32.gmra.mxu0 %v2532
  %v2560 = vpop.f32.mrf.mxu0
  %v2561 = vadd.f32 0.0, %v2560
  %2562 = vmatmul.f32.gmra.mxu0 %v2535
  %v2563 = vpop.f32.mrf.mxu0
  %v2564 = vadd.f32 0.0, %v2563
  %2565 = vdwg.mxu0
  %2566 = vmatpush.msra.mxu0 0.0
  %2567 = vmatpush.msra.mxu0 0.0
  %2568 = vmatpush.msra.mxu0 0.0
  %2569 = vmatpush.msra.mxu0 0.0
  %2570 = vmatpush.msra.mxu0 0.0
  %2571 = vmatpush.msra.mxu0 0.0
  %2572 = vmatpush.msra.mxu0 0.0
  %2573 = vmatpush.msra.mxu0 0.0
  %2574 = vmatpush.msra.mxu0 0.0
  %2575 = vmatpush.msra.mxu0 0.0
  %2576 = vmatpush.msra.mxu0 0.0
  %2577 = vmatpush.msra.mxu0 0.0
  %2578 = vmatpush.msra.mxu0 %v2517
  %2579 = vmatpush.msra.mxu0 %v2513
  %2580 = vmatpush.msra.mxu0 %v2509
  %2581 = vmatpush.msra.mxu0 %v2505
  %2582 = vmatmul.f32.gmra.mxu0 %v2526
  %v2583 = vpop.f32.mrf.mxu0
  %v2584 = vadd.f32 0.0, %v2583
  %2585 = vmatmul.f32.gmra.mxu0 %v2529
  %v2586 = vpop.f32.mrf.mxu0
  %v2587 = vadd.f32 0.0, %v2586
  %2588 = vmatmul.f32.gmra.mxu0 %v2532
  %v2589 = vpop.f32.mrf.mxu0
  %v2590 = vadd.f32 0.0, %v2589
  %2591 = vmatmul.f32.gmra.mxu0 %v2535
  %v2592 = vpop.f32.mrf.mxu0
  %v2593 = vadd.f32 0.0, %v2592
  %2594 = vdwg.mxu0
  %2595 = vmatpush.msra.mxu0 0.0
  %2596 = vmatpush.msra.mxu0 0.0
  %2597 = vmatpush.msra.mxu0 0.0
  %2598 = vmatpush.msra.mxu0 0.0
  %2599 = vmatpush.msra.mxu0 0.0
  %2600 = vmatpush.msra.mxu0 0.0
  %2601 = vmatpush.msra.mxu0 0.0
  %2602 = vmatpush.msra.mxu0 0.0
  %2603 = vmatpush.msra.mxu0 0.0
  %2604 = vmatpush.msra.mxu0 0.0
  %2605 = vmatpush.msra.mxu0 0.0
  %2606 = vmatpush.msra.mxu0 0.0
  %2607 = vmatpush.msra.mxu0 %v2518
  %2608 = vmatpush.msra.mxu0 %v2514
  %2609 = vmatpush.msra.mxu0 %v2510
  %2610 = vmatpush.msra.mxu0 %v2506
  %2611 = vmatmul.f32.gmra.mxu0 %v2526
  %v2612 = vpop.f32.mrf.mxu0
  %v2613 = vadd.f32 0.0, %v2612
  %2614 = vmatmul.f32.gmra.mxu0 %v2529
  %v2615 = vpop.f32.mrf.mxu0
  %v2616 = vadd.f32 0.0, %v2615
  %2617 = vmatmul.f32.gmra.mxu0 %v2532
  %v2618 = vpop.f32.mrf.mxu0
  %v2619 = vadd.f32 0.0, %v2618
  %2620 = vmatmul.f32.gmra.mxu0 %v2535
  %v2621 = vpop.f32.mrf.mxu0
  %v2622 = vadd.f32 0.0, %v2621
  %2623 = vdwg.mxu0
  %2624 = vmatpush.msra.mxu0 0.0
  %2625 = vmatpush.msra.mxu0 0.0
  %2626 = vmatpush.msra.mxu0 0.0
  %2627 = vmatpush.msra.mxu0 0.0
  %2628 = vmatpush.msra.mxu0 0.0
  %2629 = vmatpush.msra.mxu0 0.0
  %2630 = vmatpush.msra.mxu0 0.0
  %2631 = vmatpush.msra.mxu0 0.0
  %2632 = vmatpush.msra.mxu0 0.0
  %2633 = vmatpush.msra.mxu0 0.0
  %2634 = vmatpush.msra.mxu0 0.0
  %2635 = vmatpush.msra.mxu0 0.0
  %2636 = vmatpush.msra.mxu0 %v2519
  %2637 = vmatpush.msra.mxu0 %v2515
  %2638 = vmatpush.msra.mxu0 %v2511
  %2639 = vmatpush.msra.mxu0 %v2507
  %2640 = vmatmul.f32.gmra.mxu0 %v2526
  %v2641 = vpop.f32.mrf.mxu0
  %v2642 = vadd.f32 0.0, %v2641
  %2643 = vmatmul.f32.gmra.mxu0 %v2529
  %v2644 = vpop.f32.mrf.mxu0
  %v2645 = vadd.f32 0.0, %v2644
  %2646 = vmatmul.f32.gmra.mxu0 %v2532
  %v2647 = vpop.f32.mrf.mxu0
  %v2648 = vadd.f32 0.0, %v2647
  %2649 = vmatmul.f32.gmra.mxu0 %v2535
  %v2650 = vpop.f32.mrf.mxu0
  %v2651 = vadd.f32 0.0, %v2650
  %2652 = vdwg.mxu0
  %v2653 = vadd.f32 %v2440, %v2555
  %v2654 = vadd.f32 %v2441, %v2584
  %v2655 = vadd.f32 %v2442, %v2613
  %v2656 = vadd.f32 %v2443, %v2642
  %v2657 = vadd.f32 %v2444, %v2558
  %v2658 = vadd.f32 %v2445, %v2587
  %v2659 = vadd.f32 %v2446, %v2616
  %v2660 = vadd.f32 %v2447, %v2645
  %v2661 = vadd.f32 %v2448, %v2561
  %v2662 = vadd.f32 %v2449, %v2590
  %v2663 = vadd.f32 %v2450, %v2619
  %v2664 = vadd.f32 %v2451, %v2648
  %v2665 = vadd.f32 %v2452, %v2564
  %v2666 = vadd.f32 %v2453, %v2593
  %v2667 = vadd.f32 %v2454, %v2622
  %v2668 = vadd.f32 %v2455, %v2651
  %v2669 = vld [vmem:[%s6] sm:$0xff]
  %v2670 = vld [vmem:[%s6 + $0x8] sm:$0xff]
  %v2671 = vld [vmem:[%s6 + $0x10] sm:$0xff]
  %v2672 = vld [vmem:[%s6 + $0x18] sm:$0xff]
  %2674 = vset.pattern.permute.xlu0 0
  %2675 = vperm.xlu0 %2674, %v2669
  %v2676 = vpop.permute.xlu0 %2675
  %2679 = vset.pattern.permute.xlu0 0
  %2680 = vperm.xlu0 %2679, %v2670
  %v2681 = vpop.permute.xlu0 %2680
  %2684 = vset.pattern.permute.xlu0 0
  %2685 = vperm.xlu0 %2684, %v2671
  %v2686 = vpop.permute.xlu0 %2685
  %2689 = vset.pattern.permute.xlu0 0
  %2690 = vperm.xlu0 %2689, %v2672
  %v2691 = vpop.permute.xlu0 %2690
  %v2693 = vadd.f32 %v2653, %v2676
  %v2694 = vadd.f32 %v2654, %v2676
  %v2695 = vadd.f32 %v2655, %v2676
  %v2696 = vadd.f32 %v2656, %v2676
  %v2697 = vadd.f32 %v2657, %v2681
  %v2698 = vadd.f32 %v2658, %v2681
  %v2699 = vadd.f32 %v2659, %v2681
  %v2700 = vadd.f32 %v2660, %v2681
  %v2701 = vadd.f32 %v2661, %v2686
  %v2702 = vadd.f32 %v2662, %v2686
  %v2703 = vadd.f32 %v2663, %v2686
  %v2704 = vadd.f32 %v2664, %v2686
  %v2705 = vadd.f32 %v2665, %v2691
  %v2706 = vadd.f32 %v2666, %v2691
  %v2707 = vadd.f32 %v2667, %v2691
  %v2708 = vadd.f32 %v2668, %v2691
  %vm2709 = vcmp.gt.f32.partialorder %v2693, 0.0
  %vm2710 = vcmp.gt.f32.partialorder %v2694, 0.0
  %vm2711 = vcmp.gt.f32.partialorder %v2695, 0.0
  %vm2712 = vcmp.gt.f32.partialorder %v2696, 0.0
  %vm2713 = vcmp.gt.f32.partialorder %v2697, 0.0
  %vm2714 = vcmp.gt.f32.partialorder %v2698, 0.0
  %vm2715 = vcmp.gt.f32.partialorder %v2699, 0.0
  %vm2716 = vcmp.gt.f32.partialorder %v2700, 0.0
  %vm2717 = vcmp.gt.f32.partialorder %v2701, 0.0
  %vm2718 = vcmp.gt.f32.partialorder %v2702, 0.0
  %vm2719 = vcmp.gt.f32.partialorder %v2703, 0.0
  %vm2720 = vcmp.gt.f32.partialorder %v2704, 0.0
  %vm2721 = vcmp.gt.f32.partialorder %v2705, 0.0
  %vm2722 = vcmp.gt.f32.partialorder %v2706, 0.0
  %vm2723 = vcmp.gt.f32.partialorder %v2707, 0.0
  %vm2724 = vcmp.gt.f32.partialorder %v2708, 0.0
  %v2725 = vmul.f32 %v2693, 0.2
  %v2726 = vmul.f32 %v2694, 0.2
  %v2727 = vmul.f32 %v2695, 0.2
  %v2728 = vmul.f32 %v2696, 0.2
  %v2729 = vmul.f32 %v2697, 0.2
  %v2730 = vmul.f32 %v2698, 0.2
  %v2731 = vmul.f32 %v2699, 0.2
  %v2732 = vmul.f32 %v2700, 0.2
  %v2733 = vmul.f32 %v2701, 0.2
  %v2734 = vmul.f32 %v2702, 0.2
  %v2735 = vmul.f32 %v2703, 0.2
  %v2736 = vmul.f32 %v2704, 0.2
  %v2737 = vmul.f32 %v2705, 0.2
  %v2738 = vmul.f32 %v2706, 0.2
  %v2739 = vmul.f32 %v2707, 0.2
  %v2740 = vmul.f32 %v2708, 0.2
  %v2741 = vsel %vm2709, %v2693, %v2725
  %v2742 = vsel %vm2710, %v2694, %v2726
  %v2743 = vsel %vm2711, %v2695, %v2727
  %v2744 = vsel %vm2712, %v2696, %v2728
  %v2745 = vsel %vm2713, %v2697, %v2729
  %v2746 = vsel %vm2714, %v2698, %v2730
  %v2747 = vsel %vm2715, %v2699, %v2731
  %v2748 = vsel %vm2716, %v2700, %v2732
  %v2749 = vsel %vm2717, %v2701, %v2733
  %v2750 = vsel %vm2718, %v2702, %v2734
  %v2751 = vsel %vm2719, %v2703, %v2735
  %v2752 = vsel %vm2720, %v2704, %v2736
  %v2753 = vsel %vm2721, %v2705, %v2737
  %v2754 = vsel %vm2722, %v2706, %v2738
  %v2755 = vsel %vm2723, %v2707, %v2739
  %v2756 = vsel %vm2724, %v2708, %v2740
  %s2757 = scalar_lea.vmem %s5, 416
  %v2758 = vld [vmem:[%s2757] sm:$0xff]
  %v2759 = vld [vmem:[%s2757 + $0x8] sm:$0xff]
  %v2760 = vld [vmem:[%s2757 + $0x10] sm:$0xff]
  %v2761 = vld [vmem:[%s2757 + $0x18] sm:$0xff]
  %2762 = vrot.lane.b32.xlu0 %v2741, 17
  %v2763 = vpop.permute.xlu0 %2762
  %2764 = vrot.lane.b32.xlu0 %v2745, 17
  %v2765 = vpop.permute.xlu0 %2764
  %2766 = vrot.lane.b32.xlu0 %v2749, 17
  %v2767 = vpop.permute.xlu0 %2766
  %2768 = vrot.lane.b32.xlu0 %v2753, 17
  %v2769 = vpop.permute.xlu0 %2768
  %2770 = vrot.lane.b32.xlu0 %v2742, 17
  %v2771 = vpop.permute.xlu0 %2770
  %2772 = vrot.lane.b32.xlu0 %v2746, 17
  %v2773 = vpop.permute.xlu0 %2772
  %2774 = vrot.lane.b32.xlu0 %v2750, 17
  %v2775 = vpop.permute.xlu0 %2774
  %2776 = vrot.lane.b32.xlu0 %v2754, 17
  %v2777 = vpop.permute.xlu0 %2776
  %2778 = vrot.lane.b32.xlu0 %v2743, 17
  %v2779 = vpop.permute.xlu0 %2778
  %2780 = vrot.lane.b32.xlu0 %v2747, 17
  %v2781 = vpop.permute.xlu0 %2780
  %2782 = vrot.lane.b32.xlu0 %v2751, 17
  %v2783 = vpop.permute.xlu0 %2782
  %2784 = vrot.lane.b32.xlu0 %v2755, 17
  %v2785 = vpop.permute.xlu0 %2784
  %2786 = vrot.lane.b32.xlu0 %v2744, 17
  %v2787 = vpop.permute.xlu0 %2786
  %2788 = vrot.lane.b32.xlu0 %v2748, 17
  %v2789 = vpop.permute.xlu0 %2788
  %2790 = vrot.lane.b32.xlu0 %v2752, 17
  %v2791 = vpop.permute.xlu0 %2790
  %2792 = vrot.lane.b32.xlu0 %v2756, 17
  %v2793 = vpop.permute.xlu0 %2792
  %v2794 = vsel %vm208, %v2779, %v2787
  %v2795 = vsel %vm208, %v2781, %v2789
  %v2796 = vsel %vm208, %v2783, %v2791
  %v2797 = vsel %vm208, %v2785, %v2793
  %v2798 = vsel %vm208, %v2771, %v2779
  %v2799 = vsel %vm208, %v2773, %v2781
  %v2800 = vsel %vm208, %v2775, %v2783
  %v2801 = vsel %vm208, %v2777, %v2785
  %v2802 = vsel %vm208, %v2763, %v2771
  %v2803 = vsel %vm208, %v2765, %v2773
  %v2804 = vsel %vm208, %v2767, %v2775
  %v2805 = vsel %vm208, %v2769, %v2777
  %v2806 = vsel %vm208, %v2787, %v2763
  %v2807 = vsel %vm208, %v2789, %v2765
  %v2808 = vsel %vm208, %v2791, %v2767
  %v2809 = vsel %vm208, %v2793, %v2769
  %v2810 = vmul.f32 %v2806, %v43
  %v2811 = vmul.f32 %v2802, %v44
  %v2812 = vmul.f32 %v2798, %v45
  %v2813 = vmul.f32 %v2794, %v46
  %v2814 = vmul.f32 %v2807, %v43
  %v2815 = vmul.f32 %v2803, %v44
  %v2816 = vmul.f32 %v2799, %v45
  %v2817 = vmul.f32 %v2795, %v46
  %v2818 = vmul.f32 %v2808, %v43
  %v2819 = vmul.f32 %v2804, %v44
  %v2820 = vmul.f32 %v2800, %v45
  %v2821 = vmul.f32 %v2796, %v46
  %v2822 = vmul.f32 %v2809, %v43
  %v2823 = vmul.f32 %v2805, %v44
  %v2824 = vmul.f32 %v2801, %v45
  %v2825 = vmul.f32 %v2797, %v46
  %s2826 = scalar_lea.vmem %s5, 288
  %v2827 = vld [vmem:[%s2826] sm:$0xff]
  %v2828 = vld [vmem:[%s2826 + $0x8] sm:$0xff]
  %v2829 = vld [vmem:[%s2826 + $0x10] sm:$0xff]
  %v2830 = vld [vmem:[%s2826 + $0x18] sm:$0xff]
  %v2832 = vsel %vm921, %v2827, 0
  %v2835 = vsel %vm921, %v2828, 0
  %v2838 = vsel %vm921, %v2829, 0
  %v2841 = vsel %vm921, %v2830, 0
  %2843 = vmatpush.msra.mxu0 0.0
  %2844 = vmatpush.msra.mxu0 0.0
  %2845 = vmatpush.msra.mxu0 0.0
  %2846 = vmatpush.msra.mxu0 0.0
  %2847 = vmatpush.msra.mxu0 0.0
  %2848 = vmatpush.msra.mxu0 0.0
  %2849 = vmatpush.msra.mxu0 0.0
  %2850 = vmatpush.msra.mxu0 0.0
  %2851 = vmatpush.msra.mxu0 0.0
  %2852 = vmatpush.msra.mxu0 0.0
  %2853 = vmatpush.msra.mxu0 0.0
  %2854 = vmatpush.msra.mxu0 0.0
  %2855 = vmatpush.msra.mxu0 %v2822
  %2856 = vmatpush.msra.mxu0 %v2818
  %2857 = vmatpush.msra.mxu0 %v2814
  %2858 = vmatpush.msra.mxu0 %v2810
  %2859 = vmatmul.f32.gmra.mxu0 %v2832
  %v2860 = vpop.f32.mrf.mxu0
  %v2861 = vadd.f32 0.0, %v2860
  %2862 = vmatmul.f32.gmra.mxu0 %v2835
  %v2863 = vpop.f32.mrf.mxu0
  %v2864 = vadd.f32 0.0, %v2863
  %2865 = vmatmul.f32.gmra.mxu0 %v2838
  %v2866 = vpop.f32.mrf.mxu0
  %v2867 = vadd.f32 0.0, %v2866
  %2868 = vmatmul.f32.gmra.mxu0 %v2841
  %v2869 = vpop.f32.mrf.mxu0
  %v2870 = vadd.f32 0.0, %v2869
  %2871 = vdwg.mxu0
  %2872 = vmatpush.msra.mxu0 0.0
  %2873 = vmatpush.msra.mxu0 0.0
  %2874 = vmatpush.msra.mxu0 0.0
  %2875 = vmatpush.msra.mxu0 0.0
  %2876 = vmatpush.msra.mxu0 0.0
  %2877 = vmatpush.msra.mxu0 0.0
  %2878 = vmatpush.msra.mxu0 0.0
  %2879 = vmatpush.msra.mxu0 0.0
  %2880 = vmatpush.msra.mxu0 0.0
  %2881 = vmatpush.msra.mxu0 0.0
  %2882 = vmatpush.msra.mxu0 0.0
  %2883 = vmatpush.msra.mxu0 0.0
  %2884 = vmatpush.msra.mxu0 %v2823
  %2885 = vmatpush.msra.mxu0 %v2819
  %2886 = vmatpush.msra.mxu0 %v2815
  %2887 = vmatpush.msra.mxu0 %v2811
  %2888 = vmatmul.f32.gmra.mxu0 %v2832
  %v2889 = vpop.f32.mrf.mxu0
  %v2890 = vadd.f32 0.0, %v2889
  %2891 = vmatmul.f32.gmra.mxu0 %v2835
  %v2892 = vpop.f32.mrf.mxu0
  %v2893 = vadd.f32 0.0, %v2892
  %2894 = vmatmul.f32.gmra.mxu0 %v2838
  %v2895 = vpop.f32.mrf.mxu0
  %v2896 = vadd.f32 0.0, %v2895
  %2897 = vmatmul.f32.gmra.mxu0 %v2841
  %v2898 = vpop.f32.mrf.mxu0
  %v2899 = vadd.f32 0.0, %v2898
  %2900 = vdwg.mxu0
  %2901 = vmatpush.msra.mxu0 0.0
  %2902 = vmatpush.msra.mxu0 0.0
  %2903 = vmatpush.msra.mxu0 0.0
  %2904 = vmatpush.msra.mxu0 0.0
  %2905 = vmatpush.msra.mxu0 0.0
  %2906 = vmatpush.msra.mxu0 0.0
  %2907 = vmatpush.msra.mxu0 0.0
  %2908 = vmatpush.msra.mxu0 0.0
  %2909 = vmatpush.msra.mxu0 0.0
  %2910 = vmatpush.msra.mxu0 0.0
  %2911 = vmatpush.msra.mxu0 0.0
  %2912 = vmatpush.msra.mxu0 0.0
  %2913 = vmatpush.msra.mxu0 %v2824
  %2914 = vmatpush.msra.mxu0 %v2820
  %2915 = vmatpush.msra.mxu0 %v2816
  %2916 = vmatpush.msra.mxu0 %v2812
  %2917 = vmatmul.f32.gmra.mxu0 %v2832
  %v2918 = vpop.f32.mrf.mxu0
  %v2919 = vadd.f32 0.0, %v2918
  %2920 = vmatmul.f32.gmra.mxu0 %v2835
  %v2921 = vpop.f32.mrf.mxu0
  %v2922 = vadd.f32 0.0, %v2921
  %2923 = vmatmul.f32.gmra.mxu0 %v2838
  %v2924 = vpop.f32.mrf.mxu0
  %v2925 = vadd.f32 0.0, %v2924
  %2926 = vmatmul.f32.gmra.mxu0 %v2841
  %v2927 = vpop.f32.mrf.mxu0
  %v2928 = vadd.f32 0.0, %v2927
  %2929 = vdwg.mxu0
  %2930 = vmatpush.msra.mxu0 0.0
  %2931 = vmatpush.msra.mxu0 0.0
  %2932 = vmatpush.msra.mxu0 0.0
  %2933 = vmatpush.msra.mxu0 0.0
  %2934 = vmatpush.msra.mxu0 0.0
  %2935 = vmatpush.msra.mxu0 0.0
  %2936 = vmatpush.msra.mxu0 0.0
  %2937 = vmatpush.msra.mxu0 0.0
  %2938 = vmatpush.msra.mxu0 0.0
  %2939 = vmatpush.msra.mxu0 0.0
  %2940 = vmatpush.msra.mxu0 0.0
  %2941 = vmatpush.msra.mxu0 0.0
  %2942 = vmatpush.msra.mxu0 %v2825
  %2943 = vmatpush.msra.mxu0 %v2821
  %2944 = vmatpush.msra.mxu0 %v2817
  %2945 = vmatpush.msra.mxu0 %v2813
  %2946 = vmatmul.f32.gmra.mxu0 %v2832
  %v2947 = vpop.f32.mrf.mxu0
  %v2948 = vadd.f32 0.0, %v2947
  %2949 = vmatmul.f32.gmra.mxu0 %v2835
  %v2950 = vpop.f32.mrf.mxu0
  %v2951 = vadd.f32 0.0, %v2950
  %2952 = vmatmul.f32.gmra.mxu0 %v2838
  %v2953 = vpop.f32.mrf.mxu0
  %v2954 = vadd.f32 0.0, %v2953
  %2955 = vmatmul.f32.gmra.mxu0 %v2841
  %v2956 = vpop.f32.mrf.mxu0
  %v2957 = vadd.f32 0.0, %v2956
  %2958 = vdwg.mxu0
  %v2960 = vsel %vm921, %v2758, 0
  %v2963 = vsel %vm921, %v2759, 0
  %v2966 = vsel %vm921, %v2760, 0
  %v2969 = vsel %vm921, %v2761, 0
  %2971 = vmatpush.msra.mxu0 0.0
  %2972 = vmatpush.msra.mxu0 0.0
  %2973 = vmatpush.msra.mxu0 0.0
  %2974 = vmatpush.msra.mxu0 0.0
  %2975 = vmatpush.msra.mxu0 0.0
  %2976 = vmatpush.msra.mxu0 0.0
  %2977 = vmatpush.msra.mxu0 0.0
  %2978 = vmatpush.msra.mxu0 0.0
  %2979 = vmatpush.msra.mxu0 0.0
  %2980 = vmatpush.msra.mxu0 0.0
  %2981 = vmatpush.msra.mxu0 0.0
  %2982 = vmatpush.msra.mxu0 0.0
  %2983 = vmatpush.msra.mxu0 %v2753
  %2984 = vmatpush.msra.mxu0 %v2749
  %2985 = vmatpush.msra.mxu0 %v2745
  %2986 = vmatpush.msra.mxu0 %v2741
  %2987 = vmatmul.f32.gmra.mxu0 %v2960
  %v2988 = vpop.f32.mrf.mxu0
  %v2989 = vadd.f32 %v2861, %v2988
  %2990 = vmatmul.f32.gmra.mxu0 %v2963
  %v2991 = vpop.f32.mrf.mxu0
  %v2992 = vadd.f32 %v2864, %v2991
  %2993 = vmatmul.f32.gmra.mxu0 %v2966
  %v2994 = vpop.f32.mrf.mxu0
  %v2995 = vadd.f32 %v2867, %v2994
  %2996 = vmatmul.f32.gmra.mxu0 %v2969
  %v2997 = vpop.f32.mrf.mxu0
  %v2998 = vadd.f32 %v2870, %v2997
  %2999 = vdwg.mxu0
  %3000 = vmatpush.msra.mxu0 0.0
  %3001 = vmatpush.msra.mxu0 0.0
  %3002 = vmatpush.msra.mxu0 0.0
  %3003 = vmatpush.msra.mxu0 0.0
  %3004 = vmatpush.msra.mxu0 0.0
  %3005 = vmatpush.msra.mxu0 0.0
  %3006 = vmatpush.msra.mxu0 0.0
  %3007 = vmatpush.msra.mxu0 0.0
  %3008 = vmatpush.msra.mxu0 0.0
  %3009 = vmatpush.msra.mxu0 0.0
  %3010 = vmatpush.msra.mxu0 0.0
  %3011 = vmatpush.msra.mxu0 0.0
  %3012 = vmatpush.msra.mxu0 %v2754
  %3013 = vmatpush.msra.mxu0 %v2750
  %3014 = vmatpush.msra.mxu0 %v2746
  %3015 = vmatpush.msra.mxu0 %v2742
  %3016 = vmatmul.f32.gmra.mxu0 %v2960
  %v3017 = vpop.f32.mrf.mxu0
  %v3018 = vadd.f32 %v2890, %v3017
  %3019 = vmatmul.f32.gmra.mxu0 %v2963
  %v3020 = vpop.f32.mrf.mxu0
  %v3021 = vadd.f32 %v2893, %v3020
  %3022 = vmatmul.f32.gmra.mxu0 %v2966
  %v3023 = vpop.f32.mrf.mxu0
  %v3024 = vadd.f32 %v2896, %v3023
  %3025 = vmatmul.f32.gmra.mxu0 %v2969
  %v3026 = vpop.f32.mrf.mxu0
  %v3027 = vadd.f32 %v2899, %v3026
  %3028 = vdwg.mxu0
  %3029 = vmatpush.msra.mxu0 0.0
  %3030 = vmatpush.msra.mxu0 0.0
  %3031 = vmatpush.msra.mxu0 0.0
  %3032 = vmatpush.msra.mxu0 0.0
  %3033 = vmatpush.msra.mxu0 0.0
  %3034 = vmatpush.msra.mxu0 0.0
  %3035 = vmatpush.msra.mxu0 0.0
  %3036 = vmatpush.msra.mxu0 0.0
  %3037 = vmatpush.msra.mxu0 0.0
  %3038 = vmatpush.msra.mxu0 0.0
  %3039 = vmatpush.msra.mxu0 0.0
  %3040 = vmatpush.msra.mxu0 0.0
  %3041 = vmatpush.msra.mxu0 %v2755
  %3042 = vmatpush.msra.mxu0 %v2751
  %3043 = vmatpush.msra.mxu0 %v2747
  %3044 = vmatpush.msra.mxu0 %v2743
  %3045 = vmatmul.f32.gmra.mxu0 %v2960
  %v3046 = vpop.f32.mrf.mxu0
  %v3047 = vadd.f32 %v2919, %v3046
  %3048 = vmatmul.f32.gmra.mxu0 %v2963
  %v3049 = vpop.f32.mrf.mxu0
  %v3050 = vadd.f32 %v2922, %v3049
  %3051 = vmatmul.f32.gmra.mxu0 %v2966
  %v3052 = vpop.f32.mrf.mxu0
  %v3053 = vadd.f32 %v2925, %v3052
  %3054 = vmatmul.f32.gmra.mxu0 %v2969
  %v3055 = vpop.f32.mrf.mxu0
  %v3056 = vadd.f32 %v2928, %v3055
  %3057 = vdwg.mxu0
  %3058 = vmatpush.msra.mxu0 0.0
  %3059 = vmatpush.msra.mxu0 0.0
  %3060 = vmatpush.msra.mxu0 0.0
  %3061 = vmatpush.msra.mxu0 0.0
  %3062 = vmatpush.msra.mxu0 0.0
  %3063 = vmatpush.msra.mxu0 0.0
  %3064 = vmatpush.msra.mxu0 0.0
  %3065 = vmatpush.msra.mxu0 0.0
  %3066 = vmatpush.msra.mxu0 0.0
  %3067 = vmatpush.msra.mxu0 0.0
  %3068 = vmatpush.msra.mxu0 0.0
  %3069 = vmatpush.msra.mxu0 0.0
  %3070 = vmatpush.msra.mxu0 %v2756
  %3071 = vmatpush.msra.mxu0 %v2752
  %3072 = vmatpush.msra.mxu0 %v2748
  %3073 = vmatpush.msra.mxu0 %v2744
  %3074 = vmatmul.f32.gmra.mxu0 %v2960
  %v3075 = vpop.f32.mrf.mxu0
  %v3076 = vadd.f32 %v2948, %v3075
  %3077 = vmatmul.f32.gmra.mxu0 %v2963
  %v3078 = vpop.f32.mrf.mxu0
  %v3079 = vadd.f32 %v2951, %v3078
  %3080 = vmatmul.f32.gmra.mxu0 %v2966
  %v3081 = vpop.f32.mrf.mxu0
  %v3082 = vadd.f32 %v2954, %v3081
  %3083 = vmatmul.f32.gmra.mxu0 %v2969
  %v3084 = vpop.f32.mrf.mxu0
  %v3085 = vadd.f32 %v2957, %v3084
  %3086 = vdwg.mxu0
  %3087 = vrot.lane.b32.xlu0 %v2741, 16
  %v3088 = vpop.permute.xlu0 %3087
  %3089 = vrot.lane.b32.xlu0 %v2745, 16
  %v3090 = vpop.permute.xlu0 %3089
  %3091 = vrot.lane.b32.xlu0 %v2749, 16
  %v3092 = vpop.permute.xlu0 %3091
  %3093 = vrot.lane.b32.xlu0 %v2753, 16
  %v3094 = vpop.permute.xlu0 %3093
  %3095 = vrot.lane.b32.xlu0 %v2742, 16
  %v3096 = vpop.permute.xlu0 %3095
  %3097 = vrot.lane.b32.xlu0 %v2746, 16
  %v3098 = vpop.permute.xlu0 %3097
  %3099 = vrot.lane.b32.xlu0 %v2750, 16
  %v3100 = vpop.permute.xlu0 %3099
  %3101 = vrot.lane.b32.xlu0 %v2754, 16
  %v3102 = vpop.permute.xlu0 %3101
  %3103 = vrot.lane.b32.xlu0 %v2743, 16
  %v3104 = vpop.permute.xlu0 %3103
  %3105 = vrot.lane.b32.xlu0 %v2747, 16
  %v3106 = vpop.permute.xlu0 %3105
  %3107 = vrot.lane.b32.xlu0 %v2751, 16
  %v3108 = vpop.permute.xlu0 %3107
  %3109 = vrot.lane.b32.xlu0 %v2755, 16
  %v3110 = vpop.permute.xlu0 %3109
  %3111 = vrot.lane.b32.xlu0 %v2744, 16
  %v3112 = vpop.permute.xlu0 %3111
  %3113 = vrot.lane.b32.xlu0 %v2748, 16
  %v3114 = vpop.permute.xlu0 %3113
  %3115 = vrot.lane.b32.xlu0 %v2752, 16
  %v3116 = vpop.permute.xlu0 %3115
  %3117 = vrot.lane.b32.xlu0 %v2756, 16
  %v3118 = vpop.permute.xlu0 %3117
  %v3119 = vsel %vm277, %v3104, %v3112
  %v3120 = vsel %vm277, %v3106, %v3114
  %v3121 = vsel %vm277, %v3108, %v3116
  %v3122 = vsel %vm277, %v3110, %v3118
  %v3123 = vsel %vm277, %v3096, %v3104
  %v3124 = vsel %vm277, %v3098, %v3106
  %v3125 = vsel %vm277, %v3100, %v3108
  %v3126 = vsel %vm277, %v3102, %v3110
  %v3127 = vsel %vm277, %v3088, %v3096
  %v3128 = vsel %vm277, %v3090, %v3098
  %v3129 = vsel %vm277, %v3092, %v3100
  %v3130 = vsel %vm277, %v3094, %v3102
  %v3131 = vsel %vm277, %v3112, %v3088
  %v3132 = vsel %vm277, %v3114, %v3090
  %v3133 = vsel %vm277, %v3116, %v3092
  %v3134 = vsel %vm277, %v3118, %v3094
  %v3135 = vmul.f32 %v3131, %v52
  %v3136 = vmul.f32 %v3127, %v53
  %v3137 = vmul.f32 %v3123, %v54
  %v3138 = vmul.f32 %v3119, %v55
  %v3139 = vmul.f32 %v3132, %v52
  %v3140 = vmul.f32 %v3128, %v53
  %v3141 = vmul.f32 %v3124, %v54
  %v3142 = vmul.f32 %v3120, %v55
  %v3143 = vmul.f32 %v3133, %v52
  %v3144 = vmul.f32 %v3129, %v53
  %v3145 = vmul.f32 %v3125, %v54
  %v3146 = vmul.f32 %v3121, %v55
  %v3147 = vmul.f32 %v3134, %v52
  %v3148 = vmul.f32 %v3130, %v53
  %v3149 = vmul.f32 %v3126, %v54
  %v3150 = vmul.f32 %v3122, %v55
  %s3151 = scalar_lea.vmem %s5, 320
  %v3152 = vld [vmem:[%s3151] sm:$0xff]
  %v3153 = vld [vmem:[%s3151 + $0x8] sm:$0xff]
  %v3154 = vld [vmem:[%s3151 + $0x10] sm:$0xff]
  %v3155 = vld [vmem:[%s3151 + $0x18] sm:$0xff]
  %v3157 = vsel %vm921, %v3152, 0
  %v3160 = vsel %vm921, %v3153, 0
  %v3163 = vsel %vm921, %v3154, 0
  %v3166 = vsel %vm921, %v3155, 0
  %3168 = vmatpush.msra.mxu0 0.0
  %3169 = vmatpush.msra.mxu0 0.0
  %3170 = vmatpush.msra.mxu0 0.0
  %3171 = vmatpush.msra.mxu0 0.0
  %3172 = vmatpush.msra.mxu0 0.0
  %3173 = vmatpush.msra.mxu0 0.0
  %3174 = vmatpush.msra.mxu0 0.0
  %3175 = vmatpush.msra.mxu0 0.0
  %3176 = vmatpush.msra.mxu0 0.0
  %3177 = vmatpush.msra.mxu0 0.0
  %3178 = vmatpush.msra.mxu0 0.0
  %3179 = vmatpush.msra.mxu0 0.0
  %3180 = vmatpush.msra.mxu0 %v3147
  %3181 = vmatpush.msra.mxu0 %v3143
  %3182 = vmatpush.msra.mxu0 %v3139
  %3183 = vmatpush.msra.mxu0 %v3135
  %3184 = vmatmul.f32.gmra.mxu0 %v3157
  %v3185 = vpop.f32.mrf.mxu0
  %v3186 = vadd.f32 0.0, %v3185
  %3187 = vmatmul.f32.gmra.mxu0 %v3160
  %v3188 = vpop.f32.mrf.mxu0
  %v3189 = vadd.f32 0.0, %v3188
  %3190 = vmatmul.f32.gmra.mxu0 %v3163
  %v3191 = vpop.f32.mrf.mxu0
  %v3192 = vadd.f32 0.0, %v3191
  %3193 = vmatmul.f32.gmra.mxu0 %v3166
  %v3194 = vpop.f32.mrf.mxu0
  %v3195 = vadd.f32 0.0, %v3194
  %3196 = vdwg.mxu0
  %3197 = vmatpush.msra.mxu0 0.0
  %3198 = vmatpush.msra.mxu0 0.0
  %3199 = vmatpush.msra.mxu0 0.0
  %3200 = vmatpush.msra.mxu0 0.0
  %3201 = vmatpush.msra.mxu0 0.0
  %3202 = vmatpush.msra.mxu0 0.0
  %3203 = vmatpush.msra.mxu0 0.0
  %3204 = vmatpush.msra.mxu0 0.0
  %3205 = vmatpush.msra.mxu0 0.0
  %3206 = vmatpush.msra.mxu0 0.0
  %3207 = vmatpush.msra.mxu0 0.0
  %3208 = vmatpush.msra.mxu0 0.0
  %3209 = vmatpush.msra.mxu0 %v3148
  %3210 = vmatpush.msra.mxu0 %v3144
  %3211 = vmatpush.msra.mxu0 %v3140
  %3212 = vmatpush.msra.mxu0 %v3136
  %3213 = vmatmul.f32.gmra.mxu0 %v3157
  %v3214 = vpop.f32.mrf.mxu0
  %v3215 = vadd.f32 0.0, %v3214
  %3216 = vmatmul.f32.gmra.mxu0 %v3160
  %v3217 = vpop.f32.mrf.mxu0
  %v3218 = vadd.f32 0.0, %v3217
  %3219 = vmatmul.f32.gmra.mxu0 %v3163
  %v3220 = vpop.f32.mrf.mxu0
  %v3221 = vadd.f32 0.0, %v3220
  %3222 = vmatmul.f32.gmra.mxu0 %v3166
  %v3223 = vpop.f32.mrf.mxu0
  %v3224 = vadd.f32 0.0, %v3223
  %3225 = vdwg.mxu0
  %3226 = vmatpush.msra.mxu0 0.0
  %3227 = vmatpush.msra.mxu0 0.0
  %3228 = vmatpush.msra.mxu0 0.0
  %3229 = vmatpush.msra.mxu0 0.0
  %3230 = vmatpush.msra.mxu0 0.0
  %3231 = vmatpush.msra.mxu0 0.0
  %3232 = vmatpush.msra.mxu0 0.0
  %3233 = vmatpush.msra.mxu0 0.0
  %3234 = vmatpush.msra.mxu0 0.0
  %3235 = vmatpush.msra.mxu0 0.0
  %3236 = vmatpush.msra.mxu0 0.0
  %3237 = vmatpush.msra.mxu0 0.0
  %3238 = vmatpush.msra.mxu0 %v3149
  %3239 = vmatpush.msra.mxu0 %v3145
  %3240 = vmatpush.msra.mxu0 %v3141
  %3241 = vmatpush.msra.mxu0 %v3137
  %3242 = vmatmul.f32.gmra.mxu0 %v3157
  %v3243 = vpop.f32.mrf.mxu0
  %v3244 = vadd.f32 0.0, %v3243
  %3245 = vmatmul.f32.gmra.mxu0 %v3160
  %v3246 = vpop.f32.mrf.mxu0
  %v3247 = vadd.f32 0.0, %v3246
  %3248 = vmatmul.f32.gmra.mxu0 %v3163
  %v3249 = vpop.f32.mrf.mxu0
  %v3250 = vadd.f32 0.0, %v3249
  %3251 = vmatmul.f32.gmra.mxu0 %v3166
  %v3252 = vpop.f32.mrf.mxu0
  %v3253 = vadd.f32 0.0, %v3252
  %3254 = vdwg.mxu0
  %3255 = vmatpush.msra.mxu0 0.0
  %3256 = vmatpush.msra.mxu0 0.0
  %3257 = vmatpush.msra.mxu0 0.0
  %3258 = vmatpush.msra.mxu0 0.0
  %3259 = vmatpush.msra.mxu0 0.0
  %3260 = vmatpush.msra.mxu0 0.0
  %3261 = vmatpush.msra.mxu0 0.0
  %3262 = vmatpush.msra.mxu0 0.0
  %3263 = vmatpush.msra.mxu0 0.0
  %3264 = vmatpush.msra.mxu0 0.0
  %3265 = vmatpush.msra.mxu0 0.0
  %3266 = vmatpush.msra.mxu0 0.0
  %3267 = vmatpush.msra.mxu0 %v3150
  %3268 = vmatpush.msra.mxu0 %v3146
  %3269 = vmatpush.msra.mxu0 %v3142
  %3270 = vmatpush.msra.mxu0 %v3138
  %3271 = vmatmul.f32.gmra.mxu0 %v3157
  %v3272 = vpop.f32.mrf.mxu0
  %v3273 = vadd.f32 0.0, %v3272
  %3274 = vmatmul.f32.gmra.mxu0 %v3160
  %v3275 = vpop.f32.mrf.mxu0
  %v3276 = vadd.f32 0.0, %v3275
  %3277 = vmatmul.f32.gmra.mxu0 %v3163
  %v3278 = vpop.f32.mrf.mxu0
  %v3279 = vadd.f32 0.0, %v3278
  %3280 = vmatmul.f32.gmra.mxu0 %v3166
  %v3281 = vpop.f32.mrf.mxu0
  %v3282 = vadd.f32 0.0, %v3281
  %3283 = vdwg.mxu0
  %v3284 = vadd.f32 %v2989, %v3186
  %v3285 = vadd.f32 %v3018, %v3215
  %v3286 = vadd.f32 %v3047, %v3244
  %v3287 = vadd.f32 %v3076, %v3273
  %v3288 = vadd.f32 %v2992, %v3189
  %v3289 = vadd.f32 %v3021, %v3218
  %v3290 = vadd.f32 %v3050, %v3247
  %v3291 = vadd.f32 %v3079, %v3276
  %v3292 = vadd.f32 %v2995, %v3192
  %v3293 = vadd.f32 %v3024, %v3221
  %v3294 = vadd.f32 %v3053, %v3250
  %v3295 = vadd.f32 %v3082, %v3279
  %v3296 = vadd.f32 %v2998, %v3195
  %v3297 = vadd.f32 %v3027, %v3224
  %v3298 = vadd.f32 %v3056, %v3253
  %v3299 = vadd.f32 %v3085, %v3282
  %3300 = vrot.lane.b32.xlu0 %v2741, 15
  %v3301 = vpop.permute.xlu0 %3300
  %3302 = vrot.lane.b32.xlu0 %v2745, 15
  %v3303 = vpop.permute.xlu0 %3302
  %3304 = vrot.lane.b32.xlu0 %v2749, 15
  %v3305 = vpop.permute.xlu0 %3304
  %3306 = vrot.lane.b32.xlu0 %v2753, 15
  %v3307 = vpop.permute.xlu0 %3306
  %3308 = vrot.lane.b32.xlu0 %v2742, 15
  %v3309 = vpop.permute.xlu0 %3308
  %3310 = vrot.lane.b32.xlu0 %v2746, 15
  %v3311 = vpop.permute.xlu0 %3310
  %3312 = vrot.lane.b32.xlu0 %v2750, 15
  %v3313 = vpop.permute.xlu0 %3312
  %3314 = vrot.lane.b32.xlu0 %v2754, 15
  %v3315 = vpop.permute.xlu0 %3314
  %3316 = vrot.lane.b32.xlu0 %v2743, 15
  %v3317 = vpop.permute.xlu0 %3316
  %3318 = vrot.lane.b32.xlu0 %v2747, 15
  %v3319 = vpop.permute.xlu0 %3318
  %3320 = vrot.lane.b32.xlu0 %v2751, 15
  %v3321 = vpop.permute.xlu0 %3320
  %3322 = vrot.lane.b32.xlu0 %v2755, 15
  %v3323 = vpop.permute.xlu0 %3322
  %3324 = vrot.lane.b32.xlu0 %v2744, 15
  %v3325 = vpop.permute.xlu0 %3324
  %3326 = vrot.lane.b32.xlu0 %v2748, 15
  %v3327 = vpop.permute.xlu0 %3326
  %3328 = vrot.lane.b32.xlu0 %v2752, 15
  %v3329 = vpop.permute.xlu0 %3328
  %3330 = vrot.lane.b32.xlu0 %v2756, 15
  %v3331 = vpop.permute.xlu0 %3330
  %v3332 = vsel %vm346, %v3317, %v3325
  %v3333 = vsel %vm346, %v3319, %v3327
  %v3334 = vsel %vm346, %v3321, %v3329
  %v3335 = vsel %vm346, %v3323, %v3331
  %v3336 = vsel %vm346, %v3309, %v3317
  %v3337 = vsel %vm346, %v3311, %v3319
  %v3338 = vsel %vm346, %v3313, %v3321
  %v3339 = vsel %vm346, %v3315, %v3323
  %v3340 = vsel %vm346, %v3301, %v3309
  %v3341 = vsel %vm346, %v3303, %v3311
  %v3342 = vsel %vm346, %v3305, %v3313
  %v3343 = vsel %vm346, %v3307, %v3315
  %v3344 = vsel %vm346, %v3325, %v3301
  %v3345 = vsel %vm346, %v3327, %v3303
  %v3346 = vsel %vm346, %v3329, %v3305
  %v3347 = vsel %vm346, %v3331, %v3307
  %v3348 = vmul.f32 %v3344, %v61
  %v3349 = vmul.f32 %v3340, %v62
  %v3350 = vmul.f32 %v3336, %v63
  %v3351 = vmul.f32 %v3332, %v64
  %v3352 = vmul.f32 %v3345, %v61
  %v3353 = vmul.f32 %v3341, %v62
  %v3354 = vmul.f32 %v3337, %v63
  %v3355 = vmul.f32 %v3333, %v64
  %v3356 = vmul.f32 %v3346, %v61
  %v3357 = vmul.f32 %v3342, %v62
  %v3358 = vmul.f32 %v3338, %v63
  %v3359 = vmul.f32 %v3334, %v64
  %v3360 = vmul.f32 %v3347, %v61
  %v3361 = vmul.f32 %v3343, %v62
  %v3362 = vmul.f32 %v3339, %v63
  %v3363 = vmul.f32 %v3335, %v64
  %s3364 = scalar_lea.vmem %s5, 352
  %v3365 = vld [vmem:[%s3364] sm:$0xff]
  %v3366 = vld [vmem:[%s3364 + $0x8] sm:$0xff]
  %v3367 = vld [vmem:[%s3364 + $0x10] sm:$0xff]
  %v3368 = vld [vmem:[%s3364 + $0x18] sm:$0xff]
  %v3370 = vsel %vm921, %v3365, 0
  %v3373 = vsel %vm921, %v3366, 0
  %v3376 = vsel %vm921, %v3367, 0
  %v3379 = vsel %vm921, %v3368, 0
  %3381 = vmatpush.msra.mxu0 0.0
  %3382 = vmatpush.msra.mxu0 0.0
  %3383 = vmatpush.msra.mxu0 0.0
  %3384 = vmatpush.msra.mxu0 0.0
  %3385 = vmatpush.msra.mxu0 0.0
  %3386 = vmatpush.msra.mxu0 0.0
  %3387 = vmatpush.msra.mxu0 0.0
  %3388 = vmatpush.msra.mxu0 0.0
  %3389 = vmatpush.msra.mxu0 0.0
  %3390 = vmatpush.msra.mxu0 0.0
  %3391 = vmatpush.msra.mxu0 0.0
  %3392 = vmatpush.msra.mxu0 0.0
  %3393 = vmatpush.msra.mxu0 %v3360
  %3394 = vmatpush.msra.mxu0 %v3356
  %3395 = vmatpush.msra.mxu0 %v3352
  %3396 = vmatpush.msra.mxu0 %v3348
  %3397 = vmatmul.f32.gmra.mxu0 %v3370
  %v3398 = vpop.f32.mrf.mxu0
  %v3399 = vadd.f32 0.0, %v3398
  %3400 = vmatmul.f32.gmra.mxu0 %v3373
  %v3401 = vpop.f32.mrf.mxu0
  %v3402 = vadd.f32 0.0, %v3401
  %3403 = vmatmul.f32.gmra.mxu0 %v3376
  %v3404 = vpop.f32.mrf.mxu0
  %v3405 = vadd.f32 0.0, %v3404
  %3406 = vmatmul.f32.gmra.mxu0 %v3379
  %v3407 = vpop.f32.mrf.mxu0
  %v3408 = vadd.f32 0.0, %v3407
  %3409 = vdwg.mxu0
  %3410 = vmatpush.msra.mxu0 0.0
  %3411 = vmatpush.msra.mxu0 0.0
  %3412 = vmatpush.msra.mxu0 0.0
  %3413 = vmatpush.msra.mxu0 0.0
  %3414 = vmatpush.msra.mxu0 0.0
  %3415 = vmatpush.msra.mxu0 0.0
  %3416 = vmatpush.msra.mxu0 0.0
  %3417 = vmatpush.msra.mxu0 0.0
  %3418 = vmatpush.msra.mxu0 0.0
  %3419 = vmatpush.msra.mxu0 0.0
  %3420 = vmatpush.msra.mxu0 0.0
  %3421 = vmatpush.msra.mxu0 0.0
  %3422 = vmatpush.msra.mxu0 %v3361
  %3423 = vmatpush.msra.mxu0 %v3357
  %3424 = vmatpush.msra.mxu0 %v3353
  %3425 = vmatpush.msra.mxu0 %v3349
  %3426 = vmatmul.f32.gmra.mxu0 %v3370
  %v3427 = vpop.f32.mrf.mxu0
  %v3428 = vadd.f32 0.0, %v3427
  %3429 = vmatmul.f32.gmra.mxu0 %v3373
  %v3430 = vpop.f32.mrf.mxu0
  %v3431 = vadd.f32 0.0, %v3430
  %3432 = vmatmul.f32.gmra.mxu0 %v3376
  %v3433 = vpop.f32.mrf.mxu0
  %v3434 = vadd.f32 0.0, %v3433
  %3435 = vmatmul.f32.gmra.mxu0 %v3379
  %v3436 = vpop.f32.mrf.mxu0
  %v3437 = vadd.f32 0.0, %v3436
  %3438 = vdwg.mxu0
  %3439 = vmatpush.msra.mxu0 0.0
  %3440 = vmatpush.msra.mxu0 0.0
  %3441 = vmatpush.msra.mxu0 0.0
  %3442 = vmatpush.msra.mxu0 0.0
  %3443 = vmatpush.msra.mxu0 0.0
  %3444 = vmatpush.msra.mxu0 0.0
  %3445 = vmatpush.msra.mxu0 0.0
  %3446 = vmatpush.msra.mxu0 0.0
  %3447 = vmatpush.msra.mxu0 0.0
  %3448 = vmatpush.msra.mxu0 0.0
  %3449 = vmatpush.msra.mxu0 0.0
  %3450 = vmatpush.msra.mxu0 0.0
  %3451 = vmatpush.msra.mxu0 %v3362
  %3452 = vmatpush.msra.mxu0 %v3358
  %3453 = vmatpush.msra.mxu0 %v3354
  %3454 = vmatpush.msra.mxu0 %v3350
  %3455 = vmatmul.f32.gmra.mxu0 %v3370
  %v3456 = vpop.f32.mrf.mxu0
  %v3457 = vadd.f32 0.0, %v3456
  %3458 = vmatmul.f32.gmra.mxu0 %v3373
  %v3459 = vpop.f32.mrf.mxu0
  %v3460 = vadd.f32 0.0, %v3459
  %3461 = vmatmul.f32.gmra.mxu0 %v3376
  %v3462 = vpop.f32.mrf.mxu0
  %v3463 = vadd.f32 0.0, %v3462
  %3464 = vmatmul.f32.gmra.mxu0 %v3379
  %v3465 = vpop.f32.mrf.mxu0
  %v3466 = vadd.f32 0.0, %v3465
  %3467 = vdwg.mxu0
  %3468 = vmatpush.msra.mxu0 0.0
  %3469 = vmatpush.msra.mxu0 0.0
  %3470 = vmatpush.msra.mxu0 0.0
  %3471 = vmatpush.msra.mxu0 0.0
  %3472 = vmatpush.msra.mxu0 0.0
  %3473 = vmatpush.msra.mxu0 0.0
  %3474 = vmatpush.msra.mxu0 0.0
  %3475 = vmatpush.msra.mxu0 0.0
  %3476 = vmatpush.msra.mxu0 0.0
  %3477 = vmatpush.msra.mxu0 0.0
  %3478 = vmatpush.msra.mxu0 0.0
  %3479 = vmatpush.msra.mxu0 0.0
  %3480 = vmatpush.msra.mxu0 %v3363
  %3481 = vmatpush.msra.mxu0 %v3359
  %3482 = vmatpush.msra.mxu0 %v3355
  %3483 = vmatpush.msra.mxu0 %v3351
  %3484 = vmatmul.f32.gmra.mxu0 %v3370
  %v3485 = vpop.f32.mrf.mxu0
  %v3486 = vadd.f32 0.0, %v3485
  %3487 = vmatmul.f32.gmra.mxu0 %v3373
  %v3488 = vpop.f32.mrf.mxu0
  %v3489 = vadd.f32 0.0, %v3488
  %3490 = vmatmul.f32.gmra.mxu0 %v3376
  %v3491 = vpop.f32.mrf.mxu0
  %v3492 = vadd.f32 0.0, %v3491
  %3493 = vmatmul.f32.gmra.mxu0 %v3379
  %v3494 = vpop.f32.mrf.mxu0
  %v3495 = vadd.f32 0.0, %v3494
  %3496 = vdwg.mxu0
  %v3497 = vadd.f32 %v3284, %v3399
  %v3498 = vadd.f32 %v3285, %v3428
  %v3499 = vadd.f32 %v3286, %v3457
  %v3500 = vadd.f32 %v3287, %v3486
  %v3501 = vadd.f32 %v3288, %v3402
  %v3502 = vadd.f32 %v3289, %v3431
  %v3503 = vadd.f32 %v3290, %v3460
  %v3504 = vadd.f32 %v3291, %v3489
  %v3505 = vadd.f32 %v3292, %v3405
  %v3506 = vadd.f32 %v3293, %v3434
  %v3507 = vadd.f32 %v3294, %v3463
  %v3508 = vadd.f32 %v3295, %v3492
  %v3509 = vadd.f32 %v3296, %v3408
  %v3510 = vadd.f32 %v3297, %v3437
  %v3511 = vadd.f32 %v3298, %v3466
  %v3512 = vadd.f32 %v3299, %v3495
  %3513 = vrot.lane.b32.xlu0 %v2741, 1
  %v3514 = vpop.permute.xlu0 %3513
  %3515 = vrot.lane.b32.xlu0 %v2745, 1
  %v3516 = vpop.permute.xlu0 %3515
  %3517 = vrot.lane.b32.xlu0 %v2749, 1
  %v3518 = vpop.permute.xlu0 %3517
  %3519 = vrot.lane.b32.xlu0 %v2753, 1
  %v3520 = vpop.permute.xlu0 %3519
  %3521 = vrot.lane.b32.xlu0 %v2742, 1
  %v3522 = vpop.permute.xlu0 %3521
  %3523 = vrot.lane.b32.xlu0 %v2746, 1
  %v3524 = vpop.permute.xlu0 %3523
  %3525 = vrot.lane.b32.xlu0 %v2750, 1
  %v3526 = vpop.permute.xlu0 %3525
  %3527 = vrot.lane.b32.xlu0 %v2754, 1
  %v3528 = vpop.permute.xlu0 %3527
  %3529 = vrot.lane.b32.xlu0 %v2743, 1
  %v3530 = vpop.permute.xlu0 %3529
  %3531 = vrot.lane.b32.xlu0 %v2747, 1
  %v3532 = vpop.permute.xlu0 %3531
  %3533 = vrot.lane.b32.xlu0 %v2751, 1
  %v3534 = vpop.permute.xlu0 %3533
  %3535 = vrot.lane.b32.xlu0 %v2755, 1
  %v3536 = vpop.permute.xlu0 %3535
  %3537 = vrot.lane.b32.xlu0 %v2744, 1
  %v3538 = vpop.permute.xlu0 %3537
  %3539 = vrot.lane.b32.xlu0 %v2748, 1
  %v3540 = vpop.permute.xlu0 %3539
  %3541 = vrot.lane.b32.xlu0 %v2752, 1
  %v3542 = vpop.permute.xlu0 %3541
  %3543 = vrot.lane.b32.xlu0 %v2756, 1
  %v3544 = vpop.permute.xlu0 %3543
  %v3545 = vsel %vm415, %v3530, %v3538
  %v3546 = vsel %vm415, %v3532, %v3540
  %v3547 = vsel %vm415, %v3534, %v3542
  %v3548 = vsel %vm415, %v3536, %v3544
  %v3549 = vsel %vm415, %v3522, %v3530
  %v3550 = vsel %vm415, %v3524, %v3532
  %v3551 = vsel %vm415, %v3526, %v3534
  %v3552 = vsel %vm415, %v3528, %v3536
  %v3553 = vsel %vm415, %v3514, %v3522
  %v3554 = vsel %vm415, %v3516, %v3524
  %v3555 = vsel %vm415, %v3518, %v3526
  %v3556 = vsel %vm415, %v3520, %v3528
  %v3557 = vsel %vm415, %v3538, %v3514
  %v3558 = vsel %vm415, %v3540, %v3516
  %v3559 = vsel %vm415, %v3542, %v3518
  %v3560 = vsel %vm415, %v3544, %v3520
  %v3561 = vmul.f32 %v3557, %v70
  %v3562 = vmul.f32 %v3553, %v71
  %v3563 = vmul.f32 %v3549, %v72
  %v3564 = vmul.f32 %v3545, %v73
  %v3565 = vmul.f32 %v3558, %v70
  %v3566 = vmul.f32 %v3554, %v71
  %v3567 = vmul.f32 %v3550, %v72
  %v3568 = vmul.f32 %v3546, %v73
  %v3569 = vmul.f32 %v3559, %v70
  %v3570 = vmul.f32 %v3555, %v71
  %v3571 = vmul.f32 %v3551, %v72
  %v3572 = vmul.f32 %v3547, %v73
  %v3573 = vmul.f32 %v3560, %v70
  %v3574 = vmul.f32 %v3556, %v71
  %v3575 = vmul.f32 %v3552, %v72
  %v3576 = vmul.f32 %v3548, %v73
  %s3577 = scalar_lea.vmem %s5, 384
  %v3578 = vld [vmem:[%s3577] sm:$0xff]
  %v3579 = vld [vmem:[%s3577 + $0x8] sm:$0xff]
  %v3580 = vld [vmem:[%s3577 + $0x10] sm:$0xff]
  %v3581 = vld [vmem:[%s3577 + $0x18] sm:$0xff]
  %v3583 = vsel %vm921, %v3578, 0
  %v3586 = vsel %vm921, %v3579, 0
  %v3589 = vsel %vm921, %v3580, 0
  %v3592 = vsel %vm921, %v3581, 0
  %3594 = vmatpush.msra.mxu0 0.0
  %3595 = vmatpush.msra.mxu0 0.0
  %3596 = vmatpush.msra.mxu0 0.0
  %3597 = vmatpush.msra.mxu0 0.0
  %3598 = vmatpush.msra.mxu0 0.0
  %3599 = vmatpush.msra.mxu0 0.0
  %3600 = vmatpush.msra.mxu0 0.0
  %3601 = vmatpush.msra.mxu0 0.0
  %3602 = vmatpush.msra.mxu0 0.0
  %3603 = vmatpush.msra.mxu0 0.0
  %3604 = vmatpush.msra.mxu0 0.0
  %3605 = vmatpush.msra.mxu0 0.0
  %3606 = vmatpush.msra.mxu0 %v3573
  %3607 = vmatpush.msra.mxu0 %v3569
  %3608 = vmatpush.msra.mxu0 %v3565
  %3609 = vmatpush.msra.mxu0 %v3561
  %3610 = vmatmul.f32.gmra.mxu0 %v3583
  %v3611 = vpop.f32.mrf.mxu0
  %v3612 = vadd.f32 0.0, %v3611
  %3613 = vmatmul.f32.gmra.mxu0 %v3586
  %v3614 = vpop.f32.mrf.mxu0
  %v3615 = vadd.f32 0.0, %v3614
  %3616 = vmatmul.f32.gmra.mxu0 %v3589
  %v3617 = vpop.f32.mrf.mxu0
  %v3618 = vadd.f32 0.0, %v3617
  %3619 = vmatmul.f32.gmra.mxu0 %v3592
  %v3620 = vpop.f32.mrf.mxu0
  %v3621 = vadd.f32 0.0, %v3620
  %3622 = vdwg.mxu0
  %3623 = vmatpush.msra.mxu0 0.0
  %3624 = vmatpush.msra.mxu0 0.0
  %3625 = vmatpush.msra.mxu0 0.0
  %3626 = vmatpush.msra.mxu0 0.0
  %3627 = vmatpush.msra.mxu0 0.0
  %3628 = vmatpush.msra.mxu0 0.0
  %3629 = vmatpush.msra.mxu0 0.0
  %3630 = vmatpush.msra.mxu0 0.0
  %3631 = vmatpush.msra.mxu0 0.0
  %3632 = vmatpush.msra.mxu0 0.0
  %3633 = vmatpush.msra.mxu0 0.0
  %3634 = vmatpush.msra.mxu0 0.0
  %3635 = vmatpush.msra.mxu0 %v3574
  %3636 = vmatpush.msra.mxu0 %v3570
  %3637 = vmatpush.msra.mxu0 %v3566
  %3638 = vmatpush.msra.mxu0 %v3562
  %3639 = vmatmul.f32.gmra.mxu0 %v3583
  %v3640 = vpop.f32.mrf.mxu0
  %v3641 = vadd.f32 0.0, %v3640
  %3642 = vmatmul.f32.gmra.mxu0 %v3586
  %v3643 = vpop.f32.mrf.mxu0
  %v3644 = vadd.f32 0.0, %v3643
  %3645 = vmatmul.f32.gmra.mxu0 %v3589
  %v3646 = vpop.f32.mrf.mxu0
  %v3647 = vadd.f32 0.0, %v3646
  %3648 = vmatmul.f32.gmra.mxu0 %v3592
  %v3649 = vpop.f32.mrf.mxu0
  %v3650 = vadd.f32 0.0, %v3649
  %3651 = vdwg.mxu0
  %3652 = vmatpush.msra.mxu0 0.0
  %3653 = vmatpush.msra.mxu0 0.0
  %3654 = vmatpush.msra.mxu0 0.0
  %3655 = vmatpush.msra.mxu0 0.0
  %3656 = vmatpush.msra.mxu0 0.0
  %3657 = vmatpush.msra.mxu0 0.0
  %3658 = vmatpush.msra.mxu0 0.0
  %3659 = vmatpush.msra.mxu0 0.0
  %3660 = vmatpush.msra.mxu0 0.0
  %3661 = vmatpush.msra.mxu0 0.0
  %3662 = vmatpush.msra.mxu0 0.0
  %3663 = vmatpush.msra.mxu0 0.0
  %3664 = vmatpush.msra.mxu0 %v3575
  %3665 = vmatpush.msra.mxu0 %v3571
  %3666 = vmatpush.msra.mxu0 %v3567
  %3667 = vmatpush.msra.mxu0 %v3563
  %3668 = vmatmul.f32.gmra.mxu0 %v3583
  %v3669 = vpop.f32.mrf.mxu0
  %v3670 = vadd.f32 0.0, %v3669
  %3671 = vmatmul.f32.gmra.mxu0 %v3586
  %v3672 = vpop.f32.mrf.mxu0
  %v3673 = vadd.f32 0.0, %v3672
  %3674 = vmatmul.f32.gmra.mxu0 %v3589
  %v3675 = vpop.f32.mrf.mxu0
  %v3676 = vadd.f32 0.0, %v3675
  %3677 = vmatmul.f32.gmra.mxu0 %v3592
  %v3678 = vpop.f32.mrf.mxu0
  %v3679 = vadd.f32 0.0, %v3678
  %3680 = vdwg.mxu0
  %3681 = vmatpush.msra.mxu0 0.0
  %3682 = vmatpush.msra.mxu0 0.0
  %3683 = vmatpush.msra.mxu0 0.0
  %3684 = vmatpush.msra.mxu0 0.0
  %3685 = vmatpush.msra.mxu0 0.0
  %3686 = vmatpush.msra.mxu0 0.0
  %3687 = vmatpush.msra.mxu0 0.0
  %3688 = vmatpush.msra.mxu0 0.0
  %3689 = vmatpush.msra.mxu0 0.0
  %3690 = vmatpush.msra.mxu0 0.0
  %3691 = vmatpush.msra.mxu0 0.0
  %3692 = vmatpush.msra.mxu0 0.0
  %3693 = vmatpush.msra.mxu0 %v3576
  %3694 = vmatpush.msra.mxu0 %v3572
  %3695 = vmatpush.msra.mxu0 %v3568
  %3696 = vmatpush.msra.mxu0 %v3564
  %3697 = vmatmul.f32.gmra.mxu0 %v3583
  %v3698 = vpop.f32.mrf.mxu0
  %v3699 = vadd.f32 0.0, %v3698
  %3700 = vmatmul.f32.gmra.mxu0 %v3586
  %v3701 = vpop.f32.mrf.mxu0
  %v3702 = vadd.f32 0.0, %v3701
  %3703 = vmatmul.f32.gmra.mxu0 %v3589
  %v3704 = vpop.f32.mrf.mxu0
  %v3705 = vadd.f32 0.0, %v3704
  %3706 = vmatmul.f32.gmra.mxu0 %v3592
  %v3707 = vpop.f32.mrf.mxu0
  %v3708 = vadd.f32 0.0, %v3707
  %3709 = vdwg.mxu0
  %v3710 = vadd.f32 %v3497, %v3612
  %v3711 = vadd.f32 %v3498, %v3641
  %v3712 = vadd.f32 %v3499, %v3670
  %v3713 = vadd.f32 %v3500, %v3699
  %v3714 = vadd.f32 %v3501, %v3615
  %v3715 = vadd.f32 %v3502, %v3644
  %v3716 = vadd.f32 %v3503, %v3673
  %v3717 = vadd.f32 %v3504, %v3702
  %v3718 = vadd.f32 %v3505, %v3618
  %v3719 = vadd.f32 %v3506, %v3647
  %v3720 = vadd.f32 %v3507, %v3676
  %v3721 = vadd.f32 %v3508, %v3705
  %v3722 = vadd.f32 %v3509, %v3621
  %v3723 = vadd.f32 %v3510, %v3650
  %v3724 = vadd.f32 %v3511, %v3679
  %v3725 = vadd.f32 %v3512, %v3708
  %3726 = vrot.lane.b32.xlu0 %v2741, 127
  %v3727 = vpop.permute.xlu0 %3726
  %3728 = vrot.lane.b32.xlu0 %v2745, 127
  %v3729 = vpop.permute.xlu0 %3728
  %3730 = vrot.lane.b32.xlu0 %v2749, 127
  %v3731 = vpop.permute.xlu0 %3730
  %3732 = vrot.lane.b32.xlu0 %v2753, 127
  %v3733 = vpop.permute.xlu0 %3732
  %3734 = vrot.lane.b32.xlu0 %v2742, 127
  %v3735 = vpop.permute.xlu0 %3734
  %3736 = vrot.lane.b32.xlu0 %v2746, 127
  %v3737 = vpop.permute.xlu0 %3736
  %3738 = vrot.lane.b32.xlu0 %v2750, 127
  %v3739 = vpop.permute.xlu0 %3738
  %3740 = vrot.lane.b32.xlu0 %v2754, 127
  %v3741 = vpop.permute.xlu0 %3740
  %3742 = vrot.lane.b32.xlu0 %v2743, 127
  %v3743 = vpop.permute.xlu0 %3742
  %3744 = vrot.lane.b32.xlu0 %v2747, 127
  %v3745 = vpop.permute.xlu0 %3744
  %3746 = vrot.lane.b32.xlu0 %v2751, 127
  %v3747 = vpop.permute.xlu0 %3746
  %3748 = vrot.lane.b32.xlu0 %v2755, 127
  %v3749 = vpop.permute.xlu0 %3748
  %3750 = vrot.lane.b32.xlu0 %v2744, 127
  %v3751 = vpop.permute.xlu0 %3750
  %3752 = vrot.lane.b32.xlu0 %v2748, 127
  %v3753 = vpop.permute.xlu0 %3752
  %3754 = vrot.lane.b32.xlu0 %v2752, 127
  %v3755 = vpop.permute.xlu0 %3754
  %3756 = vrot.lane.b32.xlu0 %v2756, 127
  %v3757 = vpop.permute.xlu0 %3756
  %v3758 = vsel %vm532, %v3743, %v3751
  %v3759 = vsel %vm532, %v3745, %v3753
  %v3760 = vsel %vm532, %v3747, %v3755
  %v3761 = vsel %vm532, %v3749, %v3757
  %v3762 = vsel %vm532, %v3735, %v3743
  %v3763 = vsel %vm532, %v3737, %v3745
  %v3764 = vsel %vm532, %v3739, %v3747
  %v3765 = vsel %vm532, %v3741, %v3749
  %v3766 = vsel %vm532, %v3727, %v3735
  %v3767 = vsel %vm532, %v3729, %v3737
  %v3768 = vsel %vm532, %v3731, %v3739
  %v3769 = vsel %vm532, %v3733, %v3741
  %v3770 = vsel %vm532, %v3751, %v3727
  %v3771 = vsel %vm532, %v3753, %v3729
  %v3772 = vsel %vm532, %v3755, %v3731
  %v3773 = vsel %vm532, %v3757, %v3733
  %v3774 = vmul.f32 %v3766, %v79
  %v3775 = vmul.f32 %v3762, %v80
  %v3776 = vmul.f32 %v3758, %v81
  %v3777 = vmul.f32 %v3770, %v82
  %v3778 = vmul.f32 %v3767, %v79
  %v3779 = vmul.f32 %v3763, %v80
  %v3780 = vmul.f32 %v3759, %v81
  %v3781 = vmul.f32 %v3771, %v82
  %v3782 = vmul.f32 %v3768, %v79
  %v3783 = vmul.f32 %v3764, %v80
  %v3784 = vmul.f32 %v3760, %v81
  %v3785 = vmul.f32 %v3772, %v82
  %v3786 = vmul.f32 %v3769, %v79
  %v3787 = vmul.f32 %v3765, %v80
  %v3788 = vmul.f32 %v3761, %v81
  %v3789 = vmul.f32 %v3773, %v82
  %s3790 = scalar_lea.vmem %s5, 448
  %v3791 = vld [vmem:[%s3790] sm:$0xff]
  %v3792 = vld [vmem:[%s3790 + $0x8] sm:$0xff]
  %v3793 = vld [vmem:[%s3790 + $0x10] sm:$0xff]
  %v3794 = vld [vmem:[%s3790 + $0x18] sm:$0xff]
  %v3796 = vsel %vm921, %v3791, 0
  %v3799 = vsel %vm921, %v3792, 0
  %v3802 = vsel %vm921, %v3793, 0
  %v3805 = vsel %vm921, %v3794, 0
  %3807 = vmatpush.msra.mxu0 0.0
  %3808 = vmatpush.msra.mxu0 0.0
  %3809 = vmatpush.msra.mxu0 0.0
  %3810 = vmatpush.msra.mxu0 0.0
  %3811 = vmatpush.msra.mxu0 0.0
  %3812 = vmatpush.msra.mxu0 0.0
  %3813 = vmatpush.msra.mxu0 0.0
  %3814 = vmatpush.msra.mxu0 0.0
  %3815 = vmatpush.msra.mxu0 0.0
  %3816 = vmatpush.msra.mxu0 0.0
  %3817 = vmatpush.msra.mxu0 0.0
  %3818 = vmatpush.msra.mxu0 0.0
  %3819 = vmatpush.msra.mxu0 %v3786
  %3820 = vmatpush.msra.mxu0 %v3782
  %3821 = vmatpush.msra.mxu0 %v3778
  %3822 = vmatpush.msra.mxu0 %v3774
  %3823 = vmatmul.f32.gmra.mxu0 %v3796
  %v3824 = vpop.f32.mrf.mxu0
  %v3825 = vadd.f32 0.0, %v3824
  %3826 = vmatmul.f32.gmra.mxu0 %v3799
  %v3827 = vpop.f32.mrf.mxu0
  %v3828 = vadd.f32 0.0, %v3827
  %3829 = vmatmul.f32.gmra.mxu0 %v3802
  %v3830 = vpop.f32.mrf.mxu0
  %v3831 = vadd.f32 0.0, %v3830
  %3832 = vmatmul.f32.gmra.mxu0 %v3805
  %v3833 = vpop.f32.mrf.mxu0
  %v3834 = vadd.f32 0.0, %v3833
  %3835 = vdwg.mxu0
  %3836 = vmatpush.msra.mxu0 0.0
  %3837 = vmatpush.msra.mxu0 0.0
  %3838 = vmatpush.msra.mxu0 0.0
  %3839 = vmatpush.msra.mxu0 0.0
  %3840 = vmatpush.msra.mxu0 0.0
  %3841 = vmatpush.msra.mxu0 0.0
  %3842 = vmatpush.msra.mxu0 0.0
  %3843 = vmatpush.msra.mxu0 0.0
  %3844 = vmatpush.msra.mxu0 0.0
  %3845 = vmatpush.msra.mxu0 0.0
  %3846 = vmatpush.msra.mxu0 0.0
  %3847 = vmatpush.msra.mxu0 0.0
  %3848 = vmatpush.msra.mxu0 %v3787
  %3849 = vmatpush.msra.mxu0 %v3783
  %3850 = vmatpush.msra.mxu0 %v3779
  %3851 = vmatpush.msra.mxu0 %v3775
  %3852 = vmatmul.f32.gmra.mxu0 %v3796
  %v3853 = vpop.f32.mrf.mxu0
  %v3854 = vadd.f32 0.0, %v3853
  %3855 = vmatmul.f32.gmra.mxu0 %v3799
  %v3856 = vpop.f32.mrf.mxu0
  %v3857 = vadd.f32 0.0, %v3856
  %3858 = vmatmul.f32.gmra.mxu0 %v3802
  %v3859 = vpop.f32.mrf.mxu0
  %v3860 = vadd.f32 0.0, %v3859
  %3861 = vmatmul.f32.gmra.mxu0 %v3805
  %v3862 = vpop.f32.mrf.mxu0
  %v3863 = vadd.f32 0.0, %v3862
  %3864 = vdwg.mxu0
  %3865 = vmatpush.msra.mxu0 0.0
  %3866 = vmatpush.msra.mxu0 0.0
  %3867 = vmatpush.msra.mxu0 0.0
  %3868 = vmatpush.msra.mxu0 0.0
  %3869 = vmatpush.msra.mxu0 0.0
  %3870 = vmatpush.msra.mxu0 0.0
  %3871 = vmatpush.msra.mxu0 0.0
  %3872 = vmatpush.msra.mxu0 0.0
  %3873 = vmatpush.msra.mxu0 0.0
  %3874 = vmatpush.msra.mxu0 0.0
  %3875 = vmatpush.msra.mxu0 0.0
  %3876 = vmatpush.msra.mxu0 0.0
  %3877 = vmatpush.msra.mxu0 %v3788
  %3878 = vmatpush.msra.mxu0 %v3784
  %3879 = vmatpush.msra.mxu0 %v3780
  %3880 = vmatpush.msra.mxu0 %v3776
  %3881 = vmatmul.f32.gmra.mxu0 %v3796
  %v3882 = vpop.f32.mrf.mxu0
  %v3883 = vadd.f32 0.0, %v3882
  %3884 = vmatmul.f32.gmra.mxu0 %v3799
  %v3885 = vpop.f32.mrf.mxu0
  %v3886 = vadd.f32 0.0, %v3885
  %3887 = vmatmul.f32.gmra.mxu0 %v3802
  %v3888 = vpop.f32.mrf.mxu0
  %v3889 = vadd.f32 0.0, %v3888
  %3890 = vmatmul.f32.gmra.mxu0 %v3805
  %v3891 = vpop.f32.mrf.mxu0
  %v3892 = vadd.f32 0.0, %v3891
  %3893 = vdwg.mxu0
  %3894 = vmatpush.msra.mxu0 0.0
  %3895 = vmatpush.msra.mxu0 0.0
  %3896 = vmatpush.msra.mxu0 0.0
  %3897 = vmatpush.msra.mxu0 0.0
  %3898 = vmatpush.msra.mxu0 0.0
  %3899 = vmatpush.msra.mxu0 0.0
  %3900 = vmatpush.msra.mxu0 0.0
  %3901 = vmatpush.msra.mxu0 0.0
  %3902 = vmatpush.msra.mxu0 0.0
  %3903 = vmatpush.msra.mxu0 0.0
  %3904 = vmatpush.msra.mxu0 0.0
  %3905 = vmatpush.msra.mxu0 0.0
  %3906 = vmatpush.msra.mxu0 %v3789
  %3907 = vmatpush.msra.mxu0 %v3785
  %3908 = vmatpush.msra.mxu0 %v3781
  %3909 = vmatpush.msra.mxu0 %v3777
  %3910 = vmatmul.f32.gmra.mxu0 %v3796
  %v3911 = vpop.f32.mrf.mxu0
  %v3912 = vadd.f32 0.0, %v3911
  %3913 = vmatmul.f32.gmra.mxu0 %v3799
  %v3914 = vpop.f32.mrf.mxu0
  %v3915 = vadd.f32 0.0, %v3914
  %3916 = vmatmul.f32.gmra.mxu0 %v3802
  %v3917 = vpop.f32.mrf.mxu0
  %v3918 = vadd.f32 0.0, %v3917
  %3919 = vmatmul.f32.gmra.mxu0 %v3805
  %v3920 = vpop.f32.mrf.mxu0
  %v3921 = vadd.f32 0.0, %v3920
  %3922 = vdwg.mxu0
  %v3923 = vadd.f32 %v3710, %v3825
  %v3924 = vadd.f32 %v3711, %v3854
  %v3925 = vadd.f32 %v3712, %v3883
  %v3926 = vadd.f32 %v3713, %v3912
  %v3927 = vadd.f32 %v3714, %v3828
  %v3928 = vadd.f32 %v3715, %v3857
  %v3929 = vadd.f32 %v3716, %v3886
  %v3930 = vadd.f32 %v3717, %v3915
  %v3931 = vadd.f32 %v3718, %v3831
  %v3932 = vadd.f32 %v3719, %v3860
  %v3933 = vadd.f32 %v3720, %v3889
  %v3934 = vadd.f32 %v3721, %v3918
  %v3935 = vadd.f32 %v3722, %v3834
  %v3936 = vadd.f32 %v3723, %v3863
  %v3937 = vadd.f32 %v3724, %v3892
  %v3938 = vadd.f32 %v3725, %v3921
  %3939 = vrot.lane.b32.xlu0 %v2741, 113
  %v3940 = vpop.permute.xlu0 %3939
  %3941 = vrot.lane.b32.xlu0 %v2745, 113
  %v3942 = vpop.permute.xlu0 %3941
  %3943 = vrot.lane.b32.xlu0 %v2749, 113
  %v3944 = vpop.permute.xlu0 %3943
  %3945 = vrot.lane.b32.xlu0 %v2753, 113
  %v3946 = vpop.permute.xlu0 %3945
  %3947 = vrot.lane.b32.xlu0 %v2742, 113
  %v3948 = vpop.permute.xlu0 %3947
  %3949 = vrot.lane.b32.xlu0 %v2746, 113
  %v3950 = vpop.permute.xlu0 %3949
  %3951 = vrot.lane.b32.xlu0 %v2750, 113
  %v3952 = vpop.permute.xlu0 %3951
  %3953 = vrot.lane.b32.xlu0 %v2754, 113
  %v3954 = vpop.permute.xlu0 %3953
  %3955 = vrot.lane.b32.xlu0 %v2743, 113
  %v3956 = vpop.permute.xlu0 %3955
  %3957 = vrot.lane.b32.xlu0 %v2747, 113
  %v3958 = vpop.permute.xlu0 %3957
  %3959 = vrot.lane.b32.xlu0 %v2751, 113
  %v3960 = vpop.permute.xlu0 %3959
  %3961 = vrot.lane.b32.xlu0 %v2755, 113
  %v3962 = vpop.permute.xlu0 %3961
  %3963 = vrot.lane.b32.xlu0 %v2744, 113
  %v3964 = vpop.permute.xlu0 %3963
  %3965 = vrot.lane.b32.xlu0 %v2748, 113
  %v3966 = vpop.permute.xlu0 %3965
  %3967 = vrot.lane.b32.xlu0 %v2752, 113
  %v3968 = vpop.permute.xlu0 %3967
  %3969 = vrot.lane.b32.xlu0 %v2756, 113
  %v3970 = vpop.permute.xlu0 %3969
  %v3971 = vsel %vm601, %v3956, %v3964
  %v3972 = vsel %vm601, %v3958, %v3966
  %v3973 = vsel %vm601, %v3960, %v3968
  %v3974 = vsel %vm601, %v3962, %v3970
  %v3975 = vsel %vm601, %v3948, %v3956
  %v3976 = vsel %vm601, %v3950, %v3958
  %v3977 = vsel %vm601, %v3952, %v3960
  %v3978 = vsel %vm601, %v3954, %v3962
  %v3979 = vsel %vm601, %v3940, %v3948
  %v3980 = vsel %vm601, %v3942, %v3950
  %v3981 = vsel %vm601, %v3944, %v3952
  %v3982 = vsel %vm601, %v3946, %v3954
  %v3983 = vsel %vm601, %v3964, %v3940
  %v3984 = vsel %vm601, %v3966, %v3942
  %v3985 = vsel %vm601, %v3968, %v3944
  %v3986 = vsel %vm601, %v3970, %v3946
  %v3987 = vmul.f32 %v3979, %v88
  %v3988 = vmul.f32 %v3975, %v89
  %v3989 = vmul.f32 %v3971, %v90
  %v3990 = vmul.f32 %v3983, %v91
  %v3991 = vmul.f32 %v3980, %v88
  %v3992 = vmul.f32 %v3976, %v89
  %v3993 = vmul.f32 %v3972, %v90
  %v3994 = vmul.f32 %v3984, %v91
  %v3995 = vmul.f32 %v3981, %v88
  %v3996 = vmul.f32 %v3977, %v89
  %v3997 = vmul.f32 %v3973, %v90
  %v3998 = vmul.f32 %v3985, %v91
  %v3999 = vmul.f32 %v3982, %v88
  %v4000 = vmul.f32 %v3978, %v89
  %v4001 = vmul.f32 %v3974, %v90
  %v4002 = vmul.f32 %v3986, %v91
  %s4003 = scalar_lea.vmem %s5, 480
  %v4004 = vld [vmem:[%s4003] sm:$0xff]
  %v4005 = vld [vmem:[%s4003 + $0x8] sm:$0xff]
  %v4006 = vld [vmem:[%s4003 + $0x10] sm:$0xff]
  %v4007 = vld [vmem:[%s4003 + $0x18] sm:$0xff]
  %v4009 = vsel %vm921, %v4004, 0
  %v4012 = vsel %vm921, %v4005, 0
  %v4015 = vsel %vm921, %v4006, 0
  %v4018 = vsel %vm921, %v4007, 0
  %4020 = vmatpush.msra.mxu0 0.0
  %4021 = vmatpush.msra.mxu0 0.0
  %4022 = vmatpush.msra.mxu0 0.0
  %4023 = vmatpush.msra.mxu0 0.0
  %4024 = vmatpush.msra.mxu0 0.0
  %4025 = vmatpush.msra.mxu0 0.0
  %4026 = vmatpush.msra.mxu0 0.0
  %4027 = vmatpush.msra.mxu0 0.0
  %4028 = vmatpush.msra.mxu0 0.0
  %4029 = vmatpush.msra.mxu0 0.0
  %4030 = vmatpush.msra.mxu0 0.0
  %4031 = vmatpush.msra.mxu0 0.0
  %4032 = vmatpush.msra.mxu0 %v3999
  %4033 = vmatpush.msra.mxu0 %v3995
  %4034 = vmatpush.msra.mxu0 %v3991
  %4035 = vmatpush.msra.mxu0 %v3987
  %4036 = vmatmul.f32.gmra.mxu0 %v4009
  %v4037 = vpop.f32.mrf.mxu0
  %v4038 = vadd.f32 0.0, %v4037
  %4039 = vmatmul.f32.gmra.mxu0 %v4012
  %v4040 = vpop.f32.mrf.mxu0
  %v4041 = vadd.f32 0.0, %v4040
  %4042 = vmatmul.f32.gmra.mxu0 %v4015
  %v4043 = vpop.f32.mrf.mxu0
  %v4044 = vadd.f32 0.0, %v4043
  %4045 = vmatmul.f32.gmra.mxu0 %v4018
  %v4046 = vpop.f32.mrf.mxu0
  %v4047 = vadd.f32 0.0, %v4046
  %4048 = vdwg.mxu0
  %4049 = vmatpush.msra.mxu0 0.0
  %4050 = vmatpush.msra.mxu0 0.0
  %4051 = vmatpush.msra.mxu0 0.0
  %4052 = vmatpush.msra.mxu0 0.0
  %4053 = vmatpush.msra.mxu0 0.0
  %4054 = vmatpush.msra.mxu0 0.0
  %4055 = vmatpush.msra.mxu0 0.0
  %4056 = vmatpush.msra.mxu0 0.0
  %4057 = vmatpush.msra.mxu0 0.0
  %4058 = vmatpush.msra.mxu0 0.0
  %4059 = vmatpush.msra.mxu0 0.0
  %4060 = vmatpush.msra.mxu0 0.0
  %4061 = vmatpush.msra.mxu0 %v4000
  %4062 = vmatpush.msra.mxu0 %v3996
  %4063 = vmatpush.msra.mxu0 %v3992
  %4064 = vmatpush.msra.mxu0 %v3988
  %4065 = vmatmul.f32.gmra.mxu0 %v4009
  %v4066 = vpop.f32.mrf.mxu0
  %v4067 = vadd.f32 0.0, %v4066
  %4068 = vmatmul.f32.gmra.mxu0 %v4012
  %v4069 = vpop.f32.mrf.mxu0
  %v4070 = vadd.f32 0.0, %v4069
  %4071 = vmatmul.f32.gmra.mxu0 %v4015
  %v4072 = vpop.f32.mrf.mxu0
  %v4073 = vadd.f32 0.0, %v4072
  %4074 = vmatmul.f32.gmra.mxu0 %v4018
  %v4075 = vpop.f32.mrf.mxu0
  %v4076 = vadd.f32 0.0, %v4075
  %4077 = vdwg.mxu0
  %4078 = vmatpush.msra.mxu0 0.0
  %4079 = vmatpush.msra.mxu0 0.0
  %4080 = vmatpush.msra.mxu0 0.0
  %4081 = vmatpush.msra.mxu0 0.0
  %4082 = vmatpush.msra.mxu0 0.0
  %4083 = vmatpush.msra.mxu0 0.0
  %4084 = vmatpush.msra.mxu0 0.0
  %4085 = vmatpush.msra.mxu0 0.0
  %4086 = vmatpush.msra.mxu0 0.0
  %4087 = vmatpush.msra.mxu0 0.0
  %4088 = vmatpush.msra.mxu0 0.0
  %4089 = vmatpush.msra.mxu0 0.0
  %4090 = vmatpush.msra.mxu0 %v4001
  %4091 = vmatpush.msra.mxu0 %v3997
  %4092 = vmatpush.msra.mxu0 %v3993
  %4093 = vmatpush.msra.mxu0 %v3989
  %4094 = vmatmul.f32.gmra.mxu0 %v4009
  %v4095 = vpop.f32.mrf.mxu0
  %v4096 = vadd.f32 0.0, %v4095
  %4097 = vmatmul.f32.gmra.mxu0 %v4012
  %v4098 = vpop.f32.mrf.mxu0
  %v4099 = vadd.f32 0.0, %v4098
  %4100 = vmatmul.f32.gmra.mxu0 %v4015
  %v4101 = vpop.f32.mrf.mxu0
  %v4102 = vadd.f32 0.0, %v4101
  %4103 = vmatmul.f32.gmra.mxu0 %v4018
  %v4104 = vpop.f32.mrf.mxu0
  %v4105 = vadd.f32 0.0, %v4104
  %4106 = vdwg.mxu0
  %4107 = vmatpush.msra.mxu0 0.0
  %4108 = vmatpush.msra.mxu0 0.0
  %4109 = vmatpush.msra.mxu0 0.0
  %4110 = vmatpush.msra.mxu0 0.0
  %4111 = vmatpush.msra.mxu0 0.0
  %4112 = vmatpush.msra.mxu0 0.0
  %4113 = vmatpush.msra.mxu0 0.0
  %4114 = vmatpush.msra.mxu0 0.0
  %4115 = vmatpush.msra.mxu0 0.0
  %4116 = vmatpush.msra.mxu0 0.0
  %4117 = vmatpush.msra.mxu0 0.0
  %4118 = vmatpush.msra.mxu0 0.0
  %4119 = vmatpush.msra.mxu0 %v4002
  %4120 = vmatpush.msra.mxu0 %v3998
  %4121 = vmatpush.msra.mxu0 %v3994
  %4122 = vmatpush.msra.mxu0 %v3990
  %4123 = vmatmul.f32.gmra.mxu0 %v4009
  %v4124 = vpop.f32.mrf.mxu0
  %v4125 = vadd.f32 0.0, %v4124
  %4126 = vmatmul.f32.gmra.mxu0 %v4012
  %v4127 = vpop.f32.mrf.mxu0
  %v4128 = vadd.f32 0.0, %v4127
  %4129 = vmatmul.f32.gmra.mxu0 %v4015
  %v4130 = vpop.f32.mrf.mxu0
  %v4131 = vadd.f32 0.0, %v4130
  %4132 = vmatmul.f32.gmra.mxu0 %v4018
  %v4133 = vpop.f32.mrf.mxu0
  %v4134 = vadd.f32 0.0, %v4133
  %4135 = vdwg.mxu0
  %v4136 = vadd.f32 %v3923, %v4038
  %v4137 = vadd.f32 %v3924, %v4067
  %v4138 = vadd.f32 %v3925, %v4096
  %v4139 = vadd.f32 %v3926, %v4125
  %v4140 = vadd.f32 %v3927, %v4041
  %v4141 = vadd.f32 %v3928, %v4070
  %v4142 = vadd.f32 %v3929, %v4099
  %v4143 = vadd.f32 %v3930, %v4128
  %v4144 = vadd.f32 %v3931, %v4044
  %v4145 = vadd.f32 %v3932, %v4073
  %v4146 = vadd.f32 %v3933, %v4102
  %v4147 = vadd.f32 %v3934, %v4131
  %v4148 = vadd.f32 %v3935, %v4047
  %v4149 = vadd.f32 %v3936, %v4076
  %v4150 = vadd.f32 %v3937, %v4105
  %v4151 = vadd.f32 %v3938, %v4134
  %4152 = vrot.lane.b32.xlu0 %v2741, 112
  %v4153 = vpop.permute.xlu0 %4152
  %4154 = vrot.lane.b32.xlu0 %v2745, 112
  %v4155 = vpop.permute.xlu0 %4154
  %4156 = vrot.lane.b32.xlu0 %v2749, 112
  %v4157 = vpop.permute.xlu0 %4156
  %4158 = vrot.lane.b32.xlu0 %v2753, 112
  %v4159 = vpop.permute.xlu0 %4158
  %4160 = vrot.lane.b32.xlu0 %v2742, 112
  %v4161 = vpop.permute.xlu0 %4160
  %4162 = vrot.lane.b32.xlu0 %v2746, 112
  %v4163 = vpop.permute.xlu0 %4162
  %4164 = vrot.lane.b32.xlu0 %v2750, 112
  %v4165 = vpop.permute.xlu0 %4164
  %4166 = vrot.lane.b32.xlu0 %v2754, 112
  %v4167 = vpop.permute.xlu0 %4166
  %4168 = vrot.lane.b32.xlu0 %v2743, 112
  %v4169 = vpop.permute.xlu0 %4168
  %4170 = vrot.lane.b32.xlu0 %v2747, 112
  %v4171 = vpop.permute.xlu0 %4170
  %4172 = vrot.lane.b32.xlu0 %v2751, 112
  %v4173 = vpop.permute.xlu0 %4172
  %4174 = vrot.lane.b32.xlu0 %v2755, 112
  %v4175 = vpop.permute.xlu0 %4174
  %4176 = vrot.lane.b32.xlu0 %v2744, 112
  %v4177 = vpop.permute.xlu0 %4176
  %4178 = vrot.lane.b32.xlu0 %v2748, 112
  %v4179 = vpop.permute.xlu0 %4178
  %4180 = vrot.lane.b32.xlu0 %v2752, 112
  %v4181 = vpop.permute.xlu0 %4180
  %4182 = vrot.lane.b32.xlu0 %v2756, 112
  %v4183 = vpop.permute.xlu0 %4182
  %v4184 = vsel %vm670, %v4169, %v4177
  %v4185 = vsel %vm670, %v4171, %v4179
  %v4186 = vsel %vm670, %v4173, %v4181
  %v4187 = vsel %vm670, %v4175, %v4183
  %v4188 = vsel %vm670, %v4161, %v4169
  %v4189 = vsel %vm670, %v4163, %v4171
  %v4190 = vsel %vm670, %v4165, %v4173
  %v4191 = vsel %vm670, %v4167, %v4175
  %v4192 = vsel %vm670, %v4153, %v4161
  %v4193 = vsel %vm670, %v4155, %v4163
  %v4194 = vsel %vm670, %v4157, %v4165
  %v4195 = vsel %vm670, %v4159, %v4167
  %v4196 = vsel %vm670, %v4177, %v4153
  %v4197 = vsel %vm670, %v4179, %v4155
  %v4198 = vsel %vm670, %v4181, %v4157
  %v4199 = vsel %vm670, %v4183, %v4159
  %v4200 = vmul.f32 %v4192, %v97
  %v4201 = vmul.f32 %v4188, %v98
  %v4202 = vmul.f32 %v4184, %v99
  %v4203 = vmul.f32 %v4196, %v100
  %v4204 = vmul.f32 %v4193, %v97
  %v4205 = vmul.f32 %v4189, %v98
  %v4206 = vmul.f32 %v4185, %v99
  %v4207 = vmul.f32 %v4197, %v100
  %v4208 = vmul.f32 %v4194, %v97
  %v4209 = vmul.f32 %v4190, %v98
  %v4210 = vmul.f32 %v4186, %v99
  %v4211 = vmul.f32 %v4198, %v100
  %v4212 = vmul.f32 %v4195, %v97
  %v4213 = vmul.f32 %v4191, %v98
  %v4214 = vmul.f32 %v4187, %v99
  %v4215 = vmul.f32 %v4199, %v100
  %s4216 = scalar_lea.vmem %s5, 512
  %v4217 = vld [vmem:[%s4216] sm:$0xff]
  %v4218 = vld [vmem:[%s4216 + $0x8] sm:$0xff]
  %v4219 = vld [vmem:[%s4216 + $0x10] sm:$0xff]
  %v4220 = vld [vmem:[%s4216 + $0x18] sm:$0xff]
  %v4222 = vsel %vm921, %v4217, 0
  %v4225 = vsel %vm921, %v4218, 0
  %v4228 = vsel %vm921, %v4219, 0
  %v4231 = vsel %vm921, %v4220, 0
  %4233 = vmatpush.msra.mxu0 0.0
  %4234 = vmatpush.msra.mxu0 0.0
  %4235 = vmatpush.msra.mxu0 0.0
  %4236 = vmatpush.msra.mxu0 0.0
  %4237 = vmatpush.msra.mxu0 0.0
  %4238 = vmatpush.msra.mxu0 0.0
  %4239 = vmatpush.msra.mxu0 0.0
  %4240 = vmatpush.msra.mxu0 0.0
  %4241 = vmatpush.msra.mxu0 0.0
  %4242 = vmatpush.msra.mxu0 0.0
  %4243 = vmatpush.msra.mxu0 0.0
  %4244 = vmatpush.msra.mxu0 0.0
  %4245 = vmatpush.msra.mxu0 %v4212
  %4246 = vmatpush.msra.mxu0 %v4208
  %4247 = vmatpush.msra.mxu0 %v4204
  %4248 = vmatpush.msra.mxu0 %v4200
  %4249 = vmatmul.f32.gmra.mxu0 %v4222
  %v4250 = vpop.f32.mrf.mxu0
  %v4251 = vadd.f32 0.0, %v4250
  %4252 = vmatmul.f32.gmra.mxu0 %v4225
  %v4253 = vpop.f32.mrf.mxu0
  %v4254 = vadd.f32 0.0, %v4253
  %4255 = vmatmul.f32.gmra.mxu0 %v4228
  %v4256 = vpop.f32.mrf.mxu0
  %v4257 = vadd.f32 0.0, %v4256
  %4258 = vmatmul.f32.gmra.mxu0 %v4231
  %v4259 = vpop.f32.mrf.mxu0
  %v4260 = vadd.f32 0.0, %v4259
  %4261 = vdwg.mxu0
  %4262 = vmatpush.msra.mxu0 0.0
  %4263 = vmatpush.msra.mxu0 0.0
  %4264 = vmatpush.msra.mxu0 0.0
  %4265 = vmatpush.msra.mxu0 0.0
  %4266 = vmatpush.msra.mxu0 0.0
  %4267 = vmatpush.msra.mxu0 0.0
  %4268 = vmatpush.msra.mxu0 0.0
  %4269 = vmatpush.msra.mxu0 0.0
  %4270 = vmatpush.msra.mxu0 0.0
  %4271 = vmatpush.msra.mxu0 0.0
  %4272 = vmatpush.msra.mxu0 0.0
  %4273 = vmatpush.msra.mxu0 0.0
  %4274 = vmatpush.msra.mxu0 %v4213
  %4275 = vmatpush.msra.mxu0 %v4209
  %4276 = vmatpush.msra.mxu0 %v4205
  %4277 = vmatpush.msra.mxu0 %v4201
  %4278 = vmatmul.f32.gmra.mxu0 %v4222
  %v4279 = vpop.f32.mrf.mxu0
  %v4280 = vadd.f32 0.0, %v4279
  %4281 = vmatmul.f32.gmra.mxu0 %v4225
  %v4282 = vpop.f32.mrf.mxu0
  %v4283 = vadd.f32 0.0, %v4282
  %4284 = vmatmul.f32.gmra.mxu0 %v4228
  %v4285 = vpop.f32.mrf.mxu0
  %v4286 = vadd.f32 0.0, %v4285
  %4287 = vmatmul.f32.gmra.mxu0 %v4231
  %v4288 = vpop.f32.mrf.mxu0
  %v4289 = vadd.f32 0.0, %v4288
  %4290 = vdwg.mxu0
  %4291 = vmatpush.msra.mxu0 0.0
  %4292 = vmatpush.msra.mxu0 0.0
  %4293 = vmatpush.msra.mxu0 0.0
  %4294 = vmatpush.msra.mxu0 0.0
  %4295 = vmatpush.msra.mxu0 0.0
  %4296 = vmatpush.msra.mxu0 0.0
  %4297 = vmatpush.msra.mxu0 0.0
  %4298 = vmatpush.msra.mxu0 0.0
  %4299 = vmatpush.msra.mxu0 0.0
  %4300 = vmatpush.msra.mxu0 0.0
  %4301 = vmatpush.msra.mxu0 0.0
  %4302 = vmatpush.msra.mxu0 0.0
  %4303 = vmatpush.msra.mxu0 %v4214
  %4304 = vmatpush.msra.mxu0 %v4210
  %4305 = vmatpush.msra.mxu0 %v4206
  %4306 = vmatpush.msra.mxu0 %v4202
  %4307 = vmatmul.f32.gmra.mxu0 %v4222
  %v4308 = vpop.f32.mrf.mxu0
  %v4309 = vadd.f32 0.0, %v4308
  %4310 = vmatmul.f32.gmra.mxu0 %v4225
  %v4311 = vpop.f32.mrf.mxu0
  %v4312 = vadd.f32 0.0, %v4311
  %4313 = vmatmul.f32.gmra.mxu0 %v4228
  %v4314 = vpop.f32.mrf.mxu0
  %v4315 = vadd.f32 0.0, %v4314
  %4316 = vmatmul.f32.gmra.mxu0 %v4231
  %v4317 = vpop.f32.mrf.mxu0
  %v4318 = vadd.f32 0.0, %v4317
  %4319 = vdwg.mxu0
  %4320 = vmatpush.msra.mxu0 0.0
  %4321 = vmatpush.msra.mxu0 0.0
  %4322 = vmatpush.msra.mxu0 0.0
  %4323 = vmatpush.msra.mxu0 0.0
  %4324 = vmatpush.msra.mxu0 0.0
  %4325 = vmatpush.msra.mxu0 0.0
  %4326 = vmatpush.msra.mxu0 0.0
  %4327 = vmatpush.msra.mxu0 0.0
  %4328 = vmatpush.msra.mxu0 0.0
  %4329 = vmatpush.msra.mxu0 0.0
  %4330 = vmatpush.msra.mxu0 0.0
  %4331 = vmatpush.msra.mxu0 0.0
  %4332 = vmatpush.msra.mxu0 %v4215
  %4333 = vmatpush.msra.mxu0 %v4211
  %4334 = vmatpush.msra.mxu0 %v4207
  %4335 = vmatpush.msra.mxu0 %v4203
  %4336 = vmatmul.f32.gmra.mxu0 %v4222
  %v4337 = vpop.f32.mrf.mxu0
  %v4338 = vadd.f32 0.0, %v4337
  %4339 = vmatmul.f32.gmra.mxu0 %v4225
  %v4340 = vpop.f32.mrf.mxu0
  %v4341 = vadd.f32 0.0, %v4340
  %4342 = vmatmul.f32.gmra.mxu0 %v4228
  %v4343 = vpop.f32.mrf.mxu0
  %v4344 = vadd.f32 0.0, %v4343
  %4345 = vmatmul.f32.gmra.mxu0 %v4231
  %v4346 = vpop.f32.mrf.mxu0
  %v4347 = vadd.f32 0.0, %v4346
  %4348 = vdwg.mxu0
  %v4349 = vadd.f32 %v4136, %v4251
  %v4350 = vadd.f32 %v4137, %v4280
  %v4351 = vadd.f32 %v4138, %v4309
  %v4352 = vadd.f32 %v4139, %v4338
  %v4353 = vadd.f32 %v4140, %v4254
  %v4354 = vadd.f32 %v4141, %v4283
  %v4355 = vadd.f32 %v4142, %v4312
  %v4356 = vadd.f32 %v4143, %v4341
  %v4357 = vadd.f32 %v4144, %v4257
  %v4358 = vadd.f32 %v4145, %v4286
  %v4359 = vadd.f32 %v4146, %v4315
  %v4360 = vadd.f32 %v4147, %v4344
  %v4361 = vadd.f32 %v4148, %v4260
  %v4362 = vadd.f32 %v4149, %v4289
  %v4363 = vadd.f32 %v4150, %v4318
  %v4364 = vadd.f32 %v4151, %v4347
  %4365 = vrot.lane.b32.xlu0 %v2741, 111
  %v4366 = vpop.permute.xlu0 %4365
  %4367 = vrot.lane.b32.xlu0 %v2745, 111
  %v4368 = vpop.permute.xlu0 %4367
  %4369 = vrot.lane.b32.xlu0 %v2749, 111
  %v4370 = vpop.permute.xlu0 %4369
  %4371 = vrot.lane.b32.xlu0 %v2753, 111
  %v4372 = vpop.permute.xlu0 %4371
  %4373 = vrot.lane.b32.xlu0 %v2742, 111
  %v4374 = vpop.permute.xlu0 %4373
  %4375 = vrot.lane.b32.xlu0 %v2746, 111
  %v4376 = vpop.permute.xlu0 %4375
  %4377 = vrot.lane.b32.xlu0 %v2750, 111
  %v4378 = vpop.permute.xlu0 %4377
  %4379 = vrot.lane.b32.xlu0 %v2754, 111
  %v4380 = vpop.permute.xlu0 %4379
  %4381 = vrot.lane.b32.xlu0 %v2743, 111
  %v4382 = vpop.permute.xlu0 %4381
  %4383 = vrot.lane.b32.xlu0 %v2747, 111
  %v4384 = vpop.permute.xlu0 %4383
  %4385 = vrot.lane.b32.xlu0 %v2751, 111
  %v4386 = vpop.permute.xlu0 %4385
  %4387 = vrot.lane.b32.xlu0 %v2755, 111
  %v4388 = vpop.permute.xlu0 %4387
  %4389 = vrot.lane.b32.xlu0 %v2744, 111
  %v4390 = vpop.permute.xlu0 %4389
  %4391 = vrot.lane.b32.xlu0 %v2748, 111
  %v4392 = vpop.permute.xlu0 %4391
  %4393 = vrot.lane.b32.xlu0 %v2752, 111
  %v4394 = vpop.permute.xlu0 %4393
  %4395 = vrot.lane.b32.xlu0 %v2756, 111
  %v4396 = vpop.permute.xlu0 %4395
  %v4397 = vsel %vm739, %v4382, %v4390
  %v4398 = vsel %vm739, %v4384, %v4392
  %v4399 = vsel %vm739, %v4386, %v4394
  %v4400 = vsel %vm739, %v4388, %v4396
  %v4401 = vsel %vm739, %v4374, %v4382
  %v4402 = vsel %vm739, %v4376, %v4384
  %v4403 = vsel %vm739, %v4378, %v4386
  %v4404 = vsel %vm739, %v4380, %v4388
  %v4405 = vsel %vm739, %v4366, %v4374
  %v4406 = vsel %vm739, %v4368, %v4376
  %v4407 = vsel %vm739, %v4370, %v4378
  %v4408 = vsel %vm739, %v4372, %v4380
  %v4409 = vsel %vm739, %v4390, %v4366
  %v4410 = vsel %vm739, %v4392, %v4368
  %v4411 = vsel %vm739, %v4394, %v4370
  %v4412 = vsel %vm739, %v4396, %v4372
  %v4413 = vmul.f32 %v4405, %v106
  %v4414 = vmul.f32 %v4401, %v107
  %v4415 = vmul.f32 %v4397, %v108
  %v4416 = vmul.f32 %v4409, %v109
  %v4417 = vmul.f32 %v4406, %v106
  %v4418 = vmul.f32 %v4402, %v107
  %v4419 = vmul.f32 %v4398, %v108
  %v4420 = vmul.f32 %v4410, %v109
  %v4421 = vmul.f32 %v4407, %v106
  %v4422 = vmul.f32 %v4403, %v107
  %v4423 = vmul.f32 %v4399, %v108
  %v4424 = vmul.f32 %v4411, %v109
  %v4425 = vmul.f32 %v4408, %v106
  %v4426 = vmul.f32 %v4404, %v107
  %v4427 = vmul.f32 %v4400, %v108
  %v4428 = vmul.f32 %v4412, %v109
  %s4429 = scalar_lea.vmem %s5, 544
  %v4430 = vld [vmem:[%s4429] sm:$0xff]
  %v4431 = vld [vmem:[%s4429 + $0x8] sm:$0xff]
  %v4432 = vld [vmem:[%s4429 + $0x10] sm:$0xff]
  %v4433 = vld [vmem:[%s4429 + $0x18] sm:$0xff]
  %v4435 = vsel %vm921, %v4430, 0
  %v4438 = vsel %vm921, %v4431, 0
  %v4441 = vsel %vm921, %v4432, 0
  %v4444 = vsel %vm921, %v4433, 0
  %4446 = vmatpush.msra.mxu0 0.0
  %4447 = vmatpush.msra.mxu0 0.0
  %4448 = vmatpush.msra.mxu0 0.0
  %4449 = vmatpush.msra.mxu0 0.0
  %4450 = vmatpush.msra.mxu0 0.0
  %4451 = vmatpush.msra.mxu0 0.0
  %4452 = vmatpush.msra.mxu0 0.0
  %4453 = vmatpush.msra.mxu0 0.0
  %4454 = vmatpush.msra.mxu0 0.0
  %4455 = vmatpush.msra.mxu0 0.0
  %4456 = vmatpush.msra.mxu0 0.0
  %4457 = vmatpush.msra.mxu0 0.0
  %4458 = vmatpush.msra.mxu0 %v4425
  %4459 = vmatpush.msra.mxu0 %v4421
  %4460 = vmatpush.msra.mxu0 %v4417
  %4461 = vmatpush.msra.mxu0 %v4413
  %4462 = vmatmul.f32.gmra.mxu0 %v4435
  %v4463 = vpop.f32.mrf.mxu0
  %v4464 = vadd.f32 0.0, %v4463
  %4465 = vmatmul.f32.gmra.mxu0 %v4438
  %v4466 = vpop.f32.mrf.mxu0
  %v4467 = vadd.f32 0.0, %v4466
  %4468 = vmatmul.f32.gmra.mxu0 %v4441
  %v4469 = vpop.f32.mrf.mxu0
  %v4470 = vadd.f32 0.0, %v4469
  %4471 = vmatmul.f32.gmra.mxu0 %v4444
  %v4472 = vpop.f32.mrf.mxu0
  %v4473 = vadd.f32 0.0, %v4472
  %4474 = vdwg.mxu0
  %4475 = vmatpush.msra.mxu0 0.0
  %4476 = vmatpush.msra.mxu0 0.0
  %4477 = vmatpush.msra.mxu0 0.0
  %4478 = vmatpush.msra.mxu0 0.0
  %4479 = vmatpush.msra.mxu0 0.0
  %4480 = vmatpush.msra.mxu0 0.0
  %4481 = vmatpush.msra.mxu0 0.0
  %4482 = vmatpush.msra.mxu0 0.0
  %4483 = vmatpush.msra.mxu0 0.0
  %4484 = vmatpush.msra.mxu0 0.0
  %4485 = vmatpush.msra.mxu0 0.0
  %4486 = vmatpush.msra.mxu0 0.0
  %4487 = vmatpush.msra.mxu0 %v4426
  %4488 = vmatpush.msra.mxu0 %v4422
  %4489 = vmatpush.msra.mxu0 %v4418
  %4490 = vmatpush.msra.mxu0 %v4414
  %4491 = vmatmul.f32.gmra.mxu0 %v4435
  %v4492 = vpop.f32.mrf.mxu0
  %v4493 = vadd.f32 0.0, %v4492
  %4494 = vmatmul.f32.gmra.mxu0 %v4438
  %v4495 = vpop.f32.mrf.mxu0
  %v4496 = vadd.f32 0.0, %v4495
  %4497 = vmatmul.f32.gmra.mxu0 %v4441
  %v4498 = vpop.f32.mrf.mxu0
  %v4499 = vadd.f32 0.0, %v4498
  %4500 = vmatmul.f32.gmra.mxu0 %v4444
  %v4501 = vpop.f32.mrf.mxu0
  %v4502 = vadd.f32 0.0, %v4501
  %4503 = vdwg.mxu0
  %4504 = vmatpush.msra.mxu0 0.0
  %4505 = vmatpush.msra.mxu0 0.0
  %4506 = vmatpush.msra.mxu0 0.0
  %4507 = vmatpush.msra.mxu0 0.0
  %4508 = vmatpush.msra.mxu0 0.0
  %4509 = vmatpush.msra.mxu0 0.0
  %4510 = vmatpush.msra.mxu0 0.0
  %4511 = vmatpush.msra.mxu0 0.0
  %4512 = vmatpush.msra.mxu0 0.0
  %4513 = vmatpush.msra.mxu0 0.0
  %4514 = vmatpush.msra.mxu0 0.0
  %4515 = vmatpush.msra.mxu0 0.0
  %4516 = vmatpush.msra.mxu0 %v4427
  %4517 = vmatpush.msra.mxu0 %v4423
  %4518 = vmatpush.msra.mxu0 %v4419
  %4519 = vmatpush.msra.mxu0 %v4415
  %4520 = vmatmul.f32.gmra.mxu0 %v4435
  %v4521 = vpop.f32.mrf.mxu0
  %v4522 = vadd.f32 0.0, %v4521
  %4523 = vmatmul.f32.gmra.mxu0 %v4438
  %v4524 = vpop.f32.mrf.mxu0
  %v4525 = vadd.f32 0.0, %v4524
  %4526 = vmatmul.f32.gmra.mxu0 %v4441
  %v4527 = vpop.f32.mrf.mxu0
  %v4528 = vadd.f32 0.0, %v4527
  %4529 = vmatmul.f32.gmra.mxu0 %v4444
  %v4530 = vpop.f32.mrf.mxu0
  %v4531 = vadd.f32 0.0, %v4530
  %4532 = vdwg.mxu0
  %4533 = vmatpush.msra.mxu0 0.0
  %4534 = vmatpush.msra.mxu0 0.0
  %4535 = vmatpush.msra.mxu0 0.0
  %4536 = vmatpush.msra.mxu0 0.0
  %4537 = vmatpush.msra.mxu0 0.0
  %4538 = vmatpush.msra.mxu0 0.0
  %4539 = vmatpush.msra.mxu0 0.0
  %4540 = vmatpush.msra.mxu0 0.0
  %4541 = vmatpush.msra.mxu0 0.0
  %4542 = vmatpush.msra.mxu0 0.0
  %4543 = vmatpush.msra.mxu0 0.0
  %4544 = vmatpush.msra.mxu0 0.0
  %4545 = vmatpush.msra.mxu0 %v4428
  %4546 = vmatpush.msra.mxu0 %v4424
  %4547 = vmatpush.msra.mxu0 %v4420
  %4548 = vmatpush.msra.mxu0 %v4416
  %4549 = vmatmul.f32.gmra.mxu0 %v4435
  %v4550 = vpop.f32.mrf.mxu0
  %v4551 = vadd.f32 0.0, %v4550
  %4552 = vmatmul.f32.gmra.mxu0 %v4438
  %v4553 = vpop.f32.mrf.mxu0
  %v4554 = vadd.f32 0.0, %v4553
  %4555 = vmatmul.f32.gmra.mxu0 %v4441
  %v4556 = vpop.f32.mrf.mxu0
  %v4557 = vadd.f32 0.0, %v4556
  %4558 = vmatmul.f32.gmra.mxu0 %v4444
  %v4559 = vpop.f32.mrf.mxu0
  %v4560 = vadd.f32 0.0, %v4559
  %4561 = vdwg.mxu0
  %v4562 = vadd.f32 %v4349, %v4464
  %v4563 = vadd.f32 %v4350, %v4493
  %v4564 = vadd.f32 %v4351, %v4522
  %v4565 = vadd.f32 %v4352, %v4551
  %v4566 = vadd.f32 %v4353, %v4467
  %v4567 = vadd.f32 %v4354, %v4496
  %v4568 = vadd.f32 %v4355, %v4525
  %v4569 = vadd.f32 %v4356, %v4554
  %v4570 = vadd.f32 %v4357, %v4470
  %v4571 = vadd.f32 %v4358, %v4499
  %v4572 = vadd.f32 %v4359, %v4528
  %v4573 = vadd.f32 %v4360, %v4557
  %v4574 = vadd.f32 %v4361, %v4473
  %v4575 = vadd.f32 %v4362, %v4502
  %v4576 = vadd.f32 %v4363, %v4531
  %v4577 = vadd.f32 %v4364, %v4560
  %s4578 = scalar_lea.vmem %s6, 32
  %v4579 = vld [vmem:[%s4578] sm:$0xff]
  %v4580 = vld [vmem:[%s4578 + $0x8] sm:$0xff]
  %v4581 = vld [vmem:[%s4578 + $0x10] sm:$0xff]
  %v4582 = vld [vmem:[%s4578 + $0x18] sm:$0xff]
  %4584 = vset.pattern.permute.xlu0 0
  %4585 = vperm.xlu0 %4584, %v4579
  %v4586 = vpop.permute.xlu0 %4585
  %4589 = vset.pattern.permute.xlu0 0
  %4590 = vperm.xlu0 %4589, %v4580
  %v4591 = vpop.permute.xlu0 %4590
  %4594 = vset.pattern.permute.xlu0 0
  %4595 = vperm.xlu0 %4594, %v4581
  %v4596 = vpop.permute.xlu0 %4595
  %4599 = vset.pattern.permute.xlu0 0
  %4600 = vperm.xlu0 %4599, %v4582
  %v4601 = vpop.permute.xlu0 %4600
  %v4603 = vadd.f32 %v4562, %v4586
  %v4604 = vadd.f32 %v4563, %v4586
  %v4605 = vadd.f32 %v4564, %v4586
  %v4606 = vadd.f32 %v4565, %v4586
  %v4607 = vadd.f32 %v4566, %v4591
  %v4608 = vadd.f32 %v4567, %v4591
  %v4609 = vadd.f32 %v4568, %v4591
  %v4610 = vadd.f32 %v4569, %v4591
  %v4611 = vadd.f32 %v4570, %v4596
  %v4612 = vadd.f32 %v4571, %v4596
  %v4613 = vadd.f32 %v4572, %v4596
  %v4614 = vadd.f32 %v4573, %v4596
  %v4615 = vadd.f32 %v4574, %v4601
  %v4616 = vadd.f32 %v4575, %v4601
  %v4617 = vadd.f32 %v4576, %v4601
  %v4618 = vadd.f32 %v4577, %v4601
  %vm4619 = vcmp.gt.f32.partialorder %v4603, 0.0
  %vm4620 = vcmp.gt.f32.partialorder %v4604, 0.0
  %vm4621 = vcmp.gt.f32.partialorder %v4605, 0.0
  %vm4622 = vcmp.gt.f32.partialorder %v4606, 0.0
  %vm4623 = vcmp.gt.f32.partialorder %v4607, 0.0
  %vm4624 = vcmp.gt.f32.partialorder %v4608, 0.0
  %vm4625 = vcmp.gt.f32.partialorder %v4609, 0.0
  %vm4626 = vcmp.gt.f32.partialorder %v4610, 0.0
  %vm4627 = vcmp.gt.f32.partialorder %v4611, 0.0
  %vm4628 = vcmp.gt.f32.partialorder %v4612, 0.0
  %vm4629 = vcmp.gt.f32.partialorder %v4613, 0.0
  %vm4630 = vcmp.gt.f32.partialorder %v4614, 0.0
  %vm4631 = vcmp.gt.f32.partialorder %v4615, 0.0
  %vm4632 = vcmp.gt.f32.partialorder %v4616, 0.0
  %vm4633 = vcmp.gt.f32.partialorder %v4617, 0.0
  %vm4634 = vcmp.gt.f32.partialorder %v4618, 0.0
  %v4635 = vmul.f32 %v4603, 0.2
  %v4636 = vmul.f32 %v4604, 0.2
  %v4637 = vmul.f32 %v4605, 0.2
  %v4638 = vmul.f32 %v4606, 0.2
  %v4639 = vmul.f32 %v4607, 0.2
  %v4640 = vmul.f32 %v4608, 0.2
  %v4641 = vmul.f32 %v4609, 0.2
  %v4642 = vmul.f32 %v4610, 0.2
  %v4643 = vmul.f32 %v4611, 0.2
  %v4644 = vmul.f32 %v4612, 0.2
  %v4645 = vmul.f32 %v4613, 0.2
  %v4646 = vmul.f32 %v4614, 0.2
  %v4647 = vmul.f32 %v4615, 0.2
  %v4648 = vmul.f32 %v4616, 0.2
  %v4649 = vmul.f32 %v4617, 0.2
  %v4650 = vmul.f32 %v4618, 0.2
  %v4651 = vsel %vm4619, %v4603, %v4635
  %v4652 = vsel %vm4620, %v4604, %v4636
  %v4653 = vsel %vm4621, %v4605, %v4637
  %v4654 = vsel %vm4622, %v4606, %v4638
  %v4655 = vsel %vm4623, %v4607, %v4639
  %v4656 = vsel %vm4624, %v4608, %v4640
  %v4657 = vsel %vm4625, %v4609, %v4641
  %v4658 = vsel %vm4626, %v4610, %v4642
  %v4659 = vsel %vm4627, %v4611, %v4643
  %v4660 = vsel %vm4628, %v4612, %v4644
  %v4661 = vsel %vm4629, %v4613, %v4645
  %v4662 = vsel %vm4630, %v4614, %v4646
  %v4663 = vsel %vm4631, %v4615, %v4647
  %v4664 = vsel %vm4632, %v4616, %v4648
  %v4665 = vsel %vm4633, %v4617, %v4649
  %v4666 = vsel %vm4634, %v4618, %v4650
  %s4667 = scalar_lea.vmem %s5, 704
  %v4668 = vld [vmem:[%s4667] sm:$0xff]
  %v4669 = vld [vmem:[%s4667 + $0x8] sm:$0xff]
  %v4670 = vld [vmem:[%s4667 + $0x10] sm:$0xff]
  %v4671 = vld [vmem:[%s4667 + $0x18] sm:$0xff]
  %4672 = vrot.lane.b32.xlu0 %v4651, 17
  %v4673 = vpop.permute.xlu0 %4672
  %4674 = vrot.lane.b32.xlu0 %v4655, 17
  %v4675 = vpop.permute.xlu0 %4674
  %4676 = vrot.lane.b32.xlu0 %v4659, 17
  %v4677 = vpop.permute.xlu0 %4676
  %4678 = vrot.lane.b32.xlu0 %v4663, 17
  %v4679 = vpop.permute.xlu0 %4678
  %4680 = vrot.lane.b32.xlu0 %v4652, 17
  %v4681 = vpop.permute.xlu0 %4680
  %4682 = vrot.lane.b32.xlu0 %v4656, 17
  %v4683 = vpop.permute.xlu0 %4682
  %4684 = vrot.lane.b32.xlu0 %v4660, 17
  %v4685 = vpop.permute.xlu0 %4684
  %4686 = vrot.lane.b32.xlu0 %v4664, 17
  %v4687 = vpop.permute.xlu0 %4686
  %4688 = vrot.lane.b32.xlu0 %v4653, 17
  %v4689 = vpop.permute.xlu0 %4688
  %4690 = vrot.lane.b32.xlu0 %v4657, 17
  %v4691 = vpop.permute.xlu0 %4690
  %4692 = vrot.lane.b32.xlu0 %v4661, 17
  %v4693 = vpop.permute.xlu0 %4692
  %4694 = vrot.lane.b32.xlu0 %v4665, 17
  %v4695 = vpop.permute.xlu0 %4694
  %4696 = vrot.lane.b32.xlu0 %v4654, 17
  %v4697 = vpop.permute.xlu0 %4696
  %4698 = vrot.lane.b32.xlu0 %v4658, 17
  %v4699 = vpop.permute.xlu0 %4698
  %4700 = vrot.lane.b32.xlu0 %v4662, 17
  %v4701 = vpop.permute.xlu0 %4700
  %4702 = vrot.lane.b32.xlu0 %v4666, 17
  %v4703 = vpop.permute.xlu0 %4702
  %v4704 = vsel %vm208, %v4689, %v4697
  %v4705 = vsel %vm208, %v4691, %v4699
  %v4706 = vsel %vm208, %v4693, %v4701
  %v4707 = vsel %vm208, %v4695, %v4703
  %v4708 = vsel %vm208, %v4681, %v4689
  %v4709 = vsel %vm208, %v4683, %v4691
  %v4710 = vsel %vm208, %v4685, %v4693
  %v4711 = vsel %vm208, %v4687, %v4695
  %v4712 = vsel %vm208, %v4673, %v4681
  %v4713 = vsel %vm208, %v4675, %v4683
  %v4714 = vsel %vm208, %v4677, %v4685
  %v4715 = vsel %vm208, %v4679, %v4687
  %v4716 = vsel %vm208, %v4697, %v4673
  %v4717 = vsel %vm208, %v4699, %v4675
  %v4718 = vsel %vm208, %v4701, %v4677
  %v4719 = vsel %vm208, %v4703, %v4679
  %v4720 = vmul.f32 %v4716, %v43
  %v4721 = vmul.f32 %v4712, %v44
  %v4722 = vmul.f32 %v4708, %v45
  %v4723 = vmul.f32 %v4704, %v46
  %v4724 = vmul.f32 %v4717, %v43
  %v4725 = vmul.f32 %v4713, %v44
  %v4726 = vmul.f32 %v4709, %v45
  %v4727 = vmul.f32 %v4705, %v46
  %v4728 = vmul.f32 %v4718, %v43
  %v4729 = vmul.f32 %v4714, %v44
  %v4730 = vmul.f32 %v4710, %v45
  %v4731 = vmul.f32 %v4706, %v46
  %v4732 = vmul.f32 %v4719, %v43
  %v4733 = vmul.f32 %v4715, %v44
  %v4734 = vmul.f32 %v4711, %v45
  %v4735 = vmul.f32 %v4707, %v46
  %s4736 = scalar_lea.vmem %s5, 576
  %v4737 = vld [vmem:[%s4736] sm:$0xff]
  %v4738 = vld [vmem:[%s4736 + $0x8] sm:$0xff]
  %v4739 = vld [vmem:[%s4736 + $0x10] sm:$0xff]
  %v4740 = vld [vmem:[%s4736 + $0x18] sm:$0xff]
  %v4742 = vsel %vm921, %v4737, 0
  %v4745 = vsel %vm921, %v4738, 0
  %v4748 = vsel %vm921, %v4739, 0
  %v4751 = vsel %vm921, %v4740, 0
  %4753 = vmatpush.msra.mxu0 0.0
  %4754 = vmatpush.msra.mxu0 0.0
  %4755 = vmatpush.msra.mxu0 0.0
  %4756 = vmatpush.msra.mxu0 0.0
  %4757 = vmatpush.msra.mxu0 0.0
  %4758 = vmatpush.msra.mxu0 0.0
  %4759 = vmatpush.msra.mxu0 0.0
  %4760 = vmatpush.msra.mxu0 0.0
  %4761 = vmatpush.msra.mxu0 0.0
  %4762 = vmatpush.msra.mxu0 0.0
  %4763 = vmatpush.msra.mxu0 0.0
  %4764 = vmatpush.msra.mxu0 0.0
  %4765 = vmatpush.msra.mxu0 %v4732
  %4766 = vmatpush.msra.mxu0 %v4728
  %4767 = vmatpush.msra.mxu0 %v4724
  %4768 = vmatpush.msra.mxu0 %v4720
  %4769 = vmatmul.f32.gmra.mxu0 %v4742
  %v4770 = vpop.f32.mrf.mxu0
  %v4771 = vadd.f32 0.0, %v4770
  %4772 = vmatmul.f32.gmra.mxu0 %v4745
  %v4773 = vpop.f32.mrf.mxu0
  %4774 = vmatmul.f32.gmra.mxu0 %v4748
  %v4775 = vpop.f32.mrf.mxu0
  %4776 = vmatmul.f32.gmra.mxu0 %v4751
  %v4777 = vpop.f32.mrf.mxu0
  %4778 = vdwg.mxu0
  %4779 = vmatpush.msra.mxu0 0.0
  %4780 = vmatpush.msra.mxu0 0.0
  %4781 = vmatpush.msra.mxu0 0.0
  %4782 = vmatpush.msra.mxu0 0.0
  %4783 = vmatpush.msra.mxu0 0.0
  %4784 = vmatpush.msra.mxu0 0.0
  %4785 = vmatpush.msra.mxu0 0.0
  %4786 = vmatpush.msra.mxu0 0.0
  %4787 = vmatpush.msra.mxu0 0.0
  %4788 = vmatpush.msra.mxu0 0.0
  %4789 = vmatpush.msra.mxu0 0.0
  %4790 = vmatpush.msra.mxu0 0.0
  %4791 = vmatpush.msra.mxu0 %v4733
  %4792 = vmatpush.msra.mxu0 %v4729
  %4793 = vmatpush.msra.mxu0 %v4725
  %4794 = vmatpush.msra.mxu0 %v4721
  %4795 = vmatmul.f32.gmra.mxu0 %v4742
  %v4796 = vpop.f32.mrf.mxu0
  %v4797 = vadd.f32 0.0, %v4796
  %4798 = vmatmul.f32.gmra.mxu0 %v4745
  %v4799 = vpop.f32.mrf.mxu0
  %4800 = vmatmul.f32.gmra.mxu0 %v4748
  %v4801 = vpop.f32.mrf.mxu0
  %4802 = vmatmul.f32.gmra.mxu0 %v4751
  %v4803 = vpop.f32.mrf.mxu0
  %4804 = vdwg.mxu0
  %4805 = vmatpush.msra.mxu0 0.0
  %4806 = vmatpush.msra.mxu0 0.0
  %4807 = vmatpush.msra.mxu0 0.0
  %4808 = vmatpush.msra.mxu0 0.0
  %4809 = vmatpush.msra.mxu0 0.0
  %4810 = vmatpush.msra.mxu0 0.0
  %4811 = vmatpush.msra.mxu0 0.0
  %4812 = vmatpush.msra.mxu0 0.0
  %4813 = vmatpush.msra.mxu0 0.0
  %4814 = vmatpush.msra.mxu0 0.0
  %4815 = vmatpush.msra.mxu0 0.0
  %4816 = vmatpush.msra.mxu0 0.0
  %4817 = vmatpush.msra.mxu0 %v4734
  %4818 = vmatpush.msra.mxu0 %v4730
  %4819 = vmatpush.msra.mxu0 %v4726
  %4820 = vmatpush.msra.mxu0 %v4722
  %4821 = vmatmul.f32.gmra.mxu0 %v4742
  %v4822 = vpop.f32.mrf.mxu0
  %v4823 = vadd.f32 0.0, %v4822
  %4824 = vmatmul.f32.gmra.mxu0 %v4745
  %v4825 = vpop.f32.mrf.mxu0
  %4826 = vmatmul.f32.gmra.mxu0 %v4748
  %v4827 = vpop.f32.mrf.mxu0
  %4828 = vmatmul.f32.gmra.mxu0 %v4751
  %v4829 = vpop.f32.mrf.mxu0
  %4830 = vdwg.mxu0
  %4831 = vmatpush.msra.mxu0 0.0
  %4832 = vmatpush.msra.mxu0 0.0
  %4833 = vmatpush.msra.mxu0 0.0
  %4834 = vmatpush.msra.mxu0 0.0
  %4835 = vmatpush.msra.mxu0 0.0
  %4836 = vmatpush.msra.mxu0 0.0
  %4837 = vmatpush.msra.mxu0 0.0
  %4838 = vmatpush.msra.mxu0 0.0
  %4839 = vmatpush.msra.mxu0 0.0
  %4840 = vmatpush.msra.mxu0 0.0
  %4841 = vmatpush.msra.mxu0 0.0
  %4842 = vmatpush.msra.mxu0 0.0
  %4843 = vmatpush.msra.mxu0 %v4735
  %4844 = vmatpush.msra.mxu0 %v4731
  %4845 = vmatpush.msra.mxu0 %v4727
  %4846 = vmatpush.msra.mxu0 %v4723
  %4847 = vmatmul.f32.gmra.mxu0 %v4742
  %v4848 = vpop.f32.mrf.mxu0
  %v4849 = vadd.f32 0.0, %v4848
  %4850 = vmatmul.f32.gmra.mxu0 %v4745
  %v4851 = vpop.f32.mrf.mxu0
  %4852 = vmatmul.f32.gmra.mxu0 %v4748
  %v4853 = vpop.f32.mrf.mxu0
  %4854 = vmatmul.f32.gmra.mxu0 %v4751
  %v4855 = vpop.f32.mrf.mxu0
  %4856 = vdwg.mxu0
  %v4858 = vsel %vm921, %v4668, 0
  %v4861 = vsel %vm921, %v4669, 0
  %v4864 = vsel %vm921, %v4670, 0
  %v4867 = vsel %vm921, %v4671, 0
  %4869 = vmatpush.msra.mxu0 0.0
  %4870 = vmatpush.msra.mxu0 0.0
  %4871 = vmatpush.msra.mxu0 0.0
  %4872 = vmatpush.msra.mxu0 0.0
  %4873 = vmatpush.msra.mxu0 0.0
  %4874 = vmatpush.msra.mxu0 0.0
  %4875 = vmatpush.msra.mxu0 0.0
  %4876 = vmatpush.msra.mxu0 0.0
  %4877 = vmatpush.msra.mxu0 0.0
  %4878 = vmatpush.msra.mxu0 0.0
  %4879 = vmatpush.msra.mxu0 0.0
  %4880 = vmatpush.msra.mxu0 0.0
  %4881 = vmatpush.msra.mxu0 %v4663
  %4882 = vmatpush.msra.mxu0 %v4659
  %4883 = vmatpush.msra.mxu0 %v4655
  %4884 = vmatpush.msra.mxu0 %v4651
  %4885 = vmatmul.f32.gmra.mxu0 %v4858
  %v4886 = vpop.f32.mrf.mxu0
  %v4887 = vadd.f32 %v4771, %v4886
  %4888 = vmatmul.f32.gmra.mxu0 %v4861
  %v4889 = vpop.f32.mrf.mxu0
  %4890 = vmatmul.f32.gmra.mxu0 %v4864
  %v4891 = vpop.f32.mrf.mxu0
  %4892 = vmatmul.f32.gmra.mxu0 %v4867
  %v4893 = vpop.f32.mrf.mxu0
  %4894 = vdwg.mxu0
  %4895 = vmatpush.msra.mxu0 0.0
  %4896 = vmatpush.msra.mxu0 0.0
  %4897 = vmatpush.msra.mxu0 0.0
  %4898 = vmatpush.msra.mxu0 0.0
  %4899 = vmatpush.msra.mxu0 0.0
  %4900 = vmatpush.msra.mxu0 0.0
  %4901 = vmatpush.msra.mxu0 0.0
  %4902 = vmatpush.msra.mxu0 0.0
  %4903 = vmatpush.msra.mxu0 0.0
  %4904 = vmatpush.msra.mxu0 0.0
  %4905 = vmatpush.msra.mxu0 0.0
  %4906 = vmatpush.msra.mxu0 0.0
  %4907 = vmatpush.msra.mxu0 %v4664
  %4908 = vmatpush.msra.mxu0 %v4660
  %4909 = vmatpush.msra.mxu0 %v4656
  %4910 = vmatpush.msra.mxu0 %v4652
  %4911 = vmatmul.f32.gmra.mxu0 %v4858
  %v4912 = vpop.f32.mrf.mxu0
  %v4913 = vadd.f32 %v4797, %v4912
  %4914 = vmatmul.f32.gmra.mxu0 %v4861
  %v4915 = vpop.f32.mrf.mxu0
  %4916 = vmatmul.f32.gmra.mxu0 %v4864
  %v4917 = vpop.f32.mrf.mxu0
  %4918 = vmatmul.f32.gmra.mxu0 %v4867
  %v4919 = vpop.f32.mrf.mxu0
  %4920 = vdwg.mxu0
  %4921 = vmatpush.msra.mxu0 0.0
  %4922 = vmatpush.msra.mxu0 0.0
  %4923 = vmatpush.msra.mxu0 0.0
  %4924 = vmatpush.msra.mxu0 0.0
  %4925 = vmatpush.msra.mxu0 0.0
  %4926 = vmatpush.msra.mxu0 0.0
  %4927 = vmatpush.msra.mxu0 0.0
  %4928 = vmatpush.msra.mxu0 0.0
  %4929 = vmatpush.msra.mxu0 0.0
  %4930 = vmatpush.msra.mxu0 0.0
  %4931 = vmatpush.msra.mxu0 0.0
  %4932 = vmatpush.msra.mxu0 0.0
  %4933 = vmatpush.msra.mxu0 %v4665
  %4934 = vmatpush.msra.mxu0 %v4661
  %4935 = vmatpush.msra.mxu0 %v4657
  %4936 = vmatpush.msra.mxu0 %v4653
  %4937 = vmatmul.f32.gmra.mxu0 %v4858
  %v4938 = vpop.f32.mrf.mxu0
  %v4939 = vadd.f32 %v4823, %v4938
  %4940 = vmatmul.f32.gmra.mxu0 %v4861
  %v4941 = vpop.f32.mrf.mxu0
  %4942 = vmatmul.f32.gmra.mxu0 %v4864
  %v4943 = vpop.f32.mrf.mxu0
  %4944 = vmatmul.f32.gmra.mxu0 %v4867
  %v4945 = vpop.f32.mrf.mxu0
  %4946 = vdwg.mxu0
  %4947 = vmatpush.msra.mxu0 0.0
  %4948 = vmatpush.msra.mxu0 0.0
  %4949 = vmatpush.msra.mxu0 0.0
  %4950 = vmatpush.msra.mxu0 0.0
  %4951 = vmatpush.msra.mxu0 0.0
  %4952 = vmatpush.msra.mxu0 0.0
  %4953 = vmatpush.msra.mxu0 0.0
  %4954 = vmatpush.msra.mxu0 0.0
  %4955 = vmatpush.msra.mxu0 0.0
  %4956 = vmatpush.msra.mxu0 0.0
  %4957 = vmatpush.msra.mxu0 0.0
  %4958 = vmatpush.msra.mxu0 0.0
  %4959 = vmatpush.msra.mxu0 %v4666
  %4960 = vmatpush.msra.mxu0 %v4662
  %4961 = vmatpush.msra.mxu0 %v4658
  %4962 = vmatpush.msra.mxu0 %v4654
  %4963 = vmatmul.f32.gmra.mxu0 %v4858
  %v4964 = vpop.f32.mrf.mxu0
  %v4965 = vadd.f32 %v4849, %v4964
  %4966 = vmatmul.f32.gmra.mxu0 %v4861
  %v4967 = vpop.f32.mrf.mxu0
  %4968 = vmatmul.f32.gmra.mxu0 %v4864
  %v4969 = vpop.f32.mrf.mxu0
  %4970 = vmatmul.f32.gmra.mxu0 %v4867
  %v4971 = vpop.f32.mrf.mxu0
  %4972 = vdwg.mxu0
  %4973 = vrot.lane.b32.xlu0 %v4651, 16
  %v4974 = vpop.permute.xlu0 %4973
  %4975 = vrot.lane.b32.xlu0 %v4655, 16
  %v4976 = vpop.permute.xlu0 %4975
  %4977 = vrot.lane.b32.xlu0 %v4659, 16
  %v4978 = vpop.permute.xlu0 %4977
  %4979 = vrot.lane.b32.xlu0 %v4663, 16
  %v4980 = vpop.permute.xlu0 %4979
  %4981 = vrot.lane.b32.xlu0 %v4652, 16
  %v4982 = vpop.permute.xlu0 %4981
  %4983 = vrot.lane.b32.xlu0 %v4656, 16
  %v4984 = vpop.permute.xlu0 %4983
  %4985 = vrot.lane.b32.xlu0 %v4660, 16
  %v4986 = vpop.permute.xlu0 %4985
  %4987 = vrot.lane.b32.xlu0 %v4664, 16
  %v4988 = vpop.permute.xlu0 %4987
  %4989 = vrot.lane.b32.xlu0 %v4653, 16
  %v4990 = vpop.permute.xlu0 %4989
  %4991 = vrot.lane.b32.xlu0 %v4657, 16
  %v4992 = vpop.permute.xlu0 %4991
  %4993 = vrot.lane.b32.xlu0 %v4661, 16
  %v4994 = vpop.permute.xlu0 %4993
  %4995 = vrot.lane.b32.xlu0 %v4665, 16
  %v4996 = vpop.permute.xlu0 %4995
  %4997 = vrot.lane.b32.xlu0 %v4654, 16
  %v4998 = vpop.permute.xlu0 %4997
  %4999 = vrot.lane.b32.xlu0 %v4658, 16
  %v5000 = vpop.permute.xlu0 %4999
  %5001 = vrot.lane.b32.xlu0 %v4662, 16
  %v5002 = vpop.permute.xlu0 %5001
  %5003 = vrot.lane.b32.xlu0 %v4666, 16
  %v5004 = vpop.permute.xlu0 %5003
  %v5005 = vsel %vm277, %v4990, %v4998
  %v5006 = vsel %vm277, %v4992, %v5000
  %v5007 = vsel %vm277, %v4994, %v5002
  %v5008 = vsel %vm277, %v4996, %v5004
  %v5009 = vsel %vm277, %v4982, %v4990
  %v5010 = vsel %vm277, %v4984, %v4992
  %v5011 = vsel %vm277, %v4986, %v4994
  %v5012 = vsel %vm277, %v4988, %v4996
  %v5013 = vsel %vm277, %v4974, %v4982
  %v5014 = vsel %vm277, %v4976, %v4984
  %v5015 = vsel %vm277, %v4978, %v4986
  %v5016 = vsel %vm277, %v4980, %v4988
  %v5017 = vsel %vm277, %v4998, %v4974
  %v5018 = vsel %vm277, %v5000, %v4976
  %v5019 = vsel %vm277, %v5002, %v4978
  %v5020 = vsel %vm277, %v5004, %v4980
  %v5021 = vmul.f32 %v5017, %v52
  %v5022 = vmul.f32 %v5013, %v53
  %v5023 = vmul.f32 %v5009, %v54
  %v5024 = vmul.f32 %v5005, %v55
  %v5025 = vmul.f32 %v5018, %v52
  %v5026 = vmul.f32 %v5014, %v53
  %v5027 = vmul.f32 %v5010, %v54
  %v5028 = vmul.f32 %v5006, %v55
  %v5029 = vmul.f32 %v5019, %v52
  %v5030 = vmul.f32 %v5015, %v53
  %v5031 = vmul.f32 %v5011, %v54
  %v5032 = vmul.f32 %v5007, %v55
  %v5033 = vmul.f32 %v5020, %v52
  %v5034 = vmul.f32 %v5016, %v53
  %v5035 = vmul.f32 %v5012, %v54
  %v5036 = vmul.f32 %v5008, %v55
  %s5037 = scalar_lea.vmem %s5, 608
  %v5038 = vld [vmem:[%s5037] sm:$0xff]
  %v5039 = vld [vmem:[%s5037 + $0x8] sm:$0xff]
  %v5040 = vld [vmem:[%s5037 + $0x10] sm:$0xff]
  %v5041 = vld [vmem:[%s5037 + $0x18] sm:$0xff]
  %v5043 = vsel %vm921, %v5038, 0
  %v5046 = vsel %vm921, %v5039, 0
  %v5049 = vsel %vm921, %v5040, 0
  %v5052 = vsel %vm921, %v5041, 0
  %5054 = vmatpush.msra.mxu0 0.0
  %5055 = vmatpush.msra.mxu0 0.0
  %5056 = vmatpush.msra.mxu0 0.0
  %5057 = vmatpush.msra.mxu0 0.0
  %5058 = vmatpush.msra.mxu0 0.0
  %5059 = vmatpush.msra.mxu0 0.0
  %5060 = vmatpush.msra.mxu0 0.0
  %5061 = vmatpush.msra.mxu0 0.0
  %5062 = vmatpush.msra.mxu0 0.0
  %5063 = vmatpush.msra.mxu0 0.0
  %5064 = vmatpush.msra.mxu0 0.0
  %5065 = vmatpush.msra.mxu0 0.0
  %5066 = vmatpush.msra.mxu0 %v5033
  %5067 = vmatpush.msra.mxu0 %v5029
  %5068 = vmatpush.msra.mxu0 %v5025
  %5069 = vmatpush.msra.mxu0 %v5021
  %5070 = vmatmul.f32.gmra.mxu0 %v5043
  %v5071 = vpop.f32.mrf.mxu0
  %v5072 = vadd.f32 0.0, %v5071
  %5073 = vmatmul.f32.gmra.mxu0 %v5046
  %v5074 = vpop.f32.mrf.mxu0
  %5075 = vmatmul.f32.gmra.mxu0 %v5049
  %v5076 = vpop.f32.mrf.mxu0
  %5077 = vmatmul.f32.gmra.mxu0 %v5052
  %v5078 = vpop.f32.mrf.mxu0
  %5079 = vdwg.mxu0
  %5080 = vmatpush.msra.mxu0 0.0
  %5081 = vmatpush.msra.mxu0 0.0
  %5082 = vmatpush.msra.mxu0 0.0
  %5083 = vmatpush.msra.mxu0 0.0
  %5084 = vmatpush.msra.mxu0 0.0
  %5085 = vmatpush.msra.mxu0 0.0
  %5086 = vmatpush.msra.mxu0 0.0
  %5087 = vmatpush.msra.mxu0 0.0
  %5088 = vmatpush.msra.mxu0 0.0
  %5089 = vmatpush.msra.mxu0 0.0
  %5090 = vmatpush.msra.mxu0 0.0
  %5091 = vmatpush.msra.mxu0 0.0
  %5092 = vmatpush.msra.mxu0 %v5034
  %5093 = vmatpush.msra.mxu0 %v5030
  %5094 = vmatpush.msra.mxu0 %v5026
  %5095 = vmatpush.msra.mxu0 %v5022
  %5096 = vmatmul.f32.gmra.mxu0 %v5043
  %v5097 = vpop.f32.mrf.mxu0
  %v5098 = vadd.f32 0.0, %v5097
  %5099 = vmatmul.f32.gmra.mxu0 %v5046
  %v5100 = vpop.f32.mrf.mxu0
  %5101 = vmatmul.f32.gmra.mxu0 %v5049
  %v5102 = vpop.f32.mrf.mxu0
  %5103 = vmatmul.f32.gmra.mxu0 %v5052
  %v5104 = vpop.f32.mrf.mxu0
  %5105 = vdwg.mxu0
  %5106 = vmatpush.msra.mxu0 0.0
  %5107 = vmatpush.msra.mxu0 0.0
  %5108 = vmatpush.msra.mxu0 0.0
  %5109 = vmatpush.msra.mxu0 0.0
  %5110 = vmatpush.msra.mxu0 0.0
  %5111 = vmatpush.msra.mxu0 0.0
  %5112 = vmatpush.msra.mxu0 0.0
  %5113 = vmatpush.msra.mxu0 0.0
  %5114 = vmatpush.msra.mxu0 0.0
  %5115 = vmatpush.msra.mxu0 0.0
  %5116 = vmatpush.msra.mxu0 0.0
  %5117 = vmatpush.msra.mxu0 0.0
  %5118 = vmatpush.msra.mxu0 %v5035
  %5119 = vmatpush.msra.mxu0 %v5031
  %5120 = vmatpush.msra.mxu0 %v5027
  %5121 = vmatpush.msra.mxu0 %v5023
  %5122 = vmatmul.f32.gmra.mxu0 %v5043
  %v5123 = vpop.f32.mrf.mxu0
  %v5124 = vadd.f32 0.0, %v5123
  %5125 = vmatmul.f32.gmra.mxu0 %v5046
  %v5126 = vpop.f32.mrf.mxu0
  %5127 = vmatmul.f32.gmra.mxu0 %v5049
  %v5128 = vpop.f32.mrf.mxu0
  %5129 = vmatmul.f32.gmra.mxu0 %v5052
  %v5130 = vpop.f32.mrf.mxu0
  %5131 = vdwg.mxu0
  %5132 = vmatpush.msra.mxu0 0.0
  %5133 = vmatpush.msra.mxu0 0.0
  %5134 = vmatpush.msra.mxu0 0.0
  %5135 = vmatpush.msra.mxu0 0.0
  %5136 = vmatpush.msra.mxu0 0.0
  %5137 = vmatpush.msra.mxu0 0.0
  %5138 = vmatpush.msra.mxu0 0.0
  %5139 = vmatpush.msra.mxu0 0.0
  %5140 = vmatpush.msra.mxu0 0.0
  %5141 = vmatpush.msra.mxu0 0.0
  %5142 = vmatpush.msra.mxu0 0.0
  %5143 = vmatpush.msra.mxu0 0.0
  %5144 = vmatpush.msra.mxu0 %v5036
  %5145 = vmatpush.msra.mxu0 %v5032
  %5146 = vmatpush.msra.mxu0 %v5028
  %5147 = vmatpush.msra.mxu0 %v5024
  %5148 = vmatmul.f32.gmra.mxu0 %v5043
  %v5149 = vpop.f32.mrf.mxu0
  %v5150 = vadd.f32 0.0, %v5149
  %5151 = vmatmul.f32.gmra.mxu0 %v5046
  %v5152 = vpop.f32.mrf.mxu0
  %5153 = vmatmul.f32.gmra.mxu0 %v5049
  %v5154 = vpop.f32.mrf.mxu0
  %5155 = vmatmul.f32.gmra.mxu0 %v5052
  %v5156 = vpop.f32.mrf.mxu0
  %5157 = vdwg.mxu0
  %v5158 = vadd.f32 %v4887, %v5072
  %v5159 = vadd.f32 %v4913, %v5098
  %v5160 = vadd.f32 %v4939, %v5124
  %v5161 = vadd.f32 %v4965, %v5150
  %5162 = vrot.lane.b32.xlu0 %v4651, 15
  %v5163 = vpop.permute.xlu0 %5162
  %5164 = vrot.lane.b32.xlu0 %v4655, 15
  %v5165 = vpop.permute.xlu0 %5164
  %5166 = vrot.lane.b32.xlu0 %v4659, 15
  %v5167 = vpop.permute.xlu0 %5166
  %5168 = vrot.lane.b32.xlu0 %v4663, 15
  %v5169 = vpop.permute.xlu0 %5168
  %5170 = vrot.lane.b32.xlu0 %v4652, 15
  %v5171 = vpop.permute.xlu0 %5170
  %5172 = vrot.lane.b32.xlu0 %v4656, 15
  %v5173 = vpop.permute.xlu0 %5172
  %5174 = vrot.lane.b32.xlu0 %v4660, 15
  %v5175 = vpop.permute.xlu0 %5174
  %5176 = vrot.lane.b32.xlu0 %v4664, 15
  %v5177 = vpop.permute.xlu0 %5176
  %5178 = vrot.lane.b32.xlu0 %v4653, 15
  %v5179 = vpop.permute.xlu0 %5178
  %5180 = vrot.lane.b32.xlu0 %v4657, 15
  %v5181 = vpop.permute.xlu0 %5180
  %5182 = vrot.lane.b32.xlu0 %v4661, 15
  %v5183 = vpop.permute.xlu0 %5182
  %5184 = vrot.lane.b32.xlu0 %v4665, 15
  %v5185 = vpop.permute.xlu0 %5184
  %5186 = vrot.lane.b32.xlu0 %v4654, 15
  %v5187 = vpop.permute.xlu0 %5186
  %5188 = vrot.lane.b32.xlu0 %v4658, 15
  %v5189 = vpop.permute.xlu0 %5188
  %5190 = vrot.lane.b32.xlu0 %v4662, 15
  %v5191 = vpop.permute.xlu0 %5190
  %5192 = vrot.lane.b32.xlu0 %v4666, 15
  %v5193 = vpop.permute.xlu0 %5192
  %v5194 = vsel %vm346, %v5179, %v5187
  %v5195 = vsel %vm346, %v5181, %v5189
  %v5196 = vsel %vm346, %v5183, %v5191
  %v5197 = vsel %vm346, %v5185, %v5193
  %v5198 = vsel %vm346, %v5171, %v5179
  %v5199 = vsel %vm346, %v5173, %v5181
  %v5200 = vsel %vm346, %v5175, %v5183
  %v5201 = vsel %vm346, %v5177, %v5185
  %v5202 = vsel %vm346, %v5163, %v5171
  %v5203 = vsel %vm346, %v5165, %v5173
  %v5204 = vsel %vm346, %v5167, %v5175
  %v5205 = vsel %vm346, %v5169, %v5177
  %v5206 = vsel %vm346, %v5187, %v5163
  %v5207 = vsel %vm346, %v5189, %v5165
  %v5208 = vsel %vm346, %v5191, %v5167
  %v5209 = vsel %vm346, %v5193, %v5169
  %v5210 = vmul.f32 %v5206, %v61
  %v5211 = vmul.f32 %v5202, %v62
  %v5212 = vmul.f32 %v5198, %v63
  %v5213 = vmul.f32 %v5194, %v64
  %v5214 = vmul.f32 %v5207, %v61
  %v5215 = vmul.f32 %v5203, %v62
  %v5216 = vmul.f32 %v5199, %v63
  %v5217 = vmul.f32 %v5195, %v64
  %v5218 = vmul.f32 %v5208, %v61
  %v5219 = vmul.f32 %v5204, %v62
  %v5220 = vmul.f32 %v5200, %v63
  %v5221 = vmul.f32 %v5196, %v64
  %v5222 = vmul.f32 %v5209, %v61
  %v5223 = vmul.f32 %v5205, %v62
  %v5224 = vmul.f32 %v5201, %v63
  %v5225 = vmul.f32 %v5197, %v64
  %s5226 = scalar_lea.vmem %s5, 640
  %v5227 = vld [vmem:[%s5226] sm:$0xff]
  %v5228 = vld [vmem:[%s5226 + $0x8] sm:$0xff]
  %v5229 = vld [vmem:[%s5226 + $0x10] sm:$0xff]
  %v5230 = vld [vmem:[%s5226 + $0x18] sm:$0xff]
  %v5232 = vsel %vm921, %v5227, 0
  %v5235 = vsel %vm921, %v5228, 0
  %v5238 = vsel %vm921, %v5229, 0
  %v5241 = vsel %vm921, %v5230, 0
  %5243 = vmatpush.msra.mxu0 0.0
  %5244 = vmatpush.msra.mxu0 0.0
  %5245 = vmatpush.msra.mxu0 0.0
  %5246 = vmatpush.msra.mxu0 0.0
  %5247 = vmatpush.msra.mxu0 0.0
  %5248 = vmatpush.msra.mxu0 0.0
  %5249 = vmatpush.msra.mxu0 0.0
  %5250 = vmatpush.msra.mxu0 0.0
  %5251 = vmatpush.msra.mxu0 0.0
  %5252 = vmatpush.msra.mxu0 0.0
  %5253 = vmatpush.msra.mxu0 0.0
  %5254 = vmatpush.msra.mxu0 0.0
  %5255 = vmatpush.msra.mxu0 %v5222
  %5256 = vmatpush.msra.mxu0 %v5218
  %5257 = vmatpush.msra.mxu0 %v5214
  %5258 = vmatpush.msra.mxu0 %v5210
  %5259 = vmatmul.f32.gmra.mxu0 %v5232
  %v5260 = vpop.f32.mrf.mxu0
  %v5261 = vadd.f32 0.0, %v5260
  %5262 = vmatmul.f32.gmra.mxu0 %v5235
  %v5263 = vpop.f32.mrf.mxu0
  %5264 = vmatmul.f32.gmra.mxu0 %v5238
  %v5265 = vpop.f32.mrf.mxu0
  %5266 = vmatmul.f32.gmra.mxu0 %v5241
  %v5267 = vpop.f32.mrf.mxu0
  %5268 = vdwg.mxu0
  %5269 = vmatpush.msra.mxu0 0.0
  %5270 = vmatpush.msra.mxu0 0.0
  %5271 = vmatpush.msra.mxu0 0.0
  %5272 = vmatpush.msra.mxu0 0.0
  %5273 = vmatpush.msra.mxu0 0.0
  %5274 = vmatpush.msra.mxu0 0.0
  %5275 = vmatpush.msra.mxu0 0.0
  %5276 = vmatpush.msra.mxu0 0.0
  %5277 = vmatpush.msra.mxu0 0.0
  %5278 = vmatpush.msra.mxu0 0.0
  %5279 = vmatpush.msra.mxu0 0.0
  %5280 = vmatpush.msra.mxu0 0.0
  %5281 = vmatpush.msra.mxu0 %v5223
  %5282 = vmatpush.msra.mxu0 %v5219
  %5283 = vmatpush.msra.mxu0 %v5215
  %5284 = vmatpush.msra.mxu0 %v5211
  %5285 = vmatmul.f32.gmra.mxu0 %v5232
  %v5286 = vpop.f32.mrf.mxu0
  %v5287 = vadd.f32 0.0, %v5286
  %5288 = vmatmul.f32.gmra.mxu0 %v5235
  %v5289 = vpop.f32.mrf.mxu0
  %5290 = vmatmul.f32.gmra.mxu0 %v5238
  %v5291 = vpop.f32.mrf.mxu0
  %5292 = vmatmul.f32.gmra.mxu0 %v5241
  %v5293 = vpop.f32.mrf.mxu0
  %5294 = vdwg.mxu0
  %5295 = vmatpush.msra.mxu0 0.0
  %5296 = vmatpush.msra.mxu0 0.0
  %5297 = vmatpush.msra.mxu0 0.0
  %5298 = vmatpush.msra.mxu0 0.0
  %5299 = vmatpush.msra.mxu0 0.0
  %5300 = vmatpush.msra.mxu0 0.0
  %5301 = vmatpush.msra.mxu0 0.0
  %5302 = vmatpush.msra.mxu0 0.0
  %5303 = vmatpush.msra.mxu0 0.0
  %5304 = vmatpush.msra.mxu0 0.0
  %5305 = vmatpush.msra.mxu0 0.0
  %5306 = vmatpush.msra.mxu0 0.0
  %5307 = vmatpush.msra.mxu0 %v5224
  %5308 = vmatpush.msra.mxu0 %v5220
  %5309 = vmatpush.msra.mxu0 %v5216
  %5310 = vmatpush.msra.mxu0 %v5212
  %5311 = vmatmul.f32.gmra.mxu0 %v5232
  %v5312 = vpop.f32.mrf.mxu0
  %v5313 = vadd.f32 0.0, %v5312
  %5314 = vmatmul.f32.gmra.mxu0 %v5235
  %v5315 = vpop.f32.mrf.mxu0
  %5316 = vmatmul.f32.gmra.mxu0 %v5238
  %v5317 = vpop.f32.mrf.mxu0
  %5318 = vmatmul.f32.gmra.mxu0 %v5241
  %v5319 = vpop.f32.mrf.mxu0
  %5320 = vdwg.mxu0
  %5321 = vmatpush.msra.mxu0 0.0
  %5322 = vmatpush.msra.mxu0 0.0
  %5323 = vmatpush.msra.mxu0 0.0
  %5324 = vmatpush.msra.mxu0 0.0
  %5325 = vmatpush.msra.mxu0 0.0
  %5326 = vmatpush.msra.mxu0 0.0
  %5327 = vmatpush.msra.mxu0 0.0
  %5328 = vmatpush.msra.mxu0 0.0
  %5329 = vmatpush.msra.mxu0 0.0
  %5330 = vmatpush.msra.mxu0 0.0
  %5331 = vmatpush.msra.mxu0 0.0
  %5332 = vmatpush.msra.mxu0 0.0
  %5333 = vmatpush.msra.mxu0 %v5225
  %5334 = vmatpush.msra.mxu0 %v5221
  %5335 = vmatpush.msra.mxu0 %v5217
  %5336 = vmatpush.msra.mxu0 %v5213
  %5337 = vmatmul.f32.gmra.mxu0 %v5232
  %v5338 = vpop.f32.mrf.mxu0
  %v5339 = vadd.f32 0.0, %v5338
  %5340 = vmatmul.f32.gmra.mxu0 %v5235
  %v5341 = vpop.f32.mrf.mxu0
  %5342 = vmatmul.f32.gmra.mxu0 %v5238
  %v5343 = vpop.f32.mrf.mxu0
  %5344 = vmatmul.f32.gmra.mxu0 %v5241
  %v5345 = vpop.f32.mrf.mxu0
  %5346 = vdwg.mxu0
  %v5347 = vadd.f32 %v5158, %v5261
  %v5348 = vadd.f32 %v5159, %v5287
  %v5349 = vadd.f32 %v5160, %v5313
  %v5350 = vadd.f32 %v5161, %v5339
  %5351 = vrot.lane.b32.xlu0 %v4651, 1
  %v5352 = vpop.permute.xlu0 %5351
  %5353 = vrot.lane.b32.xlu0 %v4655, 1
  %v5354 = vpop.permute.xlu0 %5353
  %5355 = vrot.lane.b32.xlu0 %v4659, 1
  %v5356 = vpop.permute.xlu0 %5355
  %5357 = vrot.lane.b32.xlu0 %v4663, 1
  %v5358 = vpop.permute.xlu0 %5357
  %5359 = vrot.lane.b32.xlu0 %v4652, 1
  %v5360 = vpop.permute.xlu0 %5359
  %5361 = vrot.lane.b32.xlu0 %v4656, 1
  %v5362 = vpop.permute.xlu0 %5361
  %5363 = vrot.lane.b32.xlu0 %v4660, 1
  %v5364 = vpop.permute.xlu0 %5363
  %5365 = vrot.lane.b32.xlu0 %v4664, 1
  %v5366 = vpop.permute.xlu0 %5365
  %5367 = vrot.lane.b32.xlu0 %v4653, 1
  %v5368 = vpop.permute.xlu0 %5367
  %5369 = vrot.lane.b32.xlu0 %v4657, 1
  %v5370 = vpop.permute.xlu0 %5369
  %5371 = vrot.lane.b32.xlu0 %v4661, 1
  %v5372 = vpop.permute.xlu0 %5371
  %5373 = vrot.lane.b32.xlu0 %v4665, 1
  %v5374 = vpop.permute.xlu0 %5373
  %5375 = vrot.lane.b32.xlu0 %v4654, 1
  %v5376 = vpop.permute.xlu0 %5375
  %5377 = vrot.lane.b32.xlu0 %v4658, 1
  %v5378 = vpop.permute.xlu0 %5377
  %5379 = vrot.lane.b32.xlu0 %v4662, 1
  %v5380 = vpop.permute.xlu0 %5379
  %5381 = vrot.lane.b32.xlu0 %v4666, 1
  %v5382 = vpop.permute.xlu0 %5381
  %v5383 = vsel %vm415, %v5368, %v5376
  %v5384 = vsel %vm415, %v5370, %v5378
  %v5385 = vsel %vm415, %v5372, %v5380
  %v5386 = vsel %vm415, %v5374, %v5382
  %v5387 = vsel %vm415, %v5360, %v5368
  %v5388 = vsel %vm415, %v5362, %v5370
  %v5389 = vsel %vm415, %v5364, %v5372
  %v5390 = vsel %vm415, %v5366, %v5374
  %v5391 = vsel %vm415, %v5352, %v5360
  %v5392 = vsel %vm415, %v5354, %v5362
  %v5393 = vsel %vm415, %v5356, %v5364
  %v5394 = vsel %vm415, %v5358, %v5366
  %v5395 = vsel %vm415, %v5376, %v5352
  %v5396 = vsel %vm415, %v5378, %v5354
  %v5397 = vsel %vm415, %v5380, %v5356
  %v5398 = vsel %vm415, %v5382, %v5358
  %v5399 = vmul.f32 %v5395, %v70
  %v5400 = vmul.f32 %v5391, %v71
  %v5401 = vmul.f32 %v5387, %v72
  %v5402 = vmul.f32 %v5383, %v73
  %v5403 = vmul.f32 %v5396, %v70
  %v5404 = vmul.f32 %v5392, %v71
  %v5405 = vmul.f32 %v5388, %v72
  %v5406 = vmul.f32 %v5384, %v73
  %v5407 = vmul.f32 %v5397, %v70
  %v5408 = vmul.f32 %v5393, %v71
  %v5409 = vmul.f32 %v5389, %v72
  %v5410 = vmul.f32 %v5385, %v73
  %v5411 = vmul.f32 %v5398, %v70
  %v5412 = vmul.f32 %v5394, %v71
  %v5413 = vmul.f32 %v5390, %v72
  %v5414 = vmul.f32 %v5386, %v73
  %s5415 = scalar_lea.vmem %s5, 672
  %v5416 = vld [vmem:[%s5415] sm:$0xff]
  %v5417 = vld [vmem:[%s5415 + $0x8] sm:$0xff]
  %v5418 = vld [vmem:[%s5415 + $0x10] sm:$0xff]
  %v5419 = vld [vmem:[%s5415 + $0x18] sm:$0xff]
  %v5421 = vsel %vm921, %v5416, 0
  %v5424 = vsel %vm921, %v5417, 0
  %v5427 = vsel %vm921, %v5418, 0
  %v5430 = vsel %vm921, %v5419, 0
  %5432 = vmatpush.msra.mxu0 0.0
  %5433 = vmatpush.msra.mxu0 0.0
  %5434 = vmatpush.msra.mxu0 0.0
  %5435 = vmatpush.msra.mxu0 0.0
  %5436 = vmatpush.msra.mxu0 0.0
  %5437 = vmatpush.msra.mxu0 0.0
  %5438 = vmatpush.msra.mxu0 0.0
  %5439 = vmatpush.msra.mxu0 0.0
  %5440 = vmatpush.msra.mxu0 0.0
  %5441 = vmatpush.msra.mxu0 0.0
  %5442 = vmatpush.msra.mxu0 0.0
  %5443 = vmatpush.msra.mxu0 0.0
  %5444 = vmatpush.msra.mxu0 %v5411
  %5445 = vmatpush.msra.mxu0 %v5407
  %5446 = vmatpush.msra.mxu0 %v5403
  %5447 = vmatpush.msra.mxu0 %v5399
  %5448 = vmatmul.f32.gmra.mxu0 %v5421
  %v5449 = vpop.f32.mrf.mxu0
  %v5450 = vadd.f32 0.0, %v5449
  %5451 = vmatmul.f32.gmra.mxu0 %v5424
  %v5452 = vpop.f32.mrf.mxu0
  %5453 = vmatmul.f32.gmra.mxu0 %v5427
  %v5454 = vpop.f32.mrf.mxu0
  %5455 = vmatmul.f32.gmra.mxu0 %v5430
  %v5456 = vpop.f32.mrf.mxu0
  %5457 = vdwg.mxu0
  %5458 = vmatpush.msra.mxu0 0.0
  %5459 = vmatpush.msra.mxu0 0.0
  %5460 = vmatpush.msra.mxu0 0.0
  %5461 = vmatpush.msra.mxu0 0.0
  %5462 = vmatpush.msra.mxu0 0.0
  %5463 = vmatpush.msra.mxu0 0.0
  %5464 = vmatpush.msra.mxu0 0.0
  %5465 = vmatpush.msra.mxu0 0.0
  %5466 = vmatpush.msra.mxu0 0.0
  %5467 = vmatpush.msra.mxu0 0.0
  %5468 = vmatpush.msra.mxu0 0.0
  %5469 = vmatpush.msra.mxu0 0.0
  %5470 = vmatpush.msra.mxu0 %v5412
  %5471 = vmatpush.msra.mxu0 %v5408
  %5472 = vmatpush.msra.mxu0 %v5404
  %5473 = vmatpush.msra.mxu0 %v5400
  %5474 = vmatmul.f32.gmra.mxu0 %v5421
  %v5475 = vpop.f32.mrf.mxu0
  %v5476 = vadd.f32 0.0, %v5475
  %5477 = vmatmul.f32.gmra.mxu0 %v5424
  %v5478 = vpop.f32.mrf.mxu0
  %5479 = vmatmul.f32.gmra.mxu0 %v5427
  %v5480 = vpop.f32.mrf.mxu0
  %5481 = vmatmul.f32.gmra.mxu0 %v5430
  %v5482 = vpop.f32.mrf.mxu0
  %5483 = vdwg.mxu0
  %5484 = vmatpush.msra.mxu0 0.0
  %5485 = vmatpush.msra.mxu0 0.0
  %5486 = vmatpush.msra.mxu0 0.0
  %5487 = vmatpush.msra.mxu0 0.0
  %5488 = vmatpush.msra.mxu0 0.0
  %5489 = vmatpush.msra.mxu0 0.0
  %5490 = vmatpush.msra.mxu0 0.0
  %5491 = vmatpush.msra.mxu0 0.0
  %5492 = vmatpush.msra.mxu0 0.0
  %5493 = vmatpush.msra.mxu0 0.0
  %5494 = vmatpush.msra.mxu0 0.0
  %5495 = vmatpush.msra.mxu0 0.0
  %5496 = vmatpush.msra.mxu0 %v5413
  %5497 = vmatpush.msra.mxu0 %v5409
  %5498 = vmatpush.msra.mxu0 %v5405
  %5499 = vmatpush.msra.mxu0 %v5401
  %5500 = vmatmul.f32.gmra.mxu0 %v5421
  %v5501 = vpop.f32.mrf.mxu0
  %v5502 = vadd.f32 0.0, %v5501
  %5503 = vmatmul.f32.gmra.mxu0 %v5424
  %v5504 = vpop.f32.mrf.mxu0
  %5505 = vmatmul.f32.gmra.mxu0 %v5427
  %v5506 = vpop.f32.mrf.mxu0
  %5507 = vmatmul.f32.gmra.mxu0 %v5430
  %v5508 = vpop.f32.mrf.mxu0
  %5509 = vdwg.mxu0
  %5510 = vmatpush.msra.mxu0 0.0
  %5511 = vmatpush.msra.mxu0 0.0
  %5512 = vmatpush.msra.mxu0 0.0
  %5513 = vmatpush.msra.mxu0 0.0
  %5514 = vmatpush.msra.mxu0 0.0
  %5515 = vmatpush.msra.mxu0 0.0
  %5516 = vmatpush.msra.mxu0 0.0
  %5517 = vmatpush.msra.mxu0 0.0
  %5518 = vmatpush.msra.mxu0 0.0
  %5519 = vmatpush.msra.mxu0 0.0
  %5520 = vmatpush.msra.mxu0 0.0
  %5521 = vmatpush.msra.mxu0 0.0
  %5522 = vmatpush.msra.mxu0 %v5414
  %5523 = vmatpush.msra.mxu0 %v5410
  %5524 = vmatpush.msra.mxu0 %v5406
  %5525 = vmatpush.msra.mxu0 %v5402
  %5526 = vmatmul.f32.gmra.mxu0 %v5421
  %v5527 = vpop.f32.mrf.mxu0
  %v5528 = vadd.f32 0.0, %v5527
  %5529 = vmatmul.f32.gmra.mxu0 %v5424
  %v5530 = vpop.f32.mrf.mxu0
  %5531 = vmatmul.f32.gmra.mxu0 %v5427
  %v5532 = vpop.f32.mrf.mxu0
  %5533 = vmatmul.f32.gmra.mxu0 %v5430
  %v5534 = vpop.f32.mrf.mxu0
  %5535 = vdwg.mxu0
  %v5536 = vadd.f32 %v5347, %v5450
  %v5537 = vadd.f32 %v5348, %v5476
  %v5538 = vadd.f32 %v5349, %v5502
  %v5539 = vadd.f32 %v5350, %v5528
  %5540 = vrot.lane.b32.xlu0 %v4651, 127
  %v5541 = vpop.permute.xlu0 %5540
  %5542 = vrot.lane.b32.xlu0 %v4655, 127
  %v5543 = vpop.permute.xlu0 %5542
  %5544 = vrot.lane.b32.xlu0 %v4659, 127
  %v5545 = vpop.permute.xlu0 %5544
  %5546 = vrot.lane.b32.xlu0 %v4663, 127
  %v5547 = vpop.permute.xlu0 %5546
  %5548 = vrot.lane.b32.xlu0 %v4652, 127
  %v5549 = vpop.permute.xlu0 %5548
  %5550 = vrot.lane.b32.xlu0 %v4656, 127
  %v5551 = vpop.permute.xlu0 %5550
  %5552 = vrot.lane.b32.xlu0 %v4660, 127
  %v5553 = vpop.permute.xlu0 %5552
  %5554 = vrot.lane.b32.xlu0 %v4664, 127
  %v5555 = vpop.permute.xlu0 %5554
  %5556 = vrot.lane.b32.xlu0 %v4653, 127
  %v5557 = vpop.permute.xlu0 %5556
  %5558 = vrot.lane.b32.xlu0 %v4657, 127
  %v5559 = vpop.permute.xlu0 %5558
  %5560 = vrot.lane.b32.xlu0 %v4661, 127
  %v5561 = vpop.permute.xlu0 %5560
  %5562 = vrot.lane.b32.xlu0 %v4665, 127
  %v5563 = vpop.permute.xlu0 %5562
  %5564 = vrot.lane.b32.xlu0 %v4654, 127
  %v5565 = vpop.permute.xlu0 %5564
  %5566 = vrot.lane.b32.xlu0 %v4658, 127
  %v5567 = vpop.permute.xlu0 %5566
  %5568 = vrot.lane.b32.xlu0 %v4662, 127
  %v5569 = vpop.permute.xlu0 %5568
  %5570 = vrot.lane.b32.xlu0 %v4666, 127
  %v5571 = vpop.permute.xlu0 %5570
  %v5572 = vsel %vm532, %v5557, %v5565
  %v5573 = vsel %vm532, %v5559, %v5567
  %v5574 = vsel %vm532, %v5561, %v5569
  %v5575 = vsel %vm532, %v5563, %v5571
  %v5576 = vsel %vm532, %v5549, %v5557
  %v5577 = vsel %vm532, %v5551, %v5559
  %v5578 = vsel %vm532, %v5553, %v5561
  %v5579 = vsel %vm532, %v5555, %v5563
  %v5580 = vsel %vm532, %v5541, %v5549
  %v5581 = vsel %vm532, %v5543, %v5551
  %v5582 = vsel %vm532, %v5545, %v5553
  %v5583 = vsel %vm532, %v5547, %v5555
  %v5584 = vsel %vm532, %v5565, %v5541
  %v5585 = vsel %vm532, %v5567, %v5543
  %v5586 = vsel %vm532, %v5569, %v5545
  %v5587 = vsel %vm532, %v5571, %v5547
  %v5588 = vmul.f32 %v5580, %v79
  %v5589 = vmul.f32 %v5576, %v80
  %v5590 = vmul.f32 %v5572, %v81
  %v5591 = vmul.f32 %v5584, %v82
  %v5592 = vmul.f32 %v5581, %v79
  %v5593 = vmul.f32 %v5577, %v80
  %v5594 = vmul.f32 %v5573, %v81
  %v5595 = vmul.f32 %v5585, %v82
  %v5596 = vmul.f32 %v5582, %v79
  %v5597 = vmul.f32 %v5578, %v80
  %v5598 = vmul.f32 %v5574, %v81
  %v5599 = vmul.f32 %v5586, %v82
  %v5600 = vmul.f32 %v5583, %v79
  %v5601 = vmul.f32 %v5579, %v80
  %v5602 = vmul.f32 %v5575, %v81
  %v5603 = vmul.f32 %v5587, %v82
  %s5604 = scalar_lea.vmem %s5, 736
  %v5605 = vld [vmem:[%s5604] sm:$0xff]
  %v5606 = vld [vmem:[%s5604 + $0x8] sm:$0xff]
  %v5607 = vld [vmem:[%s5604 + $0x10] sm:$0xff]
  %v5608 = vld [vmem:[%s5604 + $0x18] sm:$0xff]
  %v5610 = vsel %vm921, %v5605, 0
  %v5613 = vsel %vm921, %v5606, 0
  %v5616 = vsel %vm921, %v5607, 0
  %v5619 = vsel %vm921, %v5608, 0
  %5621 = vmatpush.msra.mxu0 0.0
  %5622 = vmatpush.msra.mxu0 0.0
  %5623 = vmatpush.msra.mxu0 0.0
  %5624 = vmatpush.msra.mxu0 0.0
  %5625 = vmatpush.msra.mxu0 0.0
  %5626 = vmatpush.msra.mxu0 0.0
  %5627 = vmatpush.msra.mxu0 0.0
  %5628 = vmatpush.msra.mxu0 0.0
  %5629 = vmatpush.msra.mxu0 0.0
  %5630 = vmatpush.msra.mxu0 0.0
  %5631 = vmatpush.msra.mxu0 0.0
  %5632 = vmatpush.msra.mxu0 0.0
  %5633 = vmatpush.msra.mxu0 %v5600
  %5634 = vmatpush.msra.mxu0 %v5596
  %5635 = vmatpush.msra.mxu0 %v5592
  %5636 = vmatpush.msra.mxu0 %v5588
  %5637 = vmatmul.f32.gmra.mxu0 %v5610
  %v5638 = vpop.f32.mrf.mxu0
  %v5639 = vadd.f32 0.0, %v5638
  %5640 = vmatmul.f32.gmra.mxu0 %v5613
  %v5641 = vpop.f32.mrf.mxu0
  %5642 = vmatmul.f32.gmra.mxu0 %v5616
  %v5643 = vpop.f32.mrf.mxu0
  %5644 = vmatmul.f32.gmra.mxu0 %v5619
  %v5645 = vpop.f32.mrf.mxu0
  %5646 = vdwg.mxu0
  %5647 = vmatpush.msra.mxu0 0.0
  %5648 = vmatpush.msra.mxu0 0.0
  %5649 = vmatpush.msra.mxu0 0.0
  %5650 = vmatpush.msra.mxu0 0.0
  %5651 = vmatpush.msra.mxu0 0.0
  %5652 = vmatpush.msra.mxu0 0.0
  %5653 = vmatpush.msra.mxu0 0.0
  %5654 = vmatpush.msra.mxu0 0.0
  %5655 = vmatpush.msra.mxu0 0.0
  %5656 = vmatpush.msra.mxu0 0.0
  %5657 = vmatpush.msra.mxu0 0.0
  %5658 = vmatpush.msra.mxu0 0.0
  %5659 = vmatpush.msra.mxu0 %v5601
  %5660 = vmatpush.msra.mxu0 %v5597
  %5661 = vmatpush.msra.mxu0 %v5593
  %5662 = vmatpush.msra.mxu0 %v5589
  %5663 = vmatmul.f32.gmra.mxu0 %v5610
  %v5664 = vpop.f32.mrf.mxu0
  %v5665 = vadd.f32 0.0, %v5664
  %5666 = vmatmul.f32.gmra.mxu0 %v5613
  %v5667 = vpop.f32.mrf.mxu0
  %5668 = vmatmul.f32.gmra.mxu0 %v5616
  %v5669 = vpop.f32.mrf.mxu0
  %5670 = vmatmul.f32.gmra.mxu0 %v5619
  %v5671 = vpop.f32.mrf.mxu0
  %5672 = vdwg.mxu0
  %5673 = vmatpush.msra.mxu0 0.0
  %5674 = vmatpush.msra.mxu0 0.0
  %5675 = vmatpush.msra.mxu0 0.0
  %5676 = vmatpush.msra.mxu0 0.0
  %5677 = vmatpush.msra.mxu0 0.0
  %5678 = vmatpush.msra.mxu0 0.0
  %5679 = vmatpush.msra.mxu0 0.0
  %5680 = vmatpush.msra.mxu0 0.0
  %5681 = vmatpush.msra.mxu0 0.0
  %5682 = vmatpush.msra.mxu0 0.0
  %5683 = vmatpush.msra.mxu0 0.0
  %5684 = vmatpush.msra.mxu0 0.0
  %5685 = vmatpush.msra.mxu0 %v5602
  %5686 = vmatpush.msra.mxu0 %v5598
  %5687 = vmatpush.msra.mxu0 %v5594
  %5688 = vmatpush.msra.mxu0 %v5590
  %5689 = vmatmul.f32.gmra.mxu0 %v5610
  %v5690 = vpop.f32.mrf.mxu0
  %v5691 = vadd.f32 0.0, %v5690
  %5692 = vmatmul.f32.gmra.mxu0 %v5613
  %v5693 = vpop.f32.mrf.mxu0
  %5694 = vmatmul.f32.gmra.mxu0 %v5616
  %v5695 = vpop.f32.mrf.mxu0
  %5696 = vmatmul.f32.gmra.mxu0 %v5619
  %v5697 = vpop.f32.mrf.mxu0
  %5698 = vdwg.mxu0
  %5699 = vmatpush.msra.mxu0 0.0
  %5700 = vmatpush.msra.mxu0 0.0
  %5701 = vmatpush.msra.mxu0 0.0
  %5702 = vmatpush.msra.mxu0 0.0
  %5703 = vmatpush.msra.mxu0 0.0
  %5704 = vmatpush.msra.mxu0 0.0
  %5705 = vmatpush.msra.mxu0 0.0
  %5706 = vmatpush.msra.mxu0 0.0
  %5707 = vmatpush.msra.mxu0 0.0
  %5708 = vmatpush.msra.mxu0 0.0
  %5709 = vmatpush.msra.mxu0 0.0
  %5710 = vmatpush.msra.mxu0 0.0
  %5711 = vmatpush.msra.mxu0 %v5603
  %5712 = vmatpush.msra.mxu0 %v5599
  %5713 = vmatpush.msra.mxu0 %v5595
  %5714 = vmatpush.msra.mxu0 %v5591
  %5715 = vmatmul.f32.gmra.mxu0 %v5610
  %v5716 = vpop.f32.mrf.mxu0
  %v5717 = vadd.f32 0.0, %v5716
  %5718 = vmatmul.f32.gmra.mxu0 %v5613
  %v5719 = vpop.f32.mrf.mxu0
  %5720 = vmatmul.f32.gmra.mxu0 %v5616
  %v5721 = vpop.f32.mrf.mxu0
  %5722 = vmatmul.f32.gmra.mxu0 %v5619
  %v5723 = vpop.f32.mrf.mxu0
  %5724 = vdwg.mxu0
  %v5725 = vadd.f32 %v5536, %v5639
  %v5726 = vadd.f32 %v5537, %v5665
  %v5727 = vadd.f32 %v5538, %v5691
  %v5728 = vadd.f32 %v5539, %v5717
  %5729 = vrot.lane.b32.xlu0 %v4651, 113
  %v5730 = vpop.permute.xlu0 %5729
  %5731 = vrot.lane.b32.xlu0 %v4655, 113
  %v5732 = vpop.permute.xlu0 %5731
  %5733 = vrot.lane.b32.xlu0 %v4659, 113
  %v5734 = vpop.permute.xlu0 %5733
  %5735 = vrot.lane.b32.xlu0 %v4663, 113
  %v5736 = vpop.permute.xlu0 %5735
  %5737 = vrot.lane.b32.xlu0 %v4652, 113
  %v5738 = vpop.permute.xlu0 %5737
  %5739 = vrot.lane.b32.xlu0 %v4656, 113
  %v5740 = vpop.permute.xlu0 %5739
  %5741 = vrot.lane.b32.xlu0 %v4660, 113
  %v5742 = vpop.permute.xlu0 %5741
  %5743 = vrot.lane.b32.xlu0 %v4664, 113
  %v5744 = vpop.permute.xlu0 %5743
  %5745 = vrot.lane.b32.xlu0 %v4653, 113
  %v5746 = vpop.permute.xlu0 %5745
  %5747 = vrot.lane.b32.xlu0 %v4657, 113
  %v5748 = vpop.permute.xlu0 %5747
  %5749 = vrot.lane.b32.xlu0 %v4661, 113
  %v5750 = vpop.permute.xlu0 %5749
  %5751 = vrot.lane.b32.xlu0 %v4665, 113
  %v5752 = vpop.permute.xlu0 %5751
  %5753 = vrot.lane.b32.xlu0 %v4654, 113
  %v5754 = vpop.permute.xlu0 %5753
  %5755 = vrot.lane.b32.xlu0 %v4658, 113
  %v5756 = vpop.permute.xlu0 %5755
  %5757 = vrot.lane.b32.xlu0 %v4662, 113
  %v5758 = vpop.permute.xlu0 %5757
  %5759 = vrot.lane.b32.xlu0 %v4666, 113
  %v5760 = vpop.permute.xlu0 %5759
  %v5761 = vsel %vm601, %v5746, %v5754
  %v5762 = vsel %vm601, %v5748, %v5756
  %v5763 = vsel %vm601, %v5750, %v5758
  %v5764 = vsel %vm601, %v5752, %v5760
  %v5765 = vsel %vm601, %v5738, %v5746
  %v5766 = vsel %vm601, %v5740, %v5748
  %v5767 = vsel %vm601, %v5742, %v5750
  %v5768 = vsel %vm601, %v5744, %v5752
  %v5769 = vsel %vm601, %v5730, %v5738
  %v5770 = vsel %vm601, %v5732, %v5740
  %v5771 = vsel %vm601, %v5734, %v5742
  %v5772 = vsel %vm601, %v5736, %v5744
  %v5773 = vsel %vm601, %v5754, %v5730
  %v5774 = vsel %vm601, %v5756, %v5732
  %v5775 = vsel %vm601, %v5758, %v5734
  %v5776 = vsel %vm601, %v5760, %v5736
  %v5777 = vmul.f32 %v5769, %v88
  %v5778 = vmul.f32 %v5765, %v89
  %v5779 = vmul.f32 %v5761, %v90
  %v5780 = vmul.f32 %v5773, %v91
  %v5781 = vmul.f32 %v5770, %v88
  %v5782 = vmul.f32 %v5766, %v89
  %v5783 = vmul.f32 %v5762, %v90
  %v5784 = vmul.f32 %v5774, %v91
  %v5785 = vmul.f32 %v5771, %v88
  %v5786 = vmul.f32 %v5767, %v89
  %v5787 = vmul.f32 %v5763, %v90
  %v5788 = vmul.f32 %v5775, %v91
  %v5789 = vmul.f32 %v5772, %v88
  %v5790 = vmul.f32 %v5768, %v89
  %v5791 = vmul.f32 %v5764, %v90
  %v5792 = vmul.f32 %v5776, %v91
  %s5793 = scalar_lea.vmem %s5, 768
  %v5794 = vld [vmem:[%s5793] sm:$0xff]
  %v5795 = vld [vmem:[%s5793 + $0x8] sm:$0xff]
  %v5796 = vld [vmem:[%s5793 + $0x10] sm:$0xff]
  %v5797 = vld [vmem:[%s5793 + $0x18] sm:$0xff]
  %v5799 = vsel %vm921, %v5794, 0
  %v5802 = vsel %vm921, %v5795, 0
  %v5805 = vsel %vm921, %v5796, 0
  %v5808 = vsel %vm921, %v5797, 0
  %5810 = vmatpush.msra.mxu0 0.0
  %5811 = vmatpush.msra.mxu0 0.0
  %5812 = vmatpush.msra.mxu0 0.0
  %5813 = vmatpush.msra.mxu0 0.0
  %5814 = vmatpush.msra.mxu0 0.0
  %5815 = vmatpush.msra.mxu0 0.0
  %5816 = vmatpush.msra.mxu0 0.0
  %5817 = vmatpush.msra.mxu0 0.0
  %5818 = vmatpush.msra.mxu0 0.0
  %5819 = vmatpush.msra.mxu0 0.0
  %5820 = vmatpush.msra.mxu0 0.0
  %5821 = vmatpush.msra.mxu0 0.0
  %5822 = vmatpush.msra.mxu0 %v5789
  %5823 = vmatpush.msra.mxu0 %v5785
  %5824 = vmatpush.msra.mxu0 %v5781
  %5825 = vmatpush.msra.mxu0 %v5777
  %5826 = vmatmul.f32.gmra.mxu0 %v5799
  %v5827 = vpop.f32.mrf.mxu0
  %v5828 = vadd.f32 0.0, %v5827
  %5829 = vmatmul.f32.gmra.mxu0 %v5802
  %v5830 = vpop.f32.mrf.mxu0
  %5831 = vmatmul.f32.gmra.mxu0 %v5805
  %v5832 = vpop.f32.mrf.mxu0
  %5833 = vmatmul.f32.gmra.mxu0 %v5808
  %v5834 = vpop.f32.mrf.mxu0
  %5835 = vdwg.mxu0
  %5836 = vmatpush.msra.mxu0 0.0
  %5837 = vmatpush.msra.mxu0 0.0
  %5838 = vmatpush.msra.mxu0 0.0
  %5839 = vmatpush.msra.mxu0 0.0
  %5840 = vmatpush.msra.mxu0 0.0
  %5841 = vmatpush.msra.mxu0 0.0
  %5842 = vmatpush.msra.mxu0 0.0
  %5843 = vmatpush.msra.mxu0 0.0
  %5844 = vmatpush.msra.mxu0 0.0
  %5845 = vmatpush.msra.mxu0 0.0
  %5846 = vmatpush.msra.mxu0 0.0
  %5847 = vmatpush.msra.mxu0 0.0
  %5848 = vmatpush.msra.mxu0 %v5790
  %5849 = vmatpush.msra.mxu0 %v5786
  %5850 = vmatpush.msra.mxu0 %v5782
  %5851 = vmatpush.msra.mxu0 %v5778
  %5852 = vmatmul.f32.gmra.mxu0 %v5799
  %v5853 = vpop.f32.mrf.mxu0
  %v5854 = vadd.f32 0.0, %v5853
  %5855 = vmatmul.f32.gmra.mxu0 %v5802
  %v5856 = vpop.f32.mrf.mxu0
  %5857 = vmatmul.f32.gmra.mxu0 %v5805
  %v5858 = vpop.f32.mrf.mxu0
  %5859 = vmatmul.f32.gmra.mxu0 %v5808
  %v5860 = vpop.f32.mrf.mxu0
  %5861 = vdwg.mxu0
  %5862 = vmatpush.msra.mxu0 0.0
  %5863 = vmatpush.msra.mxu0 0.0
  %5864 = vmatpush.msra.mxu0 0.0
  %5865 = vmatpush.msra.mxu0 0.0
  %5866 = vmatpush.msra.mxu0 0.0
  %5867 = vmatpush.msra.mxu0 0.0
  %5868 = vmatpush.msra.mxu0 0.0
  %5869 = vmatpush.msra.mxu0 0.0
  %5870 = vmatpush.msra.mxu0 0.0
  %5871 = vmatpush.msra.mxu0 0.0
  %5872 = vmatpush.msra.mxu0 0.0
  %5873 = vmatpush.msra.mxu0 0.0
  %5874 = vmatpush.msra.mxu0 %v5791
  %5875 = vmatpush.msra.mxu0 %v5787
  %5876 = vmatpush.msra.mxu0 %v5783
  %5877 = vmatpush.msra.mxu0 %v5779
  %5878 = vmatmul.f32.gmra.mxu0 %v5799
  %v5879 = vpop.f32.mrf.mxu0
  %v5880 = vadd.f32 0.0, %v5879
  %5881 = vmatmul.f32.gmra.mxu0 %v5802
  %v5882 = vpop.f32.mrf.mxu0
  %5883 = vmatmul.f32.gmra.mxu0 %v5805
  %v5884 = vpop.f32.mrf.mxu0
  %5885 = vmatmul.f32.gmra.mxu0 %v5808
  %v5886 = vpop.f32.mrf.mxu0
  %5887 = vdwg.mxu0
  %5888 = vmatpush.msra.mxu0 0.0
  %5889 = vmatpush.msra.mxu0 0.0
  %5890 = vmatpush.msra.mxu0 0.0
  %5891 = vmatpush.msra.mxu0 0.0
  %5892 = vmatpush.msra.mxu0 0.0
  %5893 = vmatpush.msra.mxu0 0.0
  %5894 = vmatpush.msra.mxu0 0.0
  %5895 = vmatpush.msra.mxu0 0.0
  %5896 = vmatpush.msra.mxu0 0.0
  %5897 = vmatpush.msra.mxu0 0.0
  %5898 = vmatpush.msra.mxu0 0.0
  %5899 = vmatpush.msra.mxu0 0.0
  %5900 = vmatpush.msra.mxu0 %v5792
  %5901 = vmatpush.msra.mxu0 %v5788
  %5902 = vmatpush.msra.mxu0 %v5784
  %5903 = vmatpush.msra.mxu0 %v5780
  %5904 = vmatmul.f32.gmra.mxu0 %v5799
  %v5905 = vpop.f32.mrf.mxu0
  %v5906 = vadd.f32 0.0, %v5905
  %5907 = vmatmul.f32.gmra.mxu0 %v5802
  %v5908 = vpop.f32.mrf.mxu0
  %5909 = vmatmul.f32.gmra.mxu0 %v5805
  %v5910 = vpop.f32.mrf.mxu0
  %5911 = vmatmul.f32.gmra.mxu0 %v5808
  %v5912 = vpop.f32.mrf.mxu0
  %5913 = vdwg.mxu0
  %v5914 = vadd.f32 %v5725, %v5828
  %v5915 = vadd.f32 %v5726, %v5854
  %v5916 = vadd.f32 %v5727, %v5880
  %v5917 = vadd.f32 %v5728, %v5906
  %5918 = vrot.lane.b32.xlu0 %v4651, 112
  %v5919 = vpop.permute.xlu0 %5918
  %5920 = vrot.lane.b32.xlu0 %v4655, 112
  %v5921 = vpop.permute.xlu0 %5920
  %5922 = vrot.lane.b32.xlu0 %v4659, 112
  %v5923 = vpop.permute.xlu0 %5922
  %5924 = vrot.lane.b32.xlu0 %v4663, 112
  %v5925 = vpop.permute.xlu0 %5924
  %5926 = vrot.lane.b32.xlu0 %v4652, 112
  %v5927 = vpop.permute.xlu0 %5926
  %5928 = vrot.lane.b32.xlu0 %v4656, 112
  %v5929 = vpop.permute.xlu0 %5928
  %5930 = vrot.lane.b32.xlu0 %v4660, 112
  %v5931 = vpop.permute.xlu0 %5930
  %5932 = vrot.lane.b32.xlu0 %v4664, 112
  %v5933 = vpop.permute.xlu0 %5932
  %5934 = vrot.lane.b32.xlu0 %v4653, 112
  %v5935 = vpop.permute.xlu0 %5934
  %5936 = vrot.lane.b32.xlu0 %v4657, 112
  %v5937 = vpop.permute.xlu0 %5936
  %5938 = vrot.lane.b32.xlu0 %v4661, 112
  %v5939 = vpop.permute.xlu0 %5938
  %5940 = vrot.lane.b32.xlu0 %v4665, 112
  %v5941 = vpop.permute.xlu0 %5940
  %5942 = vrot.lane.b32.xlu0 %v4654, 112
  %v5943 = vpop.permute.xlu0 %5942
  %5944 = vrot.lane.b32.xlu0 %v4658, 112
  %v5945 = vpop.permute.xlu0 %5944
  %5946 = vrot.lane.b32.xlu0 %v4662, 112
  %v5947 = vpop.permute.xlu0 %5946
  %5948 = vrot.lane.b32.xlu0 %v4666, 112
  %v5949 = vpop.permute.xlu0 %5948
  %v5950 = vsel %vm670, %v5935, %v5943
  %v5951 = vsel %vm670, %v5937, %v5945
  %v5952 = vsel %vm670, %v5939, %v5947
  %v5953 = vsel %vm670, %v5941, %v5949
  %v5954 = vsel %vm670, %v5927, %v5935
  %v5955 = vsel %vm670, %v5929, %v5937
  %v5956 = vsel %vm670, %v5931, %v5939
  %v5957 = vsel %vm670, %v5933, %v5941
  %v5958 = vsel %vm670, %v5919, %v5927
  %v5959 = vsel %vm670, %v5921, %v5929
  %v5960 = vsel %vm670, %v5923, %v5931
  %v5961 = vsel %vm670, %v5925, %v5933
  %v5962 = vsel %vm670, %v5943, %v5919
  %v5963 = vsel %vm670, %v5945, %v5921
  %v5964 = vsel %vm670, %v5947, %v5923
  %v5965 = vsel %vm670, %v5949, %v5925
  %v5966 = vmul.f32 %v5958, %v97
  %v5967 = vmul.f32 %v5954, %v98
  %v5968 = vmul.f32 %v5950, %v99
  %v5969 = vmul.f32 %v5962, %v100
  %v5970 = vmul.f32 %v5959, %v97
  %v5971 = vmul.f32 %v5955, %v98
  %v5972 = vmul.f32 %v5951, %v99
  %v5973 = vmul.f32 %v5963, %v100
  %v5974 = vmul.f32 %v5960, %v97
  %v5975 = vmul.f32 %v5956, %v98
  %v5976 = vmul.f32 %v5952, %v99
  %v5977 = vmul.f32 %v5964, %v100
  %v5978 = vmul.f32 %v5961, %v97
  %v5979 = vmul.f32 %v5957, %v98
  %v5980 = vmul.f32 %v5953, %v99
  %v5981 = vmul.f32 %v5965, %v100
  %s5982 = scalar_lea.vmem %s5, 800
  %v5983 = vld [vmem:[%s5982] sm:$0xff]
  %v5984 = vld [vmem:[%s5982 + $0x8] sm:$0xff]
  %v5985 = vld [vmem:[%s5982 + $0x10] sm:$0xff]
  %v5986 = vld [vmem:[%s5982 + $0x18] sm:$0xff]
  %v5988 = vsel %vm921, %v5983, 0
  %v5991 = vsel %vm921, %v5984, 0
  %v5994 = vsel %vm921, %v5985, 0
  %v5997 = vsel %vm921, %v5986, 0
  %5999 = vmatpush.msra.mxu0 0.0
  %6000 = vmatpush.msra.mxu0 0.0
  %6001 = vmatpush.msra.mxu0 0.0
  %6002 = vmatpush.msra.mxu0 0.0
  %6003 = vmatpush.msra.mxu0 0.0
  %6004 = vmatpush.msra.mxu0 0.0
  %6005 = vmatpush.msra.mxu0 0.0
  %6006 = vmatpush.msra.mxu0 0.0
  %6007 = vmatpush.msra.mxu0 0.0
  %6008 = vmatpush.msra.mxu0 0.0
  %6009 = vmatpush.msra.mxu0 0.0
  %6010 = vmatpush.msra.mxu0 0.0
  %6011 = vmatpush.msra.mxu0 %v5978
  %6012 = vmatpush.msra.mxu0 %v5974
  %6013 = vmatpush.msra.mxu0 %v5970
  %6014 = vmatpush.msra.mxu0 %v5966
  %6015 = vmatmul.f32.gmra.mxu0 %v5988
  %v6016 = vpop.f32.mrf.mxu0
  %v6017 = vadd.f32 0.0, %v6016
  %6018 = vmatmul.f32.gmra.mxu0 %v5991
  %v6019 = vpop.f32.mrf.mxu0
  %6020 = vmatmul.f32.gmra.mxu0 %v5994
  %v6021 = vpop.f32.mrf.mxu0
  %6022 = vmatmul.f32.gmra.mxu0 %v5997
  %v6023 = vpop.f32.mrf.mxu0
  %6024 = vdwg.mxu0
  %6025 = vmatpush.msra.mxu0 0.0
  %6026 = vmatpush.msra.mxu0 0.0
  %6027 = vmatpush.msra.mxu0 0.0
  %6028 = vmatpush.msra.mxu0 0.0
  %6029 = vmatpush.msra.mxu0 0.0
  %6030 = vmatpush.msra.mxu0 0.0
  %6031 = vmatpush.msra.mxu0 0.0
  %6032 = vmatpush.msra.mxu0 0.0
  %6033 = vmatpush.msra.mxu0 0.0
  %6034 = vmatpush.msra.mxu0 0.0
  %6035 = vmatpush.msra.mxu0 0.0
  %6036 = vmatpush.msra.mxu0 0.0
  %6037 = vmatpush.msra.mxu0 %v5979
  %6038 = vmatpush.msra.mxu0 %v5975
  %6039 = vmatpush.msra.mxu0 %v5971
  %6040 = vmatpush.msra.mxu0 %v5967
  %6041 = vmatmul.f32.gmra.mxu0 %v5988
  %v6042 = vpop.f32.mrf.mxu0
  %v6043 = vadd.f32 0.0, %v6042
  %6044 = vmatmul.f32.gmra.mxu0 %v5991
  %v6045 = vpop.f32.mrf.mxu0
  %6046 = vmatmul.f32.gmra.mxu0 %v5994
  %v6047 = vpop.f32.mrf.mxu0
  %6048 = vmatmul.f32.gmra.mxu0 %v5997
  %v6049 = vpop.f32.mrf.mxu0
  %6050 = vdwg.mxu0
  %6051 = vmatpush.msra.mxu0 0.0
  %6052 = vmatpush.msra.mxu0 0.0
  %6053 = vmatpush.msra.mxu0 0.0
  %6054 = vmatpush.msra.mxu0 0.0
  %6055 = vmatpush.msra.mxu0 0.0
  %6056 = vmatpush.msra.mxu0 0.0
  %6057 = vmatpush.msra.mxu0 0.0
  %6058 = vmatpush.msra.mxu0 0.0
  %6059 = vmatpush.msra.mxu0 0.0
  %6060 = vmatpush.msra.mxu0 0.0
  %6061 = vmatpush.msra.mxu0 0.0
  %6062 = vmatpush.msra.mxu0 0.0
  %6063 = vmatpush.msra.mxu0 %v5980
  %6064 = vmatpush.msra.mxu0 %v5976
  %6065 = vmatpush.msra.mxu0 %v5972
  %6066 = vmatpush.msra.mxu0 %v5968
  %6067 = vmatmul.f32.gmra.mxu0 %v5988
  %v6068 = vpop.f32.mrf.mxu0
  %v6069 = vadd.f32 0.0, %v6068
  %6070 = vmatmul.f32.gmra.mxu0 %v5991
  %v6071 = vpop.f32.mrf.mxu0
  %6072 = vmatmul.f32.gmra.mxu0 %v5994
  %v6073 = vpop.f32.mrf.mxu0
  %6074 = vmatmul.f32.gmra.mxu0 %v5997
  %v6075 = vpop.f32.mrf.mxu0
  %6076 = vdwg.mxu0
  %6077 = vmatpush.msra.mxu0 0.0
  %6078 = vmatpush.msra.mxu0 0.0
  %6079 = vmatpush.msra.mxu0 0.0
  %6080 = vmatpush.msra.mxu0 0.0
  %6081 = vmatpush.msra.mxu0 0.0
  %6082 = vmatpush.msra.mxu0 0.0
  %6083 = vmatpush.msra.mxu0 0.0
  %6084 = vmatpush.msra.mxu0 0.0
  %6085 = vmatpush.msra.mxu0 0.0
  %6086 = vmatpush.msra.mxu0 0.0
  %6087 = vmatpush.msra.mxu0 0.0
  %6088 = vmatpush.msra.mxu0 0.0
  %6089 = vmatpush.msra.mxu0 %v5981
  %6090 = vmatpush.msra.mxu0 %v5977
  %6091 = vmatpush.msra.mxu0 %v5973
  %6092 = vmatpush.msra.mxu0 %v5969
  %6093 = vmatmul.f32.gmra.mxu0 %v5988
  %v6094 = vpop.f32.mrf.mxu0
  %v6095 = vadd.f32 0.0, %v6094
  %6096 = vmatmul.f32.gmra.mxu0 %v5991
  %v6097 = vpop.f32.mrf.mxu0
  %6098 = vmatmul.f32.gmra.mxu0 %v5994
  %v6099 = vpop.f32.mrf.mxu0
  %6100 = vmatmul.f32.gmra.mxu0 %v5997
  %v6101 = vpop.f32.mrf.mxu0
  %6102 = vdwg.mxu0
  %v6103 = vadd.f32 %v5914, %v6017
  %v6104 = vadd.f32 %v5915, %v6043
  %v6105 = vadd.f32 %v5916, %v6069
  %v6106 = vadd.f32 %v5917, %v6095
  %6107 = vrot.lane.b32.xlu0 %v4651, 111
  %v6108 = vpop.permute.xlu0 %6107
  %6109 = vrot.lane.b32.xlu0 %v4655, 111
  %v6110 = vpop.permute.xlu0 %6109
  %6111 = vrot.lane.b32.xlu0 %v4659, 111
  %v6112 = vpop.permute.xlu0 %6111
  %6113 = vrot.lane.b32.xlu0 %v4663, 111
  %v6114 = vpop.permute.xlu0 %6113
  %6115 = vrot.lane.b32.xlu0 %v4652, 111
  %v6116 = vpop.permute.xlu0 %6115
  %6117 = vrot.lane.b32.xlu0 %v4656, 111
  %v6118 = vpop.permute.xlu0 %6117
  %6119 = vrot.lane.b32.xlu0 %v4660, 111
  %v6120 = vpop.permute.xlu0 %6119
  %6121 = vrot.lane.b32.xlu0 %v4664, 111
  %v6122 = vpop.permute.xlu0 %6121
  %6123 = vrot.lane.b32.xlu0 %v4653, 111
  %v6124 = vpop.permute.xlu0 %6123
  %6125 = vrot.lane.b32.xlu0 %v4657, 111
  %v6126 = vpop.permute.xlu0 %6125
  %6127 = vrot.lane.b32.xlu0 %v4661, 111
  %v6128 = vpop.permute.xlu0 %6127
  %6129 = vrot.lane.b32.xlu0 %v4665, 111
  %v6130 = vpop.permute.xlu0 %6129
  %6131 = vrot.lane.b32.xlu0 %v4654, 111
  %v6132 = vpop.permute.xlu0 %6131
  %6133 = vrot.lane.b32.xlu0 %v4658, 111
  %v6134 = vpop.permute.xlu0 %6133
  %6135 = vrot.lane.b32.xlu0 %v4662, 111
  %v6136 = vpop.permute.xlu0 %6135
  %6137 = vrot.lane.b32.xlu0 %v4666, 111
  %v6138 = vpop.permute.xlu0 %6137
  %v6139 = vsel %vm739, %v6124, %v6132
  %v6140 = vsel %vm739, %v6126, %v6134
  %v6141 = vsel %vm739, %v6128, %v6136
  %v6142 = vsel %vm739, %v6130, %v6138
  %v6143 = vsel %vm739, %v6116, %v6124
  %v6144 = vsel %vm739, %v6118, %v6126
  %v6145 = vsel %vm739, %v6120, %v6128
  %v6146 = vsel %vm739, %v6122, %v6130
  %v6147 = vsel %vm739, %v6108, %v6116
  %v6148 = vsel %vm739, %v6110, %v6118
  %v6149 = vsel %vm739, %v6112, %v6120
  %v6150 = vsel %vm739, %v6114, %v6122
  %v6151 = vsel %vm739, %v6132, %v6108
  %v6152 = vsel %vm739, %v6134, %v6110
  %v6153 = vsel %vm739, %v6136, %v6112
  %v6154 = vsel %vm739, %v6138, %v6114
  %v6155 = vmul.f32 %v6147, %v106
  %v6156 = vmul.f32 %v6143, %v107
  %v6157 = vmul.f32 %v6139, %v108
  %v6158 = vmul.f32 %v6151, %v109
  %v6159 = vmul.f32 %v6148, %v106
  %v6160 = vmul.f32 %v6144, %v107
  %v6161 = vmul.f32 %v6140, %v108
  %v6162 = vmul.f32 %v6152, %v109
  %v6163 = vmul.f32 %v6149, %v106
  %v6164 = vmul.f32 %v6145, %v107
  %v6165 = vmul.f32 %v6141, %v108
  %v6166 = vmul.f32 %v6153, %v109
  %v6167 = vmul.f32 %v6150, %v106
  %v6168 = vmul.f32 %v6146, %v107
  %v6169 = vmul.f32 %v6142, %v108
  %v6170 = vmul.f32 %v6154, %v109
  %s6171 = scalar_lea.vmem %s5, 832
  %v6172 = vld [vmem:[%s6171] sm:$0xff]
  %v6173 = vld [vmem:[%s6171 + $0x8] sm:$0xff]
  %v6174 = vld [vmem:[%s6171 + $0x10] sm:$0xff]
  %v6175 = vld [vmem:[%s6171 + $0x18] sm:$0xff]
  %v6177 = vsel %vm921, %v6172, 0
  %v6180 = vsel %vm921, %v6173, 0
  %v6183 = vsel %vm921, %v6174, 0
  %v6186 = vsel %vm921, %v6175, 0
  %6188 = vmatpush.msra.mxu0 0.0
  %6189 = vmatpush.msra.mxu0 0.0
  %6190 = vmatpush.msra.mxu0 0.0
  %6191 = vmatpush.msra.mxu0 0.0
  %6192 = vmatpush.msra.mxu0 0.0
  %6193 = vmatpush.msra.mxu0 0.0
  %6194 = vmatpush.msra.mxu0 0.0
  %6195 = vmatpush.msra.mxu0 0.0
  %6196 = vmatpush.msra.mxu0 0.0
  %6197 = vmatpush.msra.mxu0 0.0
  %6198 = vmatpush.msra.mxu0 0.0
  %6199 = vmatpush.msra.mxu0 0.0
  %6200 = vmatpush.msra.mxu0 %v6167
  %6201 = vmatpush.msra.mxu0 %v6163
  %6202 = vmatpush.msra.mxu0 %v6159
  %6203 = vmatpush.msra.mxu0 %v6155
  %6204 = vmatmul.f32.gmra.mxu0 %v6177
  %v6205 = vpop.f32.mrf.mxu0
  %v6206 = vadd.f32 0.0, %v6205
  %6207 = vmatmul.f32.gmra.mxu0 %v6180
  %v6208 = vpop.f32.mrf.mxu0
  %6209 = vmatmul.f32.gmra.mxu0 %v6183
  %v6210 = vpop.f32.mrf.mxu0
  %6211 = vmatmul.f32.gmra.mxu0 %v6186
  %v6212 = vpop.f32.mrf.mxu0
  %6213 = vdwg.mxu0
  %6214 = vmatpush.msra.mxu0 0.0
  %6215 = vmatpush.msra.mxu0 0.0
  %6216 = vmatpush.msra.mxu0 0.0
  %6217 = vmatpush.msra.mxu0 0.0
  %6218 = vmatpush.msra.mxu0 0.0
  %6219 = vmatpush.msra.mxu0 0.0
  %6220 = vmatpush.msra.mxu0 0.0
  %6221 = vmatpush.msra.mxu0 0.0
  %6222 = vmatpush.msra.mxu0 0.0
  %6223 = vmatpush.msra.mxu0 0.0
  %6224 = vmatpush.msra.mxu0 0.0
  %6225 = vmatpush.msra.mxu0 0.0
  %6226 = vmatpush.msra.mxu0 %v6168
  %6227 = vmatpush.msra.mxu0 %v6164
  %6228 = vmatpush.msra.mxu0 %v6160
  %6229 = vmatpush.msra.mxu0 %v6156
  %6230 = vmatmul.f32.gmra.mxu0 %v6177
  %v6231 = vpop.f32.mrf.mxu0
  %v6232 = vadd.f32 0.0, %v6231
  %6233 = vmatmul.f32.gmra.mxu0 %v6180
  %v6234 = vpop.f32.mrf.mxu0
  %6235 = vmatmul.f32.gmra.mxu0 %v6183
  %v6236 = vpop.f32.mrf.mxu0
  %6237 = vmatmul.f32.gmra.mxu0 %v6186
  %v6238 = vpop.f32.mrf.mxu0
  %6239 = vdwg.mxu0
  %6240 = vmatpush.msra.mxu0 0.0
  %6241 = vmatpush.msra.mxu0 0.0
  %6242 = vmatpush.msra.mxu0 0.0
  %6243 = vmatpush.msra.mxu0 0.0
  %6244 = vmatpush.msra.mxu0 0.0
  %6245 = vmatpush.msra.mxu0 0.0
  %6246 = vmatpush.msra.mxu0 0.0
  %6247 = vmatpush.msra.mxu0 0.0
  %6248 = vmatpush.msra.mxu0 0.0
  %6249 = vmatpush.msra.mxu0 0.0
  %6250 = vmatpush.msra.mxu0 0.0
  %6251 = vmatpush.msra.mxu0 0.0
  %6252 = vmatpush.msra.mxu0 %v6169
  %6253 = vmatpush.msra.mxu0 %v6165
  %6254 = vmatpush.msra.mxu0 %v6161
  %6255 = vmatpush.msra.mxu0 %v6157
  %6256 = vmatmul.f32.gmra.mxu0 %v6177
  %v6257 = vpop.f32.mrf.mxu0
  %v6258 = vadd.f32 0.0, %v6257
  %6259 = vmatmul.f32.gmra.mxu0 %v6180
  %v6260 = vpop.f32.mrf.mxu0
  %6261 = vmatmul.f32.gmra.mxu0 %v6183
  %v6262 = vpop.f32.mrf.mxu0
  %6263 = vmatmul.f32.gmra.mxu0 %v6186
  %v6264 = vpop.f32.mrf.mxu0
  %6265 = vdwg.mxu0
  %6266 = vmatpush.msra.mxu0 0.0
  %6267 = vmatpush.msra.mxu0 0.0
  %6268 = vmatpush.msra.mxu0 0.0
  %6269 = vmatpush.msra.mxu0 0.0
  %6270 = vmatpush.msra.mxu0 0.0
  %6271 = vmatpush.msra.mxu0 0.0
  %6272 = vmatpush.msra.mxu0 0.0
  %6273 = vmatpush.msra.mxu0 0.0
  %6274 = vmatpush.msra.mxu0 0.0
  %6275 = vmatpush.msra.mxu0 0.0
  %6276 = vmatpush.msra.mxu0 0.0
  %6277 = vmatpush.msra.mxu0 0.0
  %6278 = vmatpush.msra.mxu0 %v6170
  %6279 = vmatpush.msra.mxu0 %v6166
  %6280 = vmatpush.msra.mxu0 %v6162
  %6281 = vmatpush.msra.mxu0 %v6158
  %6282 = vmatmul.f32.gmra.mxu0 %v6177
  %v6283 = vpop.f32.mrf.mxu0
  %v6284 = vadd.f32 0.0, %v6283
  %6285 = vmatmul.f32.gmra.mxu0 %v6180
  %v6286 = vpop.f32.mrf.mxu0
  %6287 = vmatmul.f32.gmra.mxu0 %v6183
  %v6288 = vpop.f32.mrf.mxu0
  %6289 = vmatmul.f32.gmra.mxu0 %v6186
  %v6290 = vpop.f32.mrf.mxu0
  %6291 = vdwg.mxu0
  %v6292 = vadd.f32 %v6103, %v6206
  %v6293 = vadd.f32 %v6104, %v6232
  %v6294 = vadd.f32 %v6105, %v6258
  %v6295 = vadd.f32 %v6106, %v6284
  %s6296 = scalar_lea.vmem %s6, 64
  %v6297 = vld [vmem:[%s6296] sm:$0xff]
  %6299 = vset.pattern.permute.xlu0 0
  %6300 = vperm.xlu0 %6299, %v6297
  %v6301 = vpop.permute.xlu0 %6300
  %v6303 = vadd.f32 %v6292, %v6301
  %v6304 = vadd.f32 %v6293, %v6301
  %v6305 = vadd.f32 %v6294, %v6301
  %v6306 = vadd.f32 %v6295, %v6301
  %vm6307 = vcmp.gt.f32.partialorder %v6303, 0.0
  %vm6308 = vcmp.gt.f32.partialorder %v6304, 0.0
  %vm6309 = vcmp.gt.f32.partialorder %v6305, 0.0
  %vm6310 = vcmp.gt.f32.partialorder %v6306, 0.0
  %v6311 = vmul.f32 %v6303, 0.2
  %v6312 = vmul.f32 %v6304, 0.2
  %v6313 = vmul.f32 %v6305, 0.2
  %v6314 = vmul.f32 %v6306, 0.2
  %v6315 = vsel %vm6307, %v6303, %v6311
  %v6316 = vsel %vm6308, %v6304, %v6312
  %v6317 = vsel %vm6309, %v6305, %v6313
  %v6318 = vsel %vm6310, %v6306, %v6314
  %v6319 = vsub.f32 0.0, %v6315
  %v6320 = vsub.f32 0.0, %v6316
  %v6321 = vsub.f32 0.0, %v6317
  %v6322 = vsub.f32 0.0, %v6318
  %v6323 = vmul.f32 %v6319, 1.442695
  %v6324 = vpow.pop %v6323
  %v6325 = vmul.f32 %v6320, 1.442695
  %v6326 = vpow.pop %v6325
  %v6327 = vmul.f32 %v6321, 1.442695
  %v6328 = vpow.pop %v6327
  %v6329 = vmul.f32 %v6322, 1.442695
  %v6330 = vpow.pop %v6329
  %v6331 = vadd.f32 %v6324, 1.0
  %v6332 = vadd.f32 %v6326, 1.0
  %v6333 = vadd.f32 %v6328, 1.0
  %v6334 = vadd.f32 %v6330, 1.0
  %v6335 = vrcp.pop %v6331
  %v6336 = vmul.f32 %v6331, %v6335
  %v6337 = vsub.f32 1.0, %v6336
  %v6338 = vmul.f32 %v6335, %v6337
  %v6339 = vadd.f32 %v6335, %v6338
  %vm6340 = vweird.f32 %v6331
  %vm6341 = vweird.f32 %v6335
  %vm6342 = vmor %vm6340, %vm6341
  %v6343 = vsel %vm6342, %v6335, %v6339
  %v6344 = vand.u32 2147483647, %v6331
  %vm6345 = vcmp.eq.f32.partialorder %v6344, 8.507059e+37
  %v6346 = vand.u32 %v6331, 2147483648
  %v6347 = vor.u32 1.1754944e-38, %v6346
  %v6348 = vsel %vm6345, %v6347, %v6343
  %v6349 = vmul.f32 1.0, %v6348
  %v6350 = vrcp.pop %v6332
  %v6351 = vmul.f32 %v6332, %v6350
  %v6352 = vsub.f32 1.0, %v6351
  %v6353 = vmul.f32 %v6350, %v6352
  %v6354 = vadd.f32 %v6350, %v6353
  %vm6355 = vweird.f32 %v6332
  %vm6356 = vweird.f32 %v6350
  %vm6357 = vmor %vm6355, %vm6356
  %v6358 = vsel %vm6357, %v6350, %v6354
  %v6359 = vand.u32 2147483647, %v6332
  %vm6360 = vcmp.eq.f32.partialorder %v6359, 8.507059e+37
  %v6361 = vand.u32 %v6332, 2147483648
  %v6362 = vor.u32 1.1754944e-38, %v6361
  %v6363 = vsel %vm6360, %v6362, %v6358
  %v6364 = vmul.f32 1.0, %v6363
  %v6365 = vrcp.pop %v6333
  %v6366 = vmul.f32 %v6333, %v6365
  %v6367 = vsub.f32 1.0, %v6366
  %v6368 = vmul.f32 %v6365, %v6367
  %v6369 = vadd.f32 %v6365, %v6368
  %vm6370 = vweird.f32 %v6333
  %vm6371 = vweird.f32 %v6365
  %vm6372 = vmor %vm6370, %vm6371
  %v6373 = vsel %vm6372, %v6365, %v6369
  %v6374 = vand.u32 2147483647, %v6333
  %vm6375 = vcmp.eq.f32.partialorder %v6374, 8.507059e+37
  %v6376 = vand.u32 %v6333, 2147483648
  %v6377 = vor.u32 1.1754944e-38, %v6376
  %v6378 = vsel %vm6375, %v6377, %v6373
  %v6379 = vmul.f32 1.0, %v6378
  %v6380 = vrcp.pop %v6334
  %v6381 = vmul.f32 %v6334, %v6380
  %v6382 = vsub.f32 1.0, %v6381
  %v6383 = vmul.f32 %v6380, %v6382
  %v6384 = vadd.f32 %v6380, %v6383
  %vm6385 = vweird.f32 %v6334
  %vm6386 = vweird.f32 %v6380
  %vm6387 = vmor %vm6385, %vm6386
  %v6388 = vsel %vm6387, %v6380, %v6384
  %v6389 = vand.u32 2147483647, %v6334
  %vm6390 = vcmp.eq.f32.partialorder %v6389, 8.507059e+37
  %v6391 = vand.u32 %v6334, 2147483648
  %v6392 = vor.u32 1.1754944e-38, %v6391
  %v6393 = vsel %vm6390, %v6392, %v6388
  %v6394 = vmul.f32 1.0, %v6393
  %v6399 = vrot.slane %v6364, 7
  %v6400 = vrot.slane %v6379, 6
  %v6401 = vrot.slane %v6394, 5
  %vm6402 = vcmask 1040384
  %v6403 = vsel %vm6402, %v6349, %v6399
  %vm6404 = vcmask 1042434
  %v6405 = vsel %vm6404, %v6400, %v6401
  %vm6406 = vcmask 1041408
  %v6407 = vsel %vm6406, %v6403, %v6405
  %v6409 = vlaneseq
  %vm6410 = vcmp.ge.s32.totalorder %v6409, 0
  %vm6411 = vcmp.lt.s32.totalorder %v6409, 512
  %vm6412 = vmand %vm6410, %vm6411
  %6413 = vst.msk [vmem:[%s7] sm:$0xf] %vm6412, %v6407
  // Predicated region
  $region30: #{illumination_adjust_net.1} parent=0 // pred_check
    _
  $region31: #{illumination_adjust_net.1} parent=0 // pred_check_branch
    %6415 = sbr.rel (0) target = $region33
  $region32: #{illumination_adjust_net.1} parent=0 // pred_region
    _
  $region33: #{illumination_adjust_net.1} parent=0 // pred_fallthru
    _
  // Predicated region
  $region34: #{illumination_adjust_net.1} parent=0 // pred_check
    _
  $region35: #{illumination_adjust_net.1} parent=0 // pred_check_branch
    %6417 = sbr.rel (0) target = $region37
  $region36: #{illumination_adjust_net.1} parent=0 // pred_region
    _
  $region37: #{illumination_adjust_net.1} parent=0 // pred_fallthru
    _

</llo_original>
